<compile_context>
chip_gen: v7x
topology: tpu7x:2x2x1
jax: 0.10.0
libtpu: 0.0.40
codegen_flags: <defaults>
</compile_context>

<pallas_src>
import jax
import jax.numpy as jnp
from jax.experimental import pallas as pl
from jax.experimental.pallas import tpu as pltpu

N_NODES = 16        # nodes per graph
N_FEAT = 8          # dataset_num_node_features
F_PAD = 16          # feature dim padded to the bf16 sublane tile
N_HIDDEN = 32       # n_hidden_channels
N_CLASSES = 4       # dataset_num_classes
BT = 64             # graphs processed per grid step (keeps grid >= 2 on the demo batch)

# Row offsets inside the packed bf16 weight slab (aligned to the 16-row bf16 sublane tile).
W0_ROW, W1_ROW, W2L_ROW, W_ROWS = 0, 16, 48, 80
B_ROWS = 8          # f32 bias slab rows (row0=b0, row1=b1, row2=fused bias, rest zero)
NEG_BIG = -1e30     # bias for padded class lanes -> exp() == 0 under softmax


def gcnflat_kernel(a_ref, x_ref, p_ref, w_ref, b_ref, o_ref):
    # Resident packed parameters (single DMA, constant index_map).
    w0 = w_ref[W0_ROW:W0_ROW + F_PAD, :]              # [16, H]     bf16 (rows >= F are zero)
    w1 = w_ref[W1_ROW:W1_ROW + N_HIDDEN, :]           # [H, H]      bf16
    w2wl = w_ref[W2L_ROW:W2L_ROW + N_HIDDEN, :]       # [H, Hpad]   bf16 (cols >= C are zero)
    b0 = b_ref[0:1, :]                                 # [1, H]      f32
    b1 = b_ref[1:2, :]                                 # [1, H]      f32
    bf = b_ref[2:3, :]                                 # [1, Hpad]   f32 (cols >= C are -1e30)

    a_blk = a_ref[...]                                 # [BT*N, BT*N] bf16 block-diagonal adjacency
    x = x_ref[...]                                     # [BT*N, F_PAD] bf16 (flattened, zero-padded)

    # ---- conv0: h = relu(A @ (x @ W0) + b0) ----  (one block-diag matmul for all BT graphs)
    z = jnp.dot(x, w0, preferred_element_type=jnp.float32).astype(jnp.bfloat16)     # [BT*N, H]
    h = jnp.dot(a_blk, z, preferred_element_type=jnp.float32)                        # [BT*N, H] f32
    h = jnp.maximum(h + b0, 0.0).astype(jnp.bfloat16)

    # ---- conv1: h = relu(A @ (h @ W1) + b1) ----
    z = jnp.dot(h, w1, preferred_element_type=jnp.float32).astype(jnp.bfloat16)
    h = jnp.dot(a_blk, z, preferred_element_type=jnp.float32)
    h = jnp.maximum(h + b1, 0.0).astype(jnp.bfloat16)

    # ---- fused conv2 + global_mean_pool + Linear ----
    # pooled[g] = mean_rows(A_g) @ h_g  via one block-structured pooling matmul.
    pooled = jnp.dot(p_ref[...], h, preferred_element_type=jnp.float32).astype(jnp.bfloat16)  # [BT, H]
    logits = jnp.dot(pooled, w2wl, preferred_element_type=jnp.float32) + bf                    # [BT, Hpad]

    # softmax over lanes; padded class lanes carry -1e30 bias -> exp == 0 exactly.
    m = jnp.max(logits, axis=1, keepdims=True)
    e = jnp.exp(logits - m)
    s = jnp.sum(e, axis=1, keepdims=True)
    o_ref[...] = e * pl.reciprocal(s, approx=True)


def pack_params(params):
    """Fold conv2+pool+linear algebra and pack everything into two VMEM-resident slabs."""
    w0, b0, w1, b1, w2, b2, wl, bl = params
    w2wl = jnp.dot(w2, wl)                                  # [H, C]
    bfused = jnp.dot(b2, wl) + bl                           # [1, C]

    w_slab = jnp.zeros((W_ROWS, N_HIDDEN), jnp.float32)
    w_slab = w_slab.at[W0_ROW:W0_ROW + N_FEAT, :].set(w0)   # rows N_FEAT..F_PAD stay zero
    w_slab = w_slab.at[W1_ROW:W1_ROW + N_HIDDEN, :].set(w1)
    w_slab = w_slab.at[W2L_ROW:W2L_ROW + N_HIDDEN, :N_CLASSES].set(w2wl)

    b_slab = jnp.zeros((B_ROWS, N_HIDDEN), jnp.float32)
    b_slab = b_slab.at[0, :].set(b0[0])
    b_slab = b_slab.at[1, :].set(b1[0])
    b_slab = b_slab.at[2, :].set(jnp.full((N_HIDDEN,), NEG_BIG, jnp.float32))
    b_slab = b_slab.at[2, :N_CLASSES].set(bfused[0])
    return w_slab.astype(jnp.bfloat16), b_slab


def gcnflat_forward(a_norm, x, params):
    """a_norm: [B, N, N] normalized dense adjacency; x: [B, N, F] node features."""
    B, N, _ = a_norm.shape
    assert N == N_NODES and B % BT == 0, "demo requires B % BT == 0"
    T = B // BT
    w_slab, b_slab = pack_params(params)

    # Block-diagonal adjacency per tile of BT graphs: [B*N, BT*N] bf16 (off-diagonal exact zeros).
    a_bf = a_norm.astype(jnp.bfloat16).reshape(T, BT, N, N)
    eye_bt = jnp.eye(BT, dtype=jnp.bfloat16)
    a_blk = jnp.einsum('tgij,gh->tgihj', a_bf, eye_bt).reshape(B * N, BT * N)

    # Block-structured mean-pool matrix: row g holds mean over rows of A_g in columns g*N:(g+1)*N.
    ra = jnp.mean(a_norm, axis=1)                                           # [B, N] f32
    pool_mat = jnp.einsum('tgn,gh->tghn', ra.reshape(T, BT, N),
                          jnp.eye(BT, dtype=ra.dtype)).reshape(B, BT * N).astype(jnp.bfloat16)

    # Flattened, K-padded node features.
    x_pad = jnp.zeros((B * N, F_PAD), jnp.bfloat16)
    x_pad = x_pad.at[:, :N_FEAT].set(x.reshape(B * N, N_FEAT).astype(jnp.bfloat16))

    out_padded = pl.pallas_call(
        gcnflat_kernel,
        out_shape=jax.ShapeDtypeStruct((B, N_HIDDEN), jnp.float32),
        grid=(T,),
        in_specs=[
            pl.BlockSpec((BT * N_NODES, BT * N_NODES), lambda g: (g, 0)),   # block-diag adjacency
            pl.BlockSpec((BT * N_NODES, F_PAD), lambda g: (g, 0)),          # node features
            pl.BlockSpec((BT, BT * N_NODES), lambda g: (g, 0)),             # pooling matrix
            pl.BlockSpec((W_ROWS, N_HIDDEN), lambda g: (0, 0)),             # resident weight slab
            pl.BlockSpec((B_ROWS, N_HIDDEN), lambda g: (0, 0)),             # resident bias slab
        ],
        out_specs=pl.BlockSpec((BT, N_HIDDEN), lambda g: (g, 0)),
        compiler_params=pltpu.CompilerParams(dimension_semantics=("parallel",)),
    )(a_blk, x_pad, pool_mat, w_slab, b_slab)
    return out_padded[:, :N_CLASSES]


def gcnflat_reference(a_norm, x, params):
    """Pure-JAX f32 reference of the original module's forward (eval mode)."""
    w0, b0, w1, b1, w2, b2, wl, bl = params
    h = jnp.maximum(jnp.einsum('bij,bjf->bif', a_norm, x @ w0) + b0, 0.0)
    h = jnp.maximum(jnp.einsum('bij,bjf->bif', a_norm, h @ w1) + b1, 0.0)
    h = jnp.einsum('bij,bjf->bif', a_norm, h @ w2) + b2
    pooled = jnp.mean(h, axis=1)                    # global_mean_pool, one graph per batch slot
    logits = pooled @ wl + bl
    return jax.nn.softmax(logits, axis=1)


def init_params(key):
    def glorot(key, shape):
        fan_in, fan_out = shape
        lim = jnp.sqrt(6.0 / (fan_in + fan_out))
        return jax.random.uniform(key, shape, jnp.float32, -lim, lim)

    ks = jax.random.split(key, 5)
    w0 = glorot(ks[0], (N_FEAT, N_HIDDEN))
    b0 = jnp.zeros((1, N_HIDDEN), jnp.float32)
    w1 = glorot(ks[1], (N_HIDDEN, N_HIDDEN))
    b1 = jnp.zeros((1, N_HIDDEN), jnp.float32)
    w2 = glorot(ks[2], (N_HIDDEN, N_HIDDEN))
    b2 = jnp.zeros((1, N_HIDDEN), jnp.float32)
    wl = glorot(ks[3], (N_HIDDEN, N_CLASSES))
    bl = jax.random.uniform(ks[4], (1, N_CLASSES), jnp.float32,
                            -1.0 / jnp.sqrt(N_HIDDEN), 1.0 / jnp.sqrt(N_HIDDEN))
    return (w0, b0, w1, b1, w2, b2, wl, bl)


if __name__ == "__main__":
    key = jax.random.PRNGKey(0)
    k_x, k_a, k_p = jax.random.split(key, 3)

    B = 128  # graphs in the batch -> 2 grid steps of 64 graphs (keeps both v7x TCs busy)

    # Deterministic node features.
    x = jax.random.normal(k_x, (B, N_NODES, N_FEAT), jnp.float32)

    # Deterministic random undirected graphs -> dense gcn_norm adjacency (A+I, D^-1/2 A_hat D^-1/2).
    u = jax.random.uniform(k_a, (B, N_NODES, N_NODES))
    adj = (u < 0.25).astype(jnp.float32)
    adj = jnp.maximum(adj, jnp.swapaxes(adj, 1, 2))          # symmetrize (undirected edges)
    eye = jnp.eye(N_NODES, dtype=jnp.float32)
    adj = adj * (1.0 - eye) + eye                            # self loops, weight 1 (improved=False)
    deg = jnp.sum(adj, axis=2)
    dinv = 1.0 / jnp.sqrt(deg)                               # deg >= 1 thanks to self loops
    a_norm = dinv[:, :, None] * adj * dinv[:, None, :]

    params = init_params(k_p)

    out = jax.jit(gcnflat_forward)(a_norm, x, params)
    out = jax.block_until_ready(out)

    ref = gcnflat_reference(a_norm, x, params)

    assert out.shape == (B, N_CLASSES)
    assert bool(jnp.all(jnp.isfinite(out)))
    assert bool(jnp.allclose(jnp.sum(out, axis=1), 1.0, atol=1e-2))
    assert bool(jnp.allclose(out, ref, atol=5e-2))
    print("KERNEL_OK")
</pallas_src>

<mosaic_0001>
module attributes {stable_mosaic.version = 11 : i64} {
  func.func @gcnflat_kernel(%arg0: i32, %arg1: memref<1024x1024xbf16, #tpu.memory_space<vmem>>, %arg2: memref<1024x16xbf16, #tpu.memory_space<vmem>>, %arg3: memref<64x1024xbf16, #tpu.memory_space<vmem>>, %arg4: memref<80x32xbf16, #tpu.memory_space<vmem>>, %arg5: memref<8x32xf32, #tpu.memory_space<vmem>>, %arg6: memref<64x32xf32, #tpu.memory_space<vmem>>) attributes {dimension_semantics = [#tpu.dimension_semantics<parallel>], iteration_bounds = array<i64: 2>, scalar_prefetch = 0 : i64, scratch_operands = 0 : i64, tpu.core_type = #tpu.core_type<tc>, window_params = [{transform_indices = @transform_0, window_bounds = array<i64: 1024, 1024>}, {transform_indices = @transform_1, window_bounds = array<i64: 1024, 16>}, {transform_indices = @transform_2, window_bounds = array<i64: 64, 1024>}, {pipeline_mode = #tpu.pipeline_mode<synchronous>, transform_indices = @transform_3, window_bounds = array<i64: 80, 32>}, {pipeline_mode = #tpu.pipeline_mode<synchronous>, transform_indices = @transform_4, window_bounds = array<i64: 8, 32>}, {transform_indices = @transform_5, window_bounds = array<i64: 64, 32>}]} {
    %c0 = arith.constant 0 : index
    %c0_0 = arith.constant 0 : index
    %0 = vector.load %arg4[%c0, %c0_0] : memref<80x32xbf16, #tpu.memory_space<vmem>>, vector<16x32xbf16>
    %c16 = arith.constant 16 : index
    %c0_1 = arith.constant 0 : index
    %1 = vector.load %arg4[%c16, %c0_1] : memref<80x32xbf16, #tpu.memory_space<vmem>>, vector<32x32xbf16>
    %c48 = arith.constant 48 : index
    %c0_2 = arith.constant 0 : index
    %2 = vector.load %arg4[%c48, %c0_2] : memref<80x32xbf16, #tpu.memory_space<vmem>>, vector<32x32xbf16>
    %c0_3 = arith.constant 0 : index
    %c0_4 = arith.constant 0 : index
    %3 = vector.load %arg5[%c0_3, %c0_4] : memref<8x32xf32, #tpu.memory_space<vmem>>, vector<1x32xf32>
    %c1 = arith.constant 1 : index
    %c0_5 = arith.constant 0 : index
    %4 = vector.load %arg5[%c1, %c0_5] : memref<8x32xf32, #tpu.memory_space<vmem>>, vector<1x32xf32>
    %c2 = arith.constant 2 : index
    %c0_6 = arith.constant 0 : index
    %5 = vector.load %arg5[%c2, %c0_6] : memref<8x32xf32, #tpu.memory_space<vmem>>, vector<1x32xf32>
    %c0_7 = arith.constant 0 : index
    %c0_8 = arith.constant 0 : index
    %6 = vector.load %arg1[%c0_7, %c0_8] : memref<1024x1024xbf16, #tpu.memory_space<vmem>>, vector<1024x1024xbf16>
    %c0_9 = arith.constant 0 : index
    %c0_10 = arith.constant 0 : index
    %7 = vector.load %arg2[%c0_9, %c0_10] : memref<1024x16xbf16, #tpu.memory_space<vmem>>, vector<1024x16xbf16>
    %cst = arith.constant dense<0.000000e+00> : vector<1024x32xf32>
    %8 = tpu.matmul %7, %0, %cst {dimension_numbers = #tpu.dot_dimension_numbers<[1], [0], [0], [1], [0, 0, 1, 1], [], []>} : vector<1024x16xbf16>, vector<16x32xbf16>, vector<1024x32xf32> -> vector<1024x32xf32>
    %9 = arith.truncf %8 : vector<1024x32xf32> to vector<1024x32xbf16>
    %cst_11 = arith.constant dense<0.000000e+00> : vector<1024x32xf32>
    %10 = tpu.matmul %6, %9, %cst_11 {dimension_numbers = #tpu.dot_dimension_numbers<[1], [0], [0], [1], [0, 0, 1, 1], [], []>} : vector<1024x1024xbf16>, vector<1024x32xbf16>, vector<1024x32xf32> -> vector<1024x32xf32>
    %11 = vector.broadcast %3 : vector<1x32xf32> to vector<1024x32xf32>
    %12 = arith.addf %10, %11 : vector<1024x32xf32>
    %cst_12 = arith.constant 0.000000e+00 : f32
    %13 = vector.broadcast %cst_12 : f32 to vector<1024x32xf32>
    %14 = arith.maximumf %12, %13 : vector<1024x32xf32>
    %15 = arith.truncf %14 : vector<1024x32xf32> to vector<1024x32xbf16>
    %cst_13 = arith.constant dense<0.000000e+00> : vector<1024x32xf32>
    %16 = tpu.matmul %15, %1, %cst_13 {dimension_numbers = #tpu.dot_dimension_numbers<[1], [0], [0], [1], [0, 0, 1, 1], [], []>} : vector<1024x32xbf16>, vector<32x32xbf16>, vector<1024x32xf32> -> vector<1024x32xf32>
    %17 = arith.truncf %16 : vector<1024x32xf32> to vector<1024x32xbf16>
    %cst_14 = arith.constant dense<0.000000e+00> : vector<1024x32xf32>
    %18 = tpu.matmul %6, %17, %cst_14 {dimension_numbers = #tpu.dot_dimension_numbers<[1], [0], [0], [1], [0, 0, 1, 1], [], []>} : vector<1024x1024xbf16>, vector<1024x32xbf16>, vector<1024x32xf32> -> vector<1024x32xf32>
    %19 = vector.broadcast %4 : vector<1x32xf32> to vector<1024x32xf32>
    %20 = arith.addf %18, %19 : vector<1024x32xf32>
    %cst_15 = arith.constant 0.000000e+00 : f32
    %21 = vector.broadcast %cst_15 : f32 to vector<1024x32xf32>
    %22 = arith.maximumf %20, %21 : vector<1024x32xf32>
    %23 = arith.truncf %22 : vector<1024x32xf32> to vector<1024x32xbf16>
    %c0_16 = arith.constant 0 : index
    %c0_17 = arith.constant 0 : index
    %24 = vector.load %arg3[%c0_16, %c0_17] : memref<64x1024xbf16, #tpu.memory_space<vmem>>, vector<64x1024xbf16>
    %cst_18 = arith.constant dense<0.000000e+00> : vector<64x32xf32>
    %25 = tpu.matmul %24, %23, %cst_18 {dimension_numbers = #tpu.dot_dimension_numbers<[1], [0], [0], [1], [0, 0, 1, 1], [], []>} : vector<64x1024xbf16>, vector<1024x32xbf16>, vector<64x32xf32> -> vector<64x32xf32>
    %26 = arith.truncf %25 : vector<64x32xf32> to vector<64x32xbf16>
    %cst_19 = arith.constant dense<0.000000e+00> : vector<64x32xf32>
    %27 = tpu.matmul %26, %2, %cst_19 {dimension_numbers = #tpu.dot_dimension_numbers<[1], [0], [0], [1], [0, 0, 1, 1], [], []>} : vector<64x32xbf16>, vector<32x32xbf16>, vector<64x32xf32> -> vector<64x32xf32>
    %28 = vector.broadcast %5 : vector<1x32xf32> to vector<64x32xf32>
    %29 = arith.addf %27, %28 : vector<64x32xf32>
    %cst_20 = arith.constant dense<0xFF800000> : vector<64xf32>
    %30 = vector.multi_reduction <maximumf>, %29, %cst_20 [1] : vector<64x32xf32> to vector<64xf32>
    %31 = vector.shape_cast %30 : vector<64xf32> to vector<64x1xf32>
    %32 = vector.broadcast %31 : vector<64x1xf32> to vector<64x32xf32>
    %33 = arith.subf %29, %32 : vector<64x32xf32>
    %34 = math.exp %33 : vector<64x32xf32>
    %cst_21 = arith.constant dense<0.000000e+00> : vector<64xf32>
    %35 = vector.multi_reduction <add>, %34, %cst_21 [1] : vector<64x32xf32> to vector<64xf32>
    %36 = vector.shape_cast %35 : vector<64xf32> to vector<64x1xf32>
    %37 = tpu.reciprocal %36 {approx = true} : vector<64x1xf32> -> vector<64x1xf32>
    %38 = vector.broadcast %37 : vector<64x1xf32> to vector<64x32xf32>
    %39 = arith.mulf %34, %38 : vector<64x32xf32>
    %c0_22 = arith.constant 0 : index
    %c0_23 = arith.constant 0 : index
    %40 = vector.load %arg6[%c0_22, %c0_23] : memref<64x32xf32, #tpu.memory_space<vmem>>, vector<64x32xf32>
    tpu.vector_store %arg6[%c0_22, %c0_23], %39 {strides = array<i32>} : memref<64x32xf32, #tpu.memory_space<vmem>>, vector<64x32xf32>,
    return
  }
  func.func @transform_0(%arg0: i32) -> (i32, i32) {
    %c0_i32 = arith.constant 0 : i32
    %c0_i32_0 = arith.constant 0 : i32
    return %arg0, %c0_i32 : i32, i32
  }
  func.func @transform_1(%arg0: i32) -> (i32, i32) {
    %c0_i32 = arith.constant 0 : i32
    %c0_i32_0 = arith.constant 0 : i32
    return %arg0, %c0_i32 : i32, i32
  }
  func.func @transform_2(%arg0: i32) -> (i32, i32) {
    %c0_i32 = arith.constant 0 : i32
    %c0_i32_0 = arith.constant 0 : i32
    return %arg0, %c0_i32 : i32, i32
  }
  func.func @transform_3(%arg0: i32) -> (i32, i32) {
    %c0_i32 = arith.constant 0 : i32
    %c0_i32_0 = arith.constant 0 : i32
    %c0_i32_1 = arith.constant 0 : i32
    return %c0_i32, %c0_i32_0 : i32, i32
  }
  func.func @transform_4(%arg0: i32) -> (i32, i32) {
    %c0_i32 = arith.constant 0 : i32
    %c0_i32_0 = arith.constant 0 : i32
    %c0_i32_1 = arith.constant 0 : i32
    return %c0_i32, %c0_i32_0 : i32, i32
  }
  func.func @transform_5(%arg0: i32) -> (i32, i32) {
    %c0_i32 = arith.constant 0 : i32
    %c0_i32_0 = arith.constant 0 : i32
    return %arg0, %c0_i32 : i32, i32
  }
}

</mosaic_0001>

<llo_original>
// kernel: gcnflat_forward.1
$region0: #{gcnflat_forward.1}
  #allocation0 [shape = 'u32[]', space=smem, size = 0x4, offset = 0x4, fixed_abs, tag = 'smem constant byte address 0x4 - core index']
  #allocation1 [shape = 'u32[144,128]{1,0:T(1,128)}', space=vmem, size = 0x12000, scoped, tag = 'internal scratch']
  %s0 = inlined_call_operand.vmem [shape: bf16[2048,1024], index: 0, kind: input, shape index: {}]
  %s1 = inlined_call_operand.vmem [shape: bf16[2048,16], index: 1, kind: input, shape index: {}]
  %s2 = inlined_call_operand.vmem [shape: bf16[128,1024], index: 2, kind: input, shape index: {}]
  %s3 = inlined_call_operand.vmem [shape: bf16[80,32], index: 3, kind: input, shape index: {}]
  %s4 = inlined_call_operand.vmem [shape: f32[8,32], index: 4, kind: input, shape index: {}]
  %s5 = inlined_call_operand.vmem [shape: f32[128,32], index: 5, kind: output, shape index: {}]
  %s6 = sld [smem:[#allocation0]]
  $region53: #{gcnflat_forward.1} parent=0
    _
  %s8 = ssub.s32 1, %s6
  %s9 = scalar_select 0, %s8, %s6
  loop: start=0, step=1, limit=4
  $region2: #{gcnflat_forward.1} parent=0 // loop_pre_header
    _
  $region3: #{gcnflat_forward.1} parent=0 // loop_header
    %s11 = sphi 0, %s15
    %p12 = scmp.ge.s32.totalorder %s11, 4
    %s21 = sphi 0, %s23
    %s24 = sphi 0, %s21
    %s25 = sphi 0, %s24
    %s41 = sphi 0, %s25
    %s47 = sphi 0, %s49
    %s50 = sphi 0, %s47
    %s51 = sphi 0, %s50
    %s67 = sphi 0, %s51
    %s73 = sphi 0, %s75
    %s76 = sphi 0, %s73
    %s77 = sphi 0, %s76
    %s93 = sphi 0, %s77
    %s97 = sphi 0, %s97
    %s99 = sphi 0, %s97
    %s100 = sphi 0, %s99
    %s114 = sphi 0, %s100
    %s118 = sphi 0, %s118
    %s120 = sphi 0, %s118
    %s121 = sphi 0, %s120
    %s135 = sphi 0, %s121
    %s141 = sphi 0, %s143
    %s144 = sphi 0, %s141
    %s145 = sphi 0, %s144
    %s161 = sphi 0, %s145
  $region4: #{gcnflat_forward.1} parent=0 // loop_header_branch
    %14 = sbr.rel (%p12) target = $region8
  $region5: #{gcnflat_forward.1} parent=0 // loop_body
    %s16 = ssub.s32 %s11, 1
    %s17 = ssub.s32 %s11, 2
    %s18 = sadd.s32 %s11, 1
    %s19 = ssub.s32 %s11, %s18
    %p20 = scmp.eq.s32.totalorder %s19, 0
    %s22 = sadd.s32 %s21, 1
    %s23 = scalar_select %p20, %s21, %s22
    %p26 = pneg %p20
    %p27 = scmp.eq.s32.totalorder %s11, 1
    %p28 = por %p26, %p27
    %p29 = scmp.ne.s32.totalorder %s21, %s24
    %p30 = scmp.eq.s32.totalorder %s11, 0
    %p31 = por %p29, %p30
    %p32 = scmp.ne.s32.totalorder %s21, %s24
    %p33 = scmp.eq.s32.totalorder %s16, 1
    %p34 = por %p32, %p33
    %p35 = scmp.ne.s32.totalorder %s24, %s25
    %p36 = scmp.eq.s32.totalorder %s16, 0
    %p37 = por %p35, %p36
    %p38 = scmp.ne.s32.totalorder %s24, %s25
    %p39 = scmp.eq.s32.totalorder %s17, 1
    %p40 = por %p38, %p39
    %p42 = scmp.ne.s32.totalorder %s25, %s41
    %p43 = scmp.eq.s32.totalorder %s17, 0
    %p44 = por %p42, %p43
    %s45 = ssub.s32 %s11, %s18
    %p46 = scmp.eq.s32.totalorder %s45, 0
    %s48 = sadd.s32 %s47, 1
    %s49 = scalar_select %p46, %s47, %s48
    %p52 = pneg %p46
    %p53 = scmp.eq.s32.totalorder %s11, 1
    %p54 = por %p52, %p53
    %p55 = scmp.ne.s32.totalorder %s47, %s50
    %p56 = scmp.eq.s32.totalorder %s11, 0
    %p57 = por %p55, %p56
    %p58 = scmp.ne.s32.totalorder %s47, %s50
    %p59 = scmp.eq.s32.totalorder %s16, 1
    %p60 = por %p58, %p59
    %p61 = scmp.ne.s32.totalorder %s50, %s51
    %p62 = scmp.eq.s32.totalorder %s16, 0
    %p63 = por %p61, %p62
    %p64 = scmp.ne.s32.totalorder %s50, %s51
    %p65 = scmp.eq.s32.totalorder %s17, 1
    %p66 = por %p64, %p65
    %p68 = scmp.ne.s32.totalorder %s51, %s67
    %p69 = scmp.eq.s32.totalorder %s17, 0
    %p70 = por %p68, %p69
    %s71 = ssub.s32 %s11, %s18
    %p72 = scmp.eq.s32.totalorder %s71, 0
    %s74 = sadd.s32 %s73, 1
    %s75 = scalar_select %p72, %s73, %s74
    %p78 = pneg %p72
    %p79 = scmp.eq.s32.totalorder %s11, 1
    %p80 = por %p78, %p79
    %p81 = scmp.ne.s32.totalorder %s73, %s76
    %p82 = scmp.eq.s32.totalorder %s11, 0
    %p83 = por %p81, %p82
    %p84 = scmp.ne.s32.totalorder %s73, %s76
    %p85 = scmp.eq.s32.totalorder %s16, 1
    %p86 = por %p84, %p85
    %p87 = scmp.ne.s32.totalorder %s76, %s77
    %p88 = scmp.eq.s32.totalorder %s16, 0
    %p89 = por %p87, %p88
    %p90 = scmp.ne.s32.totalorder %s76, %s77
    %p91 = scmp.eq.s32.totalorder %s17, 1
    %p92 = por %p90, %p91
    %p94 = scmp.ne.s32.totalorder %s77, %s93
    %p95 = scmp.eq.s32.totalorder %s17, 0
    %p96 = por %p94, %p95
    %s98 = sadd.s32 %s97, 1
    %p101 = scmp.eq.s32.totalorder %s11, 1
    %p102 = scmp.ne.s32.totalorder %s97, %s99
    %p103 = scmp.eq.s32.totalorder %s11, 0
    %p104 = por %p102, %p103
    %p105 = scmp.ne.s32.totalorder %s97, %s99
    %p106 = scmp.eq.s32.totalorder %s16, 1
    %p107 = por %p105, %p106
    %p108 = scmp.ne.s32.totalorder %s99, %s100
    %p109 = scmp.eq.s32.totalorder %s16, 0
    %p110 = por %p108, %p109
    %p111 = scmp.ne.s32.totalorder %s99, %s100
    %p112 = scmp.eq.s32.totalorder %s17, 1
    %p113 = por %p111, %p112
    %p115 = scmp.ne.s32.totalorder %s100, %s114
    %p116 = scmp.eq.s32.totalorder %s17, 0
    %p117 = por %p115, %p116
    %s119 = sadd.s32 %s118, 1
    %p122 = scmp.eq.s32.totalorder %s11, 1
    %p123 = scmp.ne.s32.totalorder %s118, %s120
    %p124 = scmp.eq.s32.totalorder %s11, 0
    %p125 = por %p123, %p124
    %p126 = scmp.ne.s32.totalorder %s118, %s120
    %p127 = scmp.eq.s32.totalorder %s16, 1
    %p128 = por %p126, %p127
    %p129 = scmp.ne.s32.totalorder %s120, %s121
    %p130 = scmp.eq.s32.totalorder %s16, 0
    %p131 = por %p129, %p130
    %p132 = scmp.ne.s32.totalorder %s120, %s121
    %p133 = scmp.eq.s32.totalorder %s17, 1
    %p134 = por %p132, %p133
    %p136 = scmp.ne.s32.totalorder %s121, %s135
    %p137 = scmp.eq.s32.totalorder %s17, 0
    %p138 = por %p136, %p137
    %s139 = ssub.s32 %s11, %s18
    %p140 = scmp.eq.s32.totalorder %s139, 0
    %s142 = sadd.s32 %s141, 1
    %s143 = scalar_select %p140, %s141, %s142
    %p146 = pneg %p140
    %p147 = scmp.eq.s32.totalorder %s11, 1
    %p148 = por %p146, %p147
    %p149 = scmp.ne.s32.totalorder %s141, %s144
    %p150 = scmp.eq.s32.totalorder %s11, 0
    %p151 = por %p149, %p150
    %p152 = scmp.ne.s32.totalorder %s141, %s144
    %p153 = scmp.eq.s32.totalorder %s16, 1
    %p154 = por %p152, %p153
    %p155 = scmp.ne.s32.totalorder %s144, %s145
    %p156 = scmp.eq.s32.totalorder %s16, 0
    %p157 = por %p155, %p156
    %p158 = scmp.ne.s32.totalorder %s144, %s145
    %p159 = scmp.eq.s32.totalorder %s17, 1
    %p160 = por %p158, %p159
    %p162 = scmp.ne.s32.totalorder %s145, %s161
    %p163 = scmp.eq.s32.totalorder %s17, 0
    %p164 = por %p162, %p163
    %p165 = scmp.le.s32.totalorder 1, %s11
    %p166 = scmp.lt.s32.totalorder %s11, 3
    %p167 = pnand %p165, %p166
    %p168 = pneg %p167
    // Predicated region
    $region9: #{gcnflat_forward.1} parent=5 // pred_check
      _
    $region10: #{gcnflat_forward.1} parent=5 // pred_check_branch
      %170 = sbr.rel (%p167) target = $region12
    $region11: #{gcnflat_forward.1} parent=5 // pred_region
      %s171 = ssub.s32 %s11, 1
      // Predicated region
      $region13: #{gcnflat_forward.1} parent=11 // pred_check
        %p172 = pneg %p110
      $region14: #{gcnflat_forward.1} parent=11 // pred_check_branch
        %174 = sbr.rel (%p172) target = $region16
      $region15: #{gcnflat_forward.1} parent=11 // pred_region
        _
      $region16: #{gcnflat_forward.1} parent=11 // pred_fallthru
        _
      // Predicated region
      $region17: #{gcnflat_forward.1} parent=11 // pred_check
        %p175 = pneg %p131
      $region18: #{gcnflat_forward.1} parent=11 // pred_check_branch
        %177 = sbr.rel (%p175) target = $region20
      $region19: #{gcnflat_forward.1} parent=11 // pred_region
        _
      $region20: #{gcnflat_forward.1} parent=11 // pred_fallthru
        _
    $region12: #{gcnflat_forward.1} parent=5 // pred_fallthru
      _
    %p178 = scmp.lt.s32.totalorder %s11, 2
    // Predicated region
    $region21: #{gcnflat_forward.1} parent=5 // pred_check
      %p179 = pneg %p178
    $region22: #{gcnflat_forward.1} parent=5 // pred_check_branch
      %181 = sbr.rel (%p179) target = $region24
    $region23: #{gcnflat_forward.1} parent=5 // pred_region
      // Predicated region
      $region25: #{gcnflat_forward.1} parent=23 // pred_check
        %p182 = pneg %p31
      $region26: #{gcnflat_forward.1} parent=23 // pred_check_branch
        %184 = sbr.rel (%p182) target = $region28
      $region27: #{gcnflat_forward.1} parent=23 // pred_region
        %s185 = smul.u32 128, %s11
        %p186 = scmp.lt.s32.totalorder %s185, 255
        %s187 = scalar_select %p186, %s185, 255
        %s188 = smul.addr %s187, 8
        %s189 = smul.addr %s188, 4
        %s190 = scalar_lea.vmem %s0, %s189
        %s191 = smul.u32 128, %s11
      $region28: #{gcnflat_forward.1} parent=23 // pred_fallthru
        _
      // Predicated region
      $region29: #{gcnflat_forward.1} parent=23 // pred_check
        %p192 = pneg %p57
      $region30: #{gcnflat_forward.1} parent=23 // pred_check_branch
        %194 = sbr.rel (%p192) target = $region32
      $region31: #{gcnflat_forward.1} parent=23 // pred_region
        %s195 = smul.u32 128, %s11
        %p196 = scmp.lt.s32.totalorder %s195, 255
        %s197 = scalar_select %p196, %s195, 255
        %s198 = smul.addr %s197, 4
        %s199 = scalar_lea.vmem %s1, %s198
        %s200 = smul.u32 128, %s11
      $region32: #{gcnflat_forward.1} parent=23 // pred_fallthru
        _
      // Predicated region
      $region33: #{gcnflat_forward.1} parent=23 // pred_check
        %p201 = pneg %p83
      $region34: #{gcnflat_forward.1} parent=23 // pred_check_branch
        %203 = sbr.rel (%p201) target = $region36
      $region35: #{gcnflat_forward.1} parent=23 // pred_region
        %s204 = smul.u32 8, %s11
        %p205 = scmp.lt.s32.totalorder %s204, 15
        %s206 = scalar_select %p205, %s204, 15
        %s207 = smul.addr %s206, 8
        %s208 = smul.addr %s207, 4
        %s209 = scalar_lea.vmem %s2, %s208
        %s210 = smul.u32 8, %s11
      $region36: #{gcnflat_forward.1} parent=23 // pred_fallthru
        _
    $region24: #{gcnflat_forward.1} parent=5 // pred_fallthru
      _
    %p211 = scmp.le.s32.totalorder 1, %s11
    %p212 = scmp.lt.s32.totalorder %s11, 3
    %p213 = pnand %p211, %p212
    %p214 = pneg %p213
    // Predicated region
    $region37: #{gcnflat_forward.1} parent=5 // pred_check
      _
    $region38: #{gcnflat_forward.1} parent=5 // pred_check_branch
      %216 = sbr.rel (%p213) target = $region40
    $region39: #{gcnflat_forward.1} parent=5 // pred_region
      %s217 = ssub.s32 %s11, 1
      %s218 = smul.u32 128, %s16
      %p219 = scmp.lt.s32.totalorder %s218, 255
      %s220 = scalar_select %p219, %s218, 255
      %s221 = smul.addr %s220, 8
      %s222 = smul.addr %s221, 4
      %s223 = scalar_lea.vmem %s0, %s222
      %p224 = pneg %p37
      %p225 = pneg %p34
      %s226 = smul.u32 128, %s16
      %p227 = scmp.lt.s32.totalorder %s226, 255
      %s228 = scalar_select %p227, %s226, 255
      %s229 = smul.addr %s228, 4
      %s230 = scalar_lea.vmem %s1, %s229
      %p231 = pneg %p63
      %p232 = pneg %p60
      %s233 = smul.u32 8, %s16
      %p234 = scmp.lt.s32.totalorder %s233, 15
      %s235 = scalar_select %p234, %s233, 15
      %s236 = smul.addr %s235, 8
      %s237 = smul.addr %s236, 4
      %s238 = scalar_lea.vmem %s2, %s237
      %p239 = pneg %p89
      %p240 = pneg %p86
      %p241 = pneg %p110
      %p242 = pneg %p107
      %p243 = pneg %p131
      %p244 = pneg %p128
      %p245 = pneg %p157
      %p246 = pneg %p154
      %s247 = smul.u32 8, %s16
      %p248 = scmp.lt.s32.totalorder %s247, 15
      %s249 = scalar_select %p248, %s247, 15
      %s250 = smul.addr %s249, 8
      %s251 = scalar_lea.vmem %s5, %s250
      %s252 = smul.u32 128, %s16
      %p253 = scmp.lt.s32.totalorder %s252, 255
      %s254 = scalar_select %p253, %s252, 255
      %s255 = smul.addr %s254, 8
      %s256 = smul.addr %s255, 4
      %s257 = scalar_lea.vmem %s0, %s256
      %s258 = smul.u32 128, %s16
      %s259 = smul.u32 128, %s16
      %p260 = scmp.lt.s32.totalorder %s259, 255
      %s261 = scalar_select %p260, %s259, 255
      %s262 = smul.addr %s261, 4
      %s263 = scalar_lea.vmem %s1, %s262
      %s264 = smul.u32 128, %s16
      %s265 = smul.u32 8, %s16
      %p266 = scmp.lt.s32.totalorder %s265, 15
      %s267 = scalar_select %p266, %s265, 15
      %s268 = smul.addr %s267, 8
      %s269 = smul.addr %s268, 4
      %s270 = scalar_lea.vmem %s2, %s269
      %s271 = smul.u32 8, %s16
      %s272 = smul.u32 8, %s16
      %p273 = scmp.lt.s32.totalorder %s272, 15
      %s274 = scalar_select %p273, %s272, 15
      %s275 = smul.addr %s274, 8
      %s276 = scalar_lea.vmem %s5, %s275
      %s277 = smul.u32 8, %s16
      %v279 = vld [vmem:[%s3] sm:$0xf]
      %v280 = vld [vmem:[%s3 + $0x4] sm:$0xf]
      %v281 = vld [vmem:[%s3 + $0x8] sm:$0xf]
      %v282 = vld [vmem:[%s3 + $0xc] sm:$0xf]
      %v283 = vld [vmem:[%s3 + $0x10] sm:$0xf]
      %v284 = vld [vmem:[%s3 + $0x14] sm:$0xf]
      %v285 = vld [vmem:[%s3 + $0x18] sm:$0xf]
      %v286 = vld [vmem:[%s3 + $0x1c] sm:$0xf]
      %v287 = vld [vmem:[%s3 + $0x20] sm:$0xf]
      %v288 = vld [vmem:[%s3 + $0x24] sm:$0xf]
      %v289 = vld [vmem:[%s4] sm:$0x1]
      %v290 = vld [vmem:[%s4 + $0x1] sm:$0x1]
      %v291 = vld [vmem:[%s4 + $0x2] sm:$0x1]
      %v292 = vld [vmem:[%s257] sm:$0xff]
      %v293 = vld [vmem:[%s257 + $0x8] sm:$0xff]
      %v294 = vld [vmem:[%s257 + $0x10] sm:$0xff]
      %v295 = vld [vmem:[%s257 + $0x18] sm:$0xff]
      %v296 = vld [vmem:[%s257 + $0x20] sm:$0xff]
      %v297 = vld [vmem:[%s257 + $0x28] sm:$0xff]
      %v298 = vld [vmem:[%s257 + $0x30] sm:$0xff]
      %v299 = vld [vmem:[%s257 + $0x38] sm:$0xff]
      %v300 = vld [vmem:[%s257 + $0x40] sm:$0xff]
      %v301 = vld [vmem:[%s257 + $0x48] sm:$0xff]
      %v302 = vld [vmem:[%s257 + $0x50] sm:$0xff]
      %v303 = vld [vmem:[%s257 + $0x58] sm:$0xff]
      %v304 = vld [vmem:[%s257 + $0x60] sm:$0xff]
      %v305 = vld [vmem:[%s257 + $0x68] sm:$0xff]
      %v306 = vld [vmem:[%s257 + $0x70] sm:$0xff]
      %v307 = vld [vmem:[%s257 + $0x78] sm:$0xff]
      %v308 = vld [vmem:[%s257 + $0x80] sm:$0xff]
      %v309 = vld [vmem:[%s257 + $0x88] sm:$0xff]
      %v310 = vld [vmem:[%s257 + $0x90] sm:$0xff]
      %v311 = vld [vmem:[%s257 + $0x98] sm:$0xff]
      %v312 = vld [vmem:[%s257 + $0xa0] sm:$0xff]
      %v313 = vld [vmem:[%s257 + $0xa8] sm:$0xff]
      %v314 = vld [vmem:[%s257 + $0xb0] sm:$0xff]
      %v315 = vld [vmem:[%s257 + $0xb8] sm:$0xff]
      %v316 = vld [vmem:[%s257 + $0xc0] sm:$0xff]
      %v317 = vld [vmem:[%s257 + $0xc8] sm:$0xff]
      %v318 = vld [vmem:[%s257 + $0xd0] sm:$0xff]
      %v319 = vld [vmem:[%s257 + $0xd8] sm:$0xff]
      %v320 = vld [vmem:[%s257 + $0xe0] sm:$0xff]
      %v321 = vld [vmem:[%s257 + $0xe8] sm:$0xff]
      %v322 = vld [vmem:[%s257 + $0xf0] sm:$0xff]
      %v323 = vld [vmem:[%s257 + $0xf8] sm:$0xff]
      %v324 = vld [vmem:[%s257 + $0x100] sm:$0xff]
      %v325 = vld [vmem:[%s257 + $0x108] sm:$0xff]
      %v326 = vld [vmem:[%s257 + $0x110] sm:$0xff]
      %v327 = vld [vmem:[%s257 + $0x118] sm:$0xff]
      %v328 = vld [vmem:[%s257 + $0x120] sm:$0xff]
      %v329 = vld [vmem:[%s257 + $0x128] sm:$0xff]
      %v330 = vld [vmem:[%s257 + $0x130] sm:$0xff]
      %v331 = vld [vmem:[%s257 + $0x138] sm:$0xff]
      %v332 = vld [vmem:[%s257 + $0x140] sm:$0xff]
      %v333 = vld [vmem:[%s257 + $0x148] sm:$0xff]
      %v334 = vld [vmem:[%s257 + $0x150] sm:$0xff]
      %v335 = vld [vmem:[%s257 + $0x158] sm:$0xff]
      %v336 = vld [vmem:[%s257 + $0x160] sm:$0xff]
      %v337 = vld [vmem:[%s257 + $0x168] sm:$0xff]
      %v338 = vld [vmem:[%s257 + $0x170] sm:$0xff]
      %v339 = vld [vmem:[%s257 + $0x178] sm:$0xff]
      %v340 = vld [vmem:[%s257 + $0x180] sm:$0xff]
      %v341 = vld [vmem:[%s257 + $0x188] sm:$0xff]
      %v342 = vld [vmem:[%s257 + $0x190] sm:$0xff]
      %v343 = vld [vmem:[%s257 + $0x198] sm:$0xff]
      %v344 = vld [vmem:[%s257 + $0x1a0] sm:$0xff]
      %v345 = vld [vmem:[%s257 + $0x1a8] sm:$0xff]
      %v346 = vld [vmem:[%s257 + $0x1b0] sm:$0xff]
      %v347 = vld [vmem:[%s257 + $0x1b8] sm:$0xff]
      %v348 = vld [vmem:[%s257 + $0x1c0] sm:$0xff]
      %v349 = vld [vmem:[%s257 + $0x1c8] sm:$0xff]
      %v350 = vld [vmem:[%s257 + $0x1d0] sm:$0xff]
      %v351 = vld [vmem:[%s257 + $0x1d8] sm:$0xff]
      %v352 = vld [vmem:[%s257 + $0x1e0] sm:$0xff]
      %v353 = vld [vmem:[%s257 + $0x1e8] sm:$0xff]
      %v354 = vld [vmem:[%s257 + $0x1f0] sm:$0xff]
      %v355 = vld [vmem:[%s257 + $0x1f8] sm:$0xff]
      %v356 = vld [vmem:[%s257 + $0x200] sm:$0xff]
      %v357 = vld [vmem:[%s257 + $0x208] sm:$0xff]
      %v358 = vld [vmem:[%s257 + $0x210] sm:$0xff]
      %v359 = vld [vmem:[%s257 + $0x218] sm:$0xff]
      %v360 = vld [vmem:[%s257 + $0x220] sm:$0xff]
      %v361 = vld [vmem:[%s257 + $0x228] sm:$0xff]
      %v362 = vld [vmem:[%s257 + $0x230] sm:$0xff]
      %v363 = vld [vmem:[%s257 + $0x238] sm:$0xff]
      %v364 = vld [vmem:[%s257 + $0x240] sm:$0xff]
      %v365 = vld [vmem:[%s257 + $0x248] sm:$0xff]
      %v366 = vld [vmem:[%s257 + $0x250] sm:$0xff]
      %v367 = vld [vmem:[%s257 + $0x258] sm:$0xff]
      %v368 = vld [vmem:[%s257 + $0x260] sm:$0xff]
      %v369 = vld [vmem:[%s257 + $0x268] sm:$0xff]
      %v370 = vld [vmem:[%s257 + $0x270] sm:$0xff]
      %v371 = vld [vmem:[%s257 + $0x278] sm:$0xff]
      %v372 = vld [vmem:[%s257 + $0x280] sm:$0xff]
      %v373 = vld [vmem:[%s257 + $0x288] sm:$0xff]
      %v374 = vld [vmem:[%s257 + $0x290] sm:$0xff]
      %v375 = vld [vmem:[%s257 + $0x298] sm:$0xff]
      %v376 = vld [vmem:[%s257 + $0x2a0] sm:$0xff]
      %v377 = vld [vmem:[%s257 + $0x2a8] sm:$0xff]
      %v378 = vld [vmem:[%s257 + $0x2b0] sm:$0xff]
      %v379 = vld [vmem:[%s257 + $0x2b8] sm:$0xff]
      %v380 = vld [vmem:[%s257 + $0x2c0] sm:$0xff]
      %v381 = vld [vmem:[%s257 + $0x2c8] sm:$0xff]
      %v382 = vld [vmem:[%s257 + $0x2d0] sm:$0xff]
      %v383 = vld [vmem:[%s257 + $0x2d8] sm:$0xff]
      %v384 = vld [vmem:[%s257 + $0x2e0] sm:$0xff]
      %v385 = vld [vmem:[%s257 + $0x2e8] sm:$0xff]
      %v386 = vld [vmem:[%s257 + $0x2f0] sm:$0xff]
      %v387 = vld [vmem:[%s257 + $0x2f8] sm:$0xff]
      %v388 = vld [vmem:[%s257 + $0x300] sm:$0xff]
      %v389 = vld [vmem:[%s257 + $0x308] sm:$0xff]
      %v390 = vld [vmem:[%s257 + $0x310] sm:$0xff]
      %v391 = vld [vmem:[%s257 + $0x318] sm:$0xff]
      %v392 = vld [vmem:[%s257 + $0x320] sm:$0xff]
      %v393 = vld [vmem:[%s257 + $0x328] sm:$0xff]
      %v394 = vld [vmem:[%s257 + $0x330] sm:$0xff]
      %v395 = vld [vmem:[%s257 + $0x338] sm:$0xff]
      %v396 = vld [vmem:[%s257 + $0x340] sm:$0xff]
      %v397 = vld [vmem:[%s257 + $0x348] sm:$0xff]
      %v398 = vld [vmem:[%s257 + $0x350] sm:$0xff]
      %v399 = vld [vmem:[%s257 + $0x358] sm:$0xff]
      %v400 = vld [vmem:[%s257 + $0x360] sm:$0xff]
      %v401 = vld [vmem:[%s257 + $0x368] sm:$0xff]
      %v402 = vld [vmem:[%s257 + $0x370] sm:$0xff]
      %v403 = vld [vmem:[%s257 + $0x378] sm:$0xff]
      %v404 = vld [vmem:[%s257 + $0x380] sm:$0xff]
      %v405 = vld [vmem:[%s257 + $0x388] sm:$0xff]
      %v406 = vld [vmem:[%s257 + $0x390] sm:$0xff]
      %v407 = vld [vmem:[%s257 + $0x398] sm:$0xff]
      %v408 = vld [vmem:[%s257 + $0x3a0] sm:$0xff]
      %v409 = vld [vmem:[%s257 + $0x3a8] sm:$0xff]
      %v410 = vld [vmem:[%s257 + $0x3b0] sm:$0xff]
      %v411 = vld [vmem:[%s257 + $0x3b8] sm:$0xff]
      %v412 = vld [vmem:[%s257 + $0x3c0] sm:$0xff]
      %v413 = vld [vmem:[%s257 + $0x3c8] sm:$0xff]
      %v414 = vld [vmem:[%s257 + $0x3d0] sm:$0xff]
      %v415 = vld [vmem:[%s257 + $0x3d8] sm:$0xff]
      %v416 = vld [vmem:[%s257 + $0x3e0] sm:$0xff]
      %v417 = vld [vmem:[%s257 + $0x3e8] sm:$0xff]
      %v418 = vld [vmem:[%s257 + $0x3f0] sm:$0xff]
      %v419 = vld [vmem:[%s257 + $0x3f8] sm:$0xff]
      %v420 = vld [vmem:[%s257 + $0x400] sm:$0xff]
      %v421 = vld [vmem:[%s257 + $0x408] sm:$0xff]
      %v422 = vld [vmem:[%s257 + $0x410] sm:$0xff]
      %v423 = vld [vmem:[%s257 + $0x418] sm:$0xff]
      %v424 = vld [vmem:[%s257 + $0x420] sm:$0xff]
      %v425 = vld [vmem:[%s257 + $0x428] sm:$0xff]
      %v426 = vld [vmem:[%s257 + $0x430] sm:$0xff]
      %v427 = vld [vmem:[%s257 + $0x438] sm:$0xff]
      %v428 = vld [vmem:[%s257 + $0x440] sm:$0xff]
      %v429 = vld [vmem:[%s257 + $0x448] sm:$0xff]
      %v430 = vld [vmem:[%s257 + $0x450] sm:$0xff]
      %v431 = vld [vmem:[%s257 + $0x458] sm:$0xff]
      %v432 = vld [vmem:[%s257 + $0x460] sm:$0xff]
      %v433 = vld [vmem:[%s257 + $0x468] sm:$0xff]
      %v434 = vld [vmem:[%s257 + $0x470] sm:$0xff]
      %v435 = vld [vmem:[%s257 + $0x478] sm:$0xff]
      %v436 = vld [vmem:[%s257 + $0x480] sm:$0xff]
      %v437 = vld [vmem:[%s257 + $0x488] sm:$0xff]
      %v438 = vld [vmem:[%s257 + $0x490] sm:$0xff]
      %v439 = vld [vmem:[%s257 + $0x498] sm:$0xff]
      %v440 = vld [vmem:[%s257 + $0x4a0] sm:$0xff]
      %v441 = vld [vmem:[%s257 + $0x4a8] sm:$0xff]
      %v442 = vld [vmem:[%s257 + $0x4b0] sm:$0xff]
      %v443 = vld [vmem:[%s257 + $0x4b8] sm:$0xff]
      %v444 = vld [vmem:[%s257 + $0x4c0] sm:$0xff]
      %v445 = vld [vmem:[%s257 + $0x4c8] sm:$0xff]
      %v446 = vld [vmem:[%s257 + $0x4d0] sm:$0xff]
      %v447 = vld [vmem:[%s257 + $0x4d8] sm:$0xff]
      %v448 = vld [vmem:[%s257 + $0x4e0] sm:$0xff]
      %v449 = vld [vmem:[%s257 + $0x4e8] sm:$0xff]
      %v450 = vld [vmem:[%s257 + $0x4f0] sm:$0xff]
      %v451 = vld [vmem:[%s257 + $0x4f8] sm:$0xff]
      %v452 = vld [vmem:[%s257 + $0x500] sm:$0xff]
      %v453 = vld [vmem:[%s257 + $0x508] sm:$0xff]
      %v454 = vld [vmem:[%s257 + $0x510] sm:$0xff]
      %v455 = vld [vmem:[%s257 + $0x518] sm:$0xff]
      %v456 = vld [vmem:[%s257 + $0x520] sm:$0xff]
      %v457 = vld [vmem:[%s257 + $0x528] sm:$0xff]
      %v458 = vld [vmem:[%s257 + $0x530] sm:$0xff]
      %v459 = vld [vmem:[%s257 + $0x538] sm:$0xff]
      %v460 = vld [vmem:[%s257 + $0x540] sm:$0xff]
      %v461 = vld [vmem:[%s257 + $0x548] sm:$0xff]
      %v462 = vld [vmem:[%s257 + $0x550] sm:$0xff]
      %v463 = vld [vmem:[%s257 + $0x558] sm:$0xff]
      %v464 = vld [vmem:[%s257 + $0x560] sm:$0xff]
      %v465 = vld [vmem:[%s257 + $0x568] sm:$0xff]
      %v466 = vld [vmem:[%s257 + $0x570] sm:$0xff]
      %v467 = vld [vmem:[%s257 + $0x578] sm:$0xff]
      %v468 = vld [vmem:[%s257 + $0x580] sm:$0xff]
      %v469 = vld [vmem:[%s257 + $0x588] sm:$0xff]
      %v470 = vld [vmem:[%s257 + $0x590] sm:$0xff]
      %v471 = vld [vmem:[%s257 + $0x598] sm:$0xff]
      %v472 = vld [vmem:[%s257 + $0x5a0] sm:$0xff]
      %v473 = vld [vmem:[%s257 + $0x5a8] sm:$0xff]
      %v474 = vld [vmem:[%s257 + $0x5b0] sm:$0xff]
      %v475 = vld [vmem:[%s257 + $0x5b8] sm:$0xff]
      %v476 = vld [vmem:[%s257 + $0x5c0] sm:$0xff]
      %v477 = vld [vmem:[%s257 + $0x5c8] sm:$0xff]
      %v478 = vld [vmem:[%s257 + $0x5d0] sm:$0xff]
      %v479 = vld [vmem:[%s257 + $0x5d8] sm:$0xff]
      %v480 = vld [vmem:[%s257 + $0x5e0] sm:$0xff]
      %v481 = vld [vmem:[%s257 + $0x5e8] sm:$0xff]
      %v482 = vld [vmem:[%s257 + $0x5f0] sm:$0xff]
      %v483 = vld [vmem:[%s257 + $0x5f8] sm:$0xff]
      %v484 = vld [vmem:[%s257 + $0x600] sm:$0xff]
      %v485 = vld [vmem:[%s257 + $0x608] sm:$0xff]
      %v486 = vld [vmem:[%s257 + $0x610] sm:$0xff]
      %v487 = vld [vmem:[%s257 + $0x618] sm:$0xff]
      %v488 = vld [vmem:[%s257 + $0x620] sm:$0xff]
      %v489 = vld [vmem:[%s257 + $0x628] sm:$0xff]
      %v490 = vld [vmem:[%s257 + $0x630] sm:$0xff]
      %v491 = vld [vmem:[%s257 + $0x638] sm:$0xff]
      %v492 = vld [vmem:[%s257 + $0x640] sm:$0xff]
      %v493 = vld [vmem:[%s257 + $0x648] sm:$0xff]
      %v494 = vld [vmem:[%s257 + $0x650] sm:$0xff]
      %v495 = vld [vmem:[%s257 + $0x658] sm:$0xff]
      %v496 = vld [vmem:[%s257 + $0x660] sm:$0xff]
      %v497 = vld [vmem:[%s257 + $0x668] sm:$0xff]
      %v498 = vld [vmem:[%s257 + $0x670] sm:$0xff]
      %v499 = vld [vmem:[%s257 + $0x678] sm:$0xff]
      %v500 = vld [vmem:[%s257 + $0x680] sm:$0xff]
      %v501 = vld [vmem:[%s257 + $0x688] sm:$0xff]
      %v502 = vld [vmem:[%s257 + $0x690] sm:$0xff]
      %v503 = vld [vmem:[%s257 + $0x698] sm:$0xff]
      %v504 = vld [vmem:[%s257 + $0x6a0] sm:$0xff]
      %v505 = vld [vmem:[%s257 + $0x6a8] sm:$0xff]
      %v506 = vld [vmem:[%s257 + $0x6b0] sm:$0xff]
      %v507 = vld [vmem:[%s257 + $0x6b8] sm:$0xff]
      %v508 = vld [vmem:[%s257 + $0x6c0] sm:$0xff]
      %v509 = vld [vmem:[%s257 + $0x6c8] sm:$0xff]
      %v510 = vld [vmem:[%s257 + $0x6d0] sm:$0xff]
      %v511 = vld [vmem:[%s257 + $0x6d8] sm:$0xff]
      %v512 = vld [vmem:[%s257 + $0x6e0] sm:$0xff]
      %v513 = vld [vmem:[%s257 + $0x6e8] sm:$0xff]
      %v514 = vld [vmem:[%s257 + $0x6f0] sm:$0xff]
      %v515 = vld [vmem:[%s257 + $0x6f8] sm:$0xff]
      %v516 = vld [vmem:[%s257 + $0x700] sm:$0xff]
      %v517 = vld [vmem:[%s257 + $0x708] sm:$0xff]
      %v518 = vld [vmem:[%s257 + $0x710] sm:$0xff]
      %v519 = vld [vmem:[%s257 + $0x718] sm:$0xff]
      %v520 = vld [vmem:[%s257 + $0x720] sm:$0xff]
      %v521 = vld [vmem:[%s257 + $0x728] sm:$0xff]
      %v522 = vld [vmem:[%s257 + $0x730] sm:$0xff]
      %v523 = vld [vmem:[%s257 + $0x738] sm:$0xff]
      %v524 = vld [vmem:[%s257 + $0x740] sm:$0xff]
      %v525 = vld [vmem:[%s257 + $0x748] sm:$0xff]
      %v526 = vld [vmem:[%s257 + $0x750] sm:$0xff]
      %v527 = vld [vmem:[%s257 + $0x758] sm:$0xff]
      %v528 = vld [vmem:[%s257 + $0x760] sm:$0xff]
      %v529 = vld [vmem:[%s257 + $0x768] sm:$0xff]
      %v530 = vld [vmem:[%s257 + $0x770] sm:$0xff]
      %v531 = vld [vmem:[%s257 + $0x778] sm:$0xff]
      %v532 = vld [vmem:[%s257 + $0x780] sm:$0xff]
      %v533 = vld [vmem:[%s257 + $0x788] sm:$0xff]
      %v534 = vld [vmem:[%s257 + $0x790] sm:$0xff]
      %v535 = vld [vmem:[%s257 + $0x798] sm:$0xff]
      %v536 = vld [vmem:[%s257 + $0x7a0] sm:$0xff]
      %v537 = vld [vmem:[%s257 + $0x7a8] sm:$0xff]
      %v538 = vld [vmem:[%s257 + $0x7b0] sm:$0xff]
      %v539 = vld [vmem:[%s257 + $0x7b8] sm:$0xff]
      %v540 = vld [vmem:[%s257 + $0x7c0] sm:$0xff]
      %v541 = vld [vmem:[%s257 + $0x7c8] sm:$0xff]
      %v542 = vld [vmem:[%s257 + $0x7d0] sm:$0xff]
      %v543 = vld [vmem:[%s257 + $0x7d8] sm:$0xff]
      %v544 = vld [vmem:[%s257 + $0x7e0] sm:$0xff]
      %v545 = vld [vmem:[%s257 + $0x7e8] sm:$0xff]
      %v546 = vld [vmem:[%s257 + $0x7f0] sm:$0xff]
      %v547 = vld [vmem:[%s257 + $0x7f8] sm:$0xff]
      %v548 = vld [vmem:[%s257 + $0x800] sm:$0xff]
      %v549 = vld [vmem:[%s257 + $0x808] sm:$0xff]
      %v550 = vld [vmem:[%s257 + $0x810] sm:$0xff]
      %v551 = vld [vmem:[%s257 + $0x818] sm:$0xff]
      %v552 = vld [vmem:[%s257 + $0x820] sm:$0xff]
      %v553 = vld [vmem:[%s257 + $0x828] sm:$0xff]
      %v554 = vld [vmem:[%s257 + $0x830] sm:$0xff]
      %v555 = vld [vmem:[%s257 + $0x838] sm:$0xff]
      %v556 = vld [vmem:[%s257 + $0x840] sm:$0xff]
      %v557 = vld [vmem:[%s257 + $0x848] sm:$0xff]
      %v558 = vld [vmem:[%s257 + $0x850] sm:$0xff]
      %v559 = vld [vmem:[%s257 + $0x858] sm:$0xff]
      %v560 = vld [vmem:[%s257 + $0x860] sm:$0xff]
      %v561 = vld [vmem:[%s257 + $0x868] sm:$0xff]
      %v562 = vld [vmem:[%s257 + $0x870] sm:$0xff]
      %v563 = vld [vmem:[%s257 + $0x878] sm:$0xff]
      %v564 = vld [vmem:[%s257 + $0x880] sm:$0xff]
      %v565 = vld [vmem:[%s257 + $0x888] sm:$0xff]
      %v566 = vld [vmem:[%s257 + $0x890] sm:$0xff]
      %v567 = vld [vmem:[%s257 + $0x898] sm:$0xff]
      %v568 = vld [vmem:[%s257 + $0x8a0] sm:$0xff]
      %v569 = vld [vmem:[%s257 + $0x8a8] sm:$0xff]
      %v570 = vld [vmem:[%s257 + $0x8b0] sm:$0xff]
      %v571 = vld [vmem:[%s257 + $0x8b8] sm:$0xff]
      %v572 = vld [vmem:[%s257 + $0x8c0] sm:$0xff]
      %v573 = vld [vmem:[%s257 + $0x8c8] sm:$0xff]
      %v574 = vld [vmem:[%s257 + $0x8d0] sm:$0xff]
      %v575 = vld [vmem:[%s257 + $0x8d8] sm:$0xff]
      %v576 = vld [vmem:[%s257 + $0x8e0] sm:$0xff]
      %v577 = vld [vmem:[%s257 + $0x8e8] sm:$0xff]
      %v578 = vld [vmem:[%s257 + $0x8f0] sm:$0xff]
      %v579 = vld [vmem:[%s257 + $0x8f8] sm:$0xff]
      %v580 = vld [vmem:[%s257 + $0x900] sm:$0xff]
      %v581 = vld [vmem:[%s257 + $0x908] sm:$0xff]
      %v582 = vld [vmem:[%s257 + $0x910] sm:$0xff]
      %v583 = vld [vmem:[%s257 + $0x918] sm:$0xff]
      %v584 = vld [vmem:[%s257 + $0x920] sm:$0xff]
      %v585 = vld [vmem:[%s257 + $0x928] sm:$0xff]
      %v586 = vld [vmem:[%s257 + $0x930] sm:$0xff]
      %v587 = vld [vmem:[%s257 + $0x938] sm:$0xff]
      %v588 = vld [vmem:[%s257 + $0x940] sm:$0xff]
      %v589 = vld [vmem:[%s257 + $0x948] sm:$0xff]
      %v590 = vld [vmem:[%s257 + $0x950] sm:$0xff]
      %v591 = vld [vmem:[%s257 + $0x958] sm:$0xff]
      %v592 = vld [vmem:[%s257 + $0x960] sm:$0xff]
      %v593 = vld [vmem:[%s257 + $0x968] sm:$0xff]
      %v594 = vld [vmem:[%s257 + $0x970] sm:$0xff]
      %v595 = vld [vmem:[%s257 + $0x978] sm:$0xff]
      %v596 = vld [vmem:[%s257 + $0x980] sm:$0xff]
      %v597 = vld [vmem:[%s257 + $0x988] sm:$0xff]
      %v598 = vld [vmem:[%s257 + $0x990] sm:$0xff]
      %v599 = vld [vmem:[%s257 + $0x998] sm:$0xff]
      %v600 = vld [vmem:[%s257 + $0x9a0] sm:$0xff]
      %v601 = vld [vmem:[%s257 + $0x9a8] sm:$0xff]
      %v602 = vld [vmem:[%s257 + $0x9b0] sm:$0xff]
      %v603 = vld [vmem:[%s257 + $0x9b8] sm:$0xff]
      %v604 = vld [vmem:[%s257 + $0x9c0] sm:$0xff]
      %v605 = vld [vmem:[%s257 + $0x9c8] sm:$0xff]
      %v606 = vld [vmem:[%s257 + $0x9d0] sm:$0xff]
      %v607 = vld [vmem:[%s257 + $0x9d8] sm:$0xff]
      %v608 = vld [vmem:[%s257 + $0x9e0] sm:$0xff]
      %v609 = vld [vmem:[%s257 + $0x9e8] sm:$0xff]
      %v610 = vld [vmem:[%s257 + $0x9f0] sm:$0xff]
      %v611 = vld [vmem:[%s257 + $0x9f8] sm:$0xff]
      %v612 = vld [vmem:[%s257 + $0xa00] sm:$0xff]
      %v613 = vld [vmem:[%s257 + $0xa08] sm:$0xff]
      %v614 = vld [vmem:[%s257 + $0xa10] sm:$0xff]
      %v615 = vld [vmem:[%s257 + $0xa18] sm:$0xff]
      %v616 = vld [vmem:[%s257 + $0xa20] sm:$0xff]
      %v617 = vld [vmem:[%s257 + $0xa28] sm:$0xff]
      %v618 = vld [vmem:[%s257 + $0xa30] sm:$0xff]
      %v619 = vld [vmem:[%s257 + $0xa38] sm:$0xff]
      %v620 = vld [vmem:[%s257 + $0xa40] sm:$0xff]
      %v621 = vld [vmem:[%s257 + $0xa48] sm:$0xff]
      %v622 = vld [vmem:[%s257 + $0xa50] sm:$0xff]
      %v623 = vld [vmem:[%s257 + $0xa58] sm:$0xff]
      %v624 = vld [vmem:[%s257 + $0xa60] sm:$0xff]
      %v625 = vld [vmem:[%s257 + $0xa68] sm:$0xff]
      %v626 = vld [vmem:[%s257 + $0xa70] sm:$0xff]
      %v627 = vld [vmem:[%s257 + $0xa78] sm:$0xff]
      %v628 = vld [vmem:[%s257 + $0xa80] sm:$0xff]
      %v629 = vld [vmem:[%s257 + $0xa88] sm:$0xff]
      %v630 = vld [vmem:[%s257 + $0xa90] sm:$0xff]
      %v631 = vld [vmem:[%s257 + $0xa98] sm:$0xff]
      %v632 = vld [vmem:[%s257 + $0xaa0] sm:$0xff]
      %v633 = vld [vmem:[%s257 + $0xaa8] sm:$0xff]
      %v634 = vld [vmem:[%s257 + $0xab0] sm:$0xff]
      %v635 = vld [vmem:[%s257 + $0xab8] sm:$0xff]
      %v636 = vld [vmem:[%s257 + $0xac0] sm:$0xff]
      %v637 = vld [vmem:[%s257 + $0xac8] sm:$0xff]
      %v638 = vld [vmem:[%s257 + $0xad0] sm:$0xff]
      %v639 = vld [vmem:[%s257 + $0xad8] sm:$0xff]
      %v640 = vld [vmem:[%s257 + $0xae0] sm:$0xff]
      %v641 = vld [vmem:[%s257 + $0xae8] sm:$0xff]
      %v642 = vld [vmem:[%s257 + $0xaf0] sm:$0xff]
      %v643 = vld [vmem:[%s257 + $0xaf8] sm:$0xff]
      %v644 = vld [vmem:[%s257 + $0xb00] sm:$0xff]
      %v645 = vld [vmem:[%s257 + $0xb08] sm:$0xff]
      %v646 = vld [vmem:[%s257 + $0xb10] sm:$0xff]
      %v647 = vld [vmem:[%s257 + $0xb18] sm:$0xff]
      %v648 = vld [vmem:[%s257 + $0xb20] sm:$0xff]
      %v649 = vld [vmem:[%s257 + $0xb28] sm:$0xff]
      %v650 = vld [vmem:[%s257 + $0xb30] sm:$0xff]
      %v651 = vld [vmem:[%s257 + $0xb38] sm:$0xff]
      %v652 = vld [vmem:[%s257 + $0xb40] sm:$0xff]
      %v653 = vld [vmem:[%s257 + $0xb48] sm:$0xff]
      %v654 = vld [vmem:[%s257 + $0xb50] sm:$0xff]
      %v655 = vld [vmem:[%s257 + $0xb58] sm:$0xff]
      %v656 = vld [vmem:[%s257 + $0xb60] sm:$0xff]
      %v657 = vld [vmem:[%s257 + $0xb68] sm:$0xff]
      %v658 = vld [vmem:[%s257 + $0xb70] sm:$0xff]
      %v659 = vld [vmem:[%s257 + $0xb78] sm:$0xff]
      %v660 = vld [vmem:[%s257 + $0xb80] sm:$0xff]
      %v661 = vld [vmem:[%s257 + $0xb88] sm:$0xff]
      %v662 = vld [vmem:[%s257 + $0xb90] sm:$0xff]
      %v663 = vld [vmem:[%s257 + $0xb98] sm:$0xff]
      %v664 = vld [vmem:[%s257 + $0xba0] sm:$0xff]
      %v665 = vld [vmem:[%s257 + $0xba8] sm:$0xff]
      %v666 = vld [vmem:[%s257 + $0xbb0] sm:$0xff]
      %v667 = vld [vmem:[%s257 + $0xbb8] sm:$0xff]
      %v668 = vld [vmem:[%s257 + $0xbc0] sm:$0xff]
      %v669 = vld [vmem:[%s257 + $0xbc8] sm:$0xff]
      %v670 = vld [vmem:[%s257 + $0xbd0] sm:$0xff]
      %v671 = vld [vmem:[%s257 + $0xbd8] sm:$0xff]
      %v672 = vld [vmem:[%s257 + $0xbe0] sm:$0xff]
      %v673 = vld [vmem:[%s257 + $0xbe8] sm:$0xff]
      %v674 = vld [vmem:[%s257 + $0xbf0] sm:$0xff]
      %v675 = vld [vmem:[%s257 + $0xbf8] sm:$0xff]
      %v676 = vld [vmem:[%s257 + $0xc00] sm:$0xff]
      %v677 = vld [vmem:[%s257 + $0xc08] sm:$0xff]
      %v678 = vld [vmem:[%s257 + $0xc10] sm:$0xff]
      %v679 = vld [vmem:[%s257 + $0xc18] sm:$0xff]
      %v680 = vld [vmem:[%s257 + $0xc20] sm:$0xff]
      %v681 = vld [vmem:[%s257 + $0xc28] sm:$0xff]
      %v682 = vld [vmem:[%s257 + $0xc30] sm:$0xff]
      %v683 = vld [vmem:[%s257 + $0xc38] sm:$0xff]
      %v684 = vld [vmem:[%s257 + $0xc40] sm:$0xff]
      %v685 = vld [vmem:[%s257 + $0xc48] sm:$0xff]
      %v686 = vld [vmem:[%s257 + $0xc50] sm:$0xff]
      %v687 = vld [vmem:[%s257 + $0xc58] sm:$0xff]
      %v688 = vld [vmem:[%s257 + $0xc60] sm:$0xff]
      %v689 = vld [vmem:[%s257 + $0xc68] sm:$0xff]
      %v690 = vld [vmem:[%s257 + $0xc70] sm:$0xff]
      %v691 = vld [vmem:[%s257 + $0xc78] sm:$0xff]
      %v692 = vld [vmem:[%s257 + $0xc80] sm:$0xff]
      %v693 = vld [vmem:[%s257 + $0xc88] sm:$0xff]
      %v694 = vld [vmem:[%s257 + $0xc90] sm:$0xff]
      %v695 = vld [vmem:[%s257 + $0xc98] sm:$0xff]
      %v696 = vld [vmem:[%s257 + $0xca0] sm:$0xff]
      %v697 = vld [vmem:[%s257 + $0xca8] sm:$0xff]
      %v698 = vld [vmem:[%s257 + $0xcb0] sm:$0xff]
      %v699 = vld [vmem:[%s257 + $0xcb8] sm:$0xff]
      %v700 = vld [vmem:[%s257 + $0xcc0] sm:$0xff]
      %v701 = vld [vmem:[%s257 + $0xcc8] sm:$0xff]
      %v702 = vld [vmem:[%s257 + $0xcd0] sm:$0xff]
      %v703 = vld [vmem:[%s257 + $0xcd8] sm:$0xff]
      %v704 = vld [vmem:[%s257 + $0xce0] sm:$0xff]
      %v705 = vld [vmem:[%s257 + $0xce8] sm:$0xff]
      %v706 = vld [vmem:[%s257 + $0xcf0] sm:$0xff]
      %v707 = vld [vmem:[%s257 + $0xcf8] sm:$0xff]
      %v708 = vld [vmem:[%s257 + $0xd00] sm:$0xff]
      %v709 = vld [vmem:[%s257 + $0xd08] sm:$0xff]
      %v710 = vld [vmem:[%s257 + $0xd10] sm:$0xff]
      %v711 = vld [vmem:[%s257 + $0xd18] sm:$0xff]
      %v712 = vld [vmem:[%s257 + $0xd20] sm:$0xff]
      %v713 = vld [vmem:[%s257 + $0xd28] sm:$0xff]
      %v714 = vld [vmem:[%s257 + $0xd30] sm:$0xff]
      %v715 = vld [vmem:[%s257 + $0xd38] sm:$0xff]
      %v716 = vld [vmem:[%s257 + $0xd40] sm:$0xff]
      %v717 = vld [vmem:[%s257 + $0xd48] sm:$0xff]
      %v718 = vld [vmem:[%s257 + $0xd50] sm:$0xff]
      %v719 = vld [vmem:[%s257 + $0xd58] sm:$0xff]
      %v720 = vld [vmem:[%s257 + $0xd60] sm:$0xff]
      %v721 = vld [vmem:[%s257 + $0xd68] sm:$0xff]
      %v722 = vld [vmem:[%s257 + $0xd70] sm:$0xff]
      %v723 = vld [vmem:[%s257 + $0xd78] sm:$0xff]
      %v724 = vld [vmem:[%s257 + $0xd80] sm:$0xff]
      %v725 = vld [vmem:[%s257 + $0xd88] sm:$0xff]
      %v726 = vld [vmem:[%s257 + $0xd90] sm:$0xff]
      %v727 = vld [vmem:[%s257 + $0xd98] sm:$0xff]
      %v728 = vld [vmem:[%s257 + $0xda0] sm:$0xff]
      %v729 = vld [vmem:[%s257 + $0xda8] sm:$0xff]
      %v730 = vld [vmem:[%s257 + $0xdb0] sm:$0xff]
      %v731 = vld [vmem:[%s257 + $0xdb8] sm:$0xff]
      %v732 = vld [vmem:[%s257 + $0xdc0] sm:$0xff]
      %v733 = vld [vmem:[%s257 + $0xdc8] sm:$0xff]
      %v734 = vld [vmem:[%s257 + $0xdd0] sm:$0xff]
      %v735 = vld [vmem:[%s257 + $0xdd8] sm:$0xff]
      %v736 = vld [vmem:[%s257 + $0xde0] sm:$0xff]
      %v737 = vld [vmem:[%s257 + $0xde8] sm:$0xff]
      %v738 = vld [vmem:[%s257 + $0xdf0] sm:$0xff]
      %v739 = vld [vmem:[%s257 + $0xdf8] sm:$0xff]
      %v740 = vld [vmem:[%s257 + $0xe00] sm:$0xff]
      %v741 = vld [vmem:[%s257 + $0xe08] sm:$0xff]
      %v742 = vld [vmem:[%s257 + $0xe10] sm:$0xff]
      %v743 = vld [vmem:[%s257 + $0xe18] sm:$0xff]
      %v744 = vld [vmem:[%s257 + $0xe20] sm:$0xff]
      %v745 = vld [vmem:[%s257 + $0xe28] sm:$0xff]
      %v746 = vld [vmem:[%s257 + $0xe30] sm:$0xff]
      %v747 = vld [vmem:[%s257 + $0xe38] sm:$0xff]
      %v748 = vld [vmem:[%s257 + $0xe40] sm:$0xff]
      %v749 = vld [vmem:[%s257 + $0xe48] sm:$0xff]
      %v750 = vld [vmem:[%s257 + $0xe50] sm:$0xff]
      %v751 = vld [vmem:[%s257 + $0xe58] sm:$0xff]
      %v752 = vld [vmem:[%s257 + $0xe60] sm:$0xff]
      %v753 = vld [vmem:[%s257 + $0xe68] sm:$0xff]
      %v754 = vld [vmem:[%s257 + $0xe70] sm:$0xff]
      %v755 = vld [vmem:[%s257 + $0xe78] sm:$0xff]
      %v756 = vld [vmem:[%s257 + $0xe80] sm:$0xff]
      %v757 = vld [vmem:[%s257 + $0xe88] sm:$0xff]
      %v758 = vld [vmem:[%s257 + $0xe90] sm:$0xff]
      %v759 = vld [vmem:[%s257 + $0xe98] sm:$0xff]
      %v760 = vld [vmem:[%s257 + $0xea0] sm:$0xff]
      %v761 = vld [vmem:[%s257 + $0xea8] sm:$0xff]
      %v762 = vld [vmem:[%s257 + $0xeb0] sm:$0xff]
      %v763 = vld [vmem:[%s257 + $0xeb8] sm:$0xff]
      %v764 = vld [vmem:[%s257 + $0xec0] sm:$0xff]
      %v765 = vld [vmem:[%s257 + $0xec8] sm:$0xff]
      %v766 = vld [vmem:[%s257 + $0xed0] sm:$0xff]
      %v767 = vld [vmem:[%s257 + $0xed8] sm:$0xff]
      %v768 = vld [vmem:[%s257 + $0xee0] sm:$0xff]
      %v769 = vld [vmem:[%s257 + $0xee8] sm:$0xff]
      %v770 = vld [vmem:[%s257 + $0xef0] sm:$0xff]
      %v771 = vld [vmem:[%s257 + $0xef8] sm:$0xff]
      %v772 = vld [vmem:[%s257 + $0xf00] sm:$0xff]
      %v773 = vld [vmem:[%s257 + $0xf08] sm:$0xff]
      %v774 = vld [vmem:[%s257 + $0xf10] sm:$0xff]
      %v775 = vld [vmem:[%s257 + $0xf18] sm:$0xff]
      %v776 = vld [vmem:[%s257 + $0xf20] sm:$0xff]
      %v777 = vld [vmem:[%s257 + $0xf28] sm:$0xff]
      %v778 = vld [vmem:[%s257 + $0xf30] sm:$0xff]
      %v779 = vld [vmem:[%s257 + $0xf38] sm:$0xff]
      %v780 = vld [vmem:[%s257 + $0xf40] sm:$0xff]
      %v781 = vld [vmem:[%s257 + $0xf48] sm:$0xff]
      %v782 = vld [vmem:[%s257 + $0xf50] sm:$0xff]
      %v783 = vld [vmem:[%s257 + $0xf58] sm:$0xff]
      %v784 = vld [vmem:[%s257 + $0xf60] sm:$0xff]
      %v785 = vld [vmem:[%s257 + $0xf68] sm:$0xff]
      %v786 = vld [vmem:[%s257 + $0xf70] sm:$0xff]
      %v787 = vld [vmem:[%s257 + $0xf78] sm:$0xff]
      %v788 = vld [vmem:[%s257 + $0xf80] sm:$0xff]
      %v789 = vld [vmem:[%s257 + $0xf88] sm:$0xff]
      %v790 = vld [vmem:[%s257 + $0xf90] sm:$0xff]
      %v791 = vld [vmem:[%s257 + $0xf98] sm:$0xff]
      %v792 = vld [vmem:[%s257 + $0xfa0] sm:$0xff]
      %v793 = vld [vmem:[%s257 + $0xfa8] sm:$0xff]
      %v794 = vld [vmem:[%s257 + $0xfb0] sm:$0xff]
      %v795 = vld [vmem:[%s257 + $0xfb8] sm:$0xff]
      %v796 = vld [vmem:[%s257 + $0xfc0] sm:$0xff]
      %v797 = vld [vmem:[%s257 + $0xfc8] sm:$0xff]
      %v798 = vld [vmem:[%s257 + $0xfd0] sm:$0xff]
      %v799 = vld [vmem:[%s257 + $0xfd8] sm:$0xff]
      %v800 = vld [vmem:[%s257 + $0xfe0] sm:$0xff]
      %v801 = vld [vmem:[%s257 + $0xfe8] sm:$0xff]
      %v802 = vld [vmem:[%s257 + $0xff0] sm:$0xff]
      %v803 = vld [vmem:[%s257 + $0xff8] sm:$0xff]
      %v804 = vld [vmem:[%s263] sm:$0xf]
      %v805 = vld [vmem:[%s263 + $0x4] sm:$0xf]
      %v806 = vld [vmem:[%s263 + $0x8] sm:$0xf]
      %v807 = vld [vmem:[%s263 + $0xc] sm:$0xf]
      %v808 = vld [vmem:[%s263 + $0x10] sm:$0xf]
      %v809 = vld [vmem:[%s263 + $0x14] sm:$0xf]
      %v810 = vld [vmem:[%s263 + $0x18] sm:$0xf]
      %v811 = vld [vmem:[%s263 + $0x1c] sm:$0xf]
      %v812 = vld [vmem:[%s263 + $0x20] sm:$0xf]
      %v813 = vld [vmem:[%s263 + $0x24] sm:$0xf]
      %v814 = vld [vmem:[%s263 + $0x28] sm:$0xf]
      %v815 = vld [vmem:[%s263 + $0x2c] sm:$0xf]
      %v816 = vld [vmem:[%s263 + $0x30] sm:$0xf]
      %v817 = vld [vmem:[%s263 + $0x34] sm:$0xf]
      %v818 = vld [vmem:[%s263 + $0x38] sm:$0xf]
      %v819 = vld [vmem:[%s263 + $0x3c] sm:$0xf]
      %v820 = vld [vmem:[%s263 + $0x40] sm:$0xf]
      %v821 = vld [vmem:[%s263 + $0x44] sm:$0xf]
      %v822 = vld [vmem:[%s263 + $0x48] sm:$0xf]
      %v823 = vld [vmem:[%s263 + $0x4c] sm:$0xf]
      %v824 = vld [vmem:[%s263 + $0x50] sm:$0xf]
      %v825 = vld [vmem:[%s263 + $0x54] sm:$0xf]
      %v826 = vld [vmem:[%s263 + $0x58] sm:$0xf]
      %v827 = vld [vmem:[%s263 + $0x5c] sm:$0xf]
      %v828 = vld [vmem:[%s263 + $0x60] sm:$0xf]
      %v829 = vld [vmem:[%s263 + $0x64] sm:$0xf]
      %v830 = vld [vmem:[%s263 + $0x68] sm:$0xf]
      %v831 = vld [vmem:[%s263 + $0x6c] sm:$0xf]
      %v832 = vld [vmem:[%s263 + $0x70] sm:$0xf]
      %v833 = vld [vmem:[%s263 + $0x74] sm:$0xf]
      %v834 = vld [vmem:[%s263 + $0x78] sm:$0xf]
      %v835 = vld [vmem:[%s263 + $0x7c] sm:$0xf]
      %v836 = vld [vmem:[%s263 + $0x80] sm:$0xf]
      %v837 = vld [vmem:[%s263 + $0x84] sm:$0xf]
      %v838 = vld [vmem:[%s263 + $0x88] sm:$0xf]
      %v839 = vld [vmem:[%s263 + $0x8c] sm:$0xf]
      %v840 = vld [vmem:[%s263 + $0x90] sm:$0xf]
      %v841 = vld [vmem:[%s263 + $0x94] sm:$0xf]
      %v842 = vld [vmem:[%s263 + $0x98] sm:$0xf]
      %v843 = vld [vmem:[%s263 + $0x9c] sm:$0xf]
      %v844 = vld [vmem:[%s263 + $0xa0] sm:$0xf]
      %v845 = vld [vmem:[%s263 + $0xa4] sm:$0xf]
      %v846 = vld [vmem:[%s263 + $0xa8] sm:$0xf]
      %v847 = vld [vmem:[%s263 + $0xac] sm:$0xf]
      %v848 = vld [vmem:[%s263 + $0xb0] sm:$0xf]
      %v849 = vld [vmem:[%s263 + $0xb4] sm:$0xf]
      %v850 = vld [vmem:[%s263 + $0xb8] sm:$0xf]
      %v851 = vld [vmem:[%s263 + $0xbc] sm:$0xf]
      %v852 = vld [vmem:[%s263 + $0xc0] sm:$0xf]
      %v853 = vld [vmem:[%s263 + $0xc4] sm:$0xf]
      %v854 = vld [vmem:[%s263 + $0xc8] sm:$0xf]
      %v855 = vld [vmem:[%s263 + $0xcc] sm:$0xf]
      %v856 = vld [vmem:[%s263 + $0xd0] sm:$0xf]
      %v857 = vld [vmem:[%s263 + $0xd4] sm:$0xf]
      %v858 = vld [vmem:[%s263 + $0xd8] sm:$0xf]
      %v859 = vld [vmem:[%s263 + $0xdc] sm:$0xf]
      %v860 = vld [vmem:[%s263 + $0xe0] sm:$0xf]
      %v861 = vld [vmem:[%s263 + $0xe4] sm:$0xf]
      %v862 = vld [vmem:[%s263 + $0xe8] sm:$0xf]
      %v863 = vld [vmem:[%s263 + $0xec] sm:$0xf]
      %v864 = vld [vmem:[%s263 + $0xf0] sm:$0xf]
      %v865 = vld [vmem:[%s263 + $0xf4] sm:$0xf]
      %v866 = vld [vmem:[%s263 + $0xf8] sm:$0xf]
      %v867 = vld [vmem:[%s263 + $0xfc] sm:$0xf]
      %v868 = vld [vmem:[%s263 + $0x100] sm:$0xf]
      %v869 = vld [vmem:[%s263 + $0x104] sm:$0xf]
      %v870 = vld [vmem:[%s263 + $0x108] sm:$0xf]
      %v871 = vld [vmem:[%s263 + $0x10c] sm:$0xf]
      %v872 = vld [vmem:[%s263 + $0x110] sm:$0xf]
      %v873 = vld [vmem:[%s263 + $0x114] sm:$0xf]
      %v874 = vld [vmem:[%s263 + $0x118] sm:$0xf]
      %v875 = vld [vmem:[%s263 + $0x11c] sm:$0xf]
      %v876 = vld [vmem:[%s263 + $0x120] sm:$0xf]
      %v877 = vld [vmem:[%s263 + $0x124] sm:$0xf]
      %v878 = vld [vmem:[%s263 + $0x128] sm:$0xf]
      %v879 = vld [vmem:[%s263 + $0x12c] sm:$0xf]
      %v880 = vld [vmem:[%s263 + $0x130] sm:$0xf]
      %v881 = vld [vmem:[%s263 + $0x134] sm:$0xf]
      %v882 = vld [vmem:[%s263 + $0x138] sm:$0xf]
      %v883 = vld [vmem:[%s263 + $0x13c] sm:$0xf]
      %v884 = vld [vmem:[%s263 + $0x140] sm:$0xf]
      %v885 = vld [vmem:[%s263 + $0x144] sm:$0xf]
      %v886 = vld [vmem:[%s263 + $0x148] sm:$0xf]
      %v887 = vld [vmem:[%s263 + $0x14c] sm:$0xf]
      %v888 = vld [vmem:[%s263 + $0x150] sm:$0xf]
      %v889 = vld [vmem:[%s263 + $0x154] sm:$0xf]
      %v890 = vld [vmem:[%s263 + $0x158] sm:$0xf]
      %v891 = vld [vmem:[%s263 + $0x15c] sm:$0xf]
      %v892 = vld [vmem:[%s263 + $0x160] sm:$0xf]
      %v893 = vld [vmem:[%s263 + $0x164] sm:$0xf]
      %v894 = vld [vmem:[%s263 + $0x168] sm:$0xf]
      %v895 = vld [vmem:[%s263 + $0x16c] sm:$0xf]
      %v896 = vld [vmem:[%s263 + $0x170] sm:$0xf]
      %v897 = vld [vmem:[%s263 + $0x174] sm:$0xf]
      %v898 = vld [vmem:[%s263 + $0x178] sm:$0xf]
      %v899 = vld [vmem:[%s263 + $0x17c] sm:$0xf]
      %v900 = vld [vmem:[%s263 + $0x180] sm:$0xf]
      %v901 = vld [vmem:[%s263 + $0x184] sm:$0xf]
      %v902 = vld [vmem:[%s263 + $0x188] sm:$0xf]
      %v903 = vld [vmem:[%s263 + $0x18c] sm:$0xf]
      %v904 = vld [vmem:[%s263 + $0x190] sm:$0xf]
      %v905 = vld [vmem:[%s263 + $0x194] sm:$0xf]
      %v906 = vld [vmem:[%s263 + $0x198] sm:$0xf]
      %v907 = vld [vmem:[%s263 + $0x19c] sm:$0xf]
      %v908 = vld [vmem:[%s263 + $0x1a0] sm:$0xf]
      %v909 = vld [vmem:[%s263 + $0x1a4] sm:$0xf]
      %v910 = vld [vmem:[%s263 + $0x1a8] sm:$0xf]
      %v911 = vld [vmem:[%s263 + $0x1ac] sm:$0xf]
      %v912 = vld [vmem:[%s263 + $0x1b0] sm:$0xf]
      %v913 = vld [vmem:[%s263 + $0x1b4] sm:$0xf]
      %v914 = vld [vmem:[%s263 + $0x1b8] sm:$0xf]
      %v915 = vld [vmem:[%s263 + $0x1bc] sm:$0xf]
      %v916 = vld [vmem:[%s263 + $0x1c0] sm:$0xf]
      %v917 = vld [vmem:[%s263 + $0x1c4] sm:$0xf]
      %v918 = vld [vmem:[%s263 + $0x1c8] sm:$0xf]
      %v919 = vld [vmem:[%s263 + $0x1cc] sm:$0xf]
      %v920 = vld [vmem:[%s263 + $0x1d0] sm:$0xf]
      %v921 = vld [vmem:[%s263 + $0x1d4] sm:$0xf]
      %v922 = vld [vmem:[%s263 + $0x1d8] sm:$0xf]
      %v923 = vld [vmem:[%s263 + $0x1dc] sm:$0xf]
      %v924 = vld [vmem:[%s263 + $0x1e0] sm:$0xf]
      %v925 = vld [vmem:[%s263 + $0x1e4] sm:$0xf]
      %v926 = vld [vmem:[%s263 + $0x1e8] sm:$0xf]
      %v927 = vld [vmem:[%s263 + $0x1ec] sm:$0xf]
      %v928 = vld [vmem:[%s263 + $0x1f0] sm:$0xf]
      %v929 = vld [vmem:[%s263 + $0x1f4] sm:$0xf]
      %v930 = vld [vmem:[%s263 + $0x1f8] sm:$0xf]
      %v931 = vld [vmem:[%s263 + $0x1fc] sm:$0xf]
      %v1060 = vunpack.c.l.b16 %v804
      %v1061 = vunpack.c.l.b16 %v805
      %v1062 = vunpack.c.l.b16 %v806
      %v1063 = vunpack.c.l.b16 %v807
      %v1064 = vunpack.c.l.b16 %v808
      %v1065 = vunpack.c.l.b16 %v809
      %v1066 = vunpack.c.l.b16 %v810
      %v1067 = vunpack.c.l.b16 %v811
      %v1068 = vunpack.c.l.b16 %v812
      %v1069 = vunpack.c.l.b16 %v813
      %v1070 = vunpack.c.l.b16 %v814
      %v1071 = vunpack.c.l.b16 %v815
      %v1072 = vunpack.c.l.b16 %v816
      %v1073 = vunpack.c.l.b16 %v817
      %v1074 = vunpack.c.l.b16 %v818
      %v1075 = vunpack.c.l.b16 %v819
      %v1076 = vunpack.c.l.b16 %v820
      %v1077 = vunpack.c.l.b16 %v821
      %v1078 = vunpack.c.l.b16 %v822
      %v1079 = vunpack.c.l.b16 %v823
      %v1080 = vunpack.c.l.b16 %v824
      %v1081 = vunpack.c.l.b16 %v825
      %v1082 = vunpack.c.l.b16 %v826
      %v1083 = vunpack.c.l.b16 %v827
      %v1084 = vunpack.c.l.b16 %v828
      %v1085 = vunpack.c.l.b16 %v829
      %v1086 = vunpack.c.l.b16 %v830
      %v1087 = vunpack.c.l.b16 %v831
      %v1088 = vunpack.c.l.b16 %v832
      %v1089 = vunpack.c.l.b16 %v833
      %v1090 = vunpack.c.l.b16 %v834
      %v1091 = vunpack.c.l.b16 %v835
      %v1092 = vunpack.c.l.b16 %v836
      %v1093 = vunpack.c.l.b16 %v837
      %v1094 = vunpack.c.l.b16 %v838
      %v1095 = vunpack.c.l.b16 %v839
      %v1096 = vunpack.c.l.b16 %v840
      %v1097 = vunpack.c.l.b16 %v841
      %v1098 = vunpack.c.l.b16 %v842
      %v1099 = vunpack.c.l.b16 %v843
      %v1100 = vunpack.c.l.b16 %v844
      %v1101 = vunpack.c.l.b16 %v845
      %v1102 = vunpack.c.l.b16 %v846
      %v1103 = vunpack.c.l.b16 %v847
      %v1104 = vunpack.c.l.b16 %v848
      %v1105 = vunpack.c.l.b16 %v849
      %v1106 = vunpack.c.l.b16 %v850
      %v1107 = vunpack.c.l.b16 %v851
      %v1108 = vunpack.c.l.b16 %v852
      %v1109 = vunpack.c.l.b16 %v853
      %v1110 = vunpack.c.l.b16 %v854
      %v1111 = vunpack.c.l.b16 %v855
      %v1112 = vunpack.c.l.b16 %v856
      %v1113 = vunpack.c.l.b16 %v857
      %v1114 = vunpack.c.l.b16 %v858
      %v1115 = vunpack.c.l.b16 %v859
      %v1116 = vunpack.c.l.b16 %v860
      %v1117 = vunpack.c.l.b16 %v861
      %v1118 = vunpack.c.l.b16 %v862
      %v1119 = vunpack.c.l.b16 %v863
      %v1120 = vunpack.c.l.b16 %v864
      %v1121 = vunpack.c.l.b16 %v865
      %v1122 = vunpack.c.l.b16 %v866
      %v1123 = vunpack.c.l.b16 %v867
      %v1124 = vunpack.c.l.b16 %v868
      %v1125 = vunpack.c.l.b16 %v869
      %v1126 = vunpack.c.l.b16 %v870
      %v1127 = vunpack.c.l.b16 %v871
      %v1128 = vunpack.c.l.b16 %v872
      %v1129 = vunpack.c.l.b16 %v873
      %v1130 = vunpack.c.l.b16 %v874
      %v1131 = vunpack.c.l.b16 %v875
      %v1132 = vunpack.c.l.b16 %v876
      %v1133 = vunpack.c.l.b16 %v877
      %v1134 = vunpack.c.l.b16 %v878
      %v1135 = vunpack.c.l.b16 %v879
      %v1136 = vunpack.c.l.b16 %v880
      %v1137 = vunpack.c.l.b16 %v881
      %v1138 = vunpack.c.l.b16 %v882
      %v1139 = vunpack.c.l.b16 %v883
      %v1140 = vunpack.c.l.b16 %v884
      %v1141 = vunpack.c.l.b16 %v885
      %v1142 = vunpack.c.l.b16 %v886
      %v1143 = vunpack.c.l.b16 %v887
      %v1144 = vunpack.c.l.b16 %v888
      %v1145 = vunpack.c.l.b16 %v889
      %v1146 = vunpack.c.l.b16 %v890
      %v1147 = vunpack.c.l.b16 %v891
      %v1148 = vunpack.c.l.b16 %v892
      %v1149 = vunpack.c.l.b16 %v893
      %v1150 = vunpack.c.l.b16 %v894
      %v1151 = vunpack.c.l.b16 %v895
      %v1152 = vunpack.c.l.b16 %v896
      %v1153 = vunpack.c.l.b16 %v897
      %v1154 = vunpack.c.l.b16 %v898
      %v1155 = vunpack.c.l.b16 %v899
      %v1156 = vunpack.c.l.b16 %v900
      %v1157 = vunpack.c.l.b16 %v901
      %v1158 = vunpack.c.l.b16 %v902
      %v1159 = vunpack.c.l.b16 %v903
      %v1160 = vunpack.c.l.b16 %v904
      %v1161 = vunpack.c.l.b16 %v905
      %v1162 = vunpack.c.l.b16 %v906
      %v1163 = vunpack.c.l.b16 %v907
      %v1164 = vunpack.c.l.b16 %v908
      %v1165 = vunpack.c.l.b16 %v909
      %v1166 = vunpack.c.l.b16 %v910
      %v1167 = vunpack.c.l.b16 %v911
      %v1168 = vunpack.c.l.b16 %v912
      %v1169 = vunpack.c.l.b16 %v913
      %v1170 = vunpack.c.l.b16 %v914
      %v1171 = vunpack.c.l.b16 %v915
      %v1172 = vunpack.c.l.b16 %v916
      %v1173 = vunpack.c.l.b16 %v917
      %v1174 = vunpack.c.l.b16 %v918
      %v1175 = vunpack.c.l.b16 %v919
      %v1176 = vunpack.c.l.b16 %v920
      %v1177 = vunpack.c.l.b16 %v921
      %v1178 = vunpack.c.l.b16 %v922
      %v1179 = vunpack.c.l.b16 %v923
      %v1180 = vunpack.c.l.b16 %v924
      %v1181 = vunpack.c.l.b16 %v925
      %v1182 = vunpack.c.l.b16 %v926
      %v1183 = vunpack.c.l.b16 %v927
      %v1184 = vunpack.c.l.b16 %v928
      %v1185 = vunpack.c.l.b16 %v929
      %v1186 = vunpack.c.l.b16 %v930
      %v1187 = vunpack.c.l.b16 %v931
      %v1188 = vpack.c.b16 %v1061, %v1060
      %v1189 = vpack.c.b16 %v1063, %v1062
      %v1190 = vpack.c.b16 %v1065, %v1064
      %v1191 = vpack.c.b16 %v1067, %v1066
      %v1192 = vpack.c.b16 %v1069, %v1068
      %v1193 = vpack.c.b16 %v1071, %v1070
      %v1194 = vpack.c.b16 %v1073, %v1072
      %v1195 = vpack.c.b16 %v1075, %v1074
      %v1196 = vpack.c.b16 %v1077, %v1076
      %v1197 = vpack.c.b16 %v1079, %v1078
      %v1198 = vpack.c.b16 %v1081, %v1080
      %v1199 = vpack.c.b16 %v1083, %v1082
      %v1200 = vpack.c.b16 %v1085, %v1084
      %v1201 = vpack.c.b16 %v1087, %v1086
      %v1202 = vpack.c.b16 %v1089, %v1088
      %v1203 = vpack.c.b16 %v1091, %v1090
      %v1204 = vpack.c.b16 %v1093, %v1092
      %v1205 = vpack.c.b16 %v1095, %v1094
      %v1206 = vpack.c.b16 %v1097, %v1096
      %v1207 = vpack.c.b16 %v1099, %v1098
      %v1208 = vpack.c.b16 %v1101, %v1100
      %v1209 = vpack.c.b16 %v1103, %v1102
      %v1210 = vpack.c.b16 %v1105, %v1104
      %v1211 = vpack.c.b16 %v1107, %v1106
      %v1212 = vpack.c.b16 %v1109, %v1108
      %v1213 = vpack.c.b16 %v1111, %v1110
      %v1214 = vpack.c.b16 %v1113, %v1112
      %v1215 = vpack.c.b16 %v1115, %v1114
      %v1216 = vpack.c.b16 %v1117, %v1116
      %v1217 = vpack.c.b16 %v1119, %v1118
      %v1218 = vpack.c.b16 %v1121, %v1120
      %v1219 = vpack.c.b16 %v1123, %v1122
      %v1220 = vpack.c.b16 %v1125, %v1124
      %v1221 = vpack.c.b16 %v1127, %v1126
      %v1222 = vpack.c.b16 %v1129, %v1128
      %v1223 = vpack.c.b16 %v1131, %v1130
      %v1224 = vpack.c.b16 %v1133, %v1132
      %v1225 = vpack.c.b16 %v1135, %v1134
      %v1226 = vpack.c.b16 %v1137, %v1136
      %v1227 = vpack.c.b16 %v1139, %v1138
      %v1228 = vpack.c.b16 %v1141, %v1140
      %v1229 = vpack.c.b16 %v1143, %v1142
      %v1230 = vpack.c.b16 %v1145, %v1144
      %v1231 = vpack.c.b16 %v1147, %v1146
      %v1232 = vpack.c.b16 %v1149, %v1148
      %v1233 = vpack.c.b16 %v1151, %v1150
      %v1234 = vpack.c.b16 %v1153, %v1152
      %v1235 = vpack.c.b16 %v1155, %v1154
      %v1236 = vpack.c.b16 %v1157, %v1156
      %v1237 = vpack.c.b16 %v1159, %v1158
      %v1238 = vpack.c.b16 %v1161, %v1160
      %v1239 = vpack.c.b16 %v1163, %v1162
      %v1240 = vpack.c.b16 %v1165, %v1164
      %v1241 = vpack.c.b16 %v1167, %v1166
      %v1242 = vpack.c.b16 %v1169, %v1168
      %v1243 = vpack.c.b16 %v1171, %v1170
      %v1244 = vpack.c.b16 %v1173, %v1172
      %v1245 = vpack.c.b16 %v1175, %v1174
      %v1246 = vpack.c.b16 %v1177, %v1176
      %v1247 = vpack.c.b16 %v1179, %v1178
      %v1248 = vpack.c.b16 %v1181, %v1180
      %v1249 = vpack.c.b16 %v1183, %v1182
      %v1250 = vpack.c.b16 %v1185, %v1184
      %v1251 = vpack.c.b16 %v1187, %v1186
      %v1254 = vunpack.c.l.b16 %v279
      %v1255 = vunpack.c.l.b16 %v280
      %v1256 = vpack.c.b16 %v1255, %v1254
      %vm1258 = vcmask 130048
      %v1260 = vsel %vm1258, %v1188, 0
      %v1263 = vsel %vm1258, %v1189, 0
      %v1266 = vsel %vm1258, %v1190, 0
      %v1269 = vsel %vm1258, %v1191, 0
      %v1272 = vsel %vm1258, %v1192, 0
      %v1275 = vsel %vm1258, %v1193, 0
      %v1278 = vsel %vm1258, %v1194, 0
      %v1281 = vsel %vm1258, %v1195, 0
      %v1284 = vsel %vm1258, %v1196, 0
      %v1287 = vsel %vm1258, %v1197, 0
      %v1290 = vsel %vm1258, %v1198, 0
      %v1293 = vsel %vm1258, %v1199, 0
      %v1296 = vsel %vm1258, %v1200, 0
      %v1299 = vsel %vm1258, %v1201, 0
      %v1302 = vsel %vm1258, %v1202, 0
      %v1305 = vsel %vm1258, %v1203, 0
      %v1308 = vsel %vm1258, %v1204, 0
      %v1311 = vsel %vm1258, %v1205, 0
      %v1314 = vsel %vm1258, %v1206, 0
      %v1317 = vsel %vm1258, %v1207, 0
      %v1320 = vsel %vm1258, %v1208, 0
      %v1323 = vsel %vm1258, %v1209, 0
      %v1326 = vsel %vm1258, %v1210, 0
      %v1329 = vsel %vm1258, %v1211, 0
      %v1332 = vsel %vm1258, %v1212, 0
      %v1335 = vsel %vm1258, %v1213, 0
      %v1338 = vsel %vm1258, %v1214, 0
      %v1341 = vsel %vm1258, %v1215, 0
      %v1344 = vsel %vm1258, %v1216, 0
      %v1347 = vsel %vm1258, %v1217, 0
      %v1350 = vsel %vm1258, %v1218, 0
      %v1353 = vsel %vm1258, %v1219, 0
      %v1356 = vsel %vm1258, %v1220, 0
      %v1359 = vsel %vm1258, %v1221, 0
      %v1362 = vsel %vm1258, %v1222, 0
      %v1365 = vsel %vm1258, %v1223, 0
      %v1368 = vsel %vm1258, %v1224, 0
      %v1371 = vsel %vm1258, %v1225, 0
      %v1374 = vsel %vm1258, %v1226, 0
      %v1377 = vsel %vm1258, %v1227, 0
      %v1380 = vsel %vm1258, %v1228, 0
      %v1383 = vsel %vm1258, %v1229, 0
      %v1386 = vsel %vm1258, %v1230, 0
      %v1389 = vsel %vm1258, %v1231, 0
      %v1392 = vsel %vm1258, %v1232, 0
      %v1395 = vsel %vm1258, %v1233, 0
      %v1398 = vsel %vm1258, %v1234, 0
      %v1401 = vsel %vm1258, %v1235, 0
      %v1404 = vsel %vm1258, %v1236, 0
      %v1407 = vsel %vm1258, %v1237, 0
      %v1410 = vsel %vm1258, %v1238, 0
      %v1413 = vsel %vm1258, %v1239, 0
      %v1416 = vsel %vm1258, %v1240, 0
      %v1419 = vsel %vm1258, %v1241, 0
      %v1422 = vsel %vm1258, %v1242, 0
      %v1425 = vsel %vm1258, %v1243, 0
      %v1428 = vsel %vm1258, %v1244, 0
      %v1431 = vsel %vm1258, %v1245, 0
      %v1434 = vsel %vm1258, %v1246, 0
      %v1437 = vsel %vm1258, %v1247, 0
      %v1440 = vsel %vm1258, %v1248, 0
      %v1443 = vsel %vm1258, %v1249, 0
      %v1446 = vsel %vm1258, %v1250, 0
      %v1449 = vsel %vm1258, %v1251, 0
      %1451 = vmatprep.subr.bf16.mxu0 0
      %1452 = vmatpush1.bf16.msra.mxu0 %v1256
      %1453 = vmatprep.subr.bf16.mxu0 0
      %1454 = vmatpush1.bf16.msra.mxu0 0
      %1455 = vmatprep.subr.bf16.mxu0 0
      %1456 = vmatpush1.bf16.msra.mxu0 0
      %1457 = vmatprep.subr.bf16.mxu0 0
      %1458 = vmatpush1.bf16.msra.mxu0 0
      %1459 = vmatprep.subr.bf16.mxu0 0
      %1460 = vmatpush1.bf16.msra.mxu0 0
      %1461 = vmatprep.subr.bf16.mxu0 0
      %1462 = vmatpush1.bf16.msra.mxu0 0
      %1463 = vmatprep.subr.bf16.mxu0 0
      %1464 = vmatpush1.bf16.msra.mxu0 0
      %1465 = vmatprep.subr.bf16.mxu0 0
      %1466 = vmatpush1.bf16.msra.mxu0 0
      %1467 = vmatprep.subr.bf16.mxu0 0
      %1468 = vmatpush1.bf16.msra.mxu0 0
      %1469 = vmatprep.subr.bf16.mxu0 0
      %1470 = vmatpush1.bf16.msra.mxu0 0
      %1471 = vmatprep.subr.bf16.mxu0 0
      %1472 = vmatpush1.bf16.msra.mxu0 0
      %1473 = vmatprep.subr.bf16.mxu0 0
      %1474 = vmatpush1.bf16.msra.mxu0 0
      %1475 = vmatprep.subr.bf16.mxu0 0
      %1476 = vmatpush1.bf16.msra.mxu0 0
      %1477 = vmatprep.subr.bf16.mxu0 0
      %1478 = vmatpush1.bf16.msra.mxu0 0
      %1479 = vmatprep.subr.bf16.mxu0 0
      %1480 = vmatpush1.bf16.msra.mxu0 0
      %1481 = vmatprep.subr.bf16.mxu0 0
      %1482 = vmatpush1.bf16.msra.mxu0 0
      %1483 = vmatprep.mubr.bf16.mxu0 0
      %1484 = vmatmul.mubr.bf16.gmra.mrb[0].mxu0 %v1260
      %v1485 = vpop.f32.mrb[0].mxu0
      %v1486 = vadd.f32 0.0, %v1485
      %v1487 = vpop.f32.mrb[0].mxu0
      %v1488 = vpop.f32.mrb[0].mxu0
      %v1489 = vadd.f32 0.0, %v1488
      %v1490 = vpop.f32.mrb[0].mxu0
      %1491 = vmatprep.mubr.bf16.mxu0 0
      %1492 = vmatmul.mubr.bf16.gmra.mrb[0].mxu0 %v1263
      %v1493 = vpop.f32.mrb[0].mxu0
      %v1494 = vadd.f32 0.0, %v1493
      %v1495 = vpop.f32.mrb[0].mxu0
      %v1496 = vpop.f32.mrb[0].mxu0
      %v1497 = vadd.f32 0.0, %v1496
      %v1498 = vpop.f32.mrb[0].mxu0
      %1499 = vmatprep.mubr.bf16.mxu0 0
      %1500 = vmatmul.mubr.bf16.gmra.mrb[0].mxu0 %v1266
      %v1501 = vpop.f32.mrb[0].mxu0
      %v1502 = vadd.f32 0.0, %v1501
      %v1503 = vpop.f32.mrb[0].mxu0
      %v1504 = vpop.f32.mrb[0].mxu0
      %v1505 = vadd.f32 0.0, %v1504
      %v1506 = vpop.f32.mrb[0].mxu0
      %1507 = vmatprep.mubr.bf16.mxu0 0
      %1508 = vmatmul.mubr.bf16.gmra.mrb[0].mxu0 %v1269
      %v1509 = vpop.f32.mrb[0].mxu0
      %v1510 = vadd.f32 0.0, %v1509
      %v1511 = vpop.f32.mrb[0].mxu0
      %v1512 = vpop.f32.mrb[0].mxu0
      %v1513 = vadd.f32 0.0, %v1512
      %v1514 = vpop.f32.mrb[0].mxu0
      %1515 = vmatprep.mubr.bf16.mxu0 0
      %1516 = vmatmul.mubr.bf16.gmra.mrb[0].mxu0 %v1272
      %v1517 = vpop.f32.mrb[0].mxu0
      %v1518 = vadd.f32 0.0, %v1517
      %v1519 = vpop.f32.mrb[0].mxu0
      %v1520 = vpop.f32.mrb[0].mxu0
      %v1521 = vadd.f32 0.0, %v1520
      %v1522 = vpop.f32.mrb[0].mxu0
      %1523 = vmatprep.mubr.bf16.mxu0 0
      %1524 = vmatmul.mubr.bf16.gmra.mrb[0].mxu0 %v1275
      %v1525 = vpop.f32.mrb[0].mxu0
      %v1526 = vadd.f32 0.0, %v1525
      %v1527 = vpop.f32.mrb[0].mxu0
      %v1528 = vpop.f32.mrb[0].mxu0
      %v1529 = vadd.f32 0.0, %v1528
      %v1530 = vpop.f32.mrb[0].mxu0
      %1531 = vmatprep.mubr.bf16.mxu0 0
      %1532 = vmatmul.mubr.bf16.gmra.mrb[0].mxu0 %v1278
      %v1533 = vpop.f32.mrb[0].mxu0
      %v1534 = vadd.f32 0.0, %v1533
      %v1535 = vpop.f32.mrb[0].mxu0
      %v1536 = vpop.f32.mrb[0].mxu0
      %v1537 = vadd.f32 0.0, %v1536
      %v1538 = vpop.f32.mrb[0].mxu0
      %1539 = vmatprep.mubr.bf16.mxu0 0
      %1540 = vmatmul.mubr.bf16.gmra.mrb[0].mxu0 %v1281
      %v1541 = vpop.f32.mrb[0].mxu0
      %v1542 = vadd.f32 0.0, %v1541
      %v1543 = vpop.f32.mrb[0].mxu0
      %v1544 = vpop.f32.mrb[0].mxu0
      %v1545 = vadd.f32 0.0, %v1544
      %v1546 = vpop.f32.mrb[0].mxu0
      %1547 = vmatprep.mubr.bf16.mxu0 0
      %1548 = vmatmul.mubr.bf16.gmra.mrb[0].mxu0 %v1284
      %v1549 = vpop.f32.mrb[0].mxu0
      %v1550 = vadd.f32 0.0, %v1549
      %v1551 = vpop.f32.mrb[0].mxu0
      %v1552 = vpop.f32.mrb[0].mxu0
      %v1553 = vadd.f32 0.0, %v1552
      %v1554 = vpop.f32.mrb[0].mxu0
      %1555 = vmatprep.mubr.bf16.mxu0 0
      %1556 = vmatmul.mubr.bf16.gmra.mrb[0].mxu0 %v1287
      %v1557 = vpop.f32.mrb[0].mxu0
      %v1558 = vadd.f32 0.0, %v1557
      %v1559 = vpop.f32.mrb[0].mxu0
      %v1560 = vpop.f32.mrb[0].mxu0
      %v1561 = vadd.f32 0.0, %v1560
      %v1562 = vpop.f32.mrb[0].mxu0
      %1563 = vmatprep.mubr.bf16.mxu0 0
      %1564 = vmatmul.mubr.bf16.gmra.mrb[0].mxu0 %v1290
      %v1565 = vpop.f32.mrb[0].mxu0
      %v1566 = vadd.f32 0.0, %v1565
      %v1567 = vpop.f32.mrb[0].mxu0
      %v1568 = vpop.f32.mrb[0].mxu0
      %v1569 = vadd.f32 0.0, %v1568
      %v1570 = vpop.f32.mrb[0].mxu0
      %1571 = vmatprep.mubr.bf16.mxu0 0
      %1572 = vmatmul.mubr.bf16.gmra.mrb[0].mxu0 %v1293
      %v1573 = vpop.f32.mrb[0].mxu0
      %v1574 = vadd.f32 0.0, %v1573
      %v1575 = vpop.f32.mrb[0].mxu0
      %v1576 = vpop.f32.mrb[0].mxu0
      %v1577 = vadd.f32 0.0, %v1576
      %v1578 = vpop.f32.mrb[0].mxu0
      %1579 = vmatprep.mubr.bf16.mxu0 0
      %1580 = vmatmul.mubr.bf16.gmra.mrb[0].mxu0 %v1296
      %v1581 = vpop.f32.mrb[0].mxu0
      %v1582 = vadd.f32 0.0, %v1581
      %v1583 = vpop.f32.mrb[0].mxu0
      %v1584 = vpop.f32.mrb[0].mxu0
      %v1585 = vadd.f32 0.0, %v1584
      %v1586 = vpop.f32.mrb[0].mxu0
      %1587 = vmatprep.mubr.bf16.mxu0 0
      %1588 = vmatmul.mubr.bf16.gmra.mrb[0].mxu0 %v1299
      %v1589 = vpop.f32.mrb[0].mxu0
      %v1590 = vadd.f32 0.0, %v1589
      %v1591 = vpop.f32.mrb[0].mxu0
      %v1592 = vpop.f32.mrb[0].mxu0
      %v1593 = vadd.f32 0.0, %v1592
      %v1594 = vpop.f32.mrb[0].mxu0
      %1595 = vmatprep.mubr.bf16.mxu0 0
      %1596 = vmatmul.mubr.bf16.gmra.mrb[0].mxu0 %v1302
      %v1597 = vpop.f32.mrb[0].mxu0
      %v1598 = vadd.f32 0.0, %v1597
      %v1599 = vpop.f32.mrb[0].mxu0
      %v1600 = vpop.f32.mrb[0].mxu0
      %v1601 = vadd.f32 0.0, %v1600
      %v1602 = vpop.f32.mrb[0].mxu0
      %1603 = vmatprep.mubr.bf16.mxu0 0
      %1604 = vmatmul.mubr.bf16.gmra.mrb[0].mxu0 %v1305
      %v1605 = vpop.f32.mrb[0].mxu0
      %v1606 = vadd.f32 0.0, %v1605
      %v1607 = vpop.f32.mrb[0].mxu0
      %v1608 = vpop.f32.mrb[0].mxu0
      %v1609 = vadd.f32 0.0, %v1608
      %v1610 = vpop.f32.mrb[0].mxu0
      %1611 = vmatprep.mubr.bf16.mxu0 0
      %1612 = vmatmul.mubr.bf16.gmra.mrb[0].mxu0 %v1308
      %v1613 = vpop.f32.mrb[0].mxu0
      %v1614 = vadd.f32 0.0, %v1613
      %v1615 = vpop.f32.mrb[0].mxu0
      %v1616 = vpop.f32.mrb[0].mxu0
      %v1617 = vadd.f32 0.0, %v1616
      %v1618 = vpop.f32.mrb[0].mxu0
      %1619 = vmatprep.mubr.bf16.mxu0 0
      %1620 = vmatmul.mubr.bf16.gmra.mrb[0].mxu0 %v1311
      %v1621 = vpop.f32.mrb[0].mxu0
      %v1622 = vadd.f32 0.0, %v1621
      %v1623 = vpop.f32.mrb[0].mxu0
      %v1624 = vpop.f32.mrb[0].mxu0
      %v1625 = vadd.f32 0.0, %v1624
      %v1626 = vpop.f32.mrb[0].mxu0
      %1627 = vmatprep.mubr.bf16.mxu0 0
      %1628 = vmatmul.mubr.bf16.gmra.mrb[0].mxu0 %v1314
      %v1629 = vpop.f32.mrb[0].mxu0
      %v1630 = vadd.f32 0.0, %v1629
      %v1631 = vpop.f32.mrb[0].mxu0
      %v1632 = vpop.f32.mrb[0].mxu0
      %v1633 = vadd.f32 0.0, %v1632
      %v1634 = vpop.f32.mrb[0].mxu0
      %1635 = vmatprep.mubr.bf16.mxu0 0
      %1636 = vmatmul.mubr.bf16.gmra.mrb[0].mxu0 %v1317
      %v1637 = vpop.f32.mrb[0].mxu0
      %v1638 = vadd.f32 0.0, %v1637
      %v1639 = vpop.f32.mrb[0].mxu0
      %v1640 = vpop.f32.mrb[0].mxu0
      %v1641 = vadd.f32 0.0, %v1640
      %v1642 = vpop.f32.mrb[0].mxu0
      %1643 = vmatprep.mubr.bf16.mxu0 0
      %1644 = vmatmul.mubr.bf16.gmra.mrb[0].mxu0 %v1320
      %v1645 = vpop.f32.mrb[0].mxu0
      %v1646 = vadd.f32 0.0, %v1645
      %v1647 = vpop.f32.mrb[0].mxu0
      %v1648 = vpop.f32.mrb[0].mxu0
      %v1649 = vadd.f32 0.0, %v1648
      %v1650 = vpop.f32.mrb[0].mxu0
      %1651 = vmatprep.mubr.bf16.mxu0 0
      %1652 = vmatmul.mubr.bf16.gmra.mrb[0].mxu0 %v1323
      %v1653 = vpop.f32.mrb[0].mxu0
      %v1654 = vadd.f32 0.0, %v1653
      %v1655 = vpop.f32.mrb[0].mxu0
      %v1656 = vpop.f32.mrb[0].mxu0
      %v1657 = vadd.f32 0.0, %v1656
      %v1658 = vpop.f32.mrb[0].mxu0
      %1659 = vmatprep.mubr.bf16.mxu0 0
      %1660 = vmatmul.mubr.bf16.gmra.mrb[0].mxu0 %v1326
      %v1661 = vpop.f32.mrb[0].mxu0
      %v1662 = vadd.f32 0.0, %v1661
      %v1663 = vpop.f32.mrb[0].mxu0
      %v1664 = vpop.f32.mrb[0].mxu0
      %v1665 = vadd.f32 0.0, %v1664
      %v1666 = vpop.f32.mrb[0].mxu0
      %1667 = vmatprep.mubr.bf16.mxu0 0
      %1668 = vmatmul.mubr.bf16.gmra.mrb[0].mxu0 %v1329
      %v1669 = vpop.f32.mrb[0].mxu0
      %v1670 = vadd.f32 0.0, %v1669
      %v1671 = vpop.f32.mrb[0].mxu0
      %v1672 = vpop.f32.mrb[0].mxu0
      %v1673 = vadd.f32 0.0, %v1672
      %v1674 = vpop.f32.mrb[0].mxu0
      %1675 = vmatprep.mubr.bf16.mxu0 0
      %1676 = vmatmul.mubr.bf16.gmra.mrb[0].mxu0 %v1332
      %v1677 = vpop.f32.mrb[0].mxu0
      %v1678 = vadd.f32 0.0, %v1677
      %v1679 = vpop.f32.mrb[0].mxu0
      %v1680 = vpop.f32.mrb[0].mxu0
      %v1681 = vadd.f32 0.0, %v1680
      %v1682 = vpop.f32.mrb[0].mxu0
      %1683 = vmatprep.mubr.bf16.mxu0 0
      %1684 = vmatmul.mubr.bf16.gmra.mrb[0].mxu0 %v1335
      %v1685 = vpop.f32.mrb[0].mxu0
      %v1686 = vadd.f32 0.0, %v1685
      %v1687 = vpop.f32.mrb[0].mxu0
      %v1688 = vpop.f32.mrb[0].mxu0
      %v1689 = vadd.f32 0.0, %v1688
      %v1690 = vpop.f32.mrb[0].mxu0
      %1691 = vmatprep.mubr.bf16.mxu0 0
      %1692 = vmatmul.mubr.bf16.gmra.mrb[0].mxu0 %v1338
      %v1693 = vpop.f32.mrb[0].mxu0
      %v1694 = vadd.f32 0.0, %v1693
      %v1695 = vpop.f32.mrb[0].mxu0
      %v1696 = vpop.f32.mrb[0].mxu0
      %v1697 = vadd.f32 0.0, %v1696
      %v1698 = vpop.f32.mrb[0].mxu0
      %1699 = vmatprep.mubr.bf16.mxu0 0
      %1700 = vmatmul.mubr.bf16.gmra.mrb[0].mxu0 %v1341
      %v1701 = vpop.f32.mrb[0].mxu0
      %v1702 = vadd.f32 0.0, %v1701
      %v1703 = vpop.f32.mrb[0].mxu0
      %v1704 = vpop.f32.mrb[0].mxu0
      %v1705 = vadd.f32 0.0, %v1704
      %v1706 = vpop.f32.mrb[0].mxu0
      %1707 = vmatprep.mubr.bf16.mxu0 0
      %1708 = vmatmul.mubr.bf16.gmra.mrb[0].mxu0 %v1344
      %v1709 = vpop.f32.mrb[0].mxu0
      %v1710 = vadd.f32 0.0, %v1709
      %v1711 = vpop.f32.mrb[0].mxu0
      %v1712 = vpop.f32.mrb[0].mxu0
      %v1713 = vadd.f32 0.0, %v1712
      %v1714 = vpop.f32.mrb[0].mxu0
      %1715 = vmatprep.mubr.bf16.mxu0 0
      %1716 = vmatmul.mubr.bf16.gmra.mrb[0].mxu0 %v1347
      %v1717 = vpop.f32.mrb[0].mxu0
      %v1718 = vadd.f32 0.0, %v1717
      %v1719 = vpop.f32.mrb[0].mxu0
      %v1720 = vpop.f32.mrb[0].mxu0
      %v1721 = vadd.f32 0.0, %v1720
      %v1722 = vpop.f32.mrb[0].mxu0
      %1723 = vmatprep.mubr.bf16.mxu0 0
      %1724 = vmatmul.mubr.bf16.gmra.mrb[0].mxu0 %v1350
      %v1725 = vpop.f32.mrb[0].mxu0
      %v1726 = vadd.f32 0.0, %v1725
      %v1727 = vpop.f32.mrb[0].mxu0
      %v1728 = vpop.f32.mrb[0].mxu0
      %v1729 = vadd.f32 0.0, %v1728
      %v1730 = vpop.f32.mrb[0].mxu0
      %1731 = vmatprep.mubr.bf16.mxu0 0
      %1732 = vmatmul.mubr.bf16.gmra.mrb[0].mxu0 %v1353
      %v1733 = vpop.f32.mrb[0].mxu0
      %v1734 = vadd.f32 0.0, %v1733
      %v1735 = vpop.f32.mrb[0].mxu0
      %v1736 = vpop.f32.mrb[0].mxu0
      %v1737 = vadd.f32 0.0, %v1736
      %v1738 = vpop.f32.mrb[0].mxu0
      %1739 = vmatprep.mubr.bf16.mxu0 0
      %1740 = vmatmul.mubr.bf16.gmra.mrb[0].mxu0 %v1356
      %v1741 = vpop.f32.mrb[0].mxu0
      %v1742 = vadd.f32 0.0, %v1741
      %v1743 = vpop.f32.mrb[0].mxu0
      %v1744 = vpop.f32.mrb[0].mxu0
      %v1745 = vadd.f32 0.0, %v1744
      %v1746 = vpop.f32.mrb[0].mxu0
      %1747 = vmatprep.mubr.bf16.mxu0 0
      %1748 = vmatmul.mubr.bf16.gmra.mrb[0].mxu0 %v1359
      %v1749 = vpop.f32.mrb[0].mxu0
      %v1750 = vadd.f32 0.0, %v1749
      %v1751 = vpop.f32.mrb[0].mxu0
      %v1752 = vpop.f32.mrb[0].mxu0
      %v1753 = vadd.f32 0.0, %v1752
      %v1754 = vpop.f32.mrb[0].mxu0
      %1755 = vmatprep.mubr.bf16.mxu0 0
      %1756 = vmatmul.mubr.bf16.gmra.mrb[0].mxu0 %v1362
      %v1757 = vpop.f32.mrb[0].mxu0
      %v1758 = vadd.f32 0.0, %v1757
      %v1759 = vpop.f32.mrb[0].mxu0
      %v1760 = vpop.f32.mrb[0].mxu0
      %v1761 = vadd.f32 0.0, %v1760
      %v1762 = vpop.f32.mrb[0].mxu0
      %1763 = vmatprep.mubr.bf16.mxu0 0
      %1764 = vmatmul.mubr.bf16.gmra.mrb[0].mxu0 %v1365
      %v1765 = vpop.f32.mrb[0].mxu0
      %v1766 = vadd.f32 0.0, %v1765
      %v1767 = vpop.f32.mrb[0].mxu0
      %v1768 = vpop.f32.mrb[0].mxu0
      %v1769 = vadd.f32 0.0, %v1768
      %v1770 = vpop.f32.mrb[0].mxu0
      %1771 = vmatprep.mubr.bf16.mxu0 0
      %1772 = vmatmul.mubr.bf16.gmra.mrb[0].mxu0 %v1368
      %v1773 = vpop.f32.mrb[0].mxu0
      %v1774 = vadd.f32 0.0, %v1773
      %v1775 = vpop.f32.mrb[0].mxu0
      %v1776 = vpop.f32.mrb[0].mxu0
      %v1777 = vadd.f32 0.0, %v1776
      %v1778 = vpop.f32.mrb[0].mxu0
      %1779 = vmatprep.mubr.bf16.mxu0 0
      %1780 = vmatmul.mubr.bf16.gmra.mrb[0].mxu0 %v1371
      %v1781 = vpop.f32.mrb[0].mxu0
      %v1782 = vadd.f32 0.0, %v1781
      %v1783 = vpop.f32.mrb[0].mxu0
      %v1784 = vpop.f32.mrb[0].mxu0
      %v1785 = vadd.f32 0.0, %v1784
      %v1786 = vpop.f32.mrb[0].mxu0
      %1787 = vmatprep.mubr.bf16.mxu0 0
      %1788 = vmatmul.mubr.bf16.gmra.mrb[0].mxu0 %v1374
      %v1789 = vpop.f32.mrb[0].mxu0
      %v1790 = vadd.f32 0.0, %v1789
      %v1791 = vpop.f32.mrb[0].mxu0
      %v1792 = vpop.f32.mrb[0].mxu0
      %v1793 = vadd.f32 0.0, %v1792
      %v1794 = vpop.f32.mrb[0].mxu0
      %1795 = vmatprep.mubr.bf16.mxu0 0
      %1796 = vmatmul.mubr.bf16.gmra.mrb[0].mxu0 %v1377
      %v1797 = vpop.f32.mrb[0].mxu0
      %v1798 = vadd.f32 0.0, %v1797
      %v1799 = vpop.f32.mrb[0].mxu0
      %v1800 = vpop.f32.mrb[0].mxu0
      %v1801 = vadd.f32 0.0, %v1800
      %v1802 = vpop.f32.mrb[0].mxu0
      %1803 = vmatprep.mubr.bf16.mxu0 0
      %1804 = vmatmul.mubr.bf16.gmra.mrb[0].mxu0 %v1380
      %v1805 = vpop.f32.mrb[0].mxu0
      %v1806 = vadd.f32 0.0, %v1805
      %v1807 = vpop.f32.mrb[0].mxu0
      %v1808 = vpop.f32.mrb[0].mxu0
      %v1809 = vadd.f32 0.0, %v1808
      %v1810 = vpop.f32.mrb[0].mxu0
      %1811 = vmatprep.mubr.bf16.mxu0 0
      %1812 = vmatmul.mubr.bf16.gmra.mrb[0].mxu0 %v1383
      %v1813 = vpop.f32.mrb[0].mxu0
      %v1814 = vadd.f32 0.0, %v1813
      %v1815 = vpop.f32.mrb[0].mxu0
      %v1816 = vpop.f32.mrb[0].mxu0
      %v1817 = vadd.f32 0.0, %v1816
      %v1818 = vpop.f32.mrb[0].mxu0
      %1819 = vmatprep.mubr.bf16.mxu0 0
      %1820 = vmatmul.mubr.bf16.gmra.mrb[0].mxu0 %v1386
      %v1821 = vpop.f32.mrb[0].mxu0
      %v1822 = vadd.f32 0.0, %v1821
      %v1823 = vpop.f32.mrb[0].mxu0
      %v1824 = vpop.f32.mrb[0].mxu0
      %v1825 = vadd.f32 0.0, %v1824
      %v1826 = vpop.f32.mrb[0].mxu0
      %1827 = vmatprep.mubr.bf16.mxu0 0
      %1828 = vmatmul.mubr.bf16.gmra.mrb[0].mxu0 %v1389
      %v1829 = vpop.f32.mrb[0].mxu0
      %v1830 = vadd.f32 0.0, %v1829
      %v1831 = vpop.f32.mrb[0].mxu0
      %v1832 = vpop.f32.mrb[0].mxu0
      %v1833 = vadd.f32 0.0, %v1832
      %v1834 = vpop.f32.mrb[0].mxu0
      %1835 = vmatprep.mubr.bf16.mxu0 0
      %1836 = vmatmul.mubr.bf16.gmra.mrb[0].mxu0 %v1392
      %v1837 = vpop.f32.mrb[0].mxu0
      %v1838 = vadd.f32 0.0, %v1837
      %v1839 = vpop.f32.mrb[0].mxu0
      %v1840 = vpop.f32.mrb[0].mxu0
      %v1841 = vadd.f32 0.0, %v1840
      %v1842 = vpop.f32.mrb[0].mxu0
      %1843 = vmatprep.mubr.bf16.mxu0 0
      %1844 = vmatmul.mubr.bf16.gmra.mrb[0].mxu0 %v1395
      %v1845 = vpop.f32.mrb[0].mxu0
      %v1846 = vadd.f32 0.0, %v1845
      %v1847 = vpop.f32.mrb[0].mxu0
      %v1848 = vpop.f32.mrb[0].mxu0
      %v1849 = vadd.f32 0.0, %v1848
      %v1850 = vpop.f32.mrb[0].mxu0
      %1851 = vmatprep.mubr.bf16.mxu0 0
      %1852 = vmatmul.mubr.bf16.gmra.mrb[0].mxu0 %v1398
      %v1853 = vpop.f32.mrb[0].mxu0
      %v1854 = vadd.f32 0.0, %v1853
      %v1855 = vpop.f32.mrb[0].mxu0
      %v1856 = vpop.f32.mrb[0].mxu0
      %v1857 = vadd.f32 0.0, %v1856
      %v1858 = vpop.f32.mrb[0].mxu0
      %1859 = vmatprep.mubr.bf16.mxu0 0
      %1860 = vmatmul.mubr.bf16.gmra.mrb[0].mxu0 %v1401
      %v1861 = vpop.f32.mrb[0].mxu0
      %v1862 = vadd.f32 0.0, %v1861
      %v1863 = vpop.f32.mrb[0].mxu0
      %v1864 = vpop.f32.mrb[0].mxu0
      %v1865 = vadd.f32 0.0, %v1864
      %v1866 = vpop.f32.mrb[0].mxu0
      %1867 = vmatprep.mubr.bf16.mxu0 0
      %1868 = vmatmul.mubr.bf16.gmra.mrb[0].mxu0 %v1404
      %v1869 = vpop.f32.mrb[0].mxu0
      %v1870 = vadd.f32 0.0, %v1869
      %v1871 = vpop.f32.mrb[0].mxu0
      %v1872 = vpop.f32.mrb[0].mxu0
      %v1873 = vadd.f32 0.0, %v1872
      %v1874 = vpop.f32.mrb[0].mxu0
      %1875 = vmatprep.mubr.bf16.mxu0 0
      %1876 = vmatmul.mubr.bf16.gmra.mrb[0].mxu0 %v1407
      %v1877 = vpop.f32.mrb[0].mxu0
      %v1878 = vadd.f32 0.0, %v1877
      %v1879 = vpop.f32.mrb[0].mxu0
      %v1880 = vpop.f32.mrb[0].mxu0
      %v1881 = vadd.f32 0.0, %v1880
      %v1882 = vpop.f32.mrb[0].mxu0
      %1883 = vmatprep.mubr.bf16.mxu0 0
      %1884 = vmatmul.mubr.bf16.gmra.mrb[0].mxu0 %v1410
      %v1885 = vpop.f32.mrb[0].mxu0
      %v1886 = vadd.f32 0.0, %v1885
      %v1887 = vpop.f32.mrb[0].mxu0
      %v1888 = vpop.f32.mrb[0].mxu0
      %v1889 = vadd.f32 0.0, %v1888
      %v1890 = vpop.f32.mrb[0].mxu0
      %1891 = vmatprep.mubr.bf16.mxu0 0
      %1892 = vmatmul.mubr.bf16.gmra.mrb[0].mxu0 %v1413
      %v1893 = vpop.f32.mrb[0].mxu0
      %v1894 = vadd.f32 0.0, %v1893
      %v1895 = vpop.f32.mrb[0].mxu0
      %v1896 = vpop.f32.mrb[0].mxu0
      %v1897 = vadd.f32 0.0, %v1896
      %v1898 = vpop.f32.mrb[0].mxu0
      %1899 = vmatprep.mubr.bf16.mxu0 0
      %1900 = vmatmul.mubr.bf16.gmra.mrb[0].mxu0 %v1416
      %v1901 = vpop.f32.mrb[0].mxu0
      %v1902 = vadd.f32 0.0, %v1901
      %v1903 = vpop.f32.mrb[0].mxu0
      %v1904 = vpop.f32.mrb[0].mxu0
      %v1905 = vadd.f32 0.0, %v1904
      %v1906 = vpop.f32.mrb[0].mxu0
      %1907 = vmatprep.mubr.bf16.mxu0 0
      %1908 = vmatmul.mubr.bf16.gmra.mrb[0].mxu0 %v1419
      %v1909 = vpop.f32.mrb[0].mxu0
      %v1910 = vadd.f32 0.0, %v1909
      %v1911 = vpop.f32.mrb[0].mxu0
      %v1912 = vpop.f32.mrb[0].mxu0
      %v1913 = vadd.f32 0.0, %v1912
      %v1914 = vpop.f32.mrb[0].mxu0
      %1915 = vmatprep.mubr.bf16.mxu0 0
      %1916 = vmatmul.mubr.bf16.gmra.mrb[0].mxu0 %v1422
      %v1917 = vpop.f32.mrb[0].mxu0
      %v1918 = vadd.f32 0.0, %v1917
      %v1919 = vpop.f32.mrb[0].mxu0
      %v1920 = vpop.f32.mrb[0].mxu0
      %v1921 = vadd.f32 0.0, %v1920
      %v1922 = vpop.f32.mrb[0].mxu0
      %1923 = vmatprep.mubr.bf16.mxu0 0
      %1924 = vmatmul.mubr.bf16.gmra.mrb[0].mxu0 %v1425
      %v1925 = vpop.f32.mrb[0].mxu0
      %v1926 = vadd.f32 0.0, %v1925
      %v1927 = vpop.f32.mrb[0].mxu0
      %v1928 = vpop.f32.mrb[0].mxu0
      %v1929 = vadd.f32 0.0, %v1928
      %v1930 = vpop.f32.mrb[0].mxu0
      %1931 = vmatprep.mubr.bf16.mxu0 0
      %1932 = vmatmul.mubr.bf16.gmra.mrb[0].mxu0 %v1428
      %v1933 = vpop.f32.mrb[0].mxu0
      %v1934 = vadd.f32 0.0, %v1933
      %v1935 = vpop.f32.mrb[0].mxu0
      %v1936 = vpop.f32.mrb[0].mxu0
      %v1937 = vadd.f32 0.0, %v1936
      %v1938 = vpop.f32.mrb[0].mxu0
      %1939 = vmatprep.mubr.bf16.mxu0 0
      %1940 = vmatmul.mubr.bf16.gmra.mrb[0].mxu0 %v1431
      %v1941 = vpop.f32.mrb[0].mxu0
      %v1942 = vadd.f32 0.0, %v1941
      %v1943 = vpop.f32.mrb[0].mxu0
      %v1944 = vpop.f32.mrb[0].mxu0
      %v1945 = vadd.f32 0.0, %v1944
      %v1946 = vpop.f32.mrb[0].mxu0
      %1947 = vmatprep.mubr.bf16.mxu0 0
      %1948 = vmatmul.mubr.bf16.gmra.mrb[0].mxu0 %v1434
      %v1949 = vpop.f32.mrb[0].mxu0
      %v1950 = vadd.f32 0.0, %v1949
      %v1951 = vpop.f32.mrb[0].mxu0
      %v1952 = vpop.f32.mrb[0].mxu0
      %v1953 = vadd.f32 0.0, %v1952
      %v1954 = vpop.f32.mrb[0].mxu0
      %1955 = vmatprep.mubr.bf16.mxu0 0
      %1956 = vmatmul.mubr.bf16.gmra.mrb[0].mxu0 %v1437
      %v1957 = vpop.f32.mrb[0].mxu0
      %v1958 = vadd.f32 0.0, %v1957
      %v1959 = vpop.f32.mrb[0].mxu0
      %v1960 = vpop.f32.mrb[0].mxu0
      %v1961 = vadd.f32 0.0, %v1960
      %v1962 = vpop.f32.mrb[0].mxu0
      %1963 = vmatprep.mubr.bf16.mxu0 0
      %1964 = vmatmul.mubr.bf16.gmra.mrb[0].mxu0 %v1440
      %v1965 = vpop.f32.mrb[0].mxu0
      %v1966 = vadd.f32 0.0, %v1965
      %v1967 = vpop.f32.mrb[0].mxu0
      %v1968 = vpop.f32.mrb[0].mxu0
      %v1969 = vadd.f32 0.0, %v1968
      %v1970 = vpop.f32.mrb[0].mxu0
      %1971 = vmatprep.mubr.bf16.mxu0 0
      %1972 = vmatmul.mubr.bf16.gmra.mrb[0].mxu0 %v1443
      %v1973 = vpop.f32.mrb[0].mxu0
      %v1974 = vadd.f32 0.0, %v1973
      %v1975 = vpop.f32.mrb[0].mxu0
      %v1976 = vpop.f32.mrb[0].mxu0
      %v1977 = vadd.f32 0.0, %v1976
      %v1978 = vpop.f32.mrb[0].mxu0
      %1979 = vmatprep.mubr.bf16.mxu0 0
      %1980 = vmatmul.mubr.bf16.gmra.mrb[0].mxu0 %v1446
      %v1981 = vpop.f32.mrb[0].mxu0
      %v1982 = vadd.f32 0.0, %v1981
      %v1983 = vpop.f32.mrb[0].mxu0
      %v1984 = vpop.f32.mrb[0].mxu0
      %v1985 = vadd.f32 0.0, %v1984
      %v1986 = vpop.f32.mrb[0].mxu0
      %1987 = vmatprep.mubr.bf16.mxu0 0
      %1988 = vmatmul.mubr.bf16.gmra.mrb[0].mxu0 %v1449
      %v1989 = vpop.f32.mrb[0].mxu0
      %v1990 = vadd.f32 0.0, %v1989
      %v1991 = vpop.f32.mrb[0].mxu0
      %v1992 = vpop.f32.mrb[0].mxu0
      %v1993 = vadd.f32 0.0, %v1992
      %v1994 = vpop.f32.mrb[0].mxu0
      %1995 = vdwg.mxu0
      %v1996 = vpack.c.bf16 %v1489, %v1486
      %v1997 = vpack.c.bf16 %v1497, %v1494
      %v1998 = vpack.c.bf16 %v1505, %v1502
      %v1999 = vpack.c.bf16 %v1513, %v1510
      %v2000 = vpack.c.bf16 %v1521, %v1518
      %v2001 = vpack.c.bf16 %v1529, %v1526
      %v2002 = vpack.c.bf16 %v1537, %v1534
      %v2003 = vpack.c.bf16 %v1545, %v1542
      %v2004 = vpack.c.bf16 %v1553, %v1550
      %v2005 = vpack.c.bf16 %v1561, %v1558
      %v2006 = vpack.c.bf16 %v1569, %v1566
      %v2007 = vpack.c.bf16 %v1577, %v1574
      %v2008 = vpack.c.bf16 %v1585, %v1582
      %v2009 = vpack.c.bf16 %v1593, %v1590
      %v2010 = vpack.c.bf16 %v1601, %v1598
      %v2011 = vpack.c.bf16 %v1609, %v1606
      %v2012 = vpack.c.bf16 %v1617, %v1614
      %v2013 = vpack.c.bf16 %v1625, %v1622
      %v2014 = vpack.c.bf16 %v1633, %v1630
      %v2015 = vpack.c.bf16 %v1641, %v1638
      %v2016 = vpack.c.bf16 %v1649, %v1646
      %v2017 = vpack.c.bf16 %v1657, %v1654
      %v2018 = vpack.c.bf16 %v1665, %v1662
      %v2019 = vpack.c.bf16 %v1673, %v1670
      %v2020 = vpack.c.bf16 %v1681, %v1678
      %v2021 = vpack.c.bf16 %v1689, %v1686
      %v2022 = vpack.c.bf16 %v1697, %v1694
      %v2023 = vpack.c.bf16 %v1705, %v1702
      %v2024 = vpack.c.bf16 %v1713, %v1710
      %v2025 = vpack.c.bf16 %v1721, %v1718
      %v2026 = vpack.c.bf16 %v1729, %v1726
      %v2027 = vpack.c.bf16 %v1737, %v1734
      %v2028 = vpack.c.bf16 %v1745, %v1742
      %v2029 = vpack.c.bf16 %v1753, %v1750
      %v2030 = vpack.c.bf16 %v1761, %v1758
      %v2031 = vpack.c.bf16 %v1769, %v1766
      %v2032 = vpack.c.bf16 %v1777, %v1774
      %v2033 = vpack.c.bf16 %v1785, %v1782
      %v2034 = vpack.c.bf16 %v1793, %v1790
      %v2035 = vpack.c.bf16 %v1801, %v1798
      %v2036 = vpack.c.bf16 %v1809, %v1806
      %v2037 = vpack.c.bf16 %v1817, %v1814
      %v2038 = vpack.c.bf16 %v1825, %v1822
      %v2039 = vpack.c.bf16 %v1833, %v1830
      %v2040 = vpack.c.bf16 %v1841, %v1838
      %v2041 = vpack.c.bf16 %v1849, %v1846
      %v2042 = vpack.c.bf16 %v1857, %v1854
      %v2043 = vpack.c.bf16 %v1865, %v1862
      %v2044 = vpack.c.bf16 %v1873, %v1870
      %v2045 = vpack.c.bf16 %v1881, %v1878
      %v2046 = vpack.c.bf16 %v1889, %v1886
      %v2047 = vpack.c.bf16 %v1897, %v1894
      %v2048 = vpack.c.bf16 %v1905, %v1902
      %v2049 = vpack.c.bf16 %v1913, %v1910
      %v2050 = vpack.c.bf16 %v1921, %v1918
      %v2051 = vpack.c.bf16 %v1929, %v1926
      %v2052 = vpack.c.bf16 %v1937, %v1934
      %v2053 = vpack.c.bf16 %v1945, %v1942
      %v2054 = vpack.c.bf16 %v1953, %v1950
      %v2055 = vpack.c.bf16 %v1961, %v1958
      %v2056 = vpack.c.bf16 %v1969, %v1966
      %v2057 = vpack.c.bf16 %v1977, %v1974
      %v2058 = vpack.c.bf16 %v1985, %v1982
      %v2059 = vpack.c.bf16 %v1993, %v1990
      %v2060 = vlaneseq
      %v2061 = vshrl.u32 %v2060, 7
      %v2062 = vsub.s32 0, %v2061
      %v2063 = vrot.slane %v289, %v2062
      %v2576 = vunpack.c.l.b16 %v292
      %v2577 = vunpack.c.h.b16 %v292
      %v2578 = vunpack.c.l.b16 %v293
      %v2579 = vunpack.c.h.b16 %v293
      %v2580 = vunpack.c.l.b16 %v294
      %v2581 = vunpack.c.h.b16 %v294
      %v2582 = vunpack.c.l.b16 %v295
      %v2583 = vunpack.c.h.b16 %v295
      %v2584 = vunpack.c.l.b16 %v296
      %v2585 = vunpack.c.h.b16 %v296
      %v2586 = vunpack.c.l.b16 %v297
      %v2587 = vunpack.c.h.b16 %v297
      %v2588 = vunpack.c.l.b16 %v298
      %v2589 = vunpack.c.h.b16 %v298
      %v2590 = vunpack.c.l.b16 %v299
      %v2591 = vunpack.c.h.b16 %v299
      %v2592 = vunpack.c.l.b16 %v300
      %v2593 = vunpack.c.h.b16 %v300
      %v2594 = vunpack.c.l.b16 %v301
      %v2595 = vunpack.c.h.b16 %v301
      %v2596 = vunpack.c.l.b16 %v302
      %v2597 = vunpack.c.h.b16 %v302
      %v2598 = vunpack.c.l.b16 %v303
      %v2599 = vunpack.c.h.b16 %v303
      %v2600 = vunpack.c.l.b16 %v304
      %v2601 = vunpack.c.h.b16 %v304
      %v2602 = vunpack.c.l.b16 %v305
      %v2603 = vunpack.c.h.b16 %v305
      %v2604 = vunpack.c.l.b16 %v306
      %v2605 = vunpack.c.h.b16 %v306
      %v2606 = vunpack.c.l.b16 %v307
      %v2607 = vunpack.c.h.b16 %v307
      %v2608 = vunpack.c.l.b16 %v308
      %v2609 = vunpack.c.h.b16 %v308
      %v2610 = vunpack.c.l.b16 %v309
      %v2611 = vunpack.c.h.b16 %v309
      %v2612 = vunpack.c.l.b16 %v310
      %v2613 = vunpack.c.h.b16 %v310
      %v2614 = vunpack.c.l.b16 %v311
      %v2615 = vunpack.c.h.b16 %v311
      %v2616 = vunpack.c.l.b16 %v312
      %v2617 = vunpack.c.h.b16 %v312
      %v2618 = vunpack.c.l.b16 %v313
      %v2619 = vunpack.c.h.b16 %v313
      %v2620 = vunpack.c.l.b16 %v314
      %v2621 = vunpack.c.h.b16 %v314
      %v2622 = vunpack.c.l.b16 %v315
      %v2623 = vunpack.c.h.b16 %v315
      %v2624 = vunpack.c.l.b16 %v316
      %v2625 = vunpack.c.h.b16 %v316
      %v2626 = vunpack.c.l.b16 %v317
      %v2627 = vunpack.c.h.b16 %v317
      %v2628 = vunpack.c.l.b16 %v318
      %v2629 = vunpack.c.h.b16 %v318
      %v2630 = vunpack.c.l.b16 %v319
      %v2631 = vunpack.c.h.b16 %v319
      %v2632 = vunpack.c.l.b16 %v320
      %v2633 = vunpack.c.h.b16 %v320
      %v2634 = vunpack.c.l.b16 %v321
      %v2635 = vunpack.c.h.b16 %v321
      %v2636 = vunpack.c.l.b16 %v322
      %v2637 = vunpack.c.h.b16 %v322
      %v2638 = vunpack.c.l.b16 %v323
      %v2639 = vunpack.c.h.b16 %v323
      %v2640 = vunpack.c.l.b16 %v324
      %v2641 = vunpack.c.h.b16 %v324
      %v2642 = vunpack.c.l.b16 %v325
      %v2643 = vunpack.c.h.b16 %v325
      %v2644 = vunpack.c.l.b16 %v326
      %v2645 = vunpack.c.h.b16 %v326
      %v2646 = vunpack.c.l.b16 %v327
      %v2647 = vunpack.c.h.b16 %v327
      %v2648 = vunpack.c.l.b16 %v328
      %v2649 = vunpack.c.h.b16 %v328
      %v2650 = vunpack.c.l.b16 %v329
      %v2651 = vunpack.c.h.b16 %v329
      %v2652 = vunpack.c.l.b16 %v330
      %v2653 = vunpack.c.h.b16 %v330
      %v2654 = vunpack.c.l.b16 %v331
      %v2655 = vunpack.c.h.b16 %v331
      %v2656 = vunpack.c.l.b16 %v332
      %v2657 = vunpack.c.h.b16 %v332
      %v2658 = vunpack.c.l.b16 %v333
      %v2659 = vunpack.c.h.b16 %v333
      %v2660 = vunpack.c.l.b16 %v334
      %v2661 = vunpack.c.h.b16 %v334
      %v2662 = vunpack.c.l.b16 %v335
      %v2663 = vunpack.c.h.b16 %v335
      %v2664 = vunpack.c.l.b16 %v336
      %v2665 = vunpack.c.h.b16 %v336
      %v2666 = vunpack.c.l.b16 %v337
      %v2667 = vunpack.c.h.b16 %v337
      %v2668 = vunpack.c.l.b16 %v338
      %v2669 = vunpack.c.h.b16 %v338
      %v2670 = vunpack.c.l.b16 %v339
      %v2671 = vunpack.c.h.b16 %v339
      %v2672 = vunpack.c.l.b16 %v340
      %v2673 = vunpack.c.h.b16 %v340
      %v2674 = vunpack.c.l.b16 %v341
      %v2675 = vunpack.c.h.b16 %v341
      %v2676 = vunpack.c.l.b16 %v342
      %v2677 = vunpack.c.h.b16 %v342
      %v2678 = vunpack.c.l.b16 %v343
      %v2679 = vunpack.c.h.b16 %v343
      %v2680 = vunpack.c.l.b16 %v344
      %v2681 = vunpack.c.h.b16 %v344
      %v2682 = vunpack.c.l.b16 %v345
      %v2683 = vunpack.c.h.b16 %v345
      %v2684 = vunpack.c.l.b16 %v346
      %v2685 = vunpack.c.h.b16 %v346
      %v2686 = vunpack.c.l.b16 %v347
      %v2687 = vunpack.c.h.b16 %v347
      %v2688 = vunpack.c.l.b16 %v348
      %v2689 = vunpack.c.h.b16 %v348
      %v2690 = vunpack.c.l.b16 %v349
      %v2691 = vunpack.c.h.b16 %v349
      %v2692 = vunpack.c.l.b16 %v350
      %v2693 = vunpack.c.h.b16 %v350
      %v2694 = vunpack.c.l.b16 %v351
      %v2695 = vunpack.c.h.b16 %v351
      %v2696 = vunpack.c.l.b16 %v352
      %v2697 = vunpack.c.h.b16 %v352
      %v2698 = vunpack.c.l.b16 %v353
      %v2699 = vunpack.c.h.b16 %v353
      %v2700 = vunpack.c.l.b16 %v354
      %v2701 = vunpack.c.h.b16 %v354
      %v2702 = vunpack.c.l.b16 %v355
      %v2703 = vunpack.c.h.b16 %v355
      %v2704 = vunpack.c.l.b16 %v356
      %v2705 = vunpack.c.h.b16 %v356
      %v2706 = vunpack.c.l.b16 %v357
      %v2707 = vunpack.c.h.b16 %v357
      %v2708 = vunpack.c.l.b16 %v358
      %v2709 = vunpack.c.h.b16 %v358
      %v2710 = vunpack.c.l.b16 %v359
      %v2711 = vunpack.c.h.b16 %v359
      %v2712 = vunpack.c.l.b16 %v360
      %v2713 = vunpack.c.h.b16 %v360
      %v2714 = vunpack.c.l.b16 %v361
      %v2715 = vunpack.c.h.b16 %v361
      %v2716 = vunpack.c.l.b16 %v362
      %v2717 = vunpack.c.h.b16 %v362
      %v2718 = vunpack.c.l.b16 %v363
      %v2719 = vunpack.c.h.b16 %v363
      %v2720 = vunpack.c.l.b16 %v364
      %v2721 = vunpack.c.h.b16 %v364
      %v2722 = vunpack.c.l.b16 %v365
      %v2723 = vunpack.c.h.b16 %v365
      %v2724 = vunpack.c.l.b16 %v366
      %v2725 = vunpack.c.h.b16 %v366
      %v2726 = vunpack.c.l.b16 %v367
      %v2727 = vunpack.c.h.b16 %v367
      %v2728 = vunpack.c.l.b16 %v368
      %v2729 = vunpack.c.h.b16 %v368
      %v2730 = vunpack.c.l.b16 %v369
      %v2731 = vunpack.c.h.b16 %v369
      %v2732 = vunpack.c.l.b16 %v370
      %v2733 = vunpack.c.h.b16 %v370
      %v2734 = vunpack.c.l.b16 %v371
      %v2735 = vunpack.c.h.b16 %v371
      %v2736 = vunpack.c.l.b16 %v372
      %v2737 = vunpack.c.h.b16 %v372
      %v2738 = vunpack.c.l.b16 %v373
      %v2739 = vunpack.c.h.b16 %v373
      %v2740 = vunpack.c.l.b16 %v374
      %v2741 = vunpack.c.h.b16 %v374
      %v2742 = vunpack.c.l.b16 %v375
      %v2743 = vunpack.c.h.b16 %v375
      %v2744 = vunpack.c.l.b16 %v376
      %v2745 = vunpack.c.h.b16 %v376
      %v2746 = vunpack.c.l.b16 %v377
      %v2747 = vunpack.c.h.b16 %v377
      %v2748 = vunpack.c.l.b16 %v378
      %v2749 = vunpack.c.h.b16 %v378
      %v2750 = vunpack.c.l.b16 %v379
      %v2751 = vunpack.c.h.b16 %v379
      %v2752 = vunpack.c.l.b16 %v380
      %v2753 = vunpack.c.h.b16 %v380
      %v2754 = vunpack.c.l.b16 %v381
      %v2755 = vunpack.c.h.b16 %v381
      %v2756 = vunpack.c.l.b16 %v382
      %v2757 = vunpack.c.h.b16 %v382
      %v2758 = vunpack.c.l.b16 %v383
      %v2759 = vunpack.c.h.b16 %v383
      %v2760 = vunpack.c.l.b16 %v384
      %v2761 = vunpack.c.h.b16 %v384
      %v2762 = vunpack.c.l.b16 %v385
      %v2763 = vunpack.c.h.b16 %v385
      %v2764 = vunpack.c.l.b16 %v386
      %v2765 = vunpack.c.h.b16 %v386
      %v2766 = vunpack.c.l.b16 %v387
      %v2767 = vunpack.c.h.b16 %v387
      %v2768 = vunpack.c.l.b16 %v388
      %v2769 = vunpack.c.h.b16 %v388
      %v2770 = vunpack.c.l.b16 %v389
      %v2771 = vunpack.c.h.b16 %v389
      %v2772 = vunpack.c.l.b16 %v390
      %v2773 = vunpack.c.h.b16 %v390
      %v2774 = vunpack.c.l.b16 %v391
      %v2775 = vunpack.c.h.b16 %v391
      %v2776 = vunpack.c.l.b16 %v392
      %v2777 = vunpack.c.h.b16 %v392
      %v2778 = vunpack.c.l.b16 %v393
      %v2779 = vunpack.c.h.b16 %v393
      %v2780 = vunpack.c.l.b16 %v394
      %v2781 = vunpack.c.h.b16 %v394
      %v2782 = vunpack.c.l.b16 %v395
      %v2783 = vunpack.c.h.b16 %v395
      %v2784 = vunpack.c.l.b16 %v396
      %v2785 = vunpack.c.h.b16 %v396
      %v2786 = vunpack.c.l.b16 %v397
      %v2787 = vunpack.c.h.b16 %v397
      %v2788 = vunpack.c.l.b16 %v398
      %v2789 = vunpack.c.h.b16 %v398
      %v2790 = vunpack.c.l.b16 %v399
      %v2791 = vunpack.c.h.b16 %v399
      %v2792 = vunpack.c.l.b16 %v400
      %v2793 = vunpack.c.h.b16 %v400
      %v2794 = vunpack.c.l.b16 %v401
      %v2795 = vunpack.c.h.b16 %v401
      %v2796 = vunpack.c.l.b16 %v402
      %v2797 = vunpack.c.h.b16 %v402
      %v2798 = vunpack.c.l.b16 %v403
      %v2799 = vunpack.c.h.b16 %v403
      %v2800 = vunpack.c.l.b16 %v404
      %v2801 = vunpack.c.h.b16 %v404
      %v2802 = vunpack.c.l.b16 %v405
      %v2803 = vunpack.c.h.b16 %v405
      %v2804 = vunpack.c.l.b16 %v406
      %v2805 = vunpack.c.h.b16 %v406
      %v2806 = vunpack.c.l.b16 %v407
      %v2807 = vunpack.c.h.b16 %v407
      %v2808 = vunpack.c.l.b16 %v408
      %v2809 = vunpack.c.h.b16 %v408
      %v2810 = vunpack.c.l.b16 %v409
      %v2811 = vunpack.c.h.b16 %v409
      %v2812 = vunpack.c.l.b16 %v410
      %v2813 = vunpack.c.h.b16 %v410
      %v2814 = vunpack.c.l.b16 %v411
      %v2815 = vunpack.c.h.b16 %v411
      %v2816 = vunpack.c.l.b16 %v412
      %v2817 = vunpack.c.h.b16 %v412
      %v2818 = vunpack.c.l.b16 %v413
      %v2819 = vunpack.c.h.b16 %v413
      %v2820 = vunpack.c.l.b16 %v414
      %v2821 = vunpack.c.h.b16 %v414
      %v2822 = vunpack.c.l.b16 %v415
      %v2823 = vunpack.c.h.b16 %v415
      %v2824 = vunpack.c.l.b16 %v416
      %v2825 = vunpack.c.h.b16 %v416
      %v2826 = vunpack.c.l.b16 %v417
      %v2827 = vunpack.c.h.b16 %v417
      %v2828 = vunpack.c.l.b16 %v418
      %v2829 = vunpack.c.h.b16 %v418
      %v2830 = vunpack.c.l.b16 %v419
      %v2831 = vunpack.c.h.b16 %v419
      %v2832 = vunpack.c.l.b16 %v420
      %v2833 = vunpack.c.h.b16 %v420
      %v2834 = vunpack.c.l.b16 %v421
      %v2835 = vunpack.c.h.b16 %v421
      %v2836 = vunpack.c.l.b16 %v422
      %v2837 = vunpack.c.h.b16 %v422
      %v2838 = vunpack.c.l.b16 %v423
      %v2839 = vunpack.c.h.b16 %v423
      %v2840 = vunpack.c.l.b16 %v424
      %v2841 = vunpack.c.h.b16 %v424
      %v2842 = vunpack.c.l.b16 %v425
      %v2843 = vunpack.c.h.b16 %v425
      %v2844 = vunpack.c.l.b16 %v426
      %v2845 = vunpack.c.h.b16 %v426
      %v2846 = vunpack.c.l.b16 %v427
      %v2847 = vunpack.c.h.b16 %v427
      %v2848 = vunpack.c.l.b16 %v428
      %v2849 = vunpack.c.h.b16 %v428
      %v2850 = vunpack.c.l.b16 %v429
      %v2851 = vunpack.c.h.b16 %v429
      %v2852 = vunpack.c.l.b16 %v430
      %v2853 = vunpack.c.h.b16 %v430
      %v2854 = vunpack.c.l.b16 %v431
      %v2855 = vunpack.c.h.b16 %v431
      %v2856 = vunpack.c.l.b16 %v432
      %v2857 = vunpack.c.h.b16 %v432
      %v2858 = vunpack.c.l.b16 %v433
      %v2859 = vunpack.c.h.b16 %v433
      %v2860 = vunpack.c.l.b16 %v434
      %v2861 = vunpack.c.h.b16 %v434
      %v2862 = vunpack.c.l.b16 %v435
      %v2863 = vunpack.c.h.b16 %v435
      %v2864 = vunpack.c.l.b16 %v436
      %v2865 = vunpack.c.h.b16 %v436
      %v2866 = vunpack.c.l.b16 %v437
      %v2867 = vunpack.c.h.b16 %v437
      %v2868 = vunpack.c.l.b16 %v438
      %v2869 = vunpack.c.h.b16 %v438
      %v2870 = vunpack.c.l.b16 %v439
      %v2871 = vunpack.c.h.b16 %v439
      %v2872 = vunpack.c.l.b16 %v440
      %v2873 = vunpack.c.h.b16 %v440
      %v2874 = vunpack.c.l.b16 %v441
      %v2875 = vunpack.c.h.b16 %v441
      %v2876 = vunpack.c.l.b16 %v442
      %v2877 = vunpack.c.h.b16 %v442
      %v2878 = vunpack.c.l.b16 %v443
      %v2879 = vunpack.c.h.b16 %v443
      %v2880 = vunpack.c.l.b16 %v444
      %v2881 = vunpack.c.h.b16 %v444
      %v2882 = vunpack.c.l.b16 %v445
      %v2883 = vunpack.c.h.b16 %v445
      %v2884 = vunpack.c.l.b16 %v446
      %v2885 = vunpack.c.h.b16 %v446
      %v2886 = vunpack.c.l.b16 %v447
      %v2887 = vunpack.c.h.b16 %v447
      %v2888 = vunpack.c.l.b16 %v448
      %v2889 = vunpack.c.h.b16 %v448
      %v2890 = vunpack.c.l.b16 %v449
      %v2891 = vunpack.c.h.b16 %v449
      %v2892 = vunpack.c.l.b16 %v450
      %v2893 = vunpack.c.h.b16 %v450
      %v2894 = vunpack.c.l.b16 %v451
      %v2895 = vunpack.c.h.b16 %v451
      %v2896 = vunpack.c.l.b16 %v452
      %v2897 = vunpack.c.h.b16 %v452
      %v2898 = vunpack.c.l.b16 %v453
      %v2899 = vunpack.c.h.b16 %v453
      %v2900 = vunpack.c.l.b16 %v454
      %v2901 = vunpack.c.h.b16 %v454
      %v2902 = vunpack.c.l.b16 %v455
      %v2903 = vunpack.c.h.b16 %v455
      %v2904 = vunpack.c.l.b16 %v456
      %v2905 = vunpack.c.h.b16 %v456
      %v2906 = vunpack.c.l.b16 %v457
      %v2907 = vunpack.c.h.b16 %v457
      %v2908 = vunpack.c.l.b16 %v458
      %v2909 = vunpack.c.h.b16 %v458
      %v2910 = vunpack.c.l.b16 %v459
      %v2911 = vunpack.c.h.b16 %v459
      %v2912 = vunpack.c.l.b16 %v460
      %v2913 = vunpack.c.h.b16 %v460
      %v2914 = vunpack.c.l.b16 %v461
      %v2915 = vunpack.c.h.b16 %v461
      %v2916 = vunpack.c.l.b16 %v462
      %v2917 = vunpack.c.h.b16 %v462
      %v2918 = vunpack.c.l.b16 %v463
      %v2919 = vunpack.c.h.b16 %v463
      %v2920 = vunpack.c.l.b16 %v464
      %v2921 = vunpack.c.h.b16 %v464
      %v2922 = vunpack.c.l.b16 %v465
      %v2923 = vunpack.c.h.b16 %v465
      %v2924 = vunpack.c.l.b16 %v466
      %v2925 = vunpack.c.h.b16 %v466
      %v2926 = vunpack.c.l.b16 %v467
      %v2927 = vunpack.c.h.b16 %v467
      %v2928 = vunpack.c.l.b16 %v468
      %v2929 = vunpack.c.h.b16 %v468
      %v2930 = vunpack.c.l.b16 %v469
      %v2931 = vunpack.c.h.b16 %v469
      %v2932 = vunpack.c.l.b16 %v470
      %v2933 = vunpack.c.h.b16 %v470
      %v2934 = vunpack.c.l.b16 %v471
      %v2935 = vunpack.c.h.b16 %v471
      %v2936 = vunpack.c.l.b16 %v472
      %v2937 = vunpack.c.h.b16 %v472
      %v2938 = vunpack.c.l.b16 %v473
      %v2939 = vunpack.c.h.b16 %v473
      %v2940 = vunpack.c.l.b16 %v474
      %v2941 = vunpack.c.h.b16 %v474
      %v2942 = vunpack.c.l.b16 %v475
      %v2943 = vunpack.c.h.b16 %v475
      %v2944 = vunpack.c.l.b16 %v476
      %v2945 = vunpack.c.h.b16 %v476
      %v2946 = vunpack.c.l.b16 %v477
      %v2947 = vunpack.c.h.b16 %v477
      %v2948 = vunpack.c.l.b16 %v478
      %v2949 = vunpack.c.h.b16 %v478
      %v2950 = vunpack.c.l.b16 %v479
      %v2951 = vunpack.c.h.b16 %v479
      %v2952 = vunpack.c.l.b16 %v480
      %v2953 = vunpack.c.h.b16 %v480
      %v2954 = vunpack.c.l.b16 %v481
      %v2955 = vunpack.c.h.b16 %v481
      %v2956 = vunpack.c.l.b16 %v482
      %v2957 = vunpack.c.h.b16 %v482
      %v2958 = vunpack.c.l.b16 %v483
      %v2959 = vunpack.c.h.b16 %v483
      %v2960 = vunpack.c.l.b16 %v484
      %v2961 = vunpack.c.h.b16 %v484
      %v2962 = vunpack.c.l.b16 %v485
      %v2963 = vunpack.c.h.b16 %v485
      %v2964 = vunpack.c.l.b16 %v486
      %v2965 = vunpack.c.h.b16 %v486
      %v2966 = vunpack.c.l.b16 %v487
      %v2967 = vunpack.c.h.b16 %v487
      %v2968 = vunpack.c.l.b16 %v488
      %v2969 = vunpack.c.h.b16 %v488
      %v2970 = vunpack.c.l.b16 %v489
      %v2971 = vunpack.c.h.b16 %v489
      %v2972 = vunpack.c.l.b16 %v490
      %v2973 = vunpack.c.h.b16 %v490
      %v2974 = vunpack.c.l.b16 %v491
      %v2975 = vunpack.c.h.b16 %v491
      %v2976 = vunpack.c.l.b16 %v492
      %v2977 = vunpack.c.h.b16 %v492
      %v2978 = vunpack.c.l.b16 %v493
      %v2979 = vunpack.c.h.b16 %v493
      %v2980 = vunpack.c.l.b16 %v494
      %v2981 = vunpack.c.h.b16 %v494
      %v2982 = vunpack.c.l.b16 %v495
      %v2983 = vunpack.c.h.b16 %v495
      %v2984 = vunpack.c.l.b16 %v496
      %v2985 = vunpack.c.h.b16 %v496
      %v2986 = vunpack.c.l.b16 %v497
      %v2987 = vunpack.c.h.b16 %v497
      %v2988 = vunpack.c.l.b16 %v498
      %v2989 = vunpack.c.h.b16 %v498
      %v2990 = vunpack.c.l.b16 %v499
      %v2991 = vunpack.c.h.b16 %v499
      %v2992 = vunpack.c.l.b16 %v500
      %v2993 = vunpack.c.h.b16 %v500
      %v2994 = vunpack.c.l.b16 %v501
      %v2995 = vunpack.c.h.b16 %v501
      %v2996 = vunpack.c.l.b16 %v502
      %v2997 = vunpack.c.h.b16 %v502
      %v2998 = vunpack.c.l.b16 %v503
      %v2999 = vunpack.c.h.b16 %v503
      %v3000 = vunpack.c.l.b16 %v504
      %v3001 = vunpack.c.h.b16 %v504
      %v3002 = vunpack.c.l.b16 %v505
      %v3003 = vunpack.c.h.b16 %v505
      %v3004 = vunpack.c.l.b16 %v506
      %v3005 = vunpack.c.h.b16 %v506
      %v3006 = vunpack.c.l.b16 %v507
      %v3007 = vunpack.c.h.b16 %v507
      %v3008 = vunpack.c.l.b16 %v508
      %v3009 = vunpack.c.h.b16 %v508
      %v3010 = vunpack.c.l.b16 %v509
      %v3011 = vunpack.c.h.b16 %v509
      %v3012 = vunpack.c.l.b16 %v510
      %v3013 = vunpack.c.h.b16 %v510
      %v3014 = vunpack.c.l.b16 %v511
      %v3015 = vunpack.c.h.b16 %v511
      %v3016 = vunpack.c.l.b16 %v512
      %v3017 = vunpack.c.h.b16 %v512
      %v3018 = vunpack.c.l.b16 %v513
      %v3019 = vunpack.c.h.b16 %v513
      %v3020 = vunpack.c.l.b16 %v514
      %v3021 = vunpack.c.h.b16 %v514
      %v3022 = vunpack.c.l.b16 %v515
      %v3023 = vunpack.c.h.b16 %v515
      %v3024 = vunpack.c.l.b16 %v516
      %v3025 = vunpack.c.h.b16 %v516
      %v3026 = vunpack.c.l.b16 %v517
      %v3027 = vunpack.c.h.b16 %v517
      %v3028 = vunpack.c.l.b16 %v518
      %v3029 = vunpack.c.h.b16 %v518
      %v3030 = vunpack.c.l.b16 %v519
      %v3031 = vunpack.c.h.b16 %v519
      %v3032 = vunpack.c.l.b16 %v520
      %v3033 = vunpack.c.h.b16 %v520
      %v3034 = vunpack.c.l.b16 %v521
      %v3035 = vunpack.c.h.b16 %v521
      %v3036 = vunpack.c.l.b16 %v522
      %v3037 = vunpack.c.h.b16 %v522
      %v3038 = vunpack.c.l.b16 %v523
      %v3039 = vunpack.c.h.b16 %v523
      %v3040 = vunpack.c.l.b16 %v524
      %v3041 = vunpack.c.h.b16 %v524
      %v3042 = vunpack.c.l.b16 %v525
      %v3043 = vunpack.c.h.b16 %v525
      %v3044 = vunpack.c.l.b16 %v526
      %v3045 = vunpack.c.h.b16 %v526
      %v3046 = vunpack.c.l.b16 %v527
      %v3047 = vunpack.c.h.b16 %v527
      %v3048 = vunpack.c.l.b16 %v528
      %v3049 = vunpack.c.h.b16 %v528
      %v3050 = vunpack.c.l.b16 %v529
      %v3051 = vunpack.c.h.b16 %v529
      %v3052 = vunpack.c.l.b16 %v530
      %v3053 = vunpack.c.h.b16 %v530
      %v3054 = vunpack.c.l.b16 %v531
      %v3055 = vunpack.c.h.b16 %v531
      %v3056 = vunpack.c.l.b16 %v532
      %v3057 = vunpack.c.h.b16 %v532
      %v3058 = vunpack.c.l.b16 %v533
      %v3059 = vunpack.c.h.b16 %v533
      %v3060 = vunpack.c.l.b16 %v534
      %v3061 = vunpack.c.h.b16 %v534
      %v3062 = vunpack.c.l.b16 %v535
      %v3063 = vunpack.c.h.b16 %v535
      %v3064 = vunpack.c.l.b16 %v536
      %v3065 = vunpack.c.h.b16 %v536
      %v3066 = vunpack.c.l.b16 %v537
      %v3067 = vunpack.c.h.b16 %v537
      %v3068 = vunpack.c.l.b16 %v538
      %v3069 = vunpack.c.h.b16 %v538
      %v3070 = vunpack.c.l.b16 %v539
      %v3071 = vunpack.c.h.b16 %v539
      %v3072 = vunpack.c.l.b16 %v540
      %v3073 = vunpack.c.h.b16 %v540
      %v3074 = vunpack.c.l.b16 %v541
      %v3075 = vunpack.c.h.b16 %v541
      %v3076 = vunpack.c.l.b16 %v542
      %v3077 = vunpack.c.h.b16 %v542
      %v3078 = vunpack.c.l.b16 %v543
      %v3079 = vunpack.c.h.b16 %v543
      %v3080 = vunpack.c.l.b16 %v544
      %v3081 = vunpack.c.h.b16 %v544
      %v3082 = vunpack.c.l.b16 %v545
      %v3083 = vunpack.c.h.b16 %v545
      %v3084 = vunpack.c.l.b16 %v546
      %v3085 = vunpack.c.h.b16 %v546
      %v3086 = vunpack.c.l.b16 %v547
      %v3087 = vunpack.c.h.b16 %v547
      %v3088 = vunpack.c.l.b16 %v548
      %v3089 = vunpack.c.h.b16 %v548
      %v3090 = vunpack.c.l.b16 %v549
      %v3091 = vunpack.c.h.b16 %v549
      %v3092 = vunpack.c.l.b16 %v550
      %v3093 = vunpack.c.h.b16 %v550
      %v3094 = vunpack.c.l.b16 %v551
      %v3095 = vunpack.c.h.b16 %v551
      %v3096 = vunpack.c.l.b16 %v552
      %v3097 = vunpack.c.h.b16 %v552
      %v3098 = vunpack.c.l.b16 %v553
      %v3099 = vunpack.c.h.b16 %v553
      %v3100 = vunpack.c.l.b16 %v554
      %v3101 = vunpack.c.h.b16 %v554
      %v3102 = vunpack.c.l.b16 %v555
      %v3103 = vunpack.c.h.b16 %v555
      %v3104 = vunpack.c.l.b16 %v556
      %v3105 = vunpack.c.h.b16 %v556
      %v3106 = vunpack.c.l.b16 %v557
      %v3107 = vunpack.c.h.b16 %v557
      %v3108 = vunpack.c.l.b16 %v558
      %v3109 = vunpack.c.h.b16 %v558
      %v3110 = vunpack.c.l.b16 %v559
      %v3111 = vunpack.c.h.b16 %v559
      %v3112 = vunpack.c.l.b16 %v560
      %v3113 = vunpack.c.h.b16 %v560
      %v3114 = vunpack.c.l.b16 %v561
      %v3115 = vunpack.c.h.b16 %v561
      %v3116 = vunpack.c.l.b16 %v562
      %v3117 = vunpack.c.h.b16 %v562
      %v3118 = vunpack.c.l.b16 %v563
      %v3119 = vunpack.c.h.b16 %v563
      %v3120 = vunpack.c.l.b16 %v564
      %v3121 = vunpack.c.h.b16 %v564
      %v3122 = vunpack.c.l.b16 %v565
      %v3123 = vunpack.c.h.b16 %v565
      %v3124 = vunpack.c.l.b16 %v566
      %v3125 = vunpack.c.h.b16 %v566
      %v3126 = vunpack.c.l.b16 %v567
      %v3127 = vunpack.c.h.b16 %v567
      %v3128 = vunpack.c.l.b16 %v568
      %v3129 = vunpack.c.h.b16 %v568
      %v3130 = vunpack.c.l.b16 %v569
      %v3131 = vunpack.c.h.b16 %v569
      %v3132 = vunpack.c.l.b16 %v570
      %v3133 = vunpack.c.h.b16 %v570
      %v3134 = vunpack.c.l.b16 %v571
      %v3135 = vunpack.c.h.b16 %v571
      %v3136 = vunpack.c.l.b16 %v572
      %v3137 = vunpack.c.h.b16 %v572
      %v3138 = vunpack.c.l.b16 %v573
      %v3139 = vunpack.c.h.b16 %v573
      %v3140 = vunpack.c.l.b16 %v574
      %v3141 = vunpack.c.h.b16 %v574
      %v3142 = vunpack.c.l.b16 %v575
      %v3143 = vunpack.c.h.b16 %v575
      %v3144 = vunpack.c.l.b16 %v576
      %v3145 = vunpack.c.h.b16 %v576
      %v3146 = vunpack.c.l.b16 %v577
      %v3147 = vunpack.c.h.b16 %v577
      %v3148 = vunpack.c.l.b16 %v578
      %v3149 = vunpack.c.h.b16 %v578
      %v3150 = vunpack.c.l.b16 %v579
      %v3151 = vunpack.c.h.b16 %v579
      %v3152 = vunpack.c.l.b16 %v580
      %v3153 = vunpack.c.h.b16 %v580
      %v3154 = vunpack.c.l.b16 %v581
      %v3155 = vunpack.c.h.b16 %v581
      %v3156 = vunpack.c.l.b16 %v582
      %v3157 = vunpack.c.h.b16 %v582
      %v3158 = vunpack.c.l.b16 %v583
      %v3159 = vunpack.c.h.b16 %v583
      %v3160 = vunpack.c.l.b16 %v584
      %v3161 = vunpack.c.h.b16 %v584
      %v3162 = vunpack.c.l.b16 %v585
      %v3163 = vunpack.c.h.b16 %v585
      %v3164 = vunpack.c.l.b16 %v586
      %v3165 = vunpack.c.h.b16 %v586
      %v3166 = vunpack.c.l.b16 %v587
      %v3167 = vunpack.c.h.b16 %v587
      %v3168 = vunpack.c.l.b16 %v588
      %v3169 = vunpack.c.h.b16 %v588
      %v3170 = vunpack.c.l.b16 %v589
      %v3171 = vunpack.c.h.b16 %v589
      %v3172 = vunpack.c.l.b16 %v590
      %v3173 = vunpack.c.h.b16 %v590
      %v3174 = vunpack.c.l.b16 %v591
      %v3175 = vunpack.c.h.b16 %v591
      %v3176 = vunpack.c.l.b16 %v592
      %v3177 = vunpack.c.h.b16 %v592
      %v3178 = vunpack.c.l.b16 %v593
      %v3179 = vunpack.c.h.b16 %v593
      %v3180 = vunpack.c.l.b16 %v594
      %v3181 = vunpack.c.h.b16 %v594
      %v3182 = vunpack.c.l.b16 %v595
      %v3183 = vunpack.c.h.b16 %v595
      %v3184 = vunpack.c.l.b16 %v596
      %v3185 = vunpack.c.h.b16 %v596
      %v3186 = vunpack.c.l.b16 %v597
      %v3187 = vunpack.c.h.b16 %v597
      %v3188 = vunpack.c.l.b16 %v598
      %v3189 = vunpack.c.h.b16 %v598
      %v3190 = vunpack.c.l.b16 %v599
      %v3191 = vunpack.c.h.b16 %v599
      %v3192 = vunpack.c.l.b16 %v600
      %v3193 = vunpack.c.h.b16 %v600
      %v3194 = vunpack.c.l.b16 %v601
      %v3195 = vunpack.c.h.b16 %v601
      %v3196 = vunpack.c.l.b16 %v602
      %v3197 = vunpack.c.h.b16 %v602
      %v3198 = vunpack.c.l.b16 %v603
      %v3199 = vunpack.c.h.b16 %v603
      %v3200 = vunpack.c.l.b16 %v604
      %v3201 = vunpack.c.h.b16 %v604
      %v3202 = vunpack.c.l.b16 %v605
      %v3203 = vunpack.c.h.b16 %v605
      %v3204 = vunpack.c.l.b16 %v606
      %v3205 = vunpack.c.h.b16 %v606
      %v3206 = vunpack.c.l.b16 %v607
      %v3207 = vunpack.c.h.b16 %v607
      %v3208 = vunpack.c.l.b16 %v608
      %v3209 = vunpack.c.h.b16 %v608
      %v3210 = vunpack.c.l.b16 %v609
      %v3211 = vunpack.c.h.b16 %v609
      %v3212 = vunpack.c.l.b16 %v610
      %v3213 = vunpack.c.h.b16 %v610
      %v3214 = vunpack.c.l.b16 %v611
      %v3215 = vunpack.c.h.b16 %v611
      %v3216 = vunpack.c.l.b16 %v612
      %v3217 = vunpack.c.h.b16 %v612
      %v3218 = vunpack.c.l.b16 %v613
      %v3219 = vunpack.c.h.b16 %v613
      %v3220 = vunpack.c.l.b16 %v614
      %v3221 = vunpack.c.h.b16 %v614
      %v3222 = vunpack.c.l.b16 %v615
      %v3223 = vunpack.c.h.b16 %v615
      %v3224 = vunpack.c.l.b16 %v616
      %v3225 = vunpack.c.h.b16 %v616
      %v3226 = vunpack.c.l.b16 %v617
      %v3227 = vunpack.c.h.b16 %v617
      %v3228 = vunpack.c.l.b16 %v618
      %v3229 = vunpack.c.h.b16 %v618
      %v3230 = vunpack.c.l.b16 %v619
      %v3231 = vunpack.c.h.b16 %v619
      %v3232 = vunpack.c.l.b16 %v620
      %v3233 = vunpack.c.h.b16 %v620
      %v3234 = vunpack.c.l.b16 %v621
      %v3235 = vunpack.c.h.b16 %v621
      %v3236 = vunpack.c.l.b16 %v622
      %v3237 = vunpack.c.h.b16 %v622
      %v3238 = vunpack.c.l.b16 %v623
      %v3239 = vunpack.c.h.b16 %v623
      %v3240 = vunpack.c.l.b16 %v624
      %v3241 = vunpack.c.h.b16 %v624
      %v3242 = vunpack.c.l.b16 %v625
      %v3243 = vunpack.c.h.b16 %v625
      %v3244 = vunpack.c.l.b16 %v626
      %v3245 = vunpack.c.h.b16 %v626
      %v3246 = vunpack.c.l.b16 %v627
      %v3247 = vunpack.c.h.b16 %v627
      %v3248 = vunpack.c.l.b16 %v628
      %v3249 = vunpack.c.h.b16 %v628
      %v3250 = vunpack.c.l.b16 %v629
      %v3251 = vunpack.c.h.b16 %v629
      %v3252 = vunpack.c.l.b16 %v630
      %v3253 = vunpack.c.h.b16 %v630
      %v3254 = vunpack.c.l.b16 %v631
      %v3255 = vunpack.c.h.b16 %v631
      %v3256 = vunpack.c.l.b16 %v632
      %v3257 = vunpack.c.h.b16 %v632
      %v3258 = vunpack.c.l.b16 %v633
      %v3259 = vunpack.c.h.b16 %v633
      %v3260 = vunpack.c.l.b16 %v634
      %v3261 = vunpack.c.h.b16 %v634
      %v3262 = vunpack.c.l.b16 %v635
      %v3263 = vunpack.c.h.b16 %v635
      %v3264 = vunpack.c.l.b16 %v636
      %v3265 = vunpack.c.h.b16 %v636
      %v3266 = vunpack.c.l.b16 %v637
      %v3267 = vunpack.c.h.b16 %v637
      %v3268 = vunpack.c.l.b16 %v638
      %v3269 = vunpack.c.h.b16 %v638
      %v3270 = vunpack.c.l.b16 %v639
      %v3271 = vunpack.c.h.b16 %v639
      %v3272 = vunpack.c.l.b16 %v640
      %v3273 = vunpack.c.h.b16 %v640
      %v3274 = vunpack.c.l.b16 %v641
      %v3275 = vunpack.c.h.b16 %v641
      %v3276 = vunpack.c.l.b16 %v642
      %v3277 = vunpack.c.h.b16 %v642
      %v3278 = vunpack.c.l.b16 %v643
      %v3279 = vunpack.c.h.b16 %v643
      %v3280 = vunpack.c.l.b16 %v644
      %v3281 = vunpack.c.h.b16 %v644
      %v3282 = vunpack.c.l.b16 %v645
      %v3283 = vunpack.c.h.b16 %v645
      %v3284 = vunpack.c.l.b16 %v646
      %v3285 = vunpack.c.h.b16 %v646
      %v3286 = vunpack.c.l.b16 %v647
      %v3287 = vunpack.c.h.b16 %v647
      %v3288 = vunpack.c.l.b16 %v648
      %v3289 = vunpack.c.h.b16 %v648
      %v3290 = vunpack.c.l.b16 %v649
      %v3291 = vunpack.c.h.b16 %v649
      %v3292 = vunpack.c.l.b16 %v650
      %v3293 = vunpack.c.h.b16 %v650
      %v3294 = vunpack.c.l.b16 %v651
      %v3295 = vunpack.c.h.b16 %v651
      %v3296 = vunpack.c.l.b16 %v652
      %v3297 = vunpack.c.h.b16 %v652
      %v3298 = vunpack.c.l.b16 %v653
      %v3299 = vunpack.c.h.b16 %v653
      %v3300 = vunpack.c.l.b16 %v654
      %v3301 = vunpack.c.h.b16 %v654
      %v3302 = vunpack.c.l.b16 %v655
      %v3303 = vunpack.c.h.b16 %v655
      %v3304 = vunpack.c.l.b16 %v656
      %v3305 = vunpack.c.h.b16 %v656
      %v3306 = vunpack.c.l.b16 %v657
      %v3307 = vunpack.c.h.b16 %v657
      %v3308 = vunpack.c.l.b16 %v658
      %v3309 = vunpack.c.h.b16 %v658
      %v3310 = vunpack.c.l.b16 %v659
      %v3311 = vunpack.c.h.b16 %v659
      %v3312 = vunpack.c.l.b16 %v660
      %v3313 = vunpack.c.h.b16 %v660
      %v3314 = vunpack.c.l.b16 %v661
      %v3315 = vunpack.c.h.b16 %v661
      %v3316 = vunpack.c.l.b16 %v662
      %v3317 = vunpack.c.h.b16 %v662
      %v3318 = vunpack.c.l.b16 %v663
      %v3319 = vunpack.c.h.b16 %v663
      %v3320 = vunpack.c.l.b16 %v664
      %v3321 = vunpack.c.h.b16 %v664
      %v3322 = vunpack.c.l.b16 %v665
      %v3323 = vunpack.c.h.b16 %v665
      %v3324 = vunpack.c.l.b16 %v666
      %v3325 = vunpack.c.h.b16 %v666
      %v3326 = vunpack.c.l.b16 %v667
      %v3327 = vunpack.c.h.b16 %v667
      %v3328 = vunpack.c.l.b16 %v668
      %v3329 = vunpack.c.h.b16 %v668
      %v3330 = vunpack.c.l.b16 %v669
      %v3331 = vunpack.c.h.b16 %v669
      %v3332 = vunpack.c.l.b16 %v670
      %v3333 = vunpack.c.h.b16 %v670
      %v3334 = vunpack.c.l.b16 %v671
      %v3335 = vunpack.c.h.b16 %v671
      %v3336 = vunpack.c.l.b16 %v672
      %v3337 = vunpack.c.h.b16 %v672
      %v3338 = vunpack.c.l.b16 %v673
      %v3339 = vunpack.c.h.b16 %v673
      %v3340 = vunpack.c.l.b16 %v674
      %v3341 = vunpack.c.h.b16 %v674
      %v3342 = vunpack.c.l.b16 %v675
      %v3343 = vunpack.c.h.b16 %v675
      %v3344 = vunpack.c.l.b16 %v676
      %v3345 = vunpack.c.h.b16 %v676
      %v3346 = vunpack.c.l.b16 %v677
      %v3347 = vunpack.c.h.b16 %v677
      %v3348 = vunpack.c.l.b16 %v678
      %v3349 = vunpack.c.h.b16 %v678
      %v3350 = vunpack.c.l.b16 %v679
      %v3351 = vunpack.c.h.b16 %v679
      %v3352 = vunpack.c.l.b16 %v680
      %v3353 = vunpack.c.h.b16 %v680
      %v3354 = vunpack.c.l.b16 %v681
      %v3355 = vunpack.c.h.b16 %v681
      %v3356 = vunpack.c.l.b16 %v682
      %v3357 = vunpack.c.h.b16 %v682
      %v3358 = vunpack.c.l.b16 %v683
      %v3359 = vunpack.c.h.b16 %v683
      %v3360 = vunpack.c.l.b16 %v684
      %v3361 = vunpack.c.h.b16 %v684
      %v3362 = vunpack.c.l.b16 %v685
      %v3363 = vunpack.c.h.b16 %v685
      %v3364 = vunpack.c.l.b16 %v686
      %v3365 = vunpack.c.h.b16 %v686
      %v3366 = vunpack.c.l.b16 %v687
      %v3367 = vunpack.c.h.b16 %v687
      %v3368 = vunpack.c.l.b16 %v688
      %v3369 = vunpack.c.h.b16 %v688
      %v3370 = vunpack.c.l.b16 %v689
      %v3371 = vunpack.c.h.b16 %v689
      %v3372 = vunpack.c.l.b16 %v690
      %v3373 = vunpack.c.h.b16 %v690
      %v3374 = vunpack.c.l.b16 %v691
      %v3375 = vunpack.c.h.b16 %v691
      %v3376 = vunpack.c.l.b16 %v692
      %v3377 = vunpack.c.h.b16 %v692
      %v3378 = vunpack.c.l.b16 %v693
      %v3379 = vunpack.c.h.b16 %v693
      %v3380 = vunpack.c.l.b16 %v694
      %v3381 = vunpack.c.h.b16 %v694
      %v3382 = vunpack.c.l.b16 %v695
      %v3383 = vunpack.c.h.b16 %v695
      %v3384 = vunpack.c.l.b16 %v696
      %v3385 = vunpack.c.h.b16 %v696
      %v3386 = vunpack.c.l.b16 %v697
      %v3387 = vunpack.c.h.b16 %v697
      %v3388 = vunpack.c.l.b16 %v698
      %v3389 = vunpack.c.h.b16 %v698
      %v3390 = vunpack.c.l.b16 %v699
      %v3391 = vunpack.c.h.b16 %v699
      %v3392 = vunpack.c.l.b16 %v700
      %v3393 = vunpack.c.h.b16 %v700
      %v3394 = vunpack.c.l.b16 %v701
      %v3395 = vunpack.c.h.b16 %v701
      %v3396 = vunpack.c.l.b16 %v702
      %v3397 = vunpack.c.h.b16 %v702
      %v3398 = vunpack.c.l.b16 %v703
      %v3399 = vunpack.c.h.b16 %v703
      %v3400 = vunpack.c.l.b16 %v704
      %v3401 = vunpack.c.h.b16 %v704
      %v3402 = vunpack.c.l.b16 %v705
      %v3403 = vunpack.c.h.b16 %v705
      %v3404 = vunpack.c.l.b16 %v706
      %v3405 = vunpack.c.h.b16 %v706
      %v3406 = vunpack.c.l.b16 %v707
      %v3407 = vunpack.c.h.b16 %v707
      %v3408 = vunpack.c.l.b16 %v708
      %v3409 = vunpack.c.h.b16 %v708
      %v3410 = vunpack.c.l.b16 %v709
      %v3411 = vunpack.c.h.b16 %v709
      %v3412 = vunpack.c.l.b16 %v710
      %v3413 = vunpack.c.h.b16 %v710
      %v3414 = vunpack.c.l.b16 %v711
      %v3415 = vunpack.c.h.b16 %v711
      %v3416 = vunpack.c.l.b16 %v712
      %v3417 = vunpack.c.h.b16 %v712
      %v3418 = vunpack.c.l.b16 %v713
      %v3419 = vunpack.c.h.b16 %v713
      %v3420 = vunpack.c.l.b16 %v714
      %v3421 = vunpack.c.h.b16 %v714
      %v3422 = vunpack.c.l.b16 %v715
      %v3423 = vunpack.c.h.b16 %v715
      %v3424 = vunpack.c.l.b16 %v716
      %v3425 = vunpack.c.h.b16 %v716
      %v3426 = vunpack.c.l.b16 %v717
      %v3427 = vunpack.c.h.b16 %v717
      %v3428 = vunpack.c.l.b16 %v718
      %v3429 = vunpack.c.h.b16 %v718
      %v3430 = vunpack.c.l.b16 %v719
      %v3431 = vunpack.c.h.b16 %v719
      %v3432 = vunpack.c.l.b16 %v720
      %v3433 = vunpack.c.h.b16 %v720
      %v3434 = vunpack.c.l.b16 %v721
      %v3435 = vunpack.c.h.b16 %v721
      %v3436 = vunpack.c.l.b16 %v722
      %v3437 = vunpack.c.h.b16 %v722
      %v3438 = vunpack.c.l.b16 %v723
      %v3439 = vunpack.c.h.b16 %v723
      %v3440 = vunpack.c.l.b16 %v724
      %v3441 = vunpack.c.h.b16 %v724
      %v3442 = vunpack.c.l.b16 %v725
      %v3443 = vunpack.c.h.b16 %v725
      %v3444 = vunpack.c.l.b16 %v726
      %v3445 = vunpack.c.h.b16 %v726
      %v3446 = vunpack.c.l.b16 %v727
      %v3447 = vunpack.c.h.b16 %v727
      %v3448 = vunpack.c.l.b16 %v728
      %v3449 = vunpack.c.h.b16 %v728
      %v3450 = vunpack.c.l.b16 %v729
      %v3451 = vunpack.c.h.b16 %v729
      %v3452 = vunpack.c.l.b16 %v730
      %v3453 = vunpack.c.h.b16 %v730
      %v3454 = vunpack.c.l.b16 %v731
      %v3455 = vunpack.c.h.b16 %v731
      %v3456 = vunpack.c.l.b16 %v732
      %v3457 = vunpack.c.h.b16 %v732
      %v3458 = vunpack.c.l.b16 %v733
      %v3459 = vunpack.c.h.b16 %v733
      %v3460 = vunpack.c.l.b16 %v734
      %v3461 = vunpack.c.h.b16 %v734
      %v3462 = vunpack.c.l.b16 %v735
      %v3463 = vunpack.c.h.b16 %v735
      %v3464 = vunpack.c.l.b16 %v736
      %v3465 = vunpack.c.h.b16 %v736
      %v3466 = vunpack.c.l.b16 %v737
      %v3467 = vunpack.c.h.b16 %v737
      %v3468 = vunpack.c.l.b16 %v738
      %v3469 = vunpack.c.h.b16 %v738
      %v3470 = vunpack.c.l.b16 %v739
      %v3471 = vunpack.c.h.b16 %v739
      %v3472 = vunpack.c.l.b16 %v740
      %v3473 = vunpack.c.h.b16 %v740
      %v3474 = vunpack.c.l.b16 %v741
      %v3475 = vunpack.c.h.b16 %v741
      %v3476 = vunpack.c.l.b16 %v742
      %v3477 = vunpack.c.h.b16 %v742
      %v3478 = vunpack.c.l.b16 %v743
      %v3479 = vunpack.c.h.b16 %v743
      %v3480 = vunpack.c.l.b16 %v744
      %v3481 = vunpack.c.h.b16 %v744
      %v3482 = vunpack.c.l.b16 %v745
      %v3483 = vunpack.c.h.b16 %v745
      %v3484 = vunpack.c.l.b16 %v746
      %v3485 = vunpack.c.h.b16 %v746
      %v3486 = vunpack.c.l.b16 %v747
      %v3487 = vunpack.c.h.b16 %v747
      %v3488 = vunpack.c.l.b16 %v748
      %v3489 = vunpack.c.h.b16 %v748
      %v3490 = vunpack.c.l.b16 %v749
      %v3491 = vunpack.c.h.b16 %v749
      %v3492 = vunpack.c.l.b16 %v750
      %v3493 = vunpack.c.h.b16 %v750
      %v3494 = vunpack.c.l.b16 %v751
      %v3495 = vunpack.c.h.b16 %v751
      %v3496 = vunpack.c.l.b16 %v752
      %v3497 = vunpack.c.h.b16 %v752
      %v3498 = vunpack.c.l.b16 %v753
      %v3499 = vunpack.c.h.b16 %v753
      %v3500 = vunpack.c.l.b16 %v754
      %v3501 = vunpack.c.h.b16 %v754
      %v3502 = vunpack.c.l.b16 %v755
      %v3503 = vunpack.c.h.b16 %v755
      %v3504 = vunpack.c.l.b16 %v756
      %v3505 = vunpack.c.h.b16 %v756
      %v3506 = vunpack.c.l.b16 %v757
      %v3507 = vunpack.c.h.b16 %v757
      %v3508 = vunpack.c.l.b16 %v758
      %v3509 = vunpack.c.h.b16 %v758
      %v3510 = vunpack.c.l.b16 %v759
      %v3511 = vunpack.c.h.b16 %v759
      %v3512 = vunpack.c.l.b16 %v760
      %v3513 = vunpack.c.h.b16 %v760
      %v3514 = vunpack.c.l.b16 %v761
      %v3515 = vunpack.c.h.b16 %v761
      %v3516 = vunpack.c.l.b16 %v762
      %v3517 = vunpack.c.h.b16 %v762
      %v3518 = vunpack.c.l.b16 %v763
      %v3519 = vunpack.c.h.b16 %v763
      %v3520 = vunpack.c.l.b16 %v764
      %v3521 = vunpack.c.h.b16 %v764
      %v3522 = vunpack.c.l.b16 %v765
      %v3523 = vunpack.c.h.b16 %v765
      %v3524 = vunpack.c.l.b16 %v766
      %v3525 = vunpack.c.h.b16 %v766
      %v3526 = vunpack.c.l.b16 %v767
      %v3527 = vunpack.c.h.b16 %v767
      %v3528 = vunpack.c.l.b16 %v768
      %v3529 = vunpack.c.h.b16 %v768
      %v3530 = vunpack.c.l.b16 %v769
      %v3531 = vunpack.c.h.b16 %v769
      %v3532 = vunpack.c.l.b16 %v770
      %v3533 = vunpack.c.h.b16 %v770
      %v3534 = vunpack.c.l.b16 %v771
      %v3535 = vunpack.c.h.b16 %v771
      %v3536 = vunpack.c.l.b16 %v772
      %v3537 = vunpack.c.h.b16 %v772
      %v3538 = vunpack.c.l.b16 %v773
      %v3539 = vunpack.c.h.b16 %v773
      %v3540 = vunpack.c.l.b16 %v774
      %v3541 = vunpack.c.h.b16 %v774
      %v3542 = vunpack.c.l.b16 %v775
      %v3543 = vunpack.c.h.b16 %v775
      %v3544 = vunpack.c.l.b16 %v776
      %v3545 = vunpack.c.h.b16 %v776
      %v3546 = vunpack.c.l.b16 %v777
      %v3547 = vunpack.c.h.b16 %v777
      %v3548 = vunpack.c.l.b16 %v778
      %v3549 = vunpack.c.h.b16 %v778
      %v3550 = vunpack.c.l.b16 %v779
      %v3551 = vunpack.c.h.b16 %v779
      %v3552 = vunpack.c.l.b16 %v780
      %v3553 = vunpack.c.h.b16 %v780
      %v3554 = vunpack.c.l.b16 %v781
      %v3555 = vunpack.c.h.b16 %v781
      %v3556 = vunpack.c.l.b16 %v782
      %v3557 = vunpack.c.h.b16 %v782
      %v3558 = vunpack.c.l.b16 %v783
      %v3559 = vunpack.c.h.b16 %v783
      %v3560 = vunpack.c.l.b16 %v784
      %v3561 = vunpack.c.h.b16 %v784
      %v3562 = vunpack.c.l.b16 %v785
      %v3563 = vunpack.c.h.b16 %v785
      %v3564 = vunpack.c.l.b16 %v786
      %v3565 = vunpack.c.h.b16 %v786
      %v3566 = vunpack.c.l.b16 %v787
      %v3567 = vunpack.c.h.b16 %v787
      %v3568 = vunpack.c.l.b16 %v788
      %v3569 = vunpack.c.h.b16 %v788
      %v3570 = vunpack.c.l.b16 %v789
      %v3571 = vunpack.c.h.b16 %v789
      %v3572 = vunpack.c.l.b16 %v790
      %v3573 = vunpack.c.h.b16 %v790
      %v3574 = vunpack.c.l.b16 %v791
      %v3575 = vunpack.c.h.b16 %v791
      %v3576 = vunpack.c.l.b16 %v792
      %v3577 = vunpack.c.h.b16 %v792
      %v3578 = vunpack.c.l.b16 %v793
      %v3579 = vunpack.c.h.b16 %v793
      %v3580 = vunpack.c.l.b16 %v794
      %v3581 = vunpack.c.h.b16 %v794
      %v3582 = vunpack.c.l.b16 %v795
      %v3583 = vunpack.c.h.b16 %v795
      %v3584 = vunpack.c.l.b16 %v796
      %v3585 = vunpack.c.h.b16 %v796
      %v3586 = vunpack.c.l.b16 %v797
      %v3587 = vunpack.c.h.b16 %v797
      %v3588 = vunpack.c.l.b16 %v798
      %v3589 = vunpack.c.h.b16 %v798
      %v3590 = vunpack.c.l.b16 %v799
      %v3591 = vunpack.c.h.b16 %v799
      %v3592 = vunpack.c.l.b16 %v800
      %v3593 = vunpack.c.h.b16 %v800
      %v3594 = vunpack.c.l.b16 %v801
      %v3595 = vunpack.c.h.b16 %v801
      %v3596 = vunpack.c.l.b16 %v802
      %v3597 = vunpack.c.h.b16 %v802
      %v3598 = vunpack.c.l.b16 %v803
      %v3599 = vunpack.c.h.b16 %v803
      %v3600 = vpack.c.b16 %v2584, %v2576
      %v3601 = vpack.c.b16 %v2585, %v2577
      %v3602 = vpack.c.b16 %v2586, %v2578
      %v3603 = vpack.c.b16 %v2587, %v2579
      %v3604 = vpack.c.b16 %v2588, %v2580
      %v3605 = vpack.c.b16 %v2589, %v2581
      %v3606 = vpack.c.b16 %v2590, %v2582
      %v3607 = vpack.c.b16 %v2591, %v2583
      %v3608 = vpack.c.b16 %v2600, %v2592
      %v3609 = vpack.c.b16 %v2601, %v2593
      %v3610 = vpack.c.b16 %v2602, %v2594
      %v3611 = vpack.c.b16 %v2603, %v2595
      %v3612 = vpack.c.b16 %v2604, %v2596
      %v3613 = vpack.c.b16 %v2605, %v2597
      %v3614 = vpack.c.b16 %v2606, %v2598
      %v3615 = vpack.c.b16 %v2607, %v2599
      %v3616 = vpack.c.b16 %v2616, %v2608
      %v3617 = vpack.c.b16 %v2617, %v2609
      %v3618 = vpack.c.b16 %v2618, %v2610
      %v3619 = vpack.c.b16 %v2619, %v2611
      %v3620 = vpack.c.b16 %v2620, %v2612
      %v3621 = vpack.c.b16 %v2621, %v2613
      %v3622 = vpack.c.b16 %v2622, %v2614
      %v3623 = vpack.c.b16 %v2623, %v2615
      %v3624 = vpack.c.b16 %v2632, %v2624
      %v3625 = vpack.c.b16 %v2633, %v2625
      %v3626 = vpack.c.b16 %v2634, %v2626
      %v3627 = vpack.c.b16 %v2635, %v2627
      %v3628 = vpack.c.b16 %v2636, %v2628
      %v3629 = vpack.c.b16 %v2637, %v2629
      %v3630 = vpack.c.b16 %v2638, %v2630
      %v3631 = vpack.c.b16 %v2639, %v2631
      %v3632 = vpack.c.b16 %v2648, %v2640
      %v3633 = vpack.c.b16 %v2649, %v2641
      %v3634 = vpack.c.b16 %v2650, %v2642
      %v3635 = vpack.c.b16 %v2651, %v2643
      %v3636 = vpack.c.b16 %v2652, %v2644
      %v3637 = vpack.c.b16 %v2653, %v2645
      %v3638 = vpack.c.b16 %v2654, %v2646
      %v3639 = vpack.c.b16 %v2655, %v2647
      %v3640 = vpack.c.b16 %v2664, %v2656
      %v3641 = vpack.c.b16 %v2665, %v2657
      %v3642 = vpack.c.b16 %v2666, %v2658
      %v3643 = vpack.c.b16 %v2667, %v2659
      %v3644 = vpack.c.b16 %v2668, %v2660
      %v3645 = vpack.c.b16 %v2669, %v2661
      %v3646 = vpack.c.b16 %v2670, %v2662
      %v3647 = vpack.c.b16 %v2671, %v2663
      %v3648 = vpack.c.b16 %v2680, %v2672
      %v3649 = vpack.c.b16 %v2681, %v2673
      %v3650 = vpack.c.b16 %v2682, %v2674
      %v3651 = vpack.c.b16 %v2683, %v2675
      %v3652 = vpack.c.b16 %v2684, %v2676
      %v3653 = vpack.c.b16 %v2685, %v2677
      %v3654 = vpack.c.b16 %v2686, %v2678
      %v3655 = vpack.c.b16 %v2687, %v2679
      %v3656 = vpack.c.b16 %v2696, %v2688
      %v3657 = vpack.c.b16 %v2697, %v2689
      %v3658 = vpack.c.b16 %v2698, %v2690
      %v3659 = vpack.c.b16 %v2699, %v2691
      %v3660 = vpack.c.b16 %v2700, %v2692
      %v3661 = vpack.c.b16 %v2701, %v2693
      %v3662 = vpack.c.b16 %v2702, %v2694
      %v3663 = vpack.c.b16 %v2703, %v2695
      %v3664 = vpack.c.b16 %v2712, %v2704
      %v3665 = vpack.c.b16 %v2713, %v2705
      %v3666 = vpack.c.b16 %v2714, %v2706
      %v3667 = vpack.c.b16 %v2715, %v2707
      %v3668 = vpack.c.b16 %v2716, %v2708
      %v3669 = vpack.c.b16 %v2717, %v2709
      %v3670 = vpack.c.b16 %v2718, %v2710
      %v3671 = vpack.c.b16 %v2719, %v2711
      %v3672 = vpack.c.b16 %v2728, %v2720
      %v3673 = vpack.c.b16 %v2729, %v2721
      %v3674 = vpack.c.b16 %v2730, %v2722
      %v3675 = vpack.c.b16 %v2731, %v2723
      %v3676 = vpack.c.b16 %v2732, %v2724
      %v3677 = vpack.c.b16 %v2733, %v2725
      %v3678 = vpack.c.b16 %v2734, %v2726
      %v3679 = vpack.c.b16 %v2735, %v2727
      %v3680 = vpack.c.b16 %v2744, %v2736
      %v3681 = vpack.c.b16 %v2745, %v2737
      %v3682 = vpack.c.b16 %v2746, %v2738
      %v3683 = vpack.c.b16 %v2747, %v2739
      %v3684 = vpack.c.b16 %v2748, %v2740
      %v3685 = vpack.c.b16 %v2749, %v2741
      %v3686 = vpack.c.b16 %v2750, %v2742
      %v3687 = vpack.c.b16 %v2751, %v2743
      %v3688 = vpack.c.b16 %v2760, %v2752
      %v3689 = vpack.c.b16 %v2761, %v2753
      %v3690 = vpack.c.b16 %v2762, %v2754
      %v3691 = vpack.c.b16 %v2763, %v2755
      %v3692 = vpack.c.b16 %v2764, %v2756
      %v3693 = vpack.c.b16 %v2765, %v2757
      %v3694 = vpack.c.b16 %v2766, %v2758
      %v3695 = vpack.c.b16 %v2767, %v2759
      %v3696 = vpack.c.b16 %v2776, %v2768
      %v3697 = vpack.c.b16 %v2777, %v2769
      %v3698 = vpack.c.b16 %v2778, %v2770
      %v3699 = vpack.c.b16 %v2779, %v2771
      %v3700 = vpack.c.b16 %v2780, %v2772
      %v3701 = vpack.c.b16 %v2781, %v2773
      %v3702 = vpack.c.b16 %v2782, %v2774
      %v3703 = vpack.c.b16 %v2783, %v2775
      %v3704 = vpack.c.b16 %v2792, %v2784
      %v3705 = vpack.c.b16 %v2793, %v2785
      %v3706 = vpack.c.b16 %v2794, %v2786
      %v3707 = vpack.c.b16 %v2795, %v2787
      %v3708 = vpack.c.b16 %v2796, %v2788
      %v3709 = vpack.c.b16 %v2797, %v2789
      %v3710 = vpack.c.b16 %v2798, %v2790
      %v3711 = vpack.c.b16 %v2799, %v2791
      %v3712 = vpack.c.b16 %v2808, %v2800
      %v3713 = vpack.c.b16 %v2809, %v2801
      %v3714 = vpack.c.b16 %v2810, %v2802
      %v3715 = vpack.c.b16 %v2811, %v2803
      %v3716 = vpack.c.b16 %v2812, %v2804
      %v3717 = vpack.c.b16 %v2813, %v2805
      %v3718 = vpack.c.b16 %v2814, %v2806
      %v3719 = vpack.c.b16 %v2815, %v2807
      %v3720 = vpack.c.b16 %v2824, %v2816
      %v3721 = vpack.c.b16 %v2825, %v2817
      %v3722 = vpack.c.b16 %v2826, %v2818
      %v3723 = vpack.c.b16 %v2827, %v2819
      %v3724 = vpack.c.b16 %v2828, %v2820
      %v3725 = vpack.c.b16 %v2829, %v2821
      %v3726 = vpack.c.b16 %v2830, %v2822
      %v3727 = vpack.c.b16 %v2831, %v2823
      %v3728 = vpack.c.b16 %v2840, %v2832
      %v3729 = vpack.c.b16 %v2841, %v2833
      %v3730 = vpack.c.b16 %v2842, %v2834
      %v3731 = vpack.c.b16 %v2843, %v2835
      %v3732 = vpack.c.b16 %v2844, %v2836
      %v3733 = vpack.c.b16 %v2845, %v2837
      %v3734 = vpack.c.b16 %v2846, %v2838
      %v3735 = vpack.c.b16 %v2847, %v2839
      %v3736 = vpack.c.b16 %v2856, %v2848
      %v3737 = vpack.c.b16 %v2857, %v2849
      %v3738 = vpack.c.b16 %v2858, %v2850
      %v3739 = vpack.c.b16 %v2859, %v2851
      %v3740 = vpack.c.b16 %v2860, %v2852
      %v3741 = vpack.c.b16 %v2861, %v2853
      %v3742 = vpack.c.b16 %v2862, %v2854
      %v3743 = vpack.c.b16 %v2863, %v2855
      %v3744 = vpack.c.b16 %v2872, %v2864
      %v3745 = vpack.c.b16 %v2873, %v2865
      %v3746 = vpack.c.b16 %v2874, %v2866
      %v3747 = vpack.c.b16 %v2875, %v2867
      %v3748 = vpack.c.b16 %v2876, %v2868
      %v3749 = vpack.c.b16 %v2877, %v2869
      %v3750 = vpack.c.b16 %v2878, %v2870
      %v3751 = vpack.c.b16 %v2879, %v2871
      %v3752 = vpack.c.b16 %v2888, %v2880
      %v3753 = vpack.c.b16 %v2889, %v2881
      %v3754 = vpack.c.b16 %v2890, %v2882
      %v3755 = vpack.c.b16 %v2891, %v2883
      %v3756 = vpack.c.b16 %v2892, %v2884
      %v3757 = vpack.c.b16 %v2893, %v2885
      %v3758 = vpack.c.b16 %v2894, %v2886
      %v3759 = vpack.c.b16 %v2895, %v2887
      %v3760 = vpack.c.b16 %v2904, %v2896
      %v3761 = vpack.c.b16 %v2905, %v2897
      %v3762 = vpack.c.b16 %v2906, %v2898
      %v3763 = vpack.c.b16 %v2907, %v2899
      %v3764 = vpack.c.b16 %v2908, %v2900
      %v3765 = vpack.c.b16 %v2909, %v2901
      %v3766 = vpack.c.b16 %v2910, %v2902
      %v3767 = vpack.c.b16 %v2911, %v2903
      %v3768 = vpack.c.b16 %v2920, %v2912
      %v3769 = vpack.c.b16 %v2921, %v2913
      %v3770 = vpack.c.b16 %v2922, %v2914
      %v3771 = vpack.c.b16 %v2923, %v2915
      %v3772 = vpack.c.b16 %v2924, %v2916
      %v3773 = vpack.c.b16 %v2925, %v2917
      %v3774 = vpack.c.b16 %v2926, %v2918
      %v3775 = vpack.c.b16 %v2927, %v2919
      %v3776 = vpack.c.b16 %v2936, %v2928
      %v3777 = vpack.c.b16 %v2937, %v2929
      %v3778 = vpack.c.b16 %v2938, %v2930
      %v3779 = vpack.c.b16 %v2939, %v2931
      %v3780 = vpack.c.b16 %v2940, %v2932
      %v3781 = vpack.c.b16 %v2941, %v2933
      %v3782 = vpack.c.b16 %v2942, %v2934
      %v3783 = vpack.c.b16 %v2943, %v2935
      %v3784 = vpack.c.b16 %v2952, %v2944
      %v3785 = vpack.c.b16 %v2953, %v2945
      %v3786 = vpack.c.b16 %v2954, %v2946
      %v3787 = vpack.c.b16 %v2955, %v2947
      %v3788 = vpack.c.b16 %v2956, %v2948
      %v3789 = vpack.c.b16 %v2957, %v2949
      %v3790 = vpack.c.b16 %v2958, %v2950
      %v3791 = vpack.c.b16 %v2959, %v2951
      %v3792 = vpack.c.b16 %v2968, %v2960
      %v3793 = vpack.c.b16 %v2969, %v2961
      %v3794 = vpack.c.b16 %v2970, %v2962
      %v3795 = vpack.c.b16 %v2971, %v2963
      %v3796 = vpack.c.b16 %v2972, %v2964
      %v3797 = vpack.c.b16 %v2973, %v2965
      %v3798 = vpack.c.b16 %v2974, %v2966
      %v3799 = vpack.c.b16 %v2975, %v2967
      %v3800 = vpack.c.b16 %v2984, %v2976
      %v3801 = vpack.c.b16 %v2985, %v2977
      %v3802 = vpack.c.b16 %v2986, %v2978
      %v3803 = vpack.c.b16 %v2987, %v2979
      %v3804 = vpack.c.b16 %v2988, %v2980
      %v3805 = vpack.c.b16 %v2989, %v2981
      %v3806 = vpack.c.b16 %v2990, %v2982
      %v3807 = vpack.c.b16 %v2991, %v2983
      %v3808 = vpack.c.b16 %v3000, %v2992
      %v3809 = vpack.c.b16 %v3001, %v2993
      %v3810 = vpack.c.b16 %v3002, %v2994
      %v3811 = vpack.c.b16 %v3003, %v2995
      %v3812 = vpack.c.b16 %v3004, %v2996
      %v3813 = vpack.c.b16 %v3005, %v2997
      %v3814 = vpack.c.b16 %v3006, %v2998
      %v3815 = vpack.c.b16 %v3007, %v2999
      %v3816 = vpack.c.b16 %v3016, %v3008
      %v3817 = vpack.c.b16 %v3017, %v3009
      %v3818 = vpack.c.b16 %v3018, %v3010
      %v3819 = vpack.c.b16 %v3019, %v3011
      %v3820 = vpack.c.b16 %v3020, %v3012
      %v3821 = vpack.c.b16 %v3021, %v3013
      %v3822 = vpack.c.b16 %v3022, %v3014
      %v3823 = vpack.c.b16 %v3023, %v3015
      %v3824 = vpack.c.b16 %v3032, %v3024
      %v3825 = vpack.c.b16 %v3033, %v3025
      %v3826 = vpack.c.b16 %v3034, %v3026
      %v3827 = vpack.c.b16 %v3035, %v3027
      %v3828 = vpack.c.b16 %v3036, %v3028
      %v3829 = vpack.c.b16 %v3037, %v3029
      %v3830 = vpack.c.b16 %v3038, %v3030
      %v3831 = vpack.c.b16 %v3039, %v3031
      %v3832 = vpack.c.b16 %v3048, %v3040
      %v3833 = vpack.c.b16 %v3049, %v3041
      %v3834 = vpack.c.b16 %v3050, %v3042
      %v3835 = vpack.c.b16 %v3051, %v3043
      %v3836 = vpack.c.b16 %v3052, %v3044
      %v3837 = vpack.c.b16 %v3053, %v3045
      %v3838 = vpack.c.b16 %v3054, %v3046
      %v3839 = vpack.c.b16 %v3055, %v3047
      %v3840 = vpack.c.b16 %v3064, %v3056
      %v3841 = vpack.c.b16 %v3065, %v3057
      %v3842 = vpack.c.b16 %v3066, %v3058
      %v3843 = vpack.c.b16 %v3067, %v3059
      %v3844 = vpack.c.b16 %v3068, %v3060
      %v3845 = vpack.c.b16 %v3069, %v3061
      %v3846 = vpack.c.b16 %v3070, %v3062
      %v3847 = vpack.c.b16 %v3071, %v3063
      %v3848 = vpack.c.b16 %v3080, %v3072
      %v3849 = vpack.c.b16 %v3081, %v3073
      %v3850 = vpack.c.b16 %v3082, %v3074
      %v3851 = vpack.c.b16 %v3083, %v3075
      %v3852 = vpack.c.b16 %v3084, %v3076
      %v3853 = vpack.c.b16 %v3085, %v3077
      %v3854 = vpack.c.b16 %v3086, %v3078
      %v3855 = vpack.c.b16 %v3087, %v3079
      %v3856 = vpack.c.b16 %v3096, %v3088
      %v3857 = vpack.c.b16 %v3097, %v3089
      %v3858 = vpack.c.b16 %v3098, %v3090
      %v3859 = vpack.c.b16 %v3099, %v3091
      %v3860 = vpack.c.b16 %v3100, %v3092
      %v3861 = vpack.c.b16 %v3101, %v3093
      %v3862 = vpack.c.b16 %v3102, %v3094
      %v3863 = vpack.c.b16 %v3103, %v3095
      %v3864 = vpack.c.b16 %v3112, %v3104
      %v3865 = vpack.c.b16 %v3113, %v3105
      %v3866 = vpack.c.b16 %v3114, %v3106
      %v3867 = vpack.c.b16 %v3115, %v3107
      %v3868 = vpack.c.b16 %v3116, %v3108
      %v3869 = vpack.c.b16 %v3117, %v3109
      %v3870 = vpack.c.b16 %v3118, %v3110
      %v3871 = vpack.c.b16 %v3119, %v3111
      %v3872 = vpack.c.b16 %v3128, %v3120
      %v3873 = vpack.c.b16 %v3129, %v3121
      %v3874 = vpack.c.b16 %v3130, %v3122
      %v3875 = vpack.c.b16 %v3131, %v3123
      %v3876 = vpack.c.b16 %v3132, %v3124
      %v3877 = vpack.c.b16 %v3133, %v3125
      %v3878 = vpack.c.b16 %v3134, %v3126
      %v3879 = vpack.c.b16 %v3135, %v3127
      %v3880 = vpack.c.b16 %v3144, %v3136
      %v3881 = vpack.c.b16 %v3145, %v3137
      %v3882 = vpack.c.b16 %v3146, %v3138
      %v3883 = vpack.c.b16 %v3147, %v3139
      %v3884 = vpack.c.b16 %v3148, %v3140
      %v3885 = vpack.c.b16 %v3149, %v3141
      %v3886 = vpack.c.b16 %v3150, %v3142
      %v3887 = vpack.c.b16 %v3151, %v3143
      %v3888 = vpack.c.b16 %v3160, %v3152
      %v3889 = vpack.c.b16 %v3161, %v3153
      %v3890 = vpack.c.b16 %v3162, %v3154
      %v3891 = vpack.c.b16 %v3163, %v3155
      %v3892 = vpack.c.b16 %v3164, %v3156
      %v3893 = vpack.c.b16 %v3165, %v3157
      %v3894 = vpack.c.b16 %v3166, %v3158
      %v3895 = vpack.c.b16 %v3167, %v3159
      %v3896 = vpack.c.b16 %v3176, %v3168
      %v3897 = vpack.c.b16 %v3177, %v3169
      %v3898 = vpack.c.b16 %v3178, %v3170
      %v3899 = vpack.c.b16 %v3179, %v3171
      %v3900 = vpack.c.b16 %v3180, %v3172
      %v3901 = vpack.c.b16 %v3181, %v3173
      %v3902 = vpack.c.b16 %v3182, %v3174
      %v3903 = vpack.c.b16 %v3183, %v3175
      %v3904 = vpack.c.b16 %v3192, %v3184
      %v3905 = vpack.c.b16 %v3193, %v3185
      %v3906 = vpack.c.b16 %v3194, %v3186
      %v3907 = vpack.c.b16 %v3195, %v3187
      %v3908 = vpack.c.b16 %v3196, %v3188
      %v3909 = vpack.c.b16 %v3197, %v3189
      %v3910 = vpack.c.b16 %v3198, %v3190
      %v3911 = vpack.c.b16 %v3199, %v3191
      %v3912 = vpack.c.b16 %v3208, %v3200
      %v3913 = vpack.c.b16 %v3209, %v3201
      %v3914 = vpack.c.b16 %v3210, %v3202
      %v3915 = vpack.c.b16 %v3211, %v3203
      %v3916 = vpack.c.b16 %v3212, %v3204
      %v3917 = vpack.c.b16 %v3213, %v3205
      %v3918 = vpack.c.b16 %v3214, %v3206
      %v3919 = vpack.c.b16 %v3215, %v3207
      %v3920 = vpack.c.b16 %v3224, %v3216
      %v3921 = vpack.c.b16 %v3225, %v3217
      %v3922 = vpack.c.b16 %v3226, %v3218
      %v3923 = vpack.c.b16 %v3227, %v3219
      %v3924 = vpack.c.b16 %v3228, %v3220
      %v3925 = vpack.c.b16 %v3229, %v3221
      %v3926 = vpack.c.b16 %v3230, %v3222
      %v3927 = vpack.c.b16 %v3231, %v3223
      %v3928 = vpack.c.b16 %v3240, %v3232
      %v3929 = vpack.c.b16 %v3241, %v3233
      %v3930 = vpack.c.b16 %v3242, %v3234
      %v3931 = vpack.c.b16 %v3243, %v3235
      %v3932 = vpack.c.b16 %v3244, %v3236
      %v3933 = vpack.c.b16 %v3245, %v3237
      %v3934 = vpack.c.b16 %v3246, %v3238
      %v3935 = vpack.c.b16 %v3247, %v3239
      %v3936 = vpack.c.b16 %v3256, %v3248
      %v3937 = vpack.c.b16 %v3257, %v3249
      %v3938 = vpack.c.b16 %v3258, %v3250
      %v3939 = vpack.c.b16 %v3259, %v3251
      %v3940 = vpack.c.b16 %v3260, %v3252
      %v3941 = vpack.c.b16 %v3261, %v3253
      %v3942 = vpack.c.b16 %v3262, %v3254
      %v3943 = vpack.c.b16 %v3263, %v3255
      %v3944 = vpack.c.b16 %v3272, %v3264
      %v3945 = vpack.c.b16 %v3273, %v3265
      %v3946 = vpack.c.b16 %v3274, %v3266
      %v3947 = vpack.c.b16 %v3275, %v3267
      %v3948 = vpack.c.b16 %v3276, %v3268
      %v3949 = vpack.c.b16 %v3277, %v3269
      %v3950 = vpack.c.b16 %v3278, %v3270
      %v3951 = vpack.c.b16 %v3279, %v3271
      %v3952 = vpack.c.b16 %v3288, %v3280
      %v3953 = vpack.c.b16 %v3289, %v3281
      %v3954 = vpack.c.b16 %v3290, %v3282
      %v3955 = vpack.c.b16 %v3291, %v3283
      %v3956 = vpack.c.b16 %v3292, %v3284
      %v3957 = vpack.c.b16 %v3293, %v3285
      %v3958 = vpack.c.b16 %v3294, %v3286
      %v3959 = vpack.c.b16 %v3295, %v3287
      %v3960 = vpack.c.b16 %v3304, %v3296
      %v3961 = vpack.c.b16 %v3305, %v3297
      %v3962 = vpack.c.b16 %v3306, %v3298
      %v3963 = vpack.c.b16 %v3307, %v3299
      %v3964 = vpack.c.b16 %v3308, %v3300
      %v3965 = vpack.c.b16 %v3309, %v3301
      %v3966 = vpack.c.b16 %v3310, %v3302
      %v3967 = vpack.c.b16 %v3311, %v3303
      %v3968 = vpack.c.b16 %v3320, %v3312
      %v3969 = vpack.c.b16 %v3321, %v3313
      %v3970 = vpack.c.b16 %v3322, %v3314
      %v3971 = vpack.c.b16 %v3323, %v3315
      %v3972 = vpack.c.b16 %v3324, %v3316
      %v3973 = vpack.c.b16 %v3325, %v3317
      %v3974 = vpack.c.b16 %v3326, %v3318
      %v3975 = vpack.c.b16 %v3327, %v3319
      %v3976 = vpack.c.b16 %v3336, %v3328
      %v3977 = vpack.c.b16 %v3337, %v3329
      %v3978 = vpack.c.b16 %v3338, %v3330
      %v3979 = vpack.c.b16 %v3339, %v3331
      %v3980 = vpack.c.b16 %v3340, %v3332
      %v3981 = vpack.c.b16 %v3341, %v3333
      %v3982 = vpack.c.b16 %v3342, %v3334
      %v3983 = vpack.c.b16 %v3343, %v3335
      %v3984 = vpack.c.b16 %v3352, %v3344
      %v3985 = vpack.c.b16 %v3353, %v3345
      %v3986 = vpack.c.b16 %v3354, %v3346
      %v3987 = vpack.c.b16 %v3355, %v3347
      %v3988 = vpack.c.b16 %v3356, %v3348
      %v3989 = vpack.c.b16 %v3357, %v3349
      %v3990 = vpack.c.b16 %v3358, %v3350
      %v3991 = vpack.c.b16 %v3359, %v3351
      %v3992 = vpack.c.b16 %v3368, %v3360
      %v3993 = vpack.c.b16 %v3369, %v3361
      %v3994 = vpack.c.b16 %v3370, %v3362
      %v3995 = vpack.c.b16 %v3371, %v3363
      %v3996 = vpack.c.b16 %v3372, %v3364
      %v3997 = vpack.c.b16 %v3373, %v3365
      %v3998 = vpack.c.b16 %v3374, %v3366
      %v3999 = vpack.c.b16 %v3375, %v3367
      %v4000 = vpack.c.b16 %v3384, %v3376
      %v4001 = vpack.c.b16 %v3385, %v3377
      %v4002 = vpack.c.b16 %v3386, %v3378
      %v4003 = vpack.c.b16 %v3387, %v3379
      %v4004 = vpack.c.b16 %v3388, %v3380
      %v4005 = vpack.c.b16 %v3389, %v3381
      %v4006 = vpack.c.b16 %v3390, %v3382
      %v4007 = vpack.c.b16 %v3391, %v3383
      %v4008 = vpack.c.b16 %v3400, %v3392
      %v4009 = vpack.c.b16 %v3401, %v3393
      %v4010 = vpack.c.b16 %v3402, %v3394
      %v4011 = vpack.c.b16 %v3403, %v3395
      %v4012 = vpack.c.b16 %v3404, %v3396
      %v4013 = vpack.c.b16 %v3405, %v3397
      %v4014 = vpack.c.b16 %v3406, %v3398
      %v4015 = vpack.c.b16 %v3407, %v3399
      %v4016 = vpack.c.b16 %v3416, %v3408
      %v4017 = vpack.c.b16 %v3417, %v3409
      %v4018 = vpack.c.b16 %v3418, %v3410
      %v4019 = vpack.c.b16 %v3419, %v3411
      %v4020 = vpack.c.b16 %v3420, %v3412
      %v4021 = vpack.c.b16 %v3421, %v3413
      %v4022 = vpack.c.b16 %v3422, %v3414
      %v4023 = vpack.c.b16 %v3423, %v3415
      %v4024 = vpack.c.b16 %v3432, %v3424
      %v4025 = vpack.c.b16 %v3433, %v3425
      %v4026 = vpack.c.b16 %v3434, %v3426
      %v4027 = vpack.c.b16 %v3435, %v3427
      %v4028 = vpack.c.b16 %v3436, %v3428
      %v4029 = vpack.c.b16 %v3437, %v3429
      %v4030 = vpack.c.b16 %v3438, %v3430
      %v4031 = vpack.c.b16 %v3439, %v3431
      %v4032 = vpack.c.b16 %v3448, %v3440
      %v4033 = vpack.c.b16 %v3449, %v3441
      %v4034 = vpack.c.b16 %v3450, %v3442
      %v4035 = vpack.c.b16 %v3451, %v3443
      %v4036 = vpack.c.b16 %v3452, %v3444
      %v4037 = vpack.c.b16 %v3453, %v3445
      %v4038 = vpack.c.b16 %v3454, %v3446
      %v4039 = vpack.c.b16 %v3455, %v3447
      %v4040 = vpack.c.b16 %v3464, %v3456
      %v4041 = vpack.c.b16 %v3465, %v3457
      %v4042 = vpack.c.b16 %v3466, %v3458
      %v4043 = vpack.c.b16 %v3467, %v3459
      %v4044 = vpack.c.b16 %v3468, %v3460
      %v4045 = vpack.c.b16 %v3469, %v3461
      %v4046 = vpack.c.b16 %v3470, %v3462
      %v4047 = vpack.c.b16 %v3471, %v3463
      %v4048 = vpack.c.b16 %v3480, %v3472
      %v4049 = vpack.c.b16 %v3481, %v3473
      %v4050 = vpack.c.b16 %v3482, %v3474
      %v4051 = vpack.c.b16 %v3483, %v3475
      %v4052 = vpack.c.b16 %v3484, %v3476
      %v4053 = vpack.c.b16 %v3485, %v3477
      %v4054 = vpack.c.b16 %v3486, %v3478
      %v4055 = vpack.c.b16 %v3487, %v3479
      %v4056 = vpack.c.b16 %v3496, %v3488
      %v4057 = vpack.c.b16 %v3497, %v3489
      %v4058 = vpack.c.b16 %v3498, %v3490
      %v4059 = vpack.c.b16 %v3499, %v3491
      %v4060 = vpack.c.b16 %v3500, %v3492
      %v4061 = vpack.c.b16 %v3501, %v3493
      %v4062 = vpack.c.b16 %v3502, %v3494
      %v4063 = vpack.c.b16 %v3503, %v3495
      %v4064 = vpack.c.b16 %v3512, %v3504
      %v4065 = vpack.c.b16 %v3513, %v3505
      %v4066 = vpack.c.b16 %v3514, %v3506
      %v4067 = vpack.c.b16 %v3515, %v3507
      %v4068 = vpack.c.b16 %v3516, %v3508
      %v4069 = vpack.c.b16 %v3517, %v3509
      %v4070 = vpack.c.b16 %v3518, %v3510
      %v4071 = vpack.c.b16 %v3519, %v3511
      %v4072 = vpack.c.b16 %v3528, %v3520
      %v4073 = vpack.c.b16 %v3529, %v3521
      %v4074 = vpack.c.b16 %v3530, %v3522
      %v4075 = vpack.c.b16 %v3531, %v3523
      %v4076 = vpack.c.b16 %v3532, %v3524
      %v4077 = vpack.c.b16 %v3533, %v3525
      %v4078 = vpack.c.b16 %v3534, %v3526
      %v4079 = vpack.c.b16 %v3535, %v3527
      %v4080 = vpack.c.b16 %v3544, %v3536
      %v4081 = vpack.c.b16 %v3545, %v3537
      %v4082 = vpack.c.b16 %v3546, %v3538
      %v4083 = vpack.c.b16 %v3547, %v3539
      %v4084 = vpack.c.b16 %v3548, %v3540
      %v4085 = vpack.c.b16 %v3549, %v3541
      %v4086 = vpack.c.b16 %v3550, %v3542
      %v4087 = vpack.c.b16 %v3551, %v3543
      %v4088 = vpack.c.b16 %v3560, %v3552
      %v4089 = vpack.c.b16 %v3561, %v3553
      %v4090 = vpack.c.b16 %v3562, %v3554
      %v4091 = vpack.c.b16 %v3563, %v3555
      %v4092 = vpack.c.b16 %v3564, %v3556
      %v4093 = vpack.c.b16 %v3565, %v3557
      %v4094 = vpack.c.b16 %v3566, %v3558
      %v4095 = vpack.c.b16 %v3567, %v3559
      %v4096 = vpack.c.b16 %v3576, %v3568
      %v4097 = vpack.c.b16 %v3577, %v3569
      %v4098 = vpack.c.b16 %v3578, %v3570
      %v4099 = vpack.c.b16 %v3579, %v3571
      %v4100 = vpack.c.b16 %v3580, %v3572
      %v4101 = vpack.c.b16 %v3581, %v3573
      %v4102 = vpack.c.b16 %v3582, %v3574
      %v4103 = vpack.c.b16 %v3583, %v3575
      %v4104 = vpack.c.b16 %v3592, %v3584
      %v4105 = vpack.c.b16 %v3593, %v3585
      %v4106 = vpack.c.b16 %v3594, %v3586
      %v4107 = vpack.c.b16 %v3595, %v3587
      %v4108 = vpack.c.b16 %v3596, %v3588
      %v4109 = vpack.c.b16 %v3597, %v3589
      %v4110 = vpack.c.b16 %v3598, %v3590
      %v4111 = vpack.c.b16 %v3599, %v3591
      %4624 = vmatprep.subr.bf16.mxu0 0
      %4625 = vmatpush1.bf16.msra.mxu0 %v1996
      %4626 = vmatprep.subr.bf16.mxu0 0
      %4627 = vmatpush1.bf16.msra.mxu0 %v1997
      %4628 = vmatprep.subr.bf16.mxu0 0
      %4629 = vmatpush1.bf16.msra.mxu0 %v1998
      %4630 = vmatprep.subr.bf16.mxu0 0
      %4631 = vmatpush1.bf16.msra.mxu0 %v1999
      %4632 = vmatprep.subr.bf16.mxu0 0
      %4633 = vmatpush1.bf16.msra.mxu0 %v2000
      %4634 = vmatprep.subr.bf16.mxu0 0
      %4635 = vmatpush1.bf16.msra.mxu0 %v2001
      %4636 = vmatprep.subr.bf16.mxu0 0
      %4637 = vmatpush1.bf16.msra.mxu0 %v2002
      %4638 = vmatprep.subr.bf16.mxu0 0
      %4639 = vmatpush1.bf16.msra.mxu0 %v2003
      %4640 = vmatprep.subr.bf16.mxu0 0
      %4641 = vmatpush1.bf16.msra.mxu0 %v2004
      %4642 = vmatprep.subr.bf16.mxu0 0
      %4643 = vmatpush1.bf16.msra.mxu0 %v2005
      %4644 = vmatprep.subr.bf16.mxu0 0
      %4645 = vmatpush1.bf16.msra.mxu0 %v2006
      %4646 = vmatprep.subr.bf16.mxu0 0
      %4647 = vmatpush1.bf16.msra.mxu0 %v2007
      %4648 = vmatprep.subr.bf16.mxu0 0
      %4649 = vmatpush1.bf16.msra.mxu0 %v2008
      %4650 = vmatprep.subr.bf16.mxu0 0
      %4651 = vmatpush1.bf16.msra.mxu0 %v2009
      %4652 = vmatprep.subr.bf16.mxu0 0
      %4653 = vmatpush1.bf16.msra.mxu0 %v2010
      %4654 = vmatprep.subr.bf16.mxu0 0
      %4655 = vmatpush1.bf16.msra.mxu0 %v2011
      %4656 = vmatprep.mubr.bf16.mxu0 %v3601
      %4657 = vmatmul.mubr.bf16.gmra.mrb[0].mxu0 %v3600
      %v4658 = vpop.f32.mrb[0].mxu0
      %v4659 = vadd.f32 %v2063, %v4658
      %v4660 = vpop.f32.mrb[0].mxu0
      %v4661 = vpop.f32.mrb[0].mxu0
      %v4662 = vadd.f32 %v2063, %v4661
      %v4663 = vpop.f32.mrb[0].mxu0
      %4664 = vmatprep.mubr.bf16.mxu0 %v3609
      %4665 = vmatmul.mubr.bf16.gmra.mrb[0].mxu0 %v3608
      %v4666 = vpop.f32.mrb[0].mxu0
      %v4667 = vadd.f32 %v2063, %v4666
      %v4668 = vpop.f32.mrb[0].mxu0
      %v4669 = vpop.f32.mrb[0].mxu0
      %v4670 = vadd.f32 %v2063, %v4669
      %v4671 = vpop.f32.mrb[0].mxu0
      %4672 = vmatprep.mubr.bf16.mxu0 %v3617
      %4673 = vmatmul.mubr.bf16.gmra.mrb[0].mxu0 %v3616
      %v4674 = vpop.f32.mrb[0].mxu0
      %v4675 = vadd.f32 %v2063, %v4674
      %v4676 = vpop.f32.mrb[0].mxu0
      %v4677 = vpop.f32.mrb[0].mxu0
      %v4678 = vadd.f32 %v2063, %v4677
      %v4679 = vpop.f32.mrb[0].mxu0
      %4680 = vmatprep.mubr.bf16.mxu0 %v3625
      %4681 = vmatmul.mubr.bf16.gmra.mrb[0].mxu0 %v3624
      %v4682 = vpop.f32.mrb[0].mxu0
      %v4683 = vadd.f32 %v2063, %v4682
      %v4684 = vpop.f32.mrb[0].mxu0
      %v4685 = vpop.f32.mrb[0].mxu0
      %v4686 = vadd.f32 %v2063, %v4685
      %v4687 = vpop.f32.mrb[0].mxu0
      %4688 = vmatprep.mubr.bf16.mxu0 %v3633
      %4689 = vmatmul.mubr.bf16.gmra.mrb[0].mxu0 %v3632
      %v4690 = vpop.f32.mrb[0].mxu0
      %v4691 = vadd.f32 %v2063, %v4690
      %v4692 = vpop.f32.mrb[0].mxu0
      %v4693 = vpop.f32.mrb[0].mxu0
      %v4694 = vadd.f32 %v2063, %v4693
      %v4695 = vpop.f32.mrb[0].mxu0
      %4696 = vmatprep.mubr.bf16.mxu0 %v3641
      %4697 = vmatmul.mubr.bf16.gmra.mrb[0].mxu0 %v3640
      %v4698 = vpop.f32.mrb[0].mxu0
      %v4699 = vadd.f32 %v2063, %v4698
      %v4700 = vpop.f32.mrb[0].mxu0
      %v4701 = vpop.f32.mrb[0].mxu0
      %v4702 = vadd.f32 %v2063, %v4701
      %v4703 = vpop.f32.mrb[0].mxu0
      %4704 = vmatprep.mubr.bf16.mxu0 %v3649
      %4705 = vmatmul.mubr.bf16.gmra.mrb[0].mxu0 %v3648
      %v4706 = vpop.f32.mrb[0].mxu0
      %v4707 = vadd.f32 %v2063, %v4706
      %v4708 = vpop.f32.mrb[0].mxu0
      %v4709 = vpop.f32.mrb[0].mxu0
      %v4710 = vadd.f32 %v2063, %v4709
      %v4711 = vpop.f32.mrb[0].mxu0
      %4712 = vmatprep.mubr.bf16.mxu0 %v3657
      %4713 = vmatmul.mubr.bf16.gmra.mrb[0].mxu0 %v3656
      %v4714 = vpop.f32.mrb[0].mxu0
      %v4715 = vadd.f32 %v2063, %v4714
      %v4716 = vpop.f32.mrb[0].mxu0
      %v4717 = vpop.f32.mrb[0].mxu0
      %v4718 = vadd.f32 %v2063, %v4717
      %v4719 = vpop.f32.mrb[0].mxu0
      %4720 = vmatprep.mubr.bf16.mxu0 %v3665
      %4721 = vmatmul.mubr.bf16.gmra.mrb[0].mxu0 %v3664
      %v4722 = vpop.f32.mrb[0].mxu0
      %v4723 = vadd.f32 %v2063, %v4722
      %v4724 = vpop.f32.mrb[0].mxu0
      %v4725 = vpop.f32.mrb[0].mxu0
      %v4726 = vadd.f32 %v2063, %v4725
      %v4727 = vpop.f32.mrb[0].mxu0
      %4728 = vmatprep.mubr.bf16.mxu0 %v3673
      %4729 = vmatmul.mubr.bf16.gmra.mrb[0].mxu0 %v3672
      %v4730 = vpop.f32.mrb[0].mxu0
      %v4731 = vadd.f32 %v2063, %v4730
      %v4732 = vpop.f32.mrb[0].mxu0
      %v4733 = vpop.f32.mrb[0].mxu0
      %v4734 = vadd.f32 %v2063, %v4733
      %v4735 = vpop.f32.mrb[0].mxu0
      %4736 = vmatprep.mubr.bf16.mxu0 %v3681
      %4737 = vmatmul.mubr.bf16.gmra.mrb[0].mxu0 %v3680
      %v4738 = vpop.f32.mrb[0].mxu0
      %v4739 = vadd.f32 %v2063, %v4738
      %v4740 = vpop.f32.mrb[0].mxu0
      %v4741 = vpop.f32.mrb[0].mxu0
      %v4742 = vadd.f32 %v2063, %v4741
      %v4743 = vpop.f32.mrb[0].mxu0
      %4744 = vmatprep.mubr.bf16.mxu0 %v3689
      %4745 = vmatmul.mubr.bf16.gmra.mrb[0].mxu0 %v3688
      %v4746 = vpop.f32.mrb[0].mxu0
      %v4747 = vadd.f32 %v2063, %v4746
      %v4748 = vpop.f32.mrb[0].mxu0
      %v4749 = vpop.f32.mrb[0].mxu0
      %v4750 = vadd.f32 %v2063, %v4749
      %v4751 = vpop.f32.mrb[0].mxu0
      %4752 = vmatprep.mubr.bf16.mxu0 %v3697
      %4753 = vmatmul.mubr.bf16.gmra.mrb[0].mxu0 %v3696
      %v4754 = vpop.f32.mrb[0].mxu0
      %v4755 = vadd.f32 %v2063, %v4754
      %v4756 = vpop.f32.mrb[0].mxu0
      %v4757 = vpop.f32.mrb[0].mxu0
      %v4758 = vadd.f32 %v2063, %v4757
      %v4759 = vpop.f32.mrb[0].mxu0
      %4760 = vmatprep.mubr.bf16.mxu0 %v3705
      %4761 = vmatmul.mubr.bf16.gmra.mrb[0].mxu0 %v3704
      %v4762 = vpop.f32.mrb[0].mxu0
      %v4763 = vadd.f32 %v2063, %v4762
      %v4764 = vpop.f32.mrb[0].mxu0
      %v4765 = vpop.f32.mrb[0].mxu0
      %v4766 = vadd.f32 %v2063, %v4765
      %v4767 = vpop.f32.mrb[0].mxu0
      %4768 = vmatprep.mubr.bf16.mxu0 %v3713
      %4769 = vmatmul.mubr.bf16.gmra.mrb[0].mxu0 %v3712
      %v4770 = vpop.f32.mrb[0].mxu0
      %v4771 = vadd.f32 %v2063, %v4770
      %v4772 = vpop.f32.mrb[0].mxu0
      %v4773 = vpop.f32.mrb[0].mxu0
      %v4774 = vadd.f32 %v2063, %v4773
      %v4775 = vpop.f32.mrb[0].mxu0
      %4776 = vmatprep.mubr.bf16.mxu0 %v3721
      %4777 = vmatmul.mubr.bf16.gmra.mrb[0].mxu0 %v3720
      %v4778 = vpop.f32.mrb[0].mxu0
      %v4779 = vadd.f32 %v2063, %v4778
      %v4780 = vpop.f32.mrb[0].mxu0
      %v4781 = vpop.f32.mrb[0].mxu0
      %v4782 = vadd.f32 %v2063, %v4781
      %v4783 = vpop.f32.mrb[0].mxu0
      %4784 = vmatprep.mubr.bf16.mxu0 %v3729
      %4785 = vmatmul.mubr.bf16.gmra.mrb[0].mxu0 %v3728
      %v4786 = vpop.f32.mrb[0].mxu0
      %v4787 = vadd.f32 %v2063, %v4786
      %v4788 = vpop.f32.mrb[0].mxu0
      %v4789 = vpop.f32.mrb[0].mxu0
      %v4790 = vadd.f32 %v2063, %v4789
      %v4791 = vpop.f32.mrb[0].mxu0
      %4792 = vmatprep.mubr.bf16.mxu0 %v3737
      %4793 = vmatmul.mubr.bf16.gmra.mrb[0].mxu0 %v3736
      %v4794 = vpop.f32.mrb[0].mxu0
      %v4795 = vadd.f32 %v2063, %v4794
      %v4796 = vpop.f32.mrb[0].mxu0
      %v4797 = vpop.f32.mrb[0].mxu0
      %v4798 = vadd.f32 %v2063, %v4797
      %v4799 = vpop.f32.mrb[0].mxu0
      %4800 = vmatprep.mubr.bf16.mxu0 %v3745
      %4801 = vmatmul.mubr.bf16.gmra.mrb[0].mxu0 %v3744
      %v4802 = vpop.f32.mrb[0].mxu0
      %v4803 = vadd.f32 %v2063, %v4802
      %v4804 = vpop.f32.mrb[0].mxu0
      %v4805 = vpop.f32.mrb[0].mxu0
      %v4806 = vadd.f32 %v2063, %v4805
      %v4807 = vpop.f32.mrb[0].mxu0
      %4808 = vmatprep.mubr.bf16.mxu0 %v3753
      %4809 = vmatmul.mubr.bf16.gmra.mrb[0].mxu0 %v3752
      %v4810 = vpop.f32.mrb[0].mxu0
      %v4811 = vadd.f32 %v2063, %v4810
      %v4812 = vpop.f32.mrb[0].mxu0
      %v4813 = vpop.f32.mrb[0].mxu0
      %v4814 = vadd.f32 %v2063, %v4813
      %v4815 = vpop.f32.mrb[0].mxu0
      %4816 = vmatprep.mubr.bf16.mxu0 %v3761
      %4817 = vmatmul.mubr.bf16.gmra.mrb[0].mxu0 %v3760
      %v4818 = vpop.f32.mrb[0].mxu0
      %v4819 = vadd.f32 %v2063, %v4818
      %v4820 = vpop.f32.mrb[0].mxu0
      %v4821 = vpop.f32.mrb[0].mxu0
      %v4822 = vadd.f32 %v2063, %v4821
      %v4823 = vpop.f32.mrb[0].mxu0
      %4824 = vmatprep.mubr.bf16.mxu0 %v3769
      %4825 = vmatmul.mubr.bf16.gmra.mrb[0].mxu0 %v3768
      %v4826 = vpop.f32.mrb[0].mxu0
      %v4827 = vadd.f32 %v2063, %v4826
      %v4828 = vpop.f32.mrb[0].mxu0
      %v4829 = vpop.f32.mrb[0].mxu0
      %v4830 = vadd.f32 %v2063, %v4829
      %v4831 = vpop.f32.mrb[0].mxu0
      %4832 = vmatprep.mubr.bf16.mxu0 %v3777
      %4833 = vmatmul.mubr.bf16.gmra.mrb[0].mxu0 %v3776
      %v4834 = vpop.f32.mrb[0].mxu0
      %v4835 = vadd.f32 %v2063, %v4834
      %v4836 = vpop.f32.mrb[0].mxu0
      %v4837 = vpop.f32.mrb[0].mxu0
      %v4838 = vadd.f32 %v2063, %v4837
      %v4839 = vpop.f32.mrb[0].mxu0
      %4840 = vmatprep.mubr.bf16.mxu0 %v3785
      %4841 = vmatmul.mubr.bf16.gmra.mrb[0].mxu0 %v3784
      %v4842 = vpop.f32.mrb[0].mxu0
      %v4843 = vadd.f32 %v2063, %v4842
      %v4844 = vpop.f32.mrb[0].mxu0
      %v4845 = vpop.f32.mrb[0].mxu0
      %v4846 = vadd.f32 %v2063, %v4845
      %v4847 = vpop.f32.mrb[0].mxu0
      %4848 = vmatprep.mubr.bf16.mxu0 %v3793
      %4849 = vmatmul.mubr.bf16.gmra.mrb[0].mxu0 %v3792
      %v4850 = vpop.f32.mrb[0].mxu0
      %v4851 = vadd.f32 %v2063, %v4850
      %v4852 = vpop.f32.mrb[0].mxu0
      %v4853 = vpop.f32.mrb[0].mxu0
      %v4854 = vadd.f32 %v2063, %v4853
      %v4855 = vpop.f32.mrb[0].mxu0
      %4856 = vmatprep.mubr.bf16.mxu0 %v3801
      %4857 = vmatmul.mubr.bf16.gmra.mrb[0].mxu0 %v3800
      %v4858 = vpop.f32.mrb[0].mxu0
      %v4859 = vadd.f32 %v2063, %v4858
      %v4860 = vpop.f32.mrb[0].mxu0
      %v4861 = vpop.f32.mrb[0].mxu0
      %v4862 = vadd.f32 %v2063, %v4861
      %v4863 = vpop.f32.mrb[0].mxu0
      %4864 = vmatprep.mubr.bf16.mxu0 %v3809
      %4865 = vmatmul.mubr.bf16.gmra.mrb[0].mxu0 %v3808
      %v4866 = vpop.f32.mrb[0].mxu0
      %v4867 = vadd.f32 %v2063, %v4866
      %v4868 = vpop.f32.mrb[0].mxu0
      %v4869 = vpop.f32.mrb[0].mxu0
      %v4870 = vadd.f32 %v2063, %v4869
      %v4871 = vpop.f32.mrb[0].mxu0
      %4872 = vmatprep.mubr.bf16.mxu0 %v3817
      %4873 = vmatmul.mubr.bf16.gmra.mrb[0].mxu0 %v3816
      %v4874 = vpop.f32.mrb[0].mxu0
      %v4875 = vadd.f32 %v2063, %v4874
      %v4876 = vpop.f32.mrb[0].mxu0
      %v4877 = vpop.f32.mrb[0].mxu0
      %v4878 = vadd.f32 %v2063, %v4877
      %v4879 = vpop.f32.mrb[0].mxu0
      %4880 = vmatprep.mubr.bf16.mxu0 %v3825
      %4881 = vmatmul.mubr.bf16.gmra.mrb[0].mxu0 %v3824
      %v4882 = vpop.f32.mrb[0].mxu0
      %v4883 = vadd.f32 %v2063, %v4882
      %v4884 = vpop.f32.mrb[0].mxu0
      %v4885 = vpop.f32.mrb[0].mxu0
      %v4886 = vadd.f32 %v2063, %v4885
      %v4887 = vpop.f32.mrb[0].mxu0
      %4888 = vmatprep.mubr.bf16.mxu0 %v3833
      %4889 = vmatmul.mubr.bf16.gmra.mrb[0].mxu0 %v3832
      %v4890 = vpop.f32.mrb[0].mxu0
      %v4891 = vadd.f32 %v2063, %v4890
      %v4892 = vpop.f32.mrb[0].mxu0
      %v4893 = vpop.f32.mrb[0].mxu0
      %v4894 = vadd.f32 %v2063, %v4893
      %v4895 = vpop.f32.mrb[0].mxu0
      %4896 = vmatprep.mubr.bf16.mxu0 %v3841
      %4897 = vmatmul.mubr.bf16.gmra.mrb[0].mxu0 %v3840
      %v4898 = vpop.f32.mrb[0].mxu0
      %v4899 = vadd.f32 %v2063, %v4898
      %v4900 = vpop.f32.mrb[0].mxu0
      %v4901 = vpop.f32.mrb[0].mxu0
      %v4902 = vadd.f32 %v2063, %v4901
      %v4903 = vpop.f32.mrb[0].mxu0
      %4904 = vmatprep.mubr.bf16.mxu0 %v3849
      %4905 = vmatmul.mubr.bf16.gmra.mrb[0].mxu0 %v3848
      %v4906 = vpop.f32.mrb[0].mxu0
      %v4907 = vadd.f32 %v2063, %v4906
      %v4908 = vpop.f32.mrb[0].mxu0
      %v4909 = vpop.f32.mrb[0].mxu0
      %v4910 = vadd.f32 %v2063, %v4909
      %v4911 = vpop.f32.mrb[0].mxu0
      %4912 = vmatprep.mubr.bf16.mxu0 %v3857
      %4913 = vmatmul.mubr.bf16.gmra.mrb[0].mxu0 %v3856
      %v4914 = vpop.f32.mrb[0].mxu0
      %v4915 = vadd.f32 %v2063, %v4914
      %v4916 = vpop.f32.mrb[0].mxu0
      %v4917 = vpop.f32.mrb[0].mxu0
      %v4918 = vadd.f32 %v2063, %v4917
      %v4919 = vpop.f32.mrb[0].mxu0
      %4920 = vmatprep.mubr.bf16.mxu0 %v3865
      %4921 = vmatmul.mubr.bf16.gmra.mrb[0].mxu0 %v3864
      %v4922 = vpop.f32.mrb[0].mxu0
      %v4923 = vadd.f32 %v2063, %v4922
      %v4924 = vpop.f32.mrb[0].mxu0
      %v4925 = vpop.f32.mrb[0].mxu0
      %v4926 = vadd.f32 %v2063, %v4925
      %v4927 = vpop.f32.mrb[0].mxu0
      %4928 = vmatprep.mubr.bf16.mxu0 %v3873
      %4929 = vmatmul.mubr.bf16.gmra.mrb[0].mxu0 %v3872
      %v4930 = vpop.f32.mrb[0].mxu0
      %v4931 = vadd.f32 %v2063, %v4930
      %v4932 = vpop.f32.mrb[0].mxu0
      %v4933 = vpop.f32.mrb[0].mxu0
      %v4934 = vadd.f32 %v2063, %v4933
      %v4935 = vpop.f32.mrb[0].mxu0
      %4936 = vmatprep.mubr.bf16.mxu0 %v3881
      %4937 = vmatmul.mubr.bf16.gmra.mrb[0].mxu0 %v3880
      %v4938 = vpop.f32.mrb[0].mxu0
      %v4939 = vadd.f32 %v2063, %v4938
      %v4940 = vpop.f32.mrb[0].mxu0
      %v4941 = vpop.f32.mrb[0].mxu0
      %v4942 = vadd.f32 %v2063, %v4941
      %v4943 = vpop.f32.mrb[0].mxu0
      %4944 = vmatprep.mubr.bf16.mxu0 %v3889
      %4945 = vmatmul.mubr.bf16.gmra.mrb[0].mxu0 %v3888
      %v4946 = vpop.f32.mrb[0].mxu0
      %v4947 = vadd.f32 %v2063, %v4946
      %v4948 = vpop.f32.mrb[0].mxu0
      %v4949 = vpop.f32.mrb[0].mxu0
      %v4950 = vadd.f32 %v2063, %v4949
      %v4951 = vpop.f32.mrb[0].mxu0
      %4952 = vmatprep.mubr.bf16.mxu0 %v3897
      %4953 = vmatmul.mubr.bf16.gmra.mrb[0].mxu0 %v3896
      %v4954 = vpop.f32.mrb[0].mxu0
      %v4955 = vadd.f32 %v2063, %v4954
      %v4956 = vpop.f32.mrb[0].mxu0
      %v4957 = vpop.f32.mrb[0].mxu0
      %v4958 = vadd.f32 %v2063, %v4957
      %v4959 = vpop.f32.mrb[0].mxu0
      %4960 = vmatprep.mubr.bf16.mxu0 %v3905
      %4961 = vmatmul.mubr.bf16.gmra.mrb[0].mxu0 %v3904
      %v4962 = vpop.f32.mrb[0].mxu0
      %v4963 = vadd.f32 %v2063, %v4962
      %v4964 = vpop.f32.mrb[0].mxu0
      %v4965 = vpop.f32.mrb[0].mxu0
      %v4966 = vadd.f32 %v2063, %v4965
      %v4967 = vpop.f32.mrb[0].mxu0
      %4968 = vmatprep.mubr.bf16.mxu0 %v3913
      %4969 = vmatmul.mubr.bf16.gmra.mrb[0].mxu0 %v3912
      %v4970 = vpop.f32.mrb[0].mxu0
      %v4971 = vadd.f32 %v2063, %v4970
      %v4972 = vpop.f32.mrb[0].mxu0
      %v4973 = vpop.f32.mrb[0].mxu0
      %v4974 = vadd.f32 %v2063, %v4973
      %v4975 = vpop.f32.mrb[0].mxu0
      %4976 = vmatprep.mubr.bf16.mxu0 %v3921
      %4977 = vmatmul.mubr.bf16.gmra.mrb[0].mxu0 %v3920
      %v4978 = vpop.f32.mrb[0].mxu0
      %v4979 = vadd.f32 %v2063, %v4978
      %v4980 = vpop.f32.mrb[0].mxu0
      %v4981 = vpop.f32.mrb[0].mxu0
      %v4982 = vadd.f32 %v2063, %v4981
      %v4983 = vpop.f32.mrb[0].mxu0
      %4984 = vmatprep.mubr.bf16.mxu0 %v3929
      %4985 = vmatmul.mubr.bf16.gmra.mrb[0].mxu0 %v3928
      %v4986 = vpop.f32.mrb[0].mxu0
      %v4987 = vadd.f32 %v2063, %v4986
      %v4988 = vpop.f32.mrb[0].mxu0
      %v4989 = vpop.f32.mrb[0].mxu0
      %v4990 = vadd.f32 %v2063, %v4989
      %v4991 = vpop.f32.mrb[0].mxu0
      %4992 = vmatprep.mubr.bf16.mxu0 %v3937
      %4993 = vmatmul.mubr.bf16.gmra.mrb[0].mxu0 %v3936
      %v4994 = vpop.f32.mrb[0].mxu0
      %v4995 = vadd.f32 %v2063, %v4994
      %v4996 = vpop.f32.mrb[0].mxu0
      %v4997 = vpop.f32.mrb[0].mxu0
      %v4998 = vadd.f32 %v2063, %v4997
      %v4999 = vpop.f32.mrb[0].mxu0
      %5000 = vmatprep.mubr.bf16.mxu0 %v3945
      %5001 = vmatmul.mubr.bf16.gmra.mrb[0].mxu0 %v3944
      %v5002 = vpop.f32.mrb[0].mxu0
      %v5003 = vadd.f32 %v2063, %v5002
      %v5004 = vpop.f32.mrb[0].mxu0
      %v5005 = vpop.f32.mrb[0].mxu0
      %v5006 = vadd.f32 %v2063, %v5005
      %v5007 = vpop.f32.mrb[0].mxu0
      %5008 = vmatprep.mubr.bf16.mxu0 %v3953
      %5009 = vmatmul.mubr.bf16.gmra.mrb[0].mxu0 %v3952
      %v5010 = vpop.f32.mrb[0].mxu0
      %v5011 = vadd.f32 %v2063, %v5010
      %v5012 = vpop.f32.mrb[0].mxu0
      %v5013 = vpop.f32.mrb[0].mxu0
      %v5014 = vadd.f32 %v2063, %v5013
      %v5015 = vpop.f32.mrb[0].mxu0
      %5016 = vmatprep.mubr.bf16.mxu0 %v3961
      %5017 = vmatmul.mubr.bf16.gmra.mrb[0].mxu0 %v3960
      %v5018 = vpop.f32.mrb[0].mxu0
      %v5019 = vadd.f32 %v2063, %v5018
      %v5020 = vpop.f32.mrb[0].mxu0
      %v5021 = vpop.f32.mrb[0].mxu0
      %v5022 = vadd.f32 %v2063, %v5021
      %v5023 = vpop.f32.mrb[0].mxu0
      %5024 = vmatprep.mubr.bf16.mxu0 %v3969
      %5025 = vmatmul.mubr.bf16.gmra.mrb[0].mxu0 %v3968
      %v5026 = vpop.f32.mrb[0].mxu0
      %v5027 = vadd.f32 %v2063, %v5026
      %v5028 = vpop.f32.mrb[0].mxu0
      %v5029 = vpop.f32.mrb[0].mxu0
      %v5030 = vadd.f32 %v2063, %v5029
      %v5031 = vpop.f32.mrb[0].mxu0
      %5032 = vmatprep.mubr.bf16.mxu0 %v3977
      %5033 = vmatmul.mubr.bf16.gmra.mrb[0].mxu0 %v3976
      %v5034 = vpop.f32.mrb[0].mxu0
      %v5035 = vadd.f32 %v2063, %v5034
      %v5036 = vpop.f32.mrb[0].mxu0
      %v5037 = vpop.f32.mrb[0].mxu0
      %v5038 = vadd.f32 %v2063, %v5037
      %v5039 = vpop.f32.mrb[0].mxu0
      %5040 = vmatprep.mubr.bf16.mxu0 %v3985
      %5041 = vmatmul.mubr.bf16.gmra.mrb[0].mxu0 %v3984
      %v5042 = vpop.f32.mrb[0].mxu0
      %v5043 = vadd.f32 %v2063, %v5042
      %v5044 = vpop.f32.mrb[0].mxu0
      %v5045 = vpop.f32.mrb[0].mxu0
      %v5046 = vadd.f32 %v2063, %v5045
      %v5047 = vpop.f32.mrb[0].mxu0
      %5048 = vmatprep.mubr.bf16.mxu0 %v3993
      %5049 = vmatmul.mubr.bf16.gmra.mrb[0].mxu0 %v3992
      %v5050 = vpop.f32.mrb[0].mxu0
      %v5051 = vadd.f32 %v2063, %v5050
      %v5052 = vpop.f32.mrb[0].mxu0
      %v5053 = vpop.f32.mrb[0].mxu0
      %v5054 = vadd.f32 %v2063, %v5053
      %v5055 = vpop.f32.mrb[0].mxu0
      %5056 = vmatprep.mubr.bf16.mxu0 %v4001
      %5057 = vmatmul.mubr.bf16.gmra.mrb[0].mxu0 %v4000
      %v5058 = vpop.f32.mrb[0].mxu0
      %v5059 = vadd.f32 %v2063, %v5058
      %v5060 = vpop.f32.mrb[0].mxu0
      %v5061 = vpop.f32.mrb[0].mxu0
      %v5062 = vadd.f32 %v2063, %v5061
      %v5063 = vpop.f32.mrb[0].mxu0
      %5064 = vmatprep.mubr.bf16.mxu0 %v4009
      %5065 = vmatmul.mubr.bf16.gmra.mrb[0].mxu0 %v4008
      %v5066 = vpop.f32.mrb[0].mxu0
      %v5067 = vadd.f32 %v2063, %v5066
      %v5068 = vpop.f32.mrb[0].mxu0
      %v5069 = vpop.f32.mrb[0].mxu0
      %v5070 = vadd.f32 %v2063, %v5069
      %v5071 = vpop.f32.mrb[0].mxu0
      %5072 = vmatprep.mubr.bf16.mxu0 %v4017
      %5073 = vmatmul.mubr.bf16.gmra.mrb[0].mxu0 %v4016
      %v5074 = vpop.f32.mrb[0].mxu0
      %v5075 = vadd.f32 %v2063, %v5074
      %v5076 = vpop.f32.mrb[0].mxu0
      %v5077 = vpop.f32.mrb[0].mxu0
      %v5078 = vadd.f32 %v2063, %v5077
      %v5079 = vpop.f32.mrb[0].mxu0
      %5080 = vmatprep.mubr.bf16.mxu0 %v4025
      %5081 = vmatmul.mubr.bf16.gmra.mrb[0].mxu0 %v4024
      %v5082 = vpop.f32.mrb[0].mxu0
      %v5083 = vadd.f32 %v2063, %v5082
      %v5084 = vpop.f32.mrb[0].mxu0
      %v5085 = vpop.f32.mrb[0].mxu0
      %v5086 = vadd.f32 %v2063, %v5085
      %v5087 = vpop.f32.mrb[0].mxu0
      %5088 = vmatprep.mubr.bf16.mxu0 %v4033
      %5089 = vmatmul.mubr.bf16.gmra.mrb[0].mxu0 %v4032
      %v5090 = vpop.f32.mrb[0].mxu0
      %v5091 = vadd.f32 %v2063, %v5090
      %v5092 = vpop.f32.mrb[0].mxu0
      %v5093 = vpop.f32.mrb[0].mxu0
      %v5094 = vadd.f32 %v2063, %v5093
      %v5095 = vpop.f32.mrb[0].mxu0
      %5096 = vmatprep.mubr.bf16.mxu0 %v4041
      %5097 = vmatmul.mubr.bf16.gmra.mrb[0].mxu0 %v4040
      %v5098 = vpop.f32.mrb[0].mxu0
      %v5099 = vadd.f32 %v2063, %v5098
      %v5100 = vpop.f32.mrb[0].mxu0
      %v5101 = vpop.f32.mrb[0].mxu0
      %v5102 = vadd.f32 %v2063, %v5101
      %v5103 = vpop.f32.mrb[0].mxu0
      %5104 = vmatprep.mubr.bf16.mxu0 %v4049
      %5105 = vmatmul.mubr.bf16.gmra.mrb[0].mxu0 %v4048
      %v5106 = vpop.f32.mrb[0].mxu0
      %v5107 = vadd.f32 %v2063, %v5106
      %v5108 = vpop.f32.mrb[0].mxu0
      %v5109 = vpop.f32.mrb[0].mxu0
      %v5110 = vadd.f32 %v2063, %v5109
      %v5111 = vpop.f32.mrb[0].mxu0
      %5112 = vmatprep.mubr.bf16.mxu0 %v4057
      %5113 = vmatmul.mubr.bf16.gmra.mrb[0].mxu0 %v4056
      %v5114 = vpop.f32.mrb[0].mxu0
      %v5115 = vadd.f32 %v2063, %v5114
      %v5116 = vpop.f32.mrb[0].mxu0
      %v5117 = vpop.f32.mrb[0].mxu0
      %v5118 = vadd.f32 %v2063, %v5117
      %v5119 = vpop.f32.mrb[0].mxu0
      %5120 = vmatprep.mubr.bf16.mxu0 %v4065
      %5121 = vmatmul.mubr.bf16.gmra.mrb[0].mxu0 %v4064
      %v5122 = vpop.f32.mrb[0].mxu0
      %v5123 = vadd.f32 %v2063, %v5122
      %v5124 = vpop.f32.mrb[0].mxu0
      %v5125 = vpop.f32.mrb[0].mxu0
      %v5126 = vadd.f32 %v2063, %v5125
      %v5127 = vpop.f32.mrb[0].mxu0
      %5128 = vmatprep.mubr.bf16.mxu0 %v4073
      %5129 = vmatmul.mubr.bf16.gmra.mrb[0].mxu0 %v4072
      %v5130 = vpop.f32.mrb[0].mxu0
      %v5131 = vadd.f32 %v2063, %v5130
      %v5132 = vpop.f32.mrb[0].mxu0
      %v5133 = vpop.f32.mrb[0].mxu0
      %v5134 = vadd.f32 %v2063, %v5133
      %v5135 = vpop.f32.mrb[0].mxu0
      %5136 = vmatprep.mubr.bf16.mxu0 %v4081
      %5137 = vmatmul.mubr.bf16.gmra.mrb[0].mxu0 %v4080
      %v5138 = vpop.f32.mrb[0].mxu0
      %v5139 = vadd.f32 %v2063, %v5138
      %v5140 = vpop.f32.mrb[0].mxu0
      %v5141 = vpop.f32.mrb[0].mxu0
      %v5142 = vadd.f32 %v2063, %v5141
      %v5143 = vpop.f32.mrb[0].mxu0
      %5144 = vmatprep.mubr.bf16.mxu0 %v4089
      %5145 = vmatmul.mubr.bf16.gmra.mrb[0].mxu0 %v4088
      %v5146 = vpop.f32.mrb[0].mxu0
      %v5147 = vadd.f32 %v2063, %v5146
      %v5148 = vpop.f32.mrb[0].mxu0
      %v5149 = vpop.f32.mrb[0].mxu0
      %v5150 = vadd.f32 %v2063, %v5149
      %v5151 = vpop.f32.mrb[0].mxu0
      %5152 = vmatprep.mubr.bf16.mxu0 %v4097
      %5153 = vmatmul.mubr.bf16.gmra.mrb[0].mxu0 %v4096
      %v5154 = vpop.f32.mrb[0].mxu0
      %v5155 = vadd.f32 %v2063, %v5154
      %v5156 = vpop.f32.mrb[0].mxu0
      %v5157 = vpop.f32.mrb[0].mxu0
      %v5158 = vadd.f32 %v2063, %v5157
      %v5159 = vpop.f32.mrb[0].mxu0
      %5160 = vmatprep.mubr.bf16.mxu0 %v4105
      %5161 = vmatmul.mubr.bf16.gmra.mrb[0].mxu0 %v4104
      %v5162 = vpop.f32.mrb[0].mxu0
      %v5163 = vadd.f32 %v2063, %v5162
      %v5164 = vpop.f32.mrb[0].mxu0
      %v5165 = vpop.f32.mrb[0].mxu0
      %v5166 = vadd.f32 %v2063, %v5165
      %v5167 = vpop.f32.mrb[0].mxu0
      %5168 = vdwg.mxu0
      %5169 = vmatprep.subr.bf16.mxu0 0
      %5170 = vmatpush1.bf16.msra.mxu0 %v2012
      %5171 = vmatprep.subr.bf16.mxu0 0
      %5172 = vmatpush1.bf16.msra.mxu0 %v2013
      %5173 = vmatprep.subr.bf16.mxu0 0
      %5174 = vmatpush1.bf16.msra.mxu0 %v2014
      %5175 = vmatprep.subr.bf16.mxu0 0
      %5176 = vmatpush1.bf16.msra.mxu0 %v2015
      %5177 = vmatprep.subr.bf16.mxu0 0
      %5178 = vmatpush1.bf16.msra.mxu0 %v2016
      %5179 = vmatprep.subr.bf16.mxu0 0
      %5180 = vmatpush1.bf16.msra.mxu0 %v2017
      %5181 = vmatprep.subr.bf16.mxu0 0
      %5182 = vmatpush1.bf16.msra.mxu0 %v2018
      %5183 = vmatprep.subr.bf16.mxu0 0
      %5184 = vmatpush1.bf16.msra.mxu0 %v2019
      %5185 = vmatprep.subr.bf16.mxu0 0
      %5186 = vmatpush1.bf16.msra.mxu0 %v2020
      %5187 = vmatprep.subr.bf16.mxu0 0
      %5188 = vmatpush1.bf16.msra.mxu0 %v2021
      %5189 = vmatprep.subr.bf16.mxu0 0
      %5190 = vmatpush1.bf16.msra.mxu0 %v2022
      %5191 = vmatprep.subr.bf16.mxu0 0
      %5192 = vmatpush1.bf16.msra.mxu0 %v2023
      %5193 = vmatprep.subr.bf16.mxu0 0
      %5194 = vmatpush1.bf16.msra.mxu0 %v2024
      %5195 = vmatprep.subr.bf16.mxu0 0
      %5196 = vmatpush1.bf16.msra.mxu0 %v2025
      %5197 = vmatprep.subr.bf16.mxu0 0
      %5198 = vmatpush1.bf16.msra.mxu0 %v2026
      %5199 = vmatprep.subr.bf16.mxu0 0
      %5200 = vmatpush1.bf16.msra.mxu0 %v2027
      %5201 = vmatprep.mubr.bf16.mxu0 %v3603
      %5202 = vmatmul.mubr.bf16.gmra.mrb[0].mxu0 %v3602
      %v5203 = vpop.f32.mrb[0].mxu0
      %v5204 = vadd.f32 %v4659, %v5203
      %v5205 = vpop.f32.mrb[0].mxu0
      %v5206 = vpop.f32.mrb[0].mxu0
      %v5207 = vadd.f32 %v4662, %v5206
      %v5208 = vpop.f32.mrb[0].mxu0
      %5209 = vmatprep.mubr.bf16.mxu0 %v3611
      %5210 = vmatmul.mubr.bf16.gmra.mrb[0].mxu0 %v3610
      %v5211 = vpop.f32.mrb[0].mxu0
      %v5212 = vadd.f32 %v4667, %v5211
      %v5213 = vpop.f32.mrb[0].mxu0
      %v5214 = vpop.f32.mrb[0].mxu0
      %v5215 = vadd.f32 %v4670, %v5214
      %v5216 = vpop.f32.mrb[0].mxu0
      %5217 = vmatprep.mubr.bf16.mxu0 %v3619
      %5218 = vmatmul.mubr.bf16.gmra.mrb[0].mxu0 %v3618
      %v5219 = vpop.f32.mrb[0].mxu0
      %v5220 = vadd.f32 %v4675, %v5219
      %v5221 = vpop.f32.mrb[0].mxu0
      %v5222 = vpop.f32.mrb[0].mxu0
      %v5223 = vadd.f32 %v4678, %v5222
      %v5224 = vpop.f32.mrb[0].mxu0
      %5225 = vmatprep.mubr.bf16.mxu0 %v3627
      %5226 = vmatmul.mubr.bf16.gmra.mrb[0].mxu0 %v3626
      %v5227 = vpop.f32.mrb[0].mxu0
      %v5228 = vadd.f32 %v4683, %v5227
      %v5229 = vpop.f32.mrb[0].mxu0
      %v5230 = vpop.f32.mrb[0].mxu0
      %v5231 = vadd.f32 %v4686, %v5230
      %v5232 = vpop.f32.mrb[0].mxu0
      %5233 = vmatprep.mubr.bf16.mxu0 %v3635
      %5234 = vmatmul.mubr.bf16.gmra.mrb[0].mxu0 %v3634
      %v5235 = vpop.f32.mrb[0].mxu0
      %v5236 = vadd.f32 %v4691, %v5235
      %v5237 = vpop.f32.mrb[0].mxu0
      %v5238 = vpop.f32.mrb[0].mxu0
      %v5239 = vadd.f32 %v4694, %v5238
      %v5240 = vpop.f32.mrb[0].mxu0
      %5241 = vmatprep.mubr.bf16.mxu0 %v3643
      %5242 = vmatmul.mubr.bf16.gmra.mrb[0].mxu0 %v3642
      %v5243 = vpop.f32.mrb[0].mxu0
      %v5244 = vadd.f32 %v4699, %v5243
      %v5245 = vpop.f32.mrb[0].mxu0
      %v5246 = vpop.f32.mrb[0].mxu0
      %v5247 = vadd.f32 %v4702, %v5246
      %v5248 = vpop.f32.mrb[0].mxu0
      %5249 = vmatprep.mubr.bf16.mxu0 %v3651
      %5250 = vmatmul.mubr.bf16.gmra.mrb[0].mxu0 %v3650
      %v5251 = vpop.f32.mrb[0].mxu0
      %v5252 = vadd.f32 %v4707, %v5251
      %v5253 = vpop.f32.mrb[0].mxu0
      %v5254 = vpop.f32.mrb[0].mxu0
      %v5255 = vadd.f32 %v4710, %v5254
      %v5256 = vpop.f32.mrb[0].mxu0
      %5257 = vmatprep.mubr.bf16.mxu0 %v3659
      %5258 = vmatmul.mubr.bf16.gmra.mrb[0].mxu0 %v3658
      %v5259 = vpop.f32.mrb[0].mxu0
      %v5260 = vadd.f32 %v4715, %v5259
      %v5261 = vpop.f32.mrb[0].mxu0
      %v5262 = vpop.f32.mrb[0].mxu0
      %v5263 = vadd.f32 %v4718, %v5262
      %v5264 = vpop.f32.mrb[0].mxu0
      %5265 = vmatprep.mubr.bf16.mxu0 %v3667
      %5266 = vmatmul.mubr.bf16.gmra.mrb[0].mxu0 %v3666
      %v5267 = vpop.f32.mrb[0].mxu0
      %v5268 = vadd.f32 %v4723, %v5267
      %v5269 = vpop.f32.mrb[0].mxu0
      %v5270 = vpop.f32.mrb[0].mxu0
      %v5271 = vadd.f32 %v4726, %v5270
      %v5272 = vpop.f32.mrb[0].mxu0
      %5273 = vmatprep.mubr.bf16.mxu0 %v3675
      %5274 = vmatmul.mubr.bf16.gmra.mrb[0].mxu0 %v3674
      %v5275 = vpop.f32.mrb[0].mxu0
      %v5276 = vadd.f32 %v4731, %v5275
      %v5277 = vpop.f32.mrb[0].mxu0
      %v5278 = vpop.f32.mrb[0].mxu0
      %v5279 = vadd.f32 %v4734, %v5278
      %v5280 = vpop.f32.mrb[0].mxu0
      %5281 = vmatprep.mubr.bf16.mxu0 %v3683
      %5282 = vmatmul.mubr.bf16.gmra.mrb[0].mxu0 %v3682
      %v5283 = vpop.f32.mrb[0].mxu0
      %v5284 = vadd.f32 %v4739, %v5283
      %v5285 = vpop.f32.mrb[0].mxu0
      %v5286 = vpop.f32.mrb[0].mxu0
      %v5287 = vadd.f32 %v4742, %v5286
      %v5288 = vpop.f32.mrb[0].mxu0
      %5289 = vmatprep.mubr.bf16.mxu0 %v3691
      %5290 = vmatmul.mubr.bf16.gmra.mrb[0].mxu0 %v3690
      %v5291 = vpop.f32.mrb[0].mxu0
      %v5292 = vadd.f32 %v4747, %v5291
      %v5293 = vpop.f32.mrb[0].mxu0
      %v5294 = vpop.f32.mrb[0].mxu0
      %v5295 = vadd.f32 %v4750, %v5294
      %v5296 = vpop.f32.mrb[0].mxu0
      %5297 = vmatprep.mubr.bf16.mxu0 %v3699
      %5298 = vmatmul.mubr.bf16.gmra.mrb[0].mxu0 %v3698
      %v5299 = vpop.f32.mrb[0].mxu0
      %v5300 = vadd.f32 %v4755, %v5299
      %v5301 = vpop.f32.mrb[0].mxu0
      %v5302 = vpop.f32.mrb[0].mxu0
      %v5303 = vadd.f32 %v4758, %v5302
      %v5304 = vpop.f32.mrb[0].mxu0
      %5305 = vmatprep.mubr.bf16.mxu0 %v3707
      %5306 = vmatmul.mubr.bf16.gmra.mrb[0].mxu0 %v3706
      %v5307 = vpop.f32.mrb[0].mxu0
      %v5308 = vadd.f32 %v4763, %v5307
      %v5309 = vpop.f32.mrb[0].mxu0
      %v5310 = vpop.f32.mrb[0].mxu0
      %v5311 = vadd.f32 %v4766, %v5310
      %v5312 = vpop.f32.mrb[0].mxu0
      %5313 = vmatprep.mubr.bf16.mxu0 %v3715
      %5314 = vmatmul.mubr.bf16.gmra.mrb[0].mxu0 %v3714
      %v5315 = vpop.f32.mrb[0].mxu0
      %v5316 = vadd.f32 %v4771, %v5315
      %v5317 = vpop.f32.mrb[0].mxu0
      %v5318 = vpop.f32.mrb[0].mxu0
      %v5319 = vadd.f32 %v4774, %v5318
      %v5320 = vpop.f32.mrb[0].mxu0
      %5321 = vmatprep.mubr.bf16.mxu0 %v3723
      %5322 = vmatmul.mubr.bf16.gmra.mrb[0].mxu0 %v3722
      %v5323 = vpop.f32.mrb[0].mxu0
      %v5324 = vadd.f32 %v4779, %v5323
      %v5325 = vpop.f32.mrb[0].mxu0
      %v5326 = vpop.f32.mrb[0].mxu0
      %v5327 = vadd.f32 %v4782, %v5326
      %v5328 = vpop.f32.mrb[0].mxu0
      %5329 = vmatprep.mubr.bf16.mxu0 %v3731
      %5330 = vmatmul.mubr.bf16.gmra.mrb[0].mxu0 %v3730
      %v5331 = vpop.f32.mrb[0].mxu0
      %v5332 = vadd.f32 %v4787, %v5331
      %v5333 = vpop.f32.mrb[0].mxu0
      %v5334 = vpop.f32.mrb[0].mxu0
      %v5335 = vadd.f32 %v4790, %v5334
      %v5336 = vpop.f32.mrb[0].mxu0
      %5337 = vmatprep.mubr.bf16.mxu0 %v3739
      %5338 = vmatmul.mubr.bf16.gmra.mrb[0].mxu0 %v3738
      %v5339 = vpop.f32.mrb[0].mxu0
      %v5340 = vadd.f32 %v4795, %v5339
      %v5341 = vpop.f32.mrb[0].mxu0
      %v5342 = vpop.f32.mrb[0].mxu0
      %v5343 = vadd.f32 %v4798, %v5342
      %v5344 = vpop.f32.mrb[0].mxu0
      %5345 = vmatprep.mubr.bf16.mxu0 %v3747
      %5346 = vmatmul.mubr.bf16.gmra.mrb[0].mxu0 %v3746
      %v5347 = vpop.f32.mrb[0].mxu0
      %v5348 = vadd.f32 %v4803, %v5347
      %v5349 = vpop.f32.mrb[0].mxu0
      %v5350 = vpop.f32.mrb[0].mxu0
      %v5351 = vadd.f32 %v4806, %v5350
      %v5352 = vpop.f32.mrb[0].mxu0
      %5353 = vmatprep.mubr.bf16.mxu0 %v3755
      %5354 = vmatmul.mubr.bf16.gmra.mrb[0].mxu0 %v3754
      %v5355 = vpop.f32.mrb[0].mxu0
      %v5356 = vadd.f32 %v4811, %v5355
      %v5357 = vpop.f32.mrb[0].mxu0
      %v5358 = vpop.f32.mrb[0].mxu0
      %v5359 = vadd.f32 %v4814, %v5358
      %v5360 = vpop.f32.mrb[0].mxu0
      %5361 = vmatprep.mubr.bf16.mxu0 %v3763
      %5362 = vmatmul.mubr.bf16.gmra.mrb[0].mxu0 %v3762
      %v5363 = vpop.f32.mrb[0].mxu0
      %v5364 = vadd.f32 %v4819, %v5363
      %v5365 = vpop.f32.mrb[0].mxu0
      %v5366 = vpop.f32.mrb[0].mxu0
      %v5367 = vadd.f32 %v4822, %v5366
      %v5368 = vpop.f32.mrb[0].mxu0
      %5369 = vmatprep.mubr.bf16.mxu0 %v3771
      %5370 = vmatmul.mubr.bf16.gmra.mrb[0].mxu0 %v3770
      %v5371 = vpop.f32.mrb[0].mxu0
      %v5372 = vadd.f32 %v4827, %v5371
      %v5373 = vpop.f32.mrb[0].mxu0
      %v5374 = vpop.f32.mrb[0].mxu0
      %v5375 = vadd.f32 %v4830, %v5374
      %v5376 = vpop.f32.mrb[0].mxu0
      %5377 = vmatprep.mubr.bf16.mxu0 %v3779
      %5378 = vmatmul.mubr.bf16.gmra.mrb[0].mxu0 %v3778
      %v5379 = vpop.f32.mrb[0].mxu0
      %v5380 = vadd.f32 %v4835, %v5379
      %v5381 = vpop.f32.mrb[0].mxu0
      %v5382 = vpop.f32.mrb[0].mxu0
      %v5383 = vadd.f32 %v4838, %v5382
      %v5384 = vpop.f32.mrb[0].mxu0
      %5385 = vmatprep.mubr.bf16.mxu0 %v3787
      %5386 = vmatmul.mubr.bf16.gmra.mrb[0].mxu0 %v3786
      %v5387 = vpop.f32.mrb[0].mxu0
      %v5388 = vadd.f32 %v4843, %v5387
      %v5389 = vpop.f32.mrb[0].mxu0
      %v5390 = vpop.f32.mrb[0].mxu0
      %v5391 = vadd.f32 %v4846, %v5390
      %v5392 = vpop.f32.mrb[0].mxu0
      %5393 = vmatprep.mubr.bf16.mxu0 %v3795
      %5394 = vmatmul.mubr.bf16.gmra.mrb[0].mxu0 %v3794
      %v5395 = vpop.f32.mrb[0].mxu0
      %v5396 = vadd.f32 %v4851, %v5395
      %v5397 = vpop.f32.mrb[0].mxu0
      %v5398 = vpop.f32.mrb[0].mxu0
      %v5399 = vadd.f32 %v4854, %v5398
      %v5400 = vpop.f32.mrb[0].mxu0
      %5401 = vmatprep.mubr.bf16.mxu0 %v3803
      %5402 = vmatmul.mubr.bf16.gmra.mrb[0].mxu0 %v3802
      %v5403 = vpop.f32.mrb[0].mxu0
      %v5404 = vadd.f32 %v4859, %v5403
      %v5405 = vpop.f32.mrb[0].mxu0
      %v5406 = vpop.f32.mrb[0].mxu0
      %v5407 = vadd.f32 %v4862, %v5406
      %v5408 = vpop.f32.mrb[0].mxu0
      %5409 = vmatprep.mubr.bf16.mxu0 %v3811
      %5410 = vmatmul.mubr.bf16.gmra.mrb[0].mxu0 %v3810
      %v5411 = vpop.f32.mrb[0].mxu0
      %v5412 = vadd.f32 %v4867, %v5411
      %v5413 = vpop.f32.mrb[0].mxu0
      %v5414 = vpop.f32.mrb[0].mxu0
      %v5415 = vadd.f32 %v4870, %v5414
      %v5416 = vpop.f32.mrb[0].mxu0
      %5417 = vmatprep.mubr.bf16.mxu0 %v3819
      %5418 = vmatmul.mubr.bf16.gmra.mrb[0].mxu0 %v3818
      %v5419 = vpop.f32.mrb[0].mxu0
      %v5420 = vadd.f32 %v4875, %v5419
      %v5421 = vpop.f32.mrb[0].mxu0
      %v5422 = vpop.f32.mrb[0].mxu0
      %v5423 = vadd.f32 %v4878, %v5422
      %v5424 = vpop.f32.mrb[0].mxu0
      %5425 = vmatprep.mubr.bf16.mxu0 %v3827
      %5426 = vmatmul.mubr.bf16.gmra.mrb[0].mxu0 %v3826
      %v5427 = vpop.f32.mrb[0].mxu0
      %v5428 = vadd.f32 %v4883, %v5427
      %v5429 = vpop.f32.mrb[0].mxu0
      %v5430 = vpop.f32.mrb[0].mxu0
      %v5431 = vadd.f32 %v4886, %v5430
      %v5432 = vpop.f32.mrb[0].mxu0
      %5433 = vmatprep.mubr.bf16.mxu0 %v3835
      %5434 = vmatmul.mubr.bf16.gmra.mrb[0].mxu0 %v3834
      %v5435 = vpop.f32.mrb[0].mxu0
      %v5436 = vadd.f32 %v4891, %v5435
      %v5437 = vpop.f32.mrb[0].mxu0
      %v5438 = vpop.f32.mrb[0].mxu0
      %v5439 = vadd.f32 %v4894, %v5438
      %v5440 = vpop.f32.mrb[0].mxu0
      %5441 = vmatprep.mubr.bf16.mxu0 %v3843
      %5442 = vmatmul.mubr.bf16.gmra.mrb[0].mxu0 %v3842
      %v5443 = vpop.f32.mrb[0].mxu0
      %v5444 = vadd.f32 %v4899, %v5443
      %v5445 = vpop.f32.mrb[0].mxu0
      %v5446 = vpop.f32.mrb[0].mxu0
      %v5447 = vadd.f32 %v4902, %v5446
      %v5448 = vpop.f32.mrb[0].mxu0
      %5449 = vmatprep.mubr.bf16.mxu0 %v3851
      %5450 = vmatmul.mubr.bf16.gmra.mrb[0].mxu0 %v3850
      %v5451 = vpop.f32.mrb[0].mxu0
      %v5452 = vadd.f32 %v4907, %v5451
      %v5453 = vpop.f32.mrb[0].mxu0
      %v5454 = vpop.f32.mrb[0].mxu0
      %v5455 = vadd.f32 %v4910, %v5454
      %v5456 = vpop.f32.mrb[0].mxu0
      %5457 = vmatprep.mubr.bf16.mxu0 %v3859
      %5458 = vmatmul.mubr.bf16.gmra.mrb[0].mxu0 %v3858
      %v5459 = vpop.f32.mrb[0].mxu0
      %v5460 = vadd.f32 %v4915, %v5459
      %v5461 = vpop.f32.mrb[0].mxu0
      %v5462 = vpop.f32.mrb[0].mxu0
      %v5463 = vadd.f32 %v4918, %v5462
      %v5464 = vpop.f32.mrb[0].mxu0
      %5465 = vmatprep.mubr.bf16.mxu0 %v3867
      %5466 = vmatmul.mubr.bf16.gmra.mrb[0].mxu0 %v3866
      %v5467 = vpop.f32.mrb[0].mxu0
      %v5468 = vadd.f32 %v4923, %v5467
      %v5469 = vpop.f32.mrb[0].mxu0
      %v5470 = vpop.f32.mrb[0].mxu0
      %v5471 = vadd.f32 %v4926, %v5470
      %v5472 = vpop.f32.mrb[0].mxu0
      %5473 = vmatprep.mubr.bf16.mxu0 %v3875
      %5474 = vmatmul.mubr.bf16.gmra.mrb[0].mxu0 %v3874
      %v5475 = vpop.f32.mrb[0].mxu0
      %v5476 = vadd.f32 %v4931, %v5475
      %v5477 = vpop.f32.mrb[0].mxu0
      %v5478 = vpop.f32.mrb[0].mxu0
      %v5479 = vadd.f32 %v4934, %v5478
      %v5480 = vpop.f32.mrb[0].mxu0
      %5481 = vmatprep.mubr.bf16.mxu0 %v3883
      %5482 = vmatmul.mubr.bf16.gmra.mrb[0].mxu0 %v3882
      %v5483 = vpop.f32.mrb[0].mxu0
      %v5484 = vadd.f32 %v4939, %v5483
      %v5485 = vpop.f32.mrb[0].mxu0
      %v5486 = vpop.f32.mrb[0].mxu0
      %v5487 = vadd.f32 %v4942, %v5486
      %v5488 = vpop.f32.mrb[0].mxu0
      %5489 = vmatprep.mubr.bf16.mxu0 %v3891
      %5490 = vmatmul.mubr.bf16.gmra.mrb[0].mxu0 %v3890
      %v5491 = vpop.f32.mrb[0].mxu0
      %v5492 = vadd.f32 %v4947, %v5491
      %v5493 = vpop.f32.mrb[0].mxu0
      %v5494 = vpop.f32.mrb[0].mxu0
      %v5495 = vadd.f32 %v4950, %v5494
      %v5496 = vpop.f32.mrb[0].mxu0
      %5497 = vmatprep.mubr.bf16.mxu0 %v3899
      %5498 = vmatmul.mubr.bf16.gmra.mrb[0].mxu0 %v3898
      %v5499 = vpop.f32.mrb[0].mxu0
      %v5500 = vadd.f32 %v4955, %v5499
      %v5501 = vpop.f32.mrb[0].mxu0
      %v5502 = vpop.f32.mrb[0].mxu0
      %v5503 = vadd.f32 %v4958, %v5502
      %v5504 = vpop.f32.mrb[0].mxu0
      %5505 = vmatprep.mubr.bf16.mxu0 %v3907
      %5506 = vmatmul.mubr.bf16.gmra.mrb[0].mxu0 %v3906
      %v5507 = vpop.f32.mrb[0].mxu0
      %v5508 = vadd.f32 %v4963, %v5507
      %v5509 = vpop.f32.mrb[0].mxu0
      %v5510 = vpop.f32.mrb[0].mxu0
      %v5511 = vadd.f32 %v4966, %v5510
      %v5512 = vpop.f32.mrb[0].mxu0
      %5513 = vmatprep.mubr.bf16.mxu0 %v3915
      %5514 = vmatmul.mubr.bf16.gmra.mrb[0].mxu0 %v3914
      %v5515 = vpop.f32.mrb[0].mxu0
      %v5516 = vadd.f32 %v4971, %v5515
      %v5517 = vpop.f32.mrb[0].mxu0
      %v5518 = vpop.f32.mrb[0].mxu0
      %v5519 = vadd.f32 %v4974, %v5518
      %v5520 = vpop.f32.mrb[0].mxu0
      %5521 = vmatprep.mubr.bf16.mxu0 %v3923
      %5522 = vmatmul.mubr.bf16.gmra.mrb[0].mxu0 %v3922
      %v5523 = vpop.f32.mrb[0].mxu0
      %v5524 = vadd.f32 %v4979, %v5523
      %v5525 = vpop.f32.mrb[0].mxu0
      %v5526 = vpop.f32.mrb[0].mxu0
      %v5527 = vadd.f32 %v4982, %v5526
      %v5528 = vpop.f32.mrb[0].mxu0
      %5529 = vmatprep.mubr.bf16.mxu0 %v3931
      %5530 = vmatmul.mubr.bf16.gmra.mrb[0].mxu0 %v3930
      %v5531 = vpop.f32.mrb[0].mxu0
      %v5532 = vadd.f32 %v4987, %v5531
      %v5533 = vpop.f32.mrb[0].mxu0
      %v5534 = vpop.f32.mrb[0].mxu0
      %v5535 = vadd.f32 %v4990, %v5534
      %v5536 = vpop.f32.mrb[0].mxu0
      %5537 = vmatprep.mubr.bf16.mxu0 %v3939
      %5538 = vmatmul.mubr.bf16.gmra.mrb[0].mxu0 %v3938
      %v5539 = vpop.f32.mrb[0].mxu0
      %v5540 = vadd.f32 %v4995, %v5539
      %v5541 = vpop.f32.mrb[0].mxu0
      %v5542 = vpop.f32.mrb[0].mxu0
      %v5543 = vadd.f32 %v4998, %v5542
      %v5544 = vpop.f32.mrb[0].mxu0
      %5545 = vmatprep.mubr.bf16.mxu0 %v3947
      %5546 = vmatmul.mubr.bf16.gmra.mrb[0].mxu0 %v3946
      %v5547 = vpop.f32.mrb[0].mxu0
      %v5548 = vadd.f32 %v5003, %v5547
      %v5549 = vpop.f32.mrb[0].mxu0
      %v5550 = vpop.f32.mrb[0].mxu0
      %v5551 = vadd.f32 %v5006, %v5550
      %v5552 = vpop.f32.mrb[0].mxu0
      %5553 = vmatprep.mubr.bf16.mxu0 %v3955
      %5554 = vmatmul.mubr.bf16.gmra.mrb[0].mxu0 %v3954
      %v5555 = vpop.f32.mrb[0].mxu0
      %v5556 = vadd.f32 %v5011, %v5555
      %v5557 = vpop.f32.mrb[0].mxu0
      %v5558 = vpop.f32.mrb[0].mxu0
      %v5559 = vadd.f32 %v5014, %v5558
      %v5560 = vpop.f32.mrb[0].mxu0
      %5561 = vmatprep.mubr.bf16.mxu0 %v3963
      %5562 = vmatmul.mubr.bf16.gmra.mrb[0].mxu0 %v3962
      %v5563 = vpop.f32.mrb[0].mxu0
      %v5564 = vadd.f32 %v5019, %v5563
      %v5565 = vpop.f32.mrb[0].mxu0
      %v5566 = vpop.f32.mrb[0].mxu0
      %v5567 = vadd.f32 %v5022, %v5566
      %v5568 = vpop.f32.mrb[0].mxu0
      %5569 = vmatprep.mubr.bf16.mxu0 %v3971
      %5570 = vmatmul.mubr.bf16.gmra.mrb[0].mxu0 %v3970
      %v5571 = vpop.f32.mrb[0].mxu0
      %v5572 = vadd.f32 %v5027, %v5571
      %v5573 = vpop.f32.mrb[0].mxu0
      %v5574 = vpop.f32.mrb[0].mxu0
      %v5575 = vadd.f32 %v5030, %v5574
      %v5576 = vpop.f32.mrb[0].mxu0
      %5577 = vmatprep.mubr.bf16.mxu0 %v3979
      %5578 = vmatmul.mubr.bf16.gmra.mrb[0].mxu0 %v3978
      %v5579 = vpop.f32.mrb[0].mxu0
      %v5580 = vadd.f32 %v5035, %v5579
      %v5581 = vpop.f32.mrb[0].mxu0
      %v5582 = vpop.f32.mrb[0].mxu0
      %v5583 = vadd.f32 %v5038, %v5582
      %v5584 = vpop.f32.mrb[0].mxu0
      %5585 = vmatprep.mubr.bf16.mxu0 %v3987
      %5586 = vmatmul.mubr.bf16.gmra.mrb[0].mxu0 %v3986
      %v5587 = vpop.f32.mrb[0].mxu0
      %v5588 = vadd.f32 %v5043, %v5587
      %v5589 = vpop.f32.mrb[0].mxu0
      %v5590 = vpop.f32.mrb[0].mxu0
      %v5591 = vadd.f32 %v5046, %v5590
      %v5592 = vpop.f32.mrb[0].mxu0
      %5593 = vmatprep.mubr.bf16.mxu0 %v3995
      %5594 = vmatmul.mubr.bf16.gmra.mrb[0].mxu0 %v3994
      %v5595 = vpop.f32.mrb[0].mxu0
      %v5596 = vadd.f32 %v5051, %v5595
      %v5597 = vpop.f32.mrb[0].mxu0
      %v5598 = vpop.f32.mrb[0].mxu0
      %v5599 = vadd.f32 %v5054, %v5598
      %v5600 = vpop.f32.mrb[0].mxu0
      %5601 = vmatprep.mubr.bf16.mxu0 %v4003
      %5602 = vmatmul.mubr.bf16.gmra.mrb[0].mxu0 %v4002
      %v5603 = vpop.f32.mrb[0].mxu0
      %v5604 = vadd.f32 %v5059, %v5603
      %v5605 = vpop.f32.mrb[0].mxu0
      %v5606 = vpop.f32.mrb[0].mxu0
      %v5607 = vadd.f32 %v5062, %v5606
      %v5608 = vpop.f32.mrb[0].mxu0
      %5609 = vmatprep.mubr.bf16.mxu0 %v4011
      %5610 = vmatmul.mubr.bf16.gmra.mrb[0].mxu0 %v4010
      %v5611 = vpop.f32.mrb[0].mxu0
      %v5612 = vadd.f32 %v5067, %v5611
      %v5613 = vpop.f32.mrb[0].mxu0
      %v5614 = vpop.f32.mrb[0].mxu0
      %v5615 = vadd.f32 %v5070, %v5614
      %v5616 = vpop.f32.mrb[0].mxu0
      %5617 = vmatprep.mubr.bf16.mxu0 %v4019
      %5618 = vmatmul.mubr.bf16.gmra.mrb[0].mxu0 %v4018
      %v5619 = vpop.f32.mrb[0].mxu0
      %v5620 = vadd.f32 %v5075, %v5619
      %v5621 = vpop.f32.mrb[0].mxu0
      %v5622 = vpop.f32.mrb[0].mxu0
      %v5623 = vadd.f32 %v5078, %v5622
      %v5624 = vpop.f32.mrb[0].mxu0
      %5625 = vmatprep.mubr.bf16.mxu0 %v4027
      %5626 = vmatmul.mubr.bf16.gmra.mrb[0].mxu0 %v4026
      %v5627 = vpop.f32.mrb[0].mxu0
      %v5628 = vadd.f32 %v5083, %v5627
      %v5629 = vpop.f32.mrb[0].mxu0
      %v5630 = vpop.f32.mrb[0].mxu0
      %v5631 = vadd.f32 %v5086, %v5630
      %v5632 = vpop.f32.mrb[0].mxu0
      %5633 = vmatprep.mubr.bf16.mxu0 %v4035
      %5634 = vmatmul.mubr.bf16.gmra.mrb[0].mxu0 %v4034
      %v5635 = vpop.f32.mrb[0].mxu0
      %v5636 = vadd.f32 %v5091, %v5635
      %v5637 = vpop.f32.mrb[0].mxu0
      %v5638 = vpop.f32.mrb[0].mxu0
      %v5639 = vadd.f32 %v5094, %v5638
      %v5640 = vpop.f32.mrb[0].mxu0
      %5641 = vmatprep.mubr.bf16.mxu0 %v4043
      %5642 = vmatmul.mubr.bf16.gmra.mrb[0].mxu0 %v4042
      %v5643 = vpop.f32.mrb[0].mxu0
      %v5644 = vadd.f32 %v5099, %v5643
      %v5645 = vpop.f32.mrb[0].mxu0
      %v5646 = vpop.f32.mrb[0].mxu0
      %v5647 = vadd.f32 %v5102, %v5646
      %v5648 = vpop.f32.mrb[0].mxu0
      %5649 = vmatprep.mubr.bf16.mxu0 %v4051
      %5650 = vmatmul.mubr.bf16.gmra.mrb[0].mxu0 %v4050
      %v5651 = vpop.f32.mrb[0].mxu0
      %v5652 = vadd.f32 %v5107, %v5651
      %v5653 = vpop.f32.mrb[0].mxu0
      %v5654 = vpop.f32.mrb[0].mxu0
      %v5655 = vadd.f32 %v5110, %v5654
      %v5656 = vpop.f32.mrb[0].mxu0
      %5657 = vmatprep.mubr.bf16.mxu0 %v4059
      %5658 = vmatmul.mubr.bf16.gmra.mrb[0].mxu0 %v4058
      %v5659 = vpop.f32.mrb[0].mxu0
      %v5660 = vadd.f32 %v5115, %v5659
      %v5661 = vpop.f32.mrb[0].mxu0
      %v5662 = vpop.f32.mrb[0].mxu0
      %v5663 = vadd.f32 %v5118, %v5662
      %v5664 = vpop.f32.mrb[0].mxu0
      %5665 = vmatprep.mubr.bf16.mxu0 %v4067
      %5666 = vmatmul.mubr.bf16.gmra.mrb[0].mxu0 %v4066
      %v5667 = vpop.f32.mrb[0].mxu0
      %v5668 = vadd.f32 %v5123, %v5667
      %v5669 = vpop.f32.mrb[0].mxu0
      %v5670 = vpop.f32.mrb[0].mxu0
      %v5671 = vadd.f32 %v5126, %v5670
      %v5672 = vpop.f32.mrb[0].mxu0
      %5673 = vmatprep.mubr.bf16.mxu0 %v4075
      %5674 = vmatmul.mubr.bf16.gmra.mrb[0].mxu0 %v4074
      %v5675 = vpop.f32.mrb[0].mxu0
      %v5676 = vadd.f32 %v5131, %v5675
      %v5677 = vpop.f32.mrb[0].mxu0
      %v5678 = vpop.f32.mrb[0].mxu0
      %v5679 = vadd.f32 %v5134, %v5678
      %v5680 = vpop.f32.mrb[0].mxu0
      %5681 = vmatprep.mubr.bf16.mxu0 %v4083
      %5682 = vmatmul.mubr.bf16.gmra.mrb[0].mxu0 %v4082
      %v5683 = vpop.f32.mrb[0].mxu0
      %v5684 = vadd.f32 %v5139, %v5683
      %v5685 = vpop.f32.mrb[0].mxu0
      %v5686 = vpop.f32.mrb[0].mxu0
      %v5687 = vadd.f32 %v5142, %v5686
      %v5688 = vpop.f32.mrb[0].mxu0
      %5689 = vmatprep.mubr.bf16.mxu0 %v4091
      %5690 = vmatmul.mubr.bf16.gmra.mrb[0].mxu0 %v4090
      %v5691 = vpop.f32.mrb[0].mxu0
      %v5692 = vadd.f32 %v5147, %v5691
      %v5693 = vpop.f32.mrb[0].mxu0
      %v5694 = vpop.f32.mrb[0].mxu0
      %v5695 = vadd.f32 %v5150, %v5694
      %v5696 = vpop.f32.mrb[0].mxu0
      %5697 = vmatprep.mubr.bf16.mxu0 %v4099
      %5698 = vmatmul.mubr.bf16.gmra.mrb[0].mxu0 %v4098
      %v5699 = vpop.f32.mrb[0].mxu0
      %v5700 = vadd.f32 %v5155, %v5699
      %v5701 = vpop.f32.mrb[0].mxu0
      %v5702 = vpop.f32.mrb[0].mxu0
      %v5703 = vadd.f32 %v5158, %v5702
      %v5704 = vpop.f32.mrb[0].mxu0
      %5705 = vmatprep.mubr.bf16.mxu0 %v4107
      %5706 = vmatmul.mubr.bf16.gmra.mrb[0].mxu0 %v4106
      %v5707 = vpop.f32.mrb[0].mxu0
      %v5708 = vadd.f32 %v5163, %v5707
      %v5709 = vpop.f32.mrb[0].mxu0
      %v5710 = vpop.f32.mrb[0].mxu0
      %v5711 = vadd.f32 %v5166, %v5710
      %v5712 = vpop.f32.mrb[0].mxu0
      %5713 = vdwg.mxu0
      %5714 = vmatprep.subr.bf16.mxu0 0
      %5715 = vmatpush1.bf16.msra.mxu0 %v2028
      %5716 = vmatprep.subr.bf16.mxu0 0
      %5717 = vmatpush1.bf16.msra.mxu0 %v2029
      %5718 = vmatprep.subr.bf16.mxu0 0
      %5719 = vmatpush1.bf16.msra.mxu0 %v2030
      %5720 = vmatprep.subr.bf16.mxu0 0
      %5721 = vmatpush1.bf16.msra.mxu0 %v2031
      %5722 = vmatprep.subr.bf16.mxu0 0
      %5723 = vmatpush1.bf16.msra.mxu0 %v2032
      %5724 = vmatprep.subr.bf16.mxu0 0
      %5725 = vmatpush1.bf16.msra.mxu0 %v2033
      %5726 = vmatprep.subr.bf16.mxu0 0
      %5727 = vmatpush1.bf16.msra.mxu0 %v2034
      %5728 = vmatprep.subr.bf16.mxu0 0
      %5729 = vmatpush1.bf16.msra.mxu0 %v2035
      %5730 = vmatprep.subr.bf16.mxu0 0
      %5731 = vmatpush1.bf16.msra.mxu0 %v2036
      %5732 = vmatprep.subr.bf16.mxu0 0
      %5733 = vmatpush1.bf16.msra.mxu0 %v2037
      %5734 = vmatprep.subr.bf16.mxu0 0
      %5735 = vmatpush1.bf16.msra.mxu0 %v2038
      %5736 = vmatprep.subr.bf16.mxu0 0
      %5737 = vmatpush1.bf16.msra.mxu0 %v2039
      %5738 = vmatprep.subr.bf16.mxu0 0
      %5739 = vmatpush1.bf16.msra.mxu0 %v2040
      %5740 = vmatprep.subr.bf16.mxu0 0
      %5741 = vmatpush1.bf16.msra.mxu0 %v2041
      %5742 = vmatprep.subr.bf16.mxu0 0
      %5743 = vmatpush1.bf16.msra.mxu0 %v2042
      %5744 = vmatprep.subr.bf16.mxu0 0
      %5745 = vmatpush1.bf16.msra.mxu0 %v2043
      %5746 = vmatprep.mubr.bf16.mxu0 %v3605
      %5747 = vmatmul.mubr.bf16.gmra.mrb[0].mxu0 %v3604
      %v5748 = vpop.f32.mrb[0].mxu0
      %v5749 = vadd.f32 %v5204, %v5748
      %v5750 = vpop.f32.mrb[0].mxu0
      %v5751 = vpop.f32.mrb[0].mxu0
      %v5752 = vadd.f32 %v5207, %v5751
      %v5753 = vpop.f32.mrb[0].mxu0
      %5754 = vmatprep.mubr.bf16.mxu0 %v3613
      %5755 = vmatmul.mubr.bf16.gmra.mrb[0].mxu0 %v3612
      %v5756 = vpop.f32.mrb[0].mxu0
      %v5757 = vadd.f32 %v5212, %v5756
      %v5758 = vpop.f32.mrb[0].mxu0
      %v5759 = vpop.f32.mrb[0].mxu0
      %v5760 = vadd.f32 %v5215, %v5759
      %v5761 = vpop.f32.mrb[0].mxu0
      %5762 = vmatprep.mubr.bf16.mxu0 %v3621
      %5763 = vmatmul.mubr.bf16.gmra.mrb[0].mxu0 %v3620
      %v5764 = vpop.f32.mrb[0].mxu0
      %v5765 = vadd.f32 %v5220, %v5764
      %v5766 = vpop.f32.mrb[0].mxu0
      %v5767 = vpop.f32.mrb[0].mxu0
      %v5768 = vadd.f32 %v5223, %v5767
      %v5769 = vpop.f32.mrb[0].mxu0
      %5770 = vmatprep.mubr.bf16.mxu0 %v3629
      %5771 = vmatmul.mubr.bf16.gmra.mrb[0].mxu0 %v3628
      %v5772 = vpop.f32.mrb[0].mxu0
      %v5773 = vadd.f32 %v5228, %v5772
      %v5774 = vpop.f32.mrb[0].mxu0
      %v5775 = vpop.f32.mrb[0].mxu0
      %v5776 = vadd.f32 %v5231, %v5775
      %v5777 = vpop.f32.mrb[0].mxu0
      %5778 = vmatprep.mubr.bf16.mxu0 %v3637
      %5779 = vmatmul.mubr.bf16.gmra.mrb[0].mxu0 %v3636
      %v5780 = vpop.f32.mrb[0].mxu0
      %v5781 = vadd.f32 %v5236, %v5780
      %v5782 = vpop.f32.mrb[0].mxu0
      %v5783 = vpop.f32.mrb[0].mxu0
      %v5784 = vadd.f32 %v5239, %v5783
      %v5785 = vpop.f32.mrb[0].mxu0
      %5786 = vmatprep.mubr.bf16.mxu0 %v3645
      %5787 = vmatmul.mubr.bf16.gmra.mrb[0].mxu0 %v3644
      %v5788 = vpop.f32.mrb[0].mxu0
      %v5789 = vadd.f32 %v5244, %v5788
      %v5790 = vpop.f32.mrb[0].mxu0
      %v5791 = vpop.f32.mrb[0].mxu0
      %v5792 = vadd.f32 %v5247, %v5791
      %v5793 = vpop.f32.mrb[0].mxu0
      %5794 = vmatprep.mubr.bf16.mxu0 %v3653
      %5795 = vmatmul.mubr.bf16.gmra.mrb[0].mxu0 %v3652
      %v5796 = vpop.f32.mrb[0].mxu0
      %v5797 = vadd.f32 %v5252, %v5796
      %v5798 = vpop.f32.mrb[0].mxu0
      %v5799 = vpop.f32.mrb[0].mxu0
      %v5800 = vadd.f32 %v5255, %v5799
      %v5801 = vpop.f32.mrb[0].mxu0
      %5802 = vmatprep.mubr.bf16.mxu0 %v3661
      %5803 = vmatmul.mubr.bf16.gmra.mrb[0].mxu0 %v3660
      %v5804 = vpop.f32.mrb[0].mxu0
      %v5805 = vadd.f32 %v5260, %v5804
      %v5806 = vpop.f32.mrb[0].mxu0
      %v5807 = vpop.f32.mrb[0].mxu0
      %v5808 = vadd.f32 %v5263, %v5807
      %v5809 = vpop.f32.mrb[0].mxu0
      %5810 = vmatprep.mubr.bf16.mxu0 %v3669
      %5811 = vmatmul.mubr.bf16.gmra.mrb[0].mxu0 %v3668
      %v5812 = vpop.f32.mrb[0].mxu0
      %v5813 = vadd.f32 %v5268, %v5812
      %v5814 = vpop.f32.mrb[0].mxu0
      %v5815 = vpop.f32.mrb[0].mxu0
      %v5816 = vadd.f32 %v5271, %v5815
      %v5817 = vpop.f32.mrb[0].mxu0
      %5818 = vmatprep.mubr.bf16.mxu0 %v3677
      %5819 = vmatmul.mubr.bf16.gmra.mrb[0].mxu0 %v3676
      %v5820 = vpop.f32.mrb[0].mxu0
      %v5821 = vadd.f32 %v5276, %v5820
      %v5822 = vpop.f32.mrb[0].mxu0
      %v5823 = vpop.f32.mrb[0].mxu0
      %v5824 = vadd.f32 %v5279, %v5823
      %v5825 = vpop.f32.mrb[0].mxu0
      %5826 = vmatprep.mubr.bf16.mxu0 %v3685
      %5827 = vmatmul.mubr.bf16.gmra.mrb[0].mxu0 %v3684
      %v5828 = vpop.f32.mrb[0].mxu0
      %v5829 = vadd.f32 %v5284, %v5828
      %v5830 = vpop.f32.mrb[0].mxu0
      %v5831 = vpop.f32.mrb[0].mxu0
      %v5832 = vadd.f32 %v5287, %v5831
      %v5833 = vpop.f32.mrb[0].mxu0
      %5834 = vmatprep.mubr.bf16.mxu0 %v3693
      %5835 = vmatmul.mubr.bf16.gmra.mrb[0].mxu0 %v3692
      %v5836 = vpop.f32.mrb[0].mxu0
      %v5837 = vadd.f32 %v5292, %v5836
      %v5838 = vpop.f32.mrb[0].mxu0
      %v5839 = vpop.f32.mrb[0].mxu0
      %v5840 = vadd.f32 %v5295, %v5839
      %v5841 = vpop.f32.mrb[0].mxu0
      %5842 = vmatprep.mubr.bf16.mxu0 %v3701
      %5843 = vmatmul.mubr.bf16.gmra.mrb[0].mxu0 %v3700
      %v5844 = vpop.f32.mrb[0].mxu0
      %v5845 = vadd.f32 %v5300, %v5844
      %v5846 = vpop.f32.mrb[0].mxu0
      %v5847 = vpop.f32.mrb[0].mxu0
      %v5848 = vadd.f32 %v5303, %v5847
      %v5849 = vpop.f32.mrb[0].mxu0
      %5850 = vmatprep.mubr.bf16.mxu0 %v3709
      %5851 = vmatmul.mubr.bf16.gmra.mrb[0].mxu0 %v3708
      %v5852 = vpop.f32.mrb[0].mxu0
      %v5853 = vadd.f32 %v5308, %v5852
      %v5854 = vpop.f32.mrb[0].mxu0
      %v5855 = vpop.f32.mrb[0].mxu0
      %v5856 = vadd.f32 %v5311, %v5855
      %v5857 = vpop.f32.mrb[0].mxu0
      %5858 = vmatprep.mubr.bf16.mxu0 %v3717
      %5859 = vmatmul.mubr.bf16.gmra.mrb[0].mxu0 %v3716
      %v5860 = vpop.f32.mrb[0].mxu0
      %v5861 = vadd.f32 %v5316, %v5860
      %v5862 = vpop.f32.mrb[0].mxu0
      %v5863 = vpop.f32.mrb[0].mxu0
      %v5864 = vadd.f32 %v5319, %v5863
      %v5865 = vpop.f32.mrb[0].mxu0
      %5866 = vmatprep.mubr.bf16.mxu0 %v3725
      %5867 = vmatmul.mubr.bf16.gmra.mrb[0].mxu0 %v3724
      %v5868 = vpop.f32.mrb[0].mxu0
      %v5869 = vadd.f32 %v5324, %v5868
      %v5870 = vpop.f32.mrb[0].mxu0
      %v5871 = vpop.f32.mrb[0].mxu0
      %v5872 = vadd.f32 %v5327, %v5871
      %v5873 = vpop.f32.mrb[0].mxu0
      %5874 = vmatprep.mubr.bf16.mxu0 %v3733
      %5875 = vmatmul.mubr.bf16.gmra.mrb[0].mxu0 %v3732
      %v5876 = vpop.f32.mrb[0].mxu0
      %v5877 = vadd.f32 %v5332, %v5876
      %v5878 = vpop.f32.mrb[0].mxu0
      %v5879 = vpop.f32.mrb[0].mxu0
      %v5880 = vadd.f32 %v5335, %v5879
      %v5881 = vpop.f32.mrb[0].mxu0
      %5882 = vmatprep.mubr.bf16.mxu0 %v3741
      %5883 = vmatmul.mubr.bf16.gmra.mrb[0].mxu0 %v3740
      %v5884 = vpop.f32.mrb[0].mxu0
      %v5885 = vadd.f32 %v5340, %v5884
      %v5886 = vpop.f32.mrb[0].mxu0
      %v5887 = vpop.f32.mrb[0].mxu0
      %v5888 = vadd.f32 %v5343, %v5887
      %v5889 = vpop.f32.mrb[0].mxu0
      %5890 = vmatprep.mubr.bf16.mxu0 %v3749
      %5891 = vmatmul.mubr.bf16.gmra.mrb[0].mxu0 %v3748
      %v5892 = vpop.f32.mrb[0].mxu0
      %v5893 = vadd.f32 %v5348, %v5892
      %v5894 = vpop.f32.mrb[0].mxu0
      %v5895 = vpop.f32.mrb[0].mxu0
      %v5896 = vadd.f32 %v5351, %v5895
      %v5897 = vpop.f32.mrb[0].mxu0
      %5898 = vmatprep.mubr.bf16.mxu0 %v3757
      %5899 = vmatmul.mubr.bf16.gmra.mrb[0].mxu0 %v3756
      %v5900 = vpop.f32.mrb[0].mxu0
      %v5901 = vadd.f32 %v5356, %v5900
      %v5902 = vpop.f32.mrb[0].mxu0
      %v5903 = vpop.f32.mrb[0].mxu0
      %v5904 = vadd.f32 %v5359, %v5903
      %v5905 = vpop.f32.mrb[0].mxu0
      %5906 = vmatprep.mubr.bf16.mxu0 %v3765
      %5907 = vmatmul.mubr.bf16.gmra.mrb[0].mxu0 %v3764
      %v5908 = vpop.f32.mrb[0].mxu0
      %v5909 = vadd.f32 %v5364, %v5908
      %v5910 = vpop.f32.mrb[0].mxu0
      %v5911 = vpop.f32.mrb[0].mxu0
      %v5912 = vadd.f32 %v5367, %v5911
      %v5913 = vpop.f32.mrb[0].mxu0
      %5914 = vmatprep.mubr.bf16.mxu0 %v3773
      %5915 = vmatmul.mubr.bf16.gmra.mrb[0].mxu0 %v3772
      %v5916 = vpop.f32.mrb[0].mxu0
      %v5917 = vadd.f32 %v5372, %v5916
      %v5918 = vpop.f32.mrb[0].mxu0
      %v5919 = vpop.f32.mrb[0].mxu0
      %v5920 = vadd.f32 %v5375, %v5919
      %v5921 = vpop.f32.mrb[0].mxu0
      %5922 = vmatprep.mubr.bf16.mxu0 %v3781
      %5923 = vmatmul.mubr.bf16.gmra.mrb[0].mxu0 %v3780
      %v5924 = vpop.f32.mrb[0].mxu0
      %v5925 = vadd.f32 %v5380, %v5924
      %v5926 = vpop.f32.mrb[0].mxu0
      %v5927 = vpop.f32.mrb[0].mxu0
      %v5928 = vadd.f32 %v5383, %v5927
      %v5929 = vpop.f32.mrb[0].mxu0
      %5930 = vmatprep.mubr.bf16.mxu0 %v3789
      %5931 = vmatmul.mubr.bf16.gmra.mrb[0].mxu0 %v3788
      %v5932 = vpop.f32.mrb[0].mxu0
      %v5933 = vadd.f32 %v5388, %v5932
      %v5934 = vpop.f32.mrb[0].mxu0
      %v5935 = vpop.f32.mrb[0].mxu0
      %v5936 = vadd.f32 %v5391, %v5935
      %v5937 = vpop.f32.mrb[0].mxu0
      %5938 = vmatprep.mubr.bf16.mxu0 %v3797
      %5939 = vmatmul.mubr.bf16.gmra.mrb[0].mxu0 %v3796
      %v5940 = vpop.f32.mrb[0].mxu0
      %v5941 = vadd.f32 %v5396, %v5940
      %v5942 = vpop.f32.mrb[0].mxu0
      %v5943 = vpop.f32.mrb[0].mxu0
      %v5944 = vadd.f32 %v5399, %v5943
      %v5945 = vpop.f32.mrb[0].mxu0
      %5946 = vmatprep.mubr.bf16.mxu0 %v3805
      %5947 = vmatmul.mubr.bf16.gmra.mrb[0].mxu0 %v3804
      %v5948 = vpop.f32.mrb[0].mxu0
      %v5949 = vadd.f32 %v5404, %v5948
      %v5950 = vpop.f32.mrb[0].mxu0
      %v5951 = vpop.f32.mrb[0].mxu0
      %v5952 = vadd.f32 %v5407, %v5951
      %v5953 = vpop.f32.mrb[0].mxu0
      %5954 = vmatprep.mubr.bf16.mxu0 %v3813
      %5955 = vmatmul.mubr.bf16.gmra.mrb[0].mxu0 %v3812
      %v5956 = vpop.f32.mrb[0].mxu0
      %v5957 = vadd.f32 %v5412, %v5956
      %v5958 = vpop.f32.mrb[0].mxu0
      %v5959 = vpop.f32.mrb[0].mxu0
      %v5960 = vadd.f32 %v5415, %v5959
      %v5961 = vpop.f32.mrb[0].mxu0
      %5962 = vmatprep.mubr.bf16.mxu0 %v3821
      %5963 = vmatmul.mubr.bf16.gmra.mrb[0].mxu0 %v3820
      %v5964 = vpop.f32.mrb[0].mxu0
      %v5965 = vadd.f32 %v5420, %v5964
      %v5966 = vpop.f32.mrb[0].mxu0
      %v5967 = vpop.f32.mrb[0].mxu0
      %v5968 = vadd.f32 %v5423, %v5967
      %v5969 = vpop.f32.mrb[0].mxu0
      %5970 = vmatprep.mubr.bf16.mxu0 %v3829
      %5971 = vmatmul.mubr.bf16.gmra.mrb[0].mxu0 %v3828
      %v5972 = vpop.f32.mrb[0].mxu0
      %v5973 = vadd.f32 %v5428, %v5972
      %v5974 = vpop.f32.mrb[0].mxu0
      %v5975 = vpop.f32.mrb[0].mxu0
      %v5976 = vadd.f32 %v5431, %v5975
      %v5977 = vpop.f32.mrb[0].mxu0
      %5978 = vmatprep.mubr.bf16.mxu0 %v3837
      %5979 = vmatmul.mubr.bf16.gmra.mrb[0].mxu0 %v3836
      %v5980 = vpop.f32.mrb[0].mxu0
      %v5981 = vadd.f32 %v5436, %v5980
      %v5982 = vpop.f32.mrb[0].mxu0
      %v5983 = vpop.f32.mrb[0].mxu0
      %v5984 = vadd.f32 %v5439, %v5983
      %v5985 = vpop.f32.mrb[0].mxu0
      %5986 = vmatprep.mubr.bf16.mxu0 %v3845
      %5987 = vmatmul.mubr.bf16.gmra.mrb[0].mxu0 %v3844
      %v5988 = vpop.f32.mrb[0].mxu0
      %v5989 = vadd.f32 %v5444, %v5988
      %v5990 = vpop.f32.mrb[0].mxu0
      %v5991 = vpop.f32.mrb[0].mxu0
      %v5992 = vadd.f32 %v5447, %v5991
      %v5993 = vpop.f32.mrb[0].mxu0
      %5994 = vmatprep.mubr.bf16.mxu0 %v3853
      %5995 = vmatmul.mubr.bf16.gmra.mrb[0].mxu0 %v3852
      %v5996 = vpop.f32.mrb[0].mxu0
      %v5997 = vadd.f32 %v5452, %v5996
      %v5998 = vpop.f32.mrb[0].mxu0
      %v5999 = vpop.f32.mrb[0].mxu0
      %v6000 = vadd.f32 %v5455, %v5999
      %v6001 = vpop.f32.mrb[0].mxu0
      %6002 = vmatprep.mubr.bf16.mxu0 %v3861
      %6003 = vmatmul.mubr.bf16.gmra.mrb[0].mxu0 %v3860
      %v6004 = vpop.f32.mrb[0].mxu0
      %v6005 = vadd.f32 %v5460, %v6004
      %v6006 = vpop.f32.mrb[0].mxu0
      %v6007 = vpop.f32.mrb[0].mxu0
      %v6008 = vadd.f32 %v5463, %v6007
      %v6009 = vpop.f32.mrb[0].mxu0
      %6010 = vmatprep.mubr.bf16.mxu0 %v3869
      %6011 = vmatmul.mubr.bf16.gmra.mrb[0].mxu0 %v3868
      %v6012 = vpop.f32.mrb[0].mxu0
      %v6013 = vadd.f32 %v5468, %v6012
      %v6014 = vpop.f32.mrb[0].mxu0
      %v6015 = vpop.f32.mrb[0].mxu0
      %v6016 = vadd.f32 %v5471, %v6015
      %v6017 = vpop.f32.mrb[0].mxu0
      %6018 = vmatprep.mubr.bf16.mxu0 %v3877
      %6019 = vmatmul.mubr.bf16.gmra.mrb[0].mxu0 %v3876
      %v6020 = vpop.f32.mrb[0].mxu0
      %v6021 = vadd.f32 %v5476, %v6020
      %v6022 = vpop.f32.mrb[0].mxu0
      %v6023 = vpop.f32.mrb[0].mxu0
      %v6024 = vadd.f32 %v5479, %v6023
      %v6025 = vpop.f32.mrb[0].mxu0
      %6026 = vmatprep.mubr.bf16.mxu0 %v3885
      %6027 = vmatmul.mubr.bf16.gmra.mrb[0].mxu0 %v3884
      %v6028 = vpop.f32.mrb[0].mxu0
      %v6029 = vadd.f32 %v5484, %v6028
      %v6030 = vpop.f32.mrb[0].mxu0
      %v6031 = vpop.f32.mrb[0].mxu0
      %v6032 = vadd.f32 %v5487, %v6031
      %v6033 = vpop.f32.mrb[0].mxu0
      %6034 = vmatprep.mubr.bf16.mxu0 %v3893
      %6035 = vmatmul.mubr.bf16.gmra.mrb[0].mxu0 %v3892
      %v6036 = vpop.f32.mrb[0].mxu0
      %v6037 = vadd.f32 %v5492, %v6036
      %v6038 = vpop.f32.mrb[0].mxu0
      %v6039 = vpop.f32.mrb[0].mxu0
      %v6040 = vadd.f32 %v5495, %v6039
      %v6041 = vpop.f32.mrb[0].mxu0
      %6042 = vmatprep.mubr.bf16.mxu0 %v3901
      %6043 = vmatmul.mubr.bf16.gmra.mrb[0].mxu0 %v3900
      %v6044 = vpop.f32.mrb[0].mxu0
      %v6045 = vadd.f32 %v5500, %v6044
      %v6046 = vpop.f32.mrb[0].mxu0
      %v6047 = vpop.f32.mrb[0].mxu0
      %v6048 = vadd.f32 %v5503, %v6047
      %v6049 = vpop.f32.mrb[0].mxu0
      %6050 = vmatprep.mubr.bf16.mxu0 %v3909
      %6051 = vmatmul.mubr.bf16.gmra.mrb[0].mxu0 %v3908
      %v6052 = vpop.f32.mrb[0].mxu0
      %v6053 = vadd.f32 %v5508, %v6052
      %v6054 = vpop.f32.mrb[0].mxu0
      %v6055 = vpop.f32.mrb[0].mxu0
      %v6056 = vadd.f32 %v5511, %v6055
      %v6057 = vpop.f32.mrb[0].mxu0
      %6058 = vmatprep.mubr.bf16.mxu0 %v3917
      %6059 = vmatmul.mubr.bf16.gmra.mrb[0].mxu0 %v3916
      %v6060 = vpop.f32.mrb[0].mxu0
      %v6061 = vadd.f32 %v5516, %v6060
      %v6062 = vpop.f32.mrb[0].mxu0
      %v6063 = vpop.f32.mrb[0].mxu0
      %v6064 = vadd.f32 %v5519, %v6063
      %v6065 = vpop.f32.mrb[0].mxu0
      %6066 = vmatprep.mubr.bf16.mxu0 %v3925
      %6067 = vmatmul.mubr.bf16.gmra.mrb[0].mxu0 %v3924
      %v6068 = vpop.f32.mrb[0].mxu0
      %v6069 = vadd.f32 %v5524, %v6068
      %v6070 = vpop.f32.mrb[0].mxu0
      %v6071 = vpop.f32.mrb[0].mxu0
      %v6072 = vadd.f32 %v5527, %v6071
      %v6073 = vpop.f32.mrb[0].mxu0
      %6074 = vmatprep.mubr.bf16.mxu0 %v3933
      %6075 = vmatmul.mubr.bf16.gmra.mrb[0].mxu0 %v3932
      %v6076 = vpop.f32.mrb[0].mxu0
      %v6077 = vadd.f32 %v5532, %v6076
      %v6078 = vpop.f32.mrb[0].mxu0
      %v6079 = vpop.f32.mrb[0].mxu0
      %v6080 = vadd.f32 %v5535, %v6079
      %v6081 = vpop.f32.mrb[0].mxu0
      %6082 = vmatprep.mubr.bf16.mxu0 %v3941
      %6083 = vmatmul.mubr.bf16.gmra.mrb[0].mxu0 %v3940
      %v6084 = vpop.f32.mrb[0].mxu0
      %v6085 = vadd.f32 %v5540, %v6084
      %v6086 = vpop.f32.mrb[0].mxu0
      %v6087 = vpop.f32.mrb[0].mxu0
      %v6088 = vadd.f32 %v5543, %v6087
      %v6089 = vpop.f32.mrb[0].mxu0
      %6090 = vmatprep.mubr.bf16.mxu0 %v3949
      %6091 = vmatmul.mubr.bf16.gmra.mrb[0].mxu0 %v3948
      %v6092 = vpop.f32.mrb[0].mxu0
      %v6093 = vadd.f32 %v5548, %v6092
      %v6094 = vpop.f32.mrb[0].mxu0
      %v6095 = vpop.f32.mrb[0].mxu0
      %v6096 = vadd.f32 %v5551, %v6095
      %v6097 = vpop.f32.mrb[0].mxu0
      %6098 = vmatprep.mubr.bf16.mxu0 %v3957
      %6099 = vmatmul.mubr.bf16.gmra.mrb[0].mxu0 %v3956
      %v6100 = vpop.f32.mrb[0].mxu0
      %v6101 = vadd.f32 %v5556, %v6100
      %v6102 = vpop.f32.mrb[0].mxu0
      %v6103 = vpop.f32.mrb[0].mxu0
      %v6104 = vadd.f32 %v5559, %v6103
      %v6105 = vpop.f32.mrb[0].mxu0
      %6106 = vmatprep.mubr.bf16.mxu0 %v3965
      %6107 = vmatmul.mubr.bf16.gmra.mrb[0].mxu0 %v3964
      %v6108 = vpop.f32.mrb[0].mxu0
      %v6109 = vadd.f32 %v5564, %v6108
      %v6110 = vpop.f32.mrb[0].mxu0
      %v6111 = vpop.f32.mrb[0].mxu0
      %v6112 = vadd.f32 %v5567, %v6111
      %v6113 = vpop.f32.mrb[0].mxu0
      %6114 = vmatprep.mubr.bf16.mxu0 %v3973
      %6115 = vmatmul.mubr.bf16.gmra.mrb[0].mxu0 %v3972
      %v6116 = vpop.f32.mrb[0].mxu0
      %v6117 = vadd.f32 %v5572, %v6116
      %v6118 = vpop.f32.mrb[0].mxu0
      %v6119 = vpop.f32.mrb[0].mxu0
      %v6120 = vadd.f32 %v5575, %v6119
      %v6121 = vpop.f32.mrb[0].mxu0
      %6122 = vmatprep.mubr.bf16.mxu0 %v3981
      %6123 = vmatmul.mubr.bf16.gmra.mrb[0].mxu0 %v3980
      %v6124 = vpop.f32.mrb[0].mxu0
      %v6125 = vadd.f32 %v5580, %v6124
      %v6126 = vpop.f32.mrb[0].mxu0
      %v6127 = vpop.f32.mrb[0].mxu0
      %v6128 = vadd.f32 %v5583, %v6127
      %v6129 = vpop.f32.mrb[0].mxu0
      %6130 = vmatprep.mubr.bf16.mxu0 %v3989
      %6131 = vmatmul.mubr.bf16.gmra.mrb[0].mxu0 %v3988
      %v6132 = vpop.f32.mrb[0].mxu0
      %v6133 = vadd.f32 %v5588, %v6132
      %v6134 = vpop.f32.mrb[0].mxu0
      %v6135 = vpop.f32.mrb[0].mxu0
      %v6136 = vadd.f32 %v5591, %v6135
      %v6137 = vpop.f32.mrb[0].mxu0
      %6138 = vmatprep.mubr.bf16.mxu0 %v3997
      %6139 = vmatmul.mubr.bf16.gmra.mrb[0].mxu0 %v3996
      %v6140 = vpop.f32.mrb[0].mxu0
      %v6141 = vadd.f32 %v5596, %v6140
      %v6142 = vpop.f32.mrb[0].mxu0
      %v6143 = vpop.f32.mrb[0].mxu0
      %v6144 = vadd.f32 %v5599, %v6143
      %v6145 = vpop.f32.mrb[0].mxu0
      %6146 = vmatprep.mubr.bf16.mxu0 %v4005
      %6147 = vmatmul.mubr.bf16.gmra.mrb[0].mxu0 %v4004
      %v6148 = vpop.f32.mrb[0].mxu0
      %v6149 = vadd.f32 %v5604, %v6148
      %v6150 = vpop.f32.mrb[0].mxu0
      %v6151 = vpop.f32.mrb[0].mxu0
      %v6152 = vadd.f32 %v5607, %v6151
      %v6153 = vpop.f32.mrb[0].mxu0
      %6154 = vmatprep.mubr.bf16.mxu0 %v4013
      %6155 = vmatmul.mubr.bf16.gmra.mrb[0].mxu0 %v4012
      %v6156 = vpop.f32.mrb[0].mxu0
      %v6157 = vadd.f32 %v5612, %v6156
      %v6158 = vpop.f32.mrb[0].mxu0
      %v6159 = vpop.f32.mrb[0].mxu0
      %v6160 = vadd.f32 %v5615, %v6159
      %v6161 = vpop.f32.mrb[0].mxu0
      %6162 = vmatprep.mubr.bf16.mxu0 %v4021
      %6163 = vmatmul.mubr.bf16.gmra.mrb[0].mxu0 %v4020
      %v6164 = vpop.f32.mrb[0].mxu0
      %v6165 = vadd.f32 %v5620, %v6164
      %v6166 = vpop.f32.mrb[0].mxu0
      %v6167 = vpop.f32.mrb[0].mxu0
      %v6168 = vadd.f32 %v5623, %v6167
      %v6169 = vpop.f32.mrb[0].mxu0
      %6170 = vmatprep.mubr.bf16.mxu0 %v4029
      %6171 = vmatmul.mubr.bf16.gmra.mrb[0].mxu0 %v4028
      %v6172 = vpop.f32.mrb[0].mxu0
      %v6173 = vadd.f32 %v5628, %v6172
      %v6174 = vpop.f32.mrb[0].mxu0
      %v6175 = vpop.f32.mrb[0].mxu0
      %v6176 = vadd.f32 %v5631, %v6175
      %v6177 = vpop.f32.mrb[0].mxu0
      %6178 = vmatprep.mubr.bf16.mxu0 %v4037
      %6179 = vmatmul.mubr.bf16.gmra.mrb[0].mxu0 %v4036
      %v6180 = vpop.f32.mrb[0].mxu0
      %v6181 = vadd.f32 %v5636, %v6180
      %v6182 = vpop.f32.mrb[0].mxu0
      %v6183 = vpop.f32.mrb[0].mxu0
      %v6184 = vadd.f32 %v5639, %v6183
      %v6185 = vpop.f32.mrb[0].mxu0
      %6186 = vmatprep.mubr.bf16.mxu0 %v4045
      %6187 = vmatmul.mubr.bf16.gmra.mrb[0].mxu0 %v4044
      %v6188 = vpop.f32.mrb[0].mxu0
      %v6189 = vadd.f32 %v5644, %v6188
      %v6190 = vpop.f32.mrb[0].mxu0
      %v6191 = vpop.f32.mrb[0].mxu0
      %v6192 = vadd.f32 %v5647, %v6191
      %v6193 = vpop.f32.mrb[0].mxu0
      %6194 = vmatprep.mubr.bf16.mxu0 %v4053
      %6195 = vmatmul.mubr.bf16.gmra.mrb[0].mxu0 %v4052
      %v6196 = vpop.f32.mrb[0].mxu0
      %v6197 = vadd.f32 %v5652, %v6196
      %v6198 = vpop.f32.mrb[0].mxu0
      %v6199 = vpop.f32.mrb[0].mxu0
      %v6200 = vadd.f32 %v5655, %v6199
      %v6201 = vpop.f32.mrb[0].mxu0
      %6202 = vmatprep.mubr.bf16.mxu0 %v4061
      %6203 = vmatmul.mubr.bf16.gmra.mrb[0].mxu0 %v4060
      %v6204 = vpop.f32.mrb[0].mxu0
      %v6205 = vadd.f32 %v5660, %v6204
      %v6206 = vpop.f32.mrb[0].mxu0
      %v6207 = vpop.f32.mrb[0].mxu0
      %v6208 = vadd.f32 %v5663, %v6207
      %v6209 = vpop.f32.mrb[0].mxu0
      %6210 = vmatprep.mubr.bf16.mxu0 %v4069
      %6211 = vmatmul.mubr.bf16.gmra.mrb[0].mxu0 %v4068
      %v6212 = vpop.f32.mrb[0].mxu0
      %v6213 = vadd.f32 %v5668, %v6212
      %v6214 = vpop.f32.mrb[0].mxu0
      %v6215 = vpop.f32.mrb[0].mxu0
      %v6216 = vadd.f32 %v5671, %v6215
      %v6217 = vpop.f32.mrb[0].mxu0
      %6218 = vmatprep.mubr.bf16.mxu0 %v4077
      %6219 = vmatmul.mubr.bf16.gmra.mrb[0].mxu0 %v4076
      %v6220 = vpop.f32.mrb[0].mxu0
      %v6221 = vadd.f32 %v5676, %v6220
      %v6222 = vpop.f32.mrb[0].mxu0
      %v6223 = vpop.f32.mrb[0].mxu0
      %v6224 = vadd.f32 %v5679, %v6223
      %v6225 = vpop.f32.mrb[0].mxu0
      %6226 = vmatprep.mubr.bf16.mxu0 %v4085
      %6227 = vmatmul.mubr.bf16.gmra.mrb[0].mxu0 %v4084
      %v6228 = vpop.f32.mrb[0].mxu0
      %v6229 = vadd.f32 %v5684, %v6228
      %v6230 = vpop.f32.mrb[0].mxu0
      %v6231 = vpop.f32.mrb[0].mxu0
      %v6232 = vadd.f32 %v5687, %v6231
      %v6233 = vpop.f32.mrb[0].mxu0
      %6234 = vmatprep.mubr.bf16.mxu0 %v4093
      %6235 = vmatmul.mubr.bf16.gmra.mrb[0].mxu0 %v4092
      %v6236 = vpop.f32.mrb[0].mxu0
      %v6237 = vadd.f32 %v5692, %v6236
      %v6238 = vpop.f32.mrb[0].mxu0
      %v6239 = vpop.f32.mrb[0].mxu0
      %v6240 = vadd.f32 %v5695, %v6239
      %v6241 = vpop.f32.mrb[0].mxu0
      %6242 = vmatprep.mubr.bf16.mxu0 %v4101
      %6243 = vmatmul.mubr.bf16.gmra.mrb[0].mxu0 %v4100
      %v6244 = vpop.f32.mrb[0].mxu0
      %v6245 = vadd.f32 %v5700, %v6244
      %v6246 = vpop.f32.mrb[0].mxu0
      %v6247 = vpop.f32.mrb[0].mxu0
      %v6248 = vadd.f32 %v5703, %v6247
      %v6249 = vpop.f32.mrb[0].mxu0
      %6250 = vmatprep.mubr.bf16.mxu0 %v4109
      %6251 = vmatmul.mubr.bf16.gmra.mrb[0].mxu0 %v4108
      %v6252 = vpop.f32.mrb[0].mxu0
      %v6253 = vadd.f32 %v5708, %v6252
      %v6254 = vpop.f32.mrb[0].mxu0
      %v6255 = vpop.f32.mrb[0].mxu0
      %v6256 = vadd.f32 %v5711, %v6255
      %v6257 = vpop.f32.mrb[0].mxu0
      %6258 = vdwg.mxu0
      %6259 = vmatprep.subr.bf16.mxu0 0
      %6260 = vmatpush1.bf16.msra.mxu0 %v2044
      %6261 = vmatprep.subr.bf16.mxu0 0
      %6262 = vmatpush1.bf16.msra.mxu0 %v2045
      %6263 = vmatprep.subr.bf16.mxu0 0
      %6264 = vmatpush1.bf16.msra.mxu0 %v2046
      %6265 = vmatprep.subr.bf16.mxu0 0
      %6266 = vmatpush1.bf16.msra.mxu0 %v2047
      %6267 = vmatprep.subr.bf16.mxu0 0
      %6268 = vmatpush1.bf16.msra.mxu0 %v2048
      %6269 = vmatprep.subr.bf16.mxu0 0
      %6270 = vmatpush1.bf16.msra.mxu0 %v2049
      %6271 = vmatprep.subr.bf16.mxu0 0
      %6272 = vmatpush1.bf16.msra.mxu0 %v2050
      %6273 = vmatprep.subr.bf16.mxu0 0
      %6274 = vmatpush1.bf16.msra.mxu0 %v2051
      %6275 = vmatprep.subr.bf16.mxu0 0
      %6276 = vmatpush1.bf16.msra.mxu0 %v2052
      %6277 = vmatprep.subr.bf16.mxu0 0
      %6278 = vmatpush1.bf16.msra.mxu0 %v2053
      %6279 = vmatprep.subr.bf16.mxu0 0
      %6280 = vmatpush1.bf16.msra.mxu0 %v2054
      %6281 = vmatprep.subr.bf16.mxu0 0
      %6282 = vmatpush1.bf16.msra.mxu0 %v2055
      %6283 = vmatprep.subr.bf16.mxu0 0
      %6284 = vmatpush1.bf16.msra.mxu0 %v2056
      %6285 = vmatprep.subr.bf16.mxu0 0
      %6286 = vmatpush1.bf16.msra.mxu0 %v2057
      %6287 = vmatprep.subr.bf16.mxu0 0
      %6288 = vmatpush1.bf16.msra.mxu0 %v2058
      %6289 = vmatprep.subr.bf16.mxu0 0
      %6290 = vmatpush1.bf16.msra.mxu0 %v2059
      %6291 = vmatprep.mubr.bf16.mxu0 %v3607
      %6292 = vmatmul.mubr.bf16.gmra.mrb[0].mxu0 %v3606
      %v6293 = vpop.f32.mrb[0].mxu0
      %v6294 = vadd.f32 %v5749, %v6293
      %v6295 = vpop.f32.mrb[0].mxu0
      %v6296 = vpop.f32.mrb[0].mxu0
      %v6297 = vadd.f32 %v5752, %v6296
      %v6298 = vpop.f32.mrb[0].mxu0
      %6299 = vmatprep.mubr.bf16.mxu0 %v3615
      %6300 = vmatmul.mubr.bf16.gmra.mrb[0].mxu0 %v3614
      %v6301 = vpop.f32.mrb[0].mxu0
      %v6302 = vadd.f32 %v5757, %v6301
      %v6303 = vpop.f32.mrb[0].mxu0
      %v6304 = vpop.f32.mrb[0].mxu0
      %v6305 = vadd.f32 %v5760, %v6304
      %v6306 = vpop.f32.mrb[0].mxu0
      %6307 = vmatprep.mubr.bf16.mxu0 %v3623
      %6308 = vmatmul.mubr.bf16.gmra.mrb[0].mxu0 %v3622
      %v6309 = vpop.f32.mrb[0].mxu0
      %v6310 = vadd.f32 %v5765, %v6309
      %v6311 = vpop.f32.mrb[0].mxu0
      %v6312 = vpop.f32.mrb[0].mxu0
      %v6313 = vadd.f32 %v5768, %v6312
      %v6314 = vpop.f32.mrb[0].mxu0
      %6315 = vmatprep.mubr.bf16.mxu0 %v3631
      %6316 = vmatmul.mubr.bf16.gmra.mrb[0].mxu0 %v3630
      %v6317 = vpop.f32.mrb[0].mxu0
      %v6318 = vadd.f32 %v5773, %v6317
      %v6319 = vpop.f32.mrb[0].mxu0
      %v6320 = vpop.f32.mrb[0].mxu0
      %v6321 = vadd.f32 %v5776, %v6320
      %v6322 = vpop.f32.mrb[0].mxu0
      %6323 = vmatprep.mubr.bf16.mxu0 %v3639
      %6324 = vmatmul.mubr.bf16.gmra.mrb[0].mxu0 %v3638
      %v6325 = vpop.f32.mrb[0].mxu0
      %v6326 = vadd.f32 %v5781, %v6325
      %v6327 = vpop.f32.mrb[0].mxu0
      %v6328 = vpop.f32.mrb[0].mxu0
      %v6329 = vadd.f32 %v5784, %v6328
      %v6330 = vpop.f32.mrb[0].mxu0
      %6331 = vmatprep.mubr.bf16.mxu0 %v3647
      %6332 = vmatmul.mubr.bf16.gmra.mrb[0].mxu0 %v3646
      %v6333 = vpop.f32.mrb[0].mxu0
      %v6334 = vadd.f32 %v5789, %v6333
      %v6335 = vpop.f32.mrb[0].mxu0
      %v6336 = vpop.f32.mrb[0].mxu0
      %v6337 = vadd.f32 %v5792, %v6336
      %v6338 = vpop.f32.mrb[0].mxu0
      %6339 = vmatprep.mubr.bf16.mxu0 %v3655
      %6340 = vmatmul.mubr.bf16.gmra.mrb[0].mxu0 %v3654
      %v6341 = vpop.f32.mrb[0].mxu0
      %v6342 = vadd.f32 %v5797, %v6341
      %v6343 = vpop.f32.mrb[0].mxu0
      %v6344 = vpop.f32.mrb[0].mxu0
      %v6345 = vadd.f32 %v5800, %v6344
      %v6346 = vpop.f32.mrb[0].mxu0
      %6347 = vmatprep.mubr.bf16.mxu0 %v3663
      %6348 = vmatmul.mubr.bf16.gmra.mrb[0].mxu0 %v3662
      %v6349 = vpop.f32.mrb[0].mxu0
      %v6350 = vadd.f32 %v5805, %v6349
      %v6351 = vpop.f32.mrb[0].mxu0
      %v6352 = vpop.f32.mrb[0].mxu0
      %v6353 = vadd.f32 %v5808, %v6352
      %v6354 = vpop.f32.mrb[0].mxu0
      %6355 = vmatprep.mubr.bf16.mxu0 %v3671
      %6356 = vmatmul.mubr.bf16.gmra.mrb[0].mxu0 %v3670
      %v6357 = vpop.f32.mrb[0].mxu0
      %v6358 = vadd.f32 %v5813, %v6357
      %v6359 = vpop.f32.mrb[0].mxu0
      %v6360 = vpop.f32.mrb[0].mxu0
      %v6361 = vadd.f32 %v5816, %v6360
      %v6362 = vpop.f32.mrb[0].mxu0
      %6363 = vmatprep.mubr.bf16.mxu0 %v3679
      %6364 = vmatmul.mubr.bf16.gmra.mrb[0].mxu0 %v3678
      %v6365 = vpop.f32.mrb[0].mxu0
      %v6366 = vadd.f32 %v5821, %v6365
      %v6367 = vpop.f32.mrb[0].mxu0
      %v6368 = vpop.f32.mrb[0].mxu0
      %v6369 = vadd.f32 %v5824, %v6368
      %v6370 = vpop.f32.mrb[0].mxu0
      %6371 = vmatprep.mubr.bf16.mxu0 %v3687
      %6372 = vmatmul.mubr.bf16.gmra.mrb[0].mxu0 %v3686
      %v6373 = vpop.f32.mrb[0].mxu0
      %v6374 = vadd.f32 %v5829, %v6373
      %v6375 = vpop.f32.mrb[0].mxu0
      %v6376 = vpop.f32.mrb[0].mxu0
      %v6377 = vadd.f32 %v5832, %v6376
      %v6378 = vpop.f32.mrb[0].mxu0
      %6379 = vmatprep.mubr.bf16.mxu0 %v3695
      %6380 = vmatmul.mubr.bf16.gmra.mrb[0].mxu0 %v3694
      %v6381 = vpop.f32.mrb[0].mxu0
      %v6382 = vadd.f32 %v5837, %v6381
      %v6383 = vpop.f32.mrb[0].mxu0
      %v6384 = vpop.f32.mrb[0].mxu0
      %v6385 = vadd.f32 %v5840, %v6384
      %v6386 = vpop.f32.mrb[0].mxu0
      %6387 = vmatprep.mubr.bf16.mxu0 %v3703
      %6388 = vmatmul.mubr.bf16.gmra.mrb[0].mxu0 %v3702
      %v6389 = vpop.f32.mrb[0].mxu0
      %v6390 = vadd.f32 %v5845, %v6389
      %v6391 = vpop.f32.mrb[0].mxu0
      %v6392 = vpop.f32.mrb[0].mxu0
      %v6393 = vadd.f32 %v5848, %v6392
      %v6394 = vpop.f32.mrb[0].mxu0
      %6395 = vmatprep.mubr.bf16.mxu0 %v3711
      %6396 = vmatmul.mubr.bf16.gmra.mrb[0].mxu0 %v3710
      %v6397 = vpop.f32.mrb[0].mxu0
      %v6398 = vadd.f32 %v5853, %v6397
      %v6399 = vpop.f32.mrb[0].mxu0
      %v6400 = vpop.f32.mrb[0].mxu0
      %v6401 = vadd.f32 %v5856, %v6400
      %v6402 = vpop.f32.mrb[0].mxu0
      %6403 = vmatprep.mubr.bf16.mxu0 %v3719
      %6404 = vmatmul.mubr.bf16.gmra.mrb[0].mxu0 %v3718
      %v6405 = vpop.f32.mrb[0].mxu0
      %v6406 = vadd.f32 %v5861, %v6405
      %v6407 = vpop.f32.mrb[0].mxu0
      %v6408 = vpop.f32.mrb[0].mxu0
      %v6409 = vadd.f32 %v5864, %v6408
      %v6410 = vpop.f32.mrb[0].mxu0
      %6411 = vmatprep.mubr.bf16.mxu0 %v3727
      %6412 = vmatmul.mubr.bf16.gmra.mrb[0].mxu0 %v3726
      %v6413 = vpop.f32.mrb[0].mxu0
      %v6414 = vadd.f32 %v5869, %v6413
      %v6415 = vpop.f32.mrb[0].mxu0
      %v6416 = vpop.f32.mrb[0].mxu0
      %v6417 = vadd.f32 %v5872, %v6416
      %v6418 = vpop.f32.mrb[0].mxu0
      %6419 = vmatprep.mubr.bf16.mxu0 %v3735
      %6420 = vmatmul.mubr.bf16.gmra.mrb[0].mxu0 %v3734
      %v6421 = vpop.f32.mrb[0].mxu0
      %v6422 = vadd.f32 %v5877, %v6421
      %v6423 = vpop.f32.mrb[0].mxu0
      %v6424 = vpop.f32.mrb[0].mxu0
      %v6425 = vadd.f32 %v5880, %v6424
      %v6426 = vpop.f32.mrb[0].mxu0
      %6427 = vmatprep.mubr.bf16.mxu0 %v3743
      %6428 = vmatmul.mubr.bf16.gmra.mrb[0].mxu0 %v3742
      %v6429 = vpop.f32.mrb[0].mxu0
      %v6430 = vadd.f32 %v5885, %v6429
      %v6431 = vpop.f32.mrb[0].mxu0
      %v6432 = vpop.f32.mrb[0].mxu0
      %v6433 = vadd.f32 %v5888, %v6432
      %v6434 = vpop.f32.mrb[0].mxu0
      %6435 = vmatprep.mubr.bf16.mxu0 %v3751
      %6436 = vmatmul.mubr.bf16.gmra.mrb[0].mxu0 %v3750
      %v6437 = vpop.f32.mrb[0].mxu0
      %v6438 = vadd.f32 %v5893, %v6437
      %v6439 = vpop.f32.mrb[0].mxu0
      %v6440 = vpop.f32.mrb[0].mxu0
      %v6441 = vadd.f32 %v5896, %v6440
      %v6442 = vpop.f32.mrb[0].mxu0
      %6443 = vmatprep.mubr.bf16.mxu0 %v3759
      %6444 = vmatmul.mubr.bf16.gmra.mrb[0].mxu0 %v3758
      %v6445 = vpop.f32.mrb[0].mxu0
      %v6446 = vadd.f32 %v5901, %v6445
      %v6447 = vpop.f32.mrb[0].mxu0
      %v6448 = vpop.f32.mrb[0].mxu0
      %v6449 = vadd.f32 %v5904, %v6448
      %v6450 = vpop.f32.mrb[0].mxu0
      %6451 = vmatprep.mubr.bf16.mxu0 %v3767
      %6452 = vmatmul.mubr.bf16.gmra.mrb[0].mxu0 %v3766
      %v6453 = vpop.f32.mrb[0].mxu0
      %v6454 = vadd.f32 %v5909, %v6453
      %v6455 = vpop.f32.mrb[0].mxu0
      %v6456 = vpop.f32.mrb[0].mxu0
      %v6457 = vadd.f32 %v5912, %v6456
      %v6458 = vpop.f32.mrb[0].mxu0
      %6459 = vmatprep.mubr.bf16.mxu0 %v3775
      %6460 = vmatmul.mubr.bf16.gmra.mrb[0].mxu0 %v3774
      %v6461 = vpop.f32.mrb[0].mxu0
      %v6462 = vadd.f32 %v5917, %v6461
      %v6463 = vpop.f32.mrb[0].mxu0
      %v6464 = vpop.f32.mrb[0].mxu0
      %v6465 = vadd.f32 %v5920, %v6464
      %v6466 = vpop.f32.mrb[0].mxu0
      %6467 = vmatprep.mubr.bf16.mxu0 %v3783
      %6468 = vmatmul.mubr.bf16.gmra.mrb[0].mxu0 %v3782
      %v6469 = vpop.f32.mrb[0].mxu0
      %v6470 = vadd.f32 %v5925, %v6469
      %v6471 = vpop.f32.mrb[0].mxu0
      %v6472 = vpop.f32.mrb[0].mxu0
      %v6473 = vadd.f32 %v5928, %v6472
      %v6474 = vpop.f32.mrb[0].mxu0
      %6475 = vmatprep.mubr.bf16.mxu0 %v3791
      %6476 = vmatmul.mubr.bf16.gmra.mrb[0].mxu0 %v3790
      %v6477 = vpop.f32.mrb[0].mxu0
      %v6478 = vadd.f32 %v5933, %v6477
      %v6479 = vpop.f32.mrb[0].mxu0
      %v6480 = vpop.f32.mrb[0].mxu0
      %v6481 = vadd.f32 %v5936, %v6480
      %v6482 = vpop.f32.mrb[0].mxu0
      %6483 = vmatprep.mubr.bf16.mxu0 %v3799
      %6484 = vmatmul.mubr.bf16.gmra.mrb[0].mxu0 %v3798
      %v6485 = vpop.f32.mrb[0].mxu0
      %v6486 = vadd.f32 %v5941, %v6485
      %v6487 = vpop.f32.mrb[0].mxu0
      %v6488 = vpop.f32.mrb[0].mxu0
      %v6489 = vadd.f32 %v5944, %v6488
      %v6490 = vpop.f32.mrb[0].mxu0
      %6491 = vmatprep.mubr.bf16.mxu0 %v3807
      %6492 = vmatmul.mubr.bf16.gmra.mrb[0].mxu0 %v3806
      %v6493 = vpop.f32.mrb[0].mxu0
      %v6494 = vadd.f32 %v5949, %v6493
      %v6495 = vpop.f32.mrb[0].mxu0
      %v6496 = vpop.f32.mrb[0].mxu0
      %v6497 = vadd.f32 %v5952, %v6496
      %v6498 = vpop.f32.mrb[0].mxu0
      %6499 = vmatprep.mubr.bf16.mxu0 %v3815
      %6500 = vmatmul.mubr.bf16.gmra.mrb[0].mxu0 %v3814
      %v6501 = vpop.f32.mrb[0].mxu0
      %v6502 = vadd.f32 %v5957, %v6501
      %v6503 = vpop.f32.mrb[0].mxu0
      %v6504 = vpop.f32.mrb[0].mxu0
      %v6505 = vadd.f32 %v5960, %v6504
      %v6506 = vpop.f32.mrb[0].mxu0
      %6507 = vmatprep.mubr.bf16.mxu0 %v3823
      %6508 = vmatmul.mubr.bf16.gmra.mrb[0].mxu0 %v3822
      %v6509 = vpop.f32.mrb[0].mxu0
      %v6510 = vadd.f32 %v5965, %v6509
      %v6511 = vpop.f32.mrb[0].mxu0
      %v6512 = vpop.f32.mrb[0].mxu0
      %v6513 = vadd.f32 %v5968, %v6512
      %v6514 = vpop.f32.mrb[0].mxu0
      %6515 = vmatprep.mubr.bf16.mxu0 %v3831
      %6516 = vmatmul.mubr.bf16.gmra.mrb[0].mxu0 %v3830
      %v6517 = vpop.f32.mrb[0].mxu0
      %v6518 = vadd.f32 %v5973, %v6517
      %v6519 = vpop.f32.mrb[0].mxu0
      %v6520 = vpop.f32.mrb[0].mxu0
      %v6521 = vadd.f32 %v5976, %v6520
      %v6522 = vpop.f32.mrb[0].mxu0
      %6523 = vmatprep.mubr.bf16.mxu0 %v3839
      %6524 = vmatmul.mubr.bf16.gmra.mrb[0].mxu0 %v3838
      %v6525 = vpop.f32.mrb[0].mxu0
      %v6526 = vadd.f32 %v5981, %v6525
      %v6527 = vpop.f32.mrb[0].mxu0
      %v6528 = vpop.f32.mrb[0].mxu0
      %v6529 = vadd.f32 %v5984, %v6528
      %v6530 = vpop.f32.mrb[0].mxu0
      %6531 = vmatprep.mubr.bf16.mxu0 %v3847
      %6532 = vmatmul.mubr.bf16.gmra.mrb[0].mxu0 %v3846
      %v6533 = vpop.f32.mrb[0].mxu0
      %v6534 = vadd.f32 %v5989, %v6533
      %v6535 = vpop.f32.mrb[0].mxu0
      %v6536 = vpop.f32.mrb[0].mxu0
      %v6537 = vadd.f32 %v5992, %v6536
      %v6538 = vpop.f32.mrb[0].mxu0
      %6539 = vmatprep.mubr.bf16.mxu0 %v3855
      %6540 = vmatmul.mubr.bf16.gmra.mrb[0].mxu0 %v3854
      %v6541 = vpop.f32.mrb[0].mxu0
      %v6542 = vadd.f32 %v5997, %v6541
      %v6543 = vpop.f32.mrb[0].mxu0
      %v6544 = vpop.f32.mrb[0].mxu0
      %v6545 = vadd.f32 %v6000, %v6544
      %v6546 = vpop.f32.mrb[0].mxu0
      %6547 = vmatprep.mubr.bf16.mxu0 %v3863
      %6548 = vmatmul.mubr.bf16.gmra.mrb[0].mxu0 %v3862
      %v6549 = vpop.f32.mrb[0].mxu0
      %v6550 = vadd.f32 %v6005, %v6549
      %v6551 = vpop.f32.mrb[0].mxu0
      %v6552 = vpop.f32.mrb[0].mxu0
      %v6553 = vadd.f32 %v6008, %v6552
      %v6554 = vpop.f32.mrb[0].mxu0
      %6555 = vmatprep.mubr.bf16.mxu0 %v3871
      %6556 = vmatmul.mubr.bf16.gmra.mrb[0].mxu0 %v3870
      %v6557 = vpop.f32.mrb[0].mxu0
      %v6558 = vadd.f32 %v6013, %v6557
      %v6559 = vpop.f32.mrb[0].mxu0
      %v6560 = vpop.f32.mrb[0].mxu0
      %v6561 = vadd.f32 %v6016, %v6560
      %v6562 = vpop.f32.mrb[0].mxu0
      %6563 = vmatprep.mubr.bf16.mxu0 %v3879
      %6564 = vmatmul.mubr.bf16.gmra.mrb[0].mxu0 %v3878
      %v6565 = vpop.f32.mrb[0].mxu0
      %v6566 = vadd.f32 %v6021, %v6565
      %v6567 = vpop.f32.mrb[0].mxu0
      %v6568 = vpop.f32.mrb[0].mxu0
      %v6569 = vadd.f32 %v6024, %v6568
      %v6570 = vpop.f32.mrb[0].mxu0
      %6571 = vmatprep.mubr.bf16.mxu0 %v3887
      %6572 = vmatmul.mubr.bf16.gmra.mrb[0].mxu0 %v3886
      %v6573 = vpop.f32.mrb[0].mxu0
      %v6574 = vadd.f32 %v6029, %v6573
      %v6575 = vpop.f32.mrb[0].mxu0
      %v6576 = vpop.f32.mrb[0].mxu0
      %v6577 = vadd.f32 %v6032, %v6576
      %v6578 = vpop.f32.mrb[0].mxu0
      %6579 = vmatprep.mubr.bf16.mxu0 %v3895
      %6580 = vmatmul.mubr.bf16.gmra.mrb[0].mxu0 %v3894
      %v6581 = vpop.f32.mrb[0].mxu0
      %v6582 = vadd.f32 %v6037, %v6581
      %v6583 = vpop.f32.mrb[0].mxu0
      %v6584 = vpop.f32.mrb[0].mxu0
      %v6585 = vadd.f32 %v6040, %v6584
      %v6586 = vpop.f32.mrb[0].mxu0
      %6587 = vmatprep.mubr.bf16.mxu0 %v3903
      %6588 = vmatmul.mubr.bf16.gmra.mrb[0].mxu0 %v3902
      %v6589 = vpop.f32.mrb[0].mxu0
      %v6590 = vadd.f32 %v6045, %v6589
      %v6591 = vpop.f32.mrb[0].mxu0
      %v6592 = vpop.f32.mrb[0].mxu0
      %v6593 = vadd.f32 %v6048, %v6592
      %v6594 = vpop.f32.mrb[0].mxu0
      %6595 = vmatprep.mubr.bf16.mxu0 %v3911
      %6596 = vmatmul.mubr.bf16.gmra.mrb[0].mxu0 %v3910
      %v6597 = vpop.f32.mrb[0].mxu0
      %v6598 = vadd.f32 %v6053, %v6597
      %v6599 = vpop.f32.mrb[0].mxu0
      %v6600 = vpop.f32.mrb[0].mxu0
      %v6601 = vadd.f32 %v6056, %v6600
      %v6602 = vpop.f32.mrb[0].mxu0
      %6603 = vmatprep.mubr.bf16.mxu0 %v3919
      %6604 = vmatmul.mubr.bf16.gmra.mrb[0].mxu0 %v3918
      %v6605 = vpop.f32.mrb[0].mxu0
      %v6606 = vadd.f32 %v6061, %v6605
      %v6607 = vpop.f32.mrb[0].mxu0
      %v6608 = vpop.f32.mrb[0].mxu0
      %v6609 = vadd.f32 %v6064, %v6608
      %v6610 = vpop.f32.mrb[0].mxu0
      %6611 = vmatprep.mubr.bf16.mxu0 %v3927
      %6612 = vmatmul.mubr.bf16.gmra.mrb[0].mxu0 %v3926
      %v6613 = vpop.f32.mrb[0].mxu0
      %v6614 = vadd.f32 %v6069, %v6613
      %v6615 = vpop.f32.mrb[0].mxu0
      %v6616 = vpop.f32.mrb[0].mxu0
      %v6617 = vadd.f32 %v6072, %v6616
      %v6618 = vpop.f32.mrb[0].mxu0
      %6619 = vmatprep.mubr.bf16.mxu0 %v3935
      %6620 = vmatmul.mubr.bf16.gmra.mrb[0].mxu0 %v3934
      %v6621 = vpop.f32.mrb[0].mxu0
      %v6622 = vadd.f32 %v6077, %v6621
      %v6623 = vpop.f32.mrb[0].mxu0
      %v6624 = vpop.f32.mrb[0].mxu0
      %v6625 = vadd.f32 %v6080, %v6624
      %v6626 = vpop.f32.mrb[0].mxu0
      %6627 = vmatprep.mubr.bf16.mxu0 %v3943
      %6628 = vmatmul.mubr.bf16.gmra.mrb[0].mxu0 %v3942
      %v6629 = vpop.f32.mrb[0].mxu0
      %v6630 = vadd.f32 %v6085, %v6629
      %v6631 = vpop.f32.mrb[0].mxu0
      %v6632 = vpop.f32.mrb[0].mxu0
      %v6633 = vadd.f32 %v6088, %v6632
      %v6634 = vpop.f32.mrb[0].mxu0
      %6635 = vmatprep.mubr.bf16.mxu0 %v3951
      %6636 = vmatmul.mubr.bf16.gmra.mrb[0].mxu0 %v3950
      %v6637 = vpop.f32.mrb[0].mxu0
      %v6638 = vadd.f32 %v6093, %v6637
      %v6639 = vpop.f32.mrb[0].mxu0
      %v6640 = vpop.f32.mrb[0].mxu0
      %v6641 = vadd.f32 %v6096, %v6640
      %v6642 = vpop.f32.mrb[0].mxu0
      %6643 = vmatprep.mubr.bf16.mxu0 %v3959
      %6644 = vmatmul.mubr.bf16.gmra.mrb[0].mxu0 %v3958
      %v6645 = vpop.f32.mrb[0].mxu0
      %v6646 = vadd.f32 %v6101, %v6645
      %v6647 = vpop.f32.mrb[0].mxu0
      %v6648 = vpop.f32.mrb[0].mxu0
      %v6649 = vadd.f32 %v6104, %v6648
      %v6650 = vpop.f32.mrb[0].mxu0
      %6651 = vmatprep.mubr.bf16.mxu0 %v3967
      %6652 = vmatmul.mubr.bf16.gmra.mrb[0].mxu0 %v3966
      %v6653 = vpop.f32.mrb[0].mxu0
      %v6654 = vadd.f32 %v6109, %v6653
      %v6655 = vpop.f32.mrb[0].mxu0
      %v6656 = vpop.f32.mrb[0].mxu0
      %v6657 = vadd.f32 %v6112, %v6656
      %v6658 = vpop.f32.mrb[0].mxu0
      %6659 = vmatprep.mubr.bf16.mxu0 %v3975
      %6660 = vmatmul.mubr.bf16.gmra.mrb[0].mxu0 %v3974
      %v6661 = vpop.f32.mrb[0].mxu0
      %v6662 = vadd.f32 %v6117, %v6661
      %v6663 = vpop.f32.mrb[0].mxu0
      %v6664 = vpop.f32.mrb[0].mxu0
      %v6665 = vadd.f32 %v6120, %v6664
      %v6666 = vpop.f32.mrb[0].mxu0
      %6667 = vmatprep.mubr.bf16.mxu0 %v3983
      %6668 = vmatmul.mubr.bf16.gmra.mrb[0].mxu0 %v3982
      %v6669 = vpop.f32.mrb[0].mxu0
      %v6670 = vadd.f32 %v6125, %v6669
      %v6671 = vpop.f32.mrb[0].mxu0
      %v6672 = vpop.f32.mrb[0].mxu0
      %v6673 = vadd.f32 %v6128, %v6672
      %v6674 = vpop.f32.mrb[0].mxu0
      %6675 = vmatprep.mubr.bf16.mxu0 %v3991
      %6676 = vmatmul.mubr.bf16.gmra.mrb[0].mxu0 %v3990
      %v6677 = vpop.f32.mrb[0].mxu0
      %v6678 = vadd.f32 %v6133, %v6677
      %v6679 = vpop.f32.mrb[0].mxu0
      %v6680 = vpop.f32.mrb[0].mxu0
      %v6681 = vadd.f32 %v6136, %v6680
      %v6682 = vpop.f32.mrb[0].mxu0
      %6683 = vmatprep.mubr.bf16.mxu0 %v3999
      %6684 = vmatmul.mubr.bf16.gmra.mrb[0].mxu0 %v3998
      %v6685 = vpop.f32.mrb[0].mxu0
      %v6686 = vadd.f32 %v6141, %v6685
      %v6687 = vpop.f32.mrb[0].mxu0
      %v6688 = vpop.f32.mrb[0].mxu0
      %v6689 = vadd.f32 %v6144, %v6688
      %v6690 = vpop.f32.mrb[0].mxu0
      %6691 = vmatprep.mubr.bf16.mxu0 %v4007
      %6692 = vmatmul.mubr.bf16.gmra.mrb[0].mxu0 %v4006
      %v6693 = vpop.f32.mrb[0].mxu0
      %v6694 = vadd.f32 %v6149, %v6693
      %v6695 = vpop.f32.mrb[0].mxu0
      %v6696 = vpop.f32.mrb[0].mxu0
      %v6697 = vadd.f32 %v6152, %v6696
      %v6698 = vpop.f32.mrb[0].mxu0
      %6699 = vmatprep.mubr.bf16.mxu0 %v4015
      %6700 = vmatmul.mubr.bf16.gmra.mrb[0].mxu0 %v4014
      %v6701 = vpop.f32.mrb[0].mxu0
      %v6702 = vadd.f32 %v6157, %v6701
      %v6703 = vpop.f32.mrb[0].mxu0
      %v6704 = vpop.f32.mrb[0].mxu0
      %v6705 = vadd.f32 %v6160, %v6704
      %v6706 = vpop.f32.mrb[0].mxu0
      %6707 = vmatprep.mubr.bf16.mxu0 %v4023
      %6708 = vmatmul.mubr.bf16.gmra.mrb[0].mxu0 %v4022
      %v6709 = vpop.f32.mrb[0].mxu0
      %v6710 = vadd.f32 %v6165, %v6709
      %v6711 = vpop.f32.mrb[0].mxu0
      %v6712 = vpop.f32.mrb[0].mxu0
      %v6713 = vadd.f32 %v6168, %v6712
      %v6714 = vpop.f32.mrb[0].mxu0
      %6715 = vmatprep.mubr.bf16.mxu0 %v4031
      %6716 = vmatmul.mubr.bf16.gmra.mrb[0].mxu0 %v4030
      %v6717 = vpop.f32.mrb[0].mxu0
      %v6718 = vadd.f32 %v6173, %v6717
      %v6719 = vpop.f32.mrb[0].mxu0
      %v6720 = vpop.f32.mrb[0].mxu0
      %v6721 = vadd.f32 %v6176, %v6720
      %v6722 = vpop.f32.mrb[0].mxu0
      %6723 = vmatprep.mubr.bf16.mxu0 %v4039
      %6724 = vmatmul.mubr.bf16.gmra.mrb[0].mxu0 %v4038
      %v6725 = vpop.f32.mrb[0].mxu0
      %v6726 = vadd.f32 %v6181, %v6725
      %v6727 = vpop.f32.mrb[0].mxu0
      %v6728 = vpop.f32.mrb[0].mxu0
      %v6729 = vadd.f32 %v6184, %v6728
      %v6730 = vpop.f32.mrb[0].mxu0
      %6731 = vmatprep.mubr.bf16.mxu0 %v4047
      %6732 = vmatmul.mubr.bf16.gmra.mrb[0].mxu0 %v4046
      %v6733 = vpop.f32.mrb[0].mxu0
      %v6734 = vadd.f32 %v6189, %v6733
      %v6735 = vpop.f32.mrb[0].mxu0
      %v6736 = vpop.f32.mrb[0].mxu0
      %v6737 = vadd.f32 %v6192, %v6736
      %v6738 = vpop.f32.mrb[0].mxu0
      %6739 = vmatprep.mubr.bf16.mxu0 %v4055
      %6740 = vmatmul.mubr.bf16.gmra.mrb[0].mxu0 %v4054
      %v6741 = vpop.f32.mrb[0].mxu0
      %v6742 = vadd.f32 %v6197, %v6741
      %v6743 = vpop.f32.mrb[0].mxu0
      %v6744 = vpop.f32.mrb[0].mxu0
      %v6745 = vadd.f32 %v6200, %v6744
      %v6746 = vpop.f32.mrb[0].mxu0
      %6747 = vmatprep.mubr.bf16.mxu0 %v4063
      %6748 = vmatmul.mubr.bf16.gmra.mrb[0].mxu0 %v4062
      %v6749 = vpop.f32.mrb[0].mxu0
      %v6750 = vadd.f32 %v6205, %v6749
      %v6751 = vpop.f32.mrb[0].mxu0
      %v6752 = vpop.f32.mrb[0].mxu0
      %v6753 = vadd.f32 %v6208, %v6752
      %v6754 = vpop.f32.mrb[0].mxu0
      %6755 = vmatprep.mubr.bf16.mxu0 %v4071
      %6756 = vmatmul.mubr.bf16.gmra.mrb[0].mxu0 %v4070
      %v6757 = vpop.f32.mrb[0].mxu0
      %v6758 = vadd.f32 %v6213, %v6757
      %v6759 = vpop.f32.mrb[0].mxu0
      %v6760 = vpop.f32.mrb[0].mxu0
      %v6761 = vadd.f32 %v6216, %v6760
      %v6762 = vpop.f32.mrb[0].mxu0
      %6763 = vmatprep.mubr.bf16.mxu0 %v4079
      %6764 = vmatmul.mubr.bf16.gmra.mrb[0].mxu0 %v4078
      %v6765 = vpop.f32.mrb[0].mxu0
      %v6766 = vadd.f32 %v6221, %v6765
      %v6767 = vpop.f32.mrb[0].mxu0
      %v6768 = vpop.f32.mrb[0].mxu0
      %v6769 = vadd.f32 %v6224, %v6768
      %v6770 = vpop.f32.mrb[0].mxu0
      %6771 = vmatprep.mubr.bf16.mxu0 %v4087
      %6772 = vmatmul.mubr.bf16.gmra.mrb[0].mxu0 %v4086
      %v6773 = vpop.f32.mrb[0].mxu0
      %v6774 = vadd.f32 %v6229, %v6773
      %v6775 = vpop.f32.mrb[0].mxu0
      %v6776 = vpop.f32.mrb[0].mxu0
      %v6777 = vadd.f32 %v6232, %v6776
      %v6778 = vpop.f32.mrb[0].mxu0
      %6779 = vmatprep.mubr.bf16.mxu0 %v4095
      %6780 = vmatmul.mubr.bf16.gmra.mrb[0].mxu0 %v4094
      %v6781 = vpop.f32.mrb[0].mxu0
      %v6782 = vadd.f32 %v6237, %v6781
      %v6783 = vpop.f32.mrb[0].mxu0
      %v6784 = vpop.f32.mrb[0].mxu0
      %v6785 = vadd.f32 %v6240, %v6784
      %v6786 = vpop.f32.mrb[0].mxu0
      %6787 = vmatprep.mubr.bf16.mxu0 %v4103
      %6788 = vmatmul.mubr.bf16.gmra.mrb[0].mxu0 %v4102
      %v6789 = vpop.f32.mrb[0].mxu0
      %v6790 = vadd.f32 %v6245, %v6789
      %v6791 = vpop.f32.mrb[0].mxu0
      %v6792 = vpop.f32.mrb[0].mxu0
      %v6793 = vadd.f32 %v6248, %v6792
      %v6794 = vpop.f32.mrb[0].mxu0
      %6795 = vmatprep.mubr.bf16.mxu0 %v4111
      %6796 = vmatmul.mubr.bf16.gmra.mrb[0].mxu0 %v4110
      %v6797 = vpop.f32.mrb[0].mxu0
      %v6798 = vadd.f32 %v6253, %v6797
      %v6799 = vpop.f32.mrb[0].mxu0
      %v6800 = vpop.f32.mrb[0].mxu0
      %v6801 = vadd.f32 %v6256, %v6800
      %v6802 = vpop.f32.mrb[0].mxu0
      %6803 = vdwg.mxu0
      %v6804 = vmax.f32 %v6294, 0.0
      %v6805 = vmax.f32 %v6297, 0.0
      %v6806 = vmax.f32 %v6302, 0.0
      %v6807 = vmax.f32 %v6305, 0.0
      %v6808 = vmax.f32 %v6310, 0.0
      %v6809 = vmax.f32 %v6313, 0.0
      %v6810 = vmax.f32 %v6318, 0.0
      %v6811 = vmax.f32 %v6321, 0.0
      %v6812 = vmax.f32 %v6326, 0.0
      %v6813 = vmax.f32 %v6329, 0.0
      %v6814 = vmax.f32 %v6334, 0.0
      %v6815 = vmax.f32 %v6337, 0.0
      %v6816 = vmax.f32 %v6342, 0.0
      %v6817 = vmax.f32 %v6345, 0.0
      %v6818 = vmax.f32 %v6350, 0.0
      %v6819 = vmax.f32 %v6353, 0.0
      %v6820 = vmax.f32 %v6358, 0.0
      %v6821 = vmax.f32 %v6361, 0.0
      %v6822 = vmax.f32 %v6366, 0.0
      %v6823 = vmax.f32 %v6369, 0.0
      %v6824 = vmax.f32 %v6374, 0.0
      %v6825 = vmax.f32 %v6377, 0.0
      %v6826 = vmax.f32 %v6382, 0.0
      %v6827 = vmax.f32 %v6385, 0.0
      %v6828 = vmax.f32 %v6390, 0.0
      %v6829 = vmax.f32 %v6393, 0.0
      %v6830 = vmax.f32 %v6398, 0.0
      %v6831 = vmax.f32 %v6401, 0.0
      %v6832 = vmax.f32 %v6406, 0.0
      %v6833 = vmax.f32 %v6409, 0.0
      %v6834 = vmax.f32 %v6414, 0.0
      %v6835 = vmax.f32 %v6417, 0.0
      %v6836 = vmax.f32 %v6422, 0.0
      %v6837 = vmax.f32 %v6425, 0.0
      %v6838 = vmax.f32 %v6430, 0.0
      %v6839 = vmax.f32 %v6433, 0.0
      %v6840 = vmax.f32 %v6438, 0.0
      %v6841 = vmax.f32 %v6441, 0.0
      %v6842 = vmax.f32 %v6446, 0.0
      %v6843 = vmax.f32 %v6449, 0.0
      %v6844 = vmax.f32 %v6454, 0.0
      %v6845 = vmax.f32 %v6457, 0.0
      %v6846 = vmax.f32 %v6462, 0.0
      %v6847 = vmax.f32 %v6465, 0.0
      %v6848 = vmax.f32 %v6470, 0.0
      %v6849 = vmax.f32 %v6473, 0.0
      %v6850 = vmax.f32 %v6478, 0.0
      %v6851 = vmax.f32 %v6481, 0.0
      %v6852 = vmax.f32 %v6486, 0.0
      %v6853 = vmax.f32 %v6489, 0.0
      %v6854 = vmax.f32 %v6494, 0.0
      %v6855 = vmax.f32 %v6497, 0.0
      %v6856 = vmax.f32 %v6502, 0.0
      %v6857 = vmax.f32 %v6505, 0.0
      %v6858 = vmax.f32 %v6510, 0.0
      %v6859 = vmax.f32 %v6513, 0.0
      %v6860 = vmax.f32 %v6518, 0.0
      %v6861 = vmax.f32 %v6521, 0.0
      %v6862 = vmax.f32 %v6526, 0.0
      %v6863 = vmax.f32 %v6529, 0.0
      %v6864 = vmax.f32 %v6534, 0.0
      %v6865 = vmax.f32 %v6537, 0.0
      %v6866 = vmax.f32 %v6542, 0.0
      %v6867 = vmax.f32 %v6545, 0.0
      %v6868 = vmax.f32 %v6550, 0.0
      %v6869 = vmax.f32 %v6553, 0.0
      %v6870 = vmax.f32 %v6558, 0.0
      %v6871 = vmax.f32 %v6561, 0.0
      %v6872 = vmax.f32 %v6566, 0.0
      %v6873 = vmax.f32 %v6569, 0.0
      %v6874 = vmax.f32 %v6574, 0.0
      %v6875 = vmax.f32 %v6577, 0.0
      %v6876 = vmax.f32 %v6582, 0.0
      %v6877 = vmax.f32 %v6585, 0.0
      %v6878 = vmax.f32 %v6590, 0.0
      %v6879 = vmax.f32 %v6593, 0.0
      %v6880 = vmax.f32 %v6598, 0.0
      %v6881 = vmax.f32 %v6601, 0.0
      %v6882 = vmax.f32 %v6606, 0.0
      %v6883 = vmax.f32 %v6609, 0.0
      %v6884 = vmax.f32 %v6614, 0.0
      %v6885 = vmax.f32 %v6617, 0.0
      %v6886 = vmax.f32 %v6622, 0.0
      %v6887 = vmax.f32 %v6625, 0.0
      %v6888 = vmax.f32 %v6630, 0.0
      %v6889 = vmax.f32 %v6633, 0.0
      %v6890 = vmax.f32 %v6638, 0.0
      %v6891 = vmax.f32 %v6641, 0.0
      %v6892 = vmax.f32 %v6646, 0.0
      %v6893 = vmax.f32 %v6649, 0.0
      %v6894 = vmax.f32 %v6654, 0.0
      %v6895 = vmax.f32 %v6657, 0.0
      %v6896 = vmax.f32 %v6662, 0.0
      %v6897 = vmax.f32 %v6665, 0.0
      %v6898 = vmax.f32 %v6670, 0.0
      %v6899 = vmax.f32 %v6673, 0.0
      %v6900 = vmax.f32 %v6678, 0.0
      %v6901 = vmax.f32 %v6681, 0.0
      %v6902 = vmax.f32 %v6686, 0.0
      %v6903 = vmax.f32 %v6689, 0.0
      %v6904 = vmax.f32 %v6694, 0.0
      %v6905 = vmax.f32 %v6697, 0.0
      %v6906 = vmax.f32 %v6702, 0.0
      %v6907 = vmax.f32 %v6705, 0.0
      %v6908 = vmax.f32 %v6710, 0.0
      %v6909 = vmax.f32 %v6713, 0.0
      %v6910 = vmax.f32 %v6718, 0.0
      %v6911 = vmax.f32 %v6721, 0.0
      %v6912 = vmax.f32 %v6726, 0.0
      %v6913 = vmax.f32 %v6729, 0.0
      %v6914 = vmax.f32 %v6734, 0.0
      %v6915 = vmax.f32 %v6737, 0.0
      %v6916 = vmax.f32 %v6742, 0.0
      %v6917 = vmax.f32 %v6745, 0.0
      %v6918 = vmax.f32 %v6750, 0.0
      %v6919 = vmax.f32 %v6753, 0.0
      %v6920 = vmax.f32 %v6758, 0.0
      %v6921 = vmax.f32 %v6761, 0.0
      %v6922 = vmax.f32 %v6766, 0.0
      %v6923 = vmax.f32 %v6769, 0.0
      %v6924 = vmax.f32 %v6774, 0.0
      %v6925 = vmax.f32 %v6777, 0.0
      %v6926 = vmax.f32 %v6782, 0.0
      %v6927 = vmax.f32 %v6785, 0.0
      %v6928 = vmax.f32 %v6790, 0.0
      %v6929 = vmax.f32 %v6793, 0.0
      %v6930 = vmax.f32 %v6798, 0.0
      %v6931 = vmax.f32 %v6801, 0.0
      %v6932 = vpack.c.bf16 %v6805, %v6804
      %v6933 = vpack.c.bf16 %v6807, %v6806
      %v6934 = vpack.c.bf16 %v6809, %v6808
      %v6935 = vpack.c.bf16 %v6811, %v6810
      %v6936 = vpack.c.bf16 %v6813, %v6812
      %v6937 = vpack.c.bf16 %v6815, %v6814
      %v6938 = vpack.c.bf16 %v6817, %v6816
      %v6939 = vpack.c.bf16 %v6819, %v6818
      %v6940 = vpack.c.bf16 %v6821, %v6820
      %v6941 = vpack.c.bf16 %v6823, %v6822
      %v6942 = vpack.c.bf16 %v6825, %v6824
      %v6943 = vpack.c.bf16 %v6827, %v6826
      %v6944 = vpack.c.bf16 %v6829, %v6828
      %v6945 = vpack.c.bf16 %v6831, %v6830
      %v6946 = vpack.c.bf16 %v6833, %v6832
      %v6947 = vpack.c.bf16 %v6835, %v6834
      %v6948 = vpack.c.bf16 %v6837, %v6836
      %v6949 = vpack.c.bf16 %v6839, %v6838
      %v6950 = vpack.c.bf16 %v6841, %v6840
      %v6951 = vpack.c.bf16 %v6843, %v6842
      %v6952 = vpack.c.bf16 %v6845, %v6844
      %v6953 = vpack.c.bf16 %v6847, %v6846
      %v6954 = vpack.c.bf16 %v6849, %v6848
      %v6955 = vpack.c.bf16 %v6851, %v6850
      %v6956 = vpack.c.bf16 %v6853, %v6852
      %v6957 = vpack.c.bf16 %v6855, %v6854
      %v6958 = vpack.c.bf16 %v6857, %v6856
      %v6959 = vpack.c.bf16 %v6859, %v6858
      %v6960 = vpack.c.bf16 %v6861, %v6860
      %v6961 = vpack.c.bf16 %v6863, %v6862
      %v6962 = vpack.c.bf16 %v6865, %v6864
      %v6963 = vpack.c.bf16 %v6867, %v6866
      %v6964 = vpack.c.bf16 %v6869, %v6868
      %v6965 = vpack.c.bf16 %v6871, %v6870
      %v6966 = vpack.c.bf16 %v6873, %v6872
      %v6967 = vpack.c.bf16 %v6875, %v6874
      %v6968 = vpack.c.bf16 %v6877, %v6876
      %v6969 = vpack.c.bf16 %v6879, %v6878
      %v6970 = vpack.c.bf16 %v6881, %v6880
      %v6971 = vpack.c.bf16 %v6883, %v6882
      %v6972 = vpack.c.bf16 %v6885, %v6884
      %v6973 = vpack.c.bf16 %v6887, %v6886
      %v6974 = vpack.c.bf16 %v6889, %v6888
      %v6975 = vpack.c.bf16 %v6891, %v6890
      %v6976 = vpack.c.bf16 %v6893, %v6892
      %v6977 = vpack.c.bf16 %v6895, %v6894
      %v6978 = vpack.c.bf16 %v6897, %v6896
      %v6979 = vpack.c.bf16 %v6899, %v6898
      %v6980 = vpack.c.bf16 %v6901, %v6900
      %v6981 = vpack.c.bf16 %v6903, %v6902
      %v6982 = vpack.c.bf16 %v6905, %v6904
      %v6983 = vpack.c.bf16 %v6907, %v6906
      %v6984 = vpack.c.bf16 %v6909, %v6908
      %v6985 = vpack.c.bf16 %v6911, %v6910
      %v6986 = vpack.c.bf16 %v6913, %v6912
      %v6987 = vpack.c.bf16 %v6915, %v6914
      %v6988 = vpack.c.bf16 %v6917, %v6916
      %v6989 = vpack.c.bf16 %v6919, %v6918
      %v6990 = vpack.c.bf16 %v6921, %v6920
      %v6991 = vpack.c.bf16 %v6923, %v6922
      %v6992 = vpack.c.bf16 %v6925, %v6924
      %v6993 = vpack.c.bf16 %v6927, %v6926
      %v6994 = vpack.c.bf16 %v6929, %v6928
      %v6995 = vpack.c.bf16 %v6931, %v6930
      %v7000 = vunpack.c.l.b16 %v281
      %v7001 = vunpack.c.l.b16 %v282
      %v7002 = vunpack.c.l.b16 %v283
      %v7003 = vunpack.c.l.b16 %v284
      %v7004 = vpack.c.b16 %v7001, %v7000
      %v7005 = vpack.c.b16 %v7003, %v7002
      %vm7008 = vcmask 261120
      %v7010 = vsel %vm7008, %v6932, 0
      %v7013 = vsel %vm7008, %v6933, 0
      %v7016 = vsel %vm7008, %v6934, 0
      %v7019 = vsel %vm7008, %v6935, 0
      %v7022 = vsel %vm7008, %v6936, 0
      %v7025 = vsel %vm7008, %v6937, 0
      %v7028 = vsel %vm7008, %v6938, 0
      %v7031 = vsel %vm7008, %v6939, 0
      %v7034 = vsel %vm7008, %v6940, 0
      %v7037 = vsel %vm7008, %v6941, 0
      %v7040 = vsel %vm7008, %v6942, 0
      %v7043 = vsel %vm7008, %v6943, 0
      %v7046 = vsel %vm7008, %v6944, 0
      %v7049 = vsel %vm7008, %v6945, 0
      %v7052 = vsel %vm7008, %v6946, 0
      %v7055 = vsel %vm7008, %v6947, 0
      %v7058 = vsel %vm7008, %v6948, 0
      %v7061 = vsel %vm7008, %v6949, 0
      %v7064 = vsel %vm7008, %v6950, 0
      %v7067 = vsel %vm7008, %v6951, 0
      %v7070 = vsel %vm7008, %v6952, 0
      %v7073 = vsel %vm7008, %v6953, 0
      %v7076 = vsel %vm7008, %v6954, 0
      %v7079 = vsel %vm7008, %v6955, 0
      %v7082 = vsel %vm7008, %v6956, 0
      %v7085 = vsel %vm7008, %v6957, 0
      %v7088 = vsel %vm7008, %v6958, 0
      %v7091 = vsel %vm7008, %v6959, 0
      %v7094 = vsel %vm7008, %v6960, 0
      %v7097 = vsel %vm7008, %v6961, 0
      %v7100 = vsel %vm7008, %v6962, 0
      %v7103 = vsel %vm7008, %v6963, 0
      %v7106 = vsel %vm7008, %v6964, 0
      %v7109 = vsel %vm7008, %v6965, 0
      %v7112 = vsel %vm7008, %v6966, 0
      %v7115 = vsel %vm7008, %v6967, 0
      %v7118 = vsel %vm7008, %v6968, 0
      %v7121 = vsel %vm7008, %v6969, 0
      %v7124 = vsel %vm7008, %v6970, 0
      %v7127 = vsel %vm7008, %v6971, 0
      %v7130 = vsel %vm7008, %v6972, 0
      %v7133 = vsel %vm7008, %v6973, 0
      %v7136 = vsel %vm7008, %v6974, 0
      %v7139 = vsel %vm7008, %v6975, 0
      %v7142 = vsel %vm7008, %v6976, 0
      %v7145 = vsel %vm7008, %v6977, 0
      %v7148 = vsel %vm7008, %v6978, 0
      %v7151 = vsel %vm7008, %v6979, 0
      %v7154 = vsel %vm7008, %v6980, 0
      %v7157 = vsel %vm7008, %v6981, 0
      %v7160 = vsel %vm7008, %v6982, 0
      %v7163 = vsel %vm7008, %v6983, 0
      %v7166 = vsel %vm7008, %v6984, 0
      %v7169 = vsel %vm7008, %v6985, 0
      %v7172 = vsel %vm7008, %v6986, 0
      %v7175 = vsel %vm7008, %v6987, 0
      %v7178 = vsel %vm7008, %v6988, 0
      %v7181 = vsel %vm7008, %v6989, 0
      %v7184 = vsel %vm7008, %v6990, 0
      %v7187 = vsel %vm7008, %v6991, 0
      %v7190 = vsel %vm7008, %v6992, 0
      %v7193 = vsel %vm7008, %v6993, 0
      %v7196 = vsel %vm7008, %v6994, 0
      %v7199 = vsel %vm7008, %v6995, 0
      %7201 = vmatprep.subr.bf16.mxu0 0
      %7202 = vmatpush1.bf16.msra.mxu0 %v7004
      %7203 = vmatprep.subr.bf16.mxu0 0
      %7204 = vmatpush1.bf16.msra.mxu0 %v7005
      %7205 = vmatprep.subr.bf16.mxu0 0
      %7206 = vmatpush1.bf16.msra.mxu0 0
      %7207 = vmatprep.subr.bf16.mxu0 0
      %7208 = vmatpush1.bf16.msra.mxu0 0
      %7209 = vmatprep.subr.bf16.mxu0 0
      %7210 = vmatpush1.bf16.msra.mxu0 0
      %7211 = vmatprep.subr.bf16.mxu0 0
      %7212 = vmatpush1.bf16.msra.mxu0 0
      %7213 = vmatprep.subr.bf16.mxu0 0
      %7214 = vmatpush1.bf16.msra.mxu0 0
      %7215 = vmatprep.subr.bf16.mxu0 0
      %7216 = vmatpush1.bf16.msra.mxu0 0
      %7217 = vmatprep.subr.bf16.mxu0 0
      %7218 = vmatpush1.bf16.msra.mxu0 0
      %7219 = vmatprep.subr.bf16.mxu0 0
      %7220 = vmatpush1.bf16.msra.mxu0 0
      %7221 = vmatprep.subr.bf16.mxu0 0
      %7222 = vmatpush1.bf16.msra.mxu0 0
      %7223 = vmatprep.subr.bf16.mxu0 0
      %7224 = vmatpush1.bf16.msra.mxu0 0
      %7225 = vmatprep.subr.bf16.mxu0 0
      %7226 = vmatpush1.bf16.msra.mxu0 0
      %7227 = vmatprep.subr.bf16.mxu0 0
      %7228 = vmatpush1.bf16.msra.mxu0 0
      %7229 = vmatprep.subr.bf16.mxu0 0
      %7230 = vmatpush1.bf16.msra.mxu0 0
      %7231 = vmatprep.subr.bf16.mxu0 0
      %7232 = vmatpush1.bf16.msra.mxu0 0
      %7233 = vmatprep.mubr.bf16.mxu0 0
      %7234 = vmatmul.mubr.bf16.gmra.mrb[0].mxu0 %v7010
      %v7235 = vpop.f32.mrb[0].mxu0
      %v7236 = vadd.f32 0.0, %v7235
      %v7237 = vpop.f32.mrb[0].mxu0
      %v7238 = vpop.f32.mrb[0].mxu0
      %v7239 = vadd.f32 0.0, %v7238
      %v7240 = vpop.f32.mrb[0].mxu0
      %7241 = vmatprep.mubr.bf16.mxu0 0
      %7242 = vmatmul.mubr.bf16.gmra.mrb[0].mxu0 %v7013
      %v7243 = vpop.f32.mrb[0].mxu0
      %v7244 = vadd.f32 0.0, %v7243
      %v7245 = vpop.f32.mrb[0].mxu0
      %v7246 = vpop.f32.mrb[0].mxu0
      %v7247 = vadd.f32 0.0, %v7246
      %v7248 = vpop.f32.mrb[0].mxu0
      %7249 = vmatprep.mubr.bf16.mxu0 0
      %7250 = vmatmul.mubr.bf16.gmra.mrb[0].mxu0 %v7016
      %v7251 = vpop.f32.mrb[0].mxu0
      %v7252 = vadd.f32 0.0, %v7251
      %v7253 = vpop.f32.mrb[0].mxu0
      %v7254 = vpop.f32.mrb[0].mxu0
      %v7255 = vadd.f32 0.0, %v7254
      %v7256 = vpop.f32.mrb[0].mxu0
      %7257 = vmatprep.mubr.bf16.mxu0 0
      %7258 = vmatmul.mubr.bf16.gmra.mrb[0].mxu0 %v7019
      %v7259 = vpop.f32.mrb[0].mxu0
      %v7260 = vadd.f32 0.0, %v7259
      %v7261 = vpop.f32.mrb[0].mxu0
      %v7262 = vpop.f32.mrb[0].mxu0
      %v7263 = vadd.f32 0.0, %v7262
      %v7264 = vpop.f32.mrb[0].mxu0
      %7265 = vmatprep.mubr.bf16.mxu0 0
      %7266 = vmatmul.mubr.bf16.gmra.mrb[0].mxu0 %v7022
      %v7267 = vpop.f32.mrb[0].mxu0
      %v7268 = vadd.f32 0.0, %v7267
      %v7269 = vpop.f32.mrb[0].mxu0
      %v7270 = vpop.f32.mrb[0].mxu0
      %v7271 = vadd.f32 0.0, %v7270
      %v7272 = vpop.f32.mrb[0].mxu0
      %7273 = vmatprep.mubr.bf16.mxu0 0
      %7274 = vmatmul.mubr.bf16.gmra.mrb[0].mxu0 %v7025
      %v7275 = vpop.f32.mrb[0].mxu0
      %v7276 = vadd.f32 0.0, %v7275
      %v7277 = vpop.f32.mrb[0].mxu0
      %v7278 = vpop.f32.mrb[0].mxu0
      %v7279 = vadd.f32 0.0, %v7278
      %v7280 = vpop.f32.mrb[0].mxu0
      %7281 = vmatprep.mubr.bf16.mxu0 0
      %7282 = vmatmul.mubr.bf16.gmra.mrb[0].mxu0 %v7028
      %v7283 = vpop.f32.mrb[0].mxu0
      %v7284 = vadd.f32 0.0, %v7283
      %v7285 = vpop.f32.mrb[0].mxu0
      %v7286 = vpop.f32.mrb[0].mxu0
      %v7287 = vadd.f32 0.0, %v7286
      %v7288 = vpop.f32.mrb[0].mxu0
      %7289 = vmatprep.mubr.bf16.mxu0 0
      %7290 = vmatmul.mubr.bf16.gmra.mrb[0].mxu0 %v7031
      %v7291 = vpop.f32.mrb[0].mxu0
      %v7292 = vadd.f32 0.0, %v7291
      %v7293 = vpop.f32.mrb[0].mxu0
      %v7294 = vpop.f32.mrb[0].mxu0
      %v7295 = vadd.f32 0.0, %v7294
      %v7296 = vpop.f32.mrb[0].mxu0
      %7297 = vmatprep.mubr.bf16.mxu0 0
      %7298 = vmatmul.mubr.bf16.gmra.mrb[0].mxu0 %v7034
      %v7299 = vpop.f32.mrb[0].mxu0
      %v7300 = vadd.f32 0.0, %v7299
      %v7301 = vpop.f32.mrb[0].mxu0
      %v7302 = vpop.f32.mrb[0].mxu0
      %v7303 = vadd.f32 0.0, %v7302
      %v7304 = vpop.f32.mrb[0].mxu0
      %7305 = vmatprep.mubr.bf16.mxu0 0
      %7306 = vmatmul.mubr.bf16.gmra.mrb[0].mxu0 %v7037
      %v7307 = vpop.f32.mrb[0].mxu0
      %v7308 = vadd.f32 0.0, %v7307
      %v7309 = vpop.f32.mrb[0].mxu0
      %v7310 = vpop.f32.mrb[0].mxu0
      %v7311 = vadd.f32 0.0, %v7310
      %v7312 = vpop.f32.mrb[0].mxu0
      %7313 = vmatprep.mubr.bf16.mxu0 0
      %7314 = vmatmul.mubr.bf16.gmra.mrb[0].mxu0 %v7040
      %v7315 = vpop.f32.mrb[0].mxu0
      %v7316 = vadd.f32 0.0, %v7315
      %v7317 = vpop.f32.mrb[0].mxu0
      %v7318 = vpop.f32.mrb[0].mxu0
      %v7319 = vadd.f32 0.0, %v7318
      %v7320 = vpop.f32.mrb[0].mxu0
      %7321 = vmatprep.mubr.bf16.mxu0 0
      %7322 = vmatmul.mubr.bf16.gmra.mrb[0].mxu0 %v7043
      %v7323 = vpop.f32.mrb[0].mxu0
      %v7324 = vadd.f32 0.0, %v7323
      %v7325 = vpop.f32.mrb[0].mxu0
      %v7326 = vpop.f32.mrb[0].mxu0
      %v7327 = vadd.f32 0.0, %v7326
      %v7328 = vpop.f32.mrb[0].mxu0
      %7329 = vmatprep.mubr.bf16.mxu0 0
      %7330 = vmatmul.mubr.bf16.gmra.mrb[0].mxu0 %v7046
      %v7331 = vpop.f32.mrb[0].mxu0
      %v7332 = vadd.f32 0.0, %v7331
      %v7333 = vpop.f32.mrb[0].mxu0
      %v7334 = vpop.f32.mrb[0].mxu0
      %v7335 = vadd.f32 0.0, %v7334
      %v7336 = vpop.f32.mrb[0].mxu0
      %7337 = vmatprep.mubr.bf16.mxu0 0
      %7338 = vmatmul.mubr.bf16.gmra.mrb[0].mxu0 %v7049
      %v7339 = vpop.f32.mrb[0].mxu0
      %v7340 = vadd.f32 0.0, %v7339
      %v7341 = vpop.f32.mrb[0].mxu0
      %v7342 = vpop.f32.mrb[0].mxu0
      %v7343 = vadd.f32 0.0, %v7342
      %v7344 = vpop.f32.mrb[0].mxu0
      %7345 = vmatprep.mubr.bf16.mxu0 0
      %7346 = vmatmul.mubr.bf16.gmra.mrb[0].mxu0 %v7052
      %v7347 = vpop.f32.mrb[0].mxu0
      %v7348 = vadd.f32 0.0, %v7347
      %v7349 = vpop.f32.mrb[0].mxu0
      %v7350 = vpop.f32.mrb[0].mxu0
      %v7351 = vadd.f32 0.0, %v7350
      %v7352 = vpop.f32.mrb[0].mxu0
      %7353 = vmatprep.mubr.bf16.mxu0 0
      %7354 = vmatmul.mubr.bf16.gmra.mrb[0].mxu0 %v7055
      %v7355 = vpop.f32.mrb[0].mxu0
      %v7356 = vadd.f32 0.0, %v7355
      %v7357 = vpop.f32.mrb[0].mxu0
      %v7358 = vpop.f32.mrb[0].mxu0
      %v7359 = vadd.f32 0.0, %v7358
      %v7360 = vpop.f32.mrb[0].mxu0
      %7361 = vmatprep.mubr.bf16.mxu0 0
      %7362 = vmatmul.mubr.bf16.gmra.mrb[0].mxu0 %v7058
      %v7363 = vpop.f32.mrb[0].mxu0
      %v7364 = vadd.f32 0.0, %v7363
      %v7365 = vpop.f32.mrb[0].mxu0
      %v7366 = vpop.f32.mrb[0].mxu0
      %v7367 = vadd.f32 0.0, %v7366
      %v7368 = vpop.f32.mrb[0].mxu0
      %7369 = vmatprep.mubr.bf16.mxu0 0
      %7370 = vmatmul.mubr.bf16.gmra.mrb[0].mxu0 %v7061
      %v7371 = vpop.f32.mrb[0].mxu0
      %v7372 = vadd.f32 0.0, %v7371
      %v7373 = vpop.f32.mrb[0].mxu0
      %v7374 = vpop.f32.mrb[0].mxu0
      %v7375 = vadd.f32 0.0, %v7374
      %v7376 = vpop.f32.mrb[0].mxu0
      %7377 = vmatprep.mubr.bf16.mxu0 0
      %7378 = vmatmul.mubr.bf16.gmra.mrb[0].mxu0 %v7064
      %v7379 = vpop.f32.mrb[0].mxu0
      %v7380 = vadd.f32 0.0, %v7379
      %v7381 = vpop.f32.mrb[0].mxu0
      %v7382 = vpop.f32.mrb[0].mxu0
      %v7383 = vadd.f32 0.0, %v7382
      %v7384 = vpop.f32.mrb[0].mxu0
      %7385 = vmatprep.mubr.bf16.mxu0 0
      %7386 = vmatmul.mubr.bf16.gmra.mrb[0].mxu0 %v7067
      %v7387 = vpop.f32.mrb[0].mxu0
      %v7388 = vadd.f32 0.0, %v7387
      %v7389 = vpop.f32.mrb[0].mxu0
      %v7390 = vpop.f32.mrb[0].mxu0
      %v7391 = vadd.f32 0.0, %v7390
      %v7392 = vpop.f32.mrb[0].mxu0
      %7393 = vmatprep.mubr.bf16.mxu0 0
      %7394 = vmatmul.mubr.bf16.gmra.mrb[0].mxu0 %v7070
      %v7395 = vpop.f32.mrb[0].mxu0
      %v7396 = vadd.f32 0.0, %v7395
      %v7397 = vpop.f32.mrb[0].mxu0
      %v7398 = vpop.f32.mrb[0].mxu0
      %v7399 = vadd.f32 0.0, %v7398
      %v7400 = vpop.f32.mrb[0].mxu0
      %7401 = vmatprep.mubr.bf16.mxu0 0
      %7402 = vmatmul.mubr.bf16.gmra.mrb[0].mxu0 %v7073
      %v7403 = vpop.f32.mrb[0].mxu0
      %v7404 = vadd.f32 0.0, %v7403
      %v7405 = vpop.f32.mrb[0].mxu0
      %v7406 = vpop.f32.mrb[0].mxu0
      %v7407 = vadd.f32 0.0, %v7406
      %v7408 = vpop.f32.mrb[0].mxu0
      %7409 = vmatprep.mubr.bf16.mxu0 0
      %7410 = vmatmul.mubr.bf16.gmra.mrb[0].mxu0 %v7076
      %v7411 = vpop.f32.mrb[0].mxu0
      %v7412 = vadd.f32 0.0, %v7411
      %v7413 = vpop.f32.mrb[0].mxu0
      %v7414 = vpop.f32.mrb[0].mxu0
      %v7415 = vadd.f32 0.0, %v7414
      %v7416 = vpop.f32.mrb[0].mxu0
      %7417 = vmatprep.mubr.bf16.mxu0 0
      %7418 = vmatmul.mubr.bf16.gmra.mrb[0].mxu0 %v7079
      %v7419 = vpop.f32.mrb[0].mxu0
      %v7420 = vadd.f32 0.0, %v7419
      %v7421 = vpop.f32.mrb[0].mxu0
      %v7422 = vpop.f32.mrb[0].mxu0
      %v7423 = vadd.f32 0.0, %v7422
      %v7424 = vpop.f32.mrb[0].mxu0
      %7425 = vmatprep.mubr.bf16.mxu0 0
      %7426 = vmatmul.mubr.bf16.gmra.mrb[0].mxu0 %v7082
      %v7427 = vpop.f32.mrb[0].mxu0
      %v7428 = vadd.f32 0.0, %v7427
      %v7429 = vpop.f32.mrb[0].mxu0
      %v7430 = vpop.f32.mrb[0].mxu0
      %v7431 = vadd.f32 0.0, %v7430
      %v7432 = vpop.f32.mrb[0].mxu0
      %7433 = vmatprep.mubr.bf16.mxu0 0
      %7434 = vmatmul.mubr.bf16.gmra.mrb[0].mxu0 %v7085
      %v7435 = vpop.f32.mrb[0].mxu0
      %v7436 = vadd.f32 0.0, %v7435
      %v7437 = vpop.f32.mrb[0].mxu0
      %v7438 = vpop.f32.mrb[0].mxu0
      %v7439 = vadd.f32 0.0, %v7438
      %v7440 = vpop.f32.mrb[0].mxu0
      %7441 = vmatprep.mubr.bf16.mxu0 0
      %7442 = vmatmul.mubr.bf16.gmra.mrb[0].mxu0 %v7088
      %v7443 = vpop.f32.mrb[0].mxu0
      %v7444 = vadd.f32 0.0, %v7443
      %v7445 = vpop.f32.mrb[0].mxu0
      %v7446 = vpop.f32.mrb[0].mxu0
      %v7447 = vadd.f32 0.0, %v7446
      %v7448 = vpop.f32.mrb[0].mxu0
      %7449 = vmatprep.mubr.bf16.mxu0 0
      %7450 = vmatmul.mubr.bf16.gmra.mrb[0].mxu0 %v7091
      %v7451 = vpop.f32.mrb[0].mxu0
      %v7452 = vadd.f32 0.0, %v7451
      %v7453 = vpop.f32.mrb[0].mxu0
      %v7454 = vpop.f32.mrb[0].mxu0
      %v7455 = vadd.f32 0.0, %v7454
      %v7456 = vpop.f32.mrb[0].mxu0
      %7457 = vmatprep.mubr.bf16.mxu0 0
      %7458 = vmatmul.mubr.bf16.gmra.mrb[0].mxu0 %v7094
      %v7459 = vpop.f32.mrb[0].mxu0
      %v7460 = vadd.f32 0.0, %v7459
      %v7461 = vpop.f32.mrb[0].mxu0
      %v7462 = vpop.f32.mrb[0].mxu0
      %v7463 = vadd.f32 0.0, %v7462
      %v7464 = vpop.f32.mrb[0].mxu0
      %7465 = vmatprep.mubr.bf16.mxu0 0
      %7466 = vmatmul.mubr.bf16.gmra.mrb[0].mxu0 %v7097
      %v7467 = vpop.f32.mrb[0].mxu0
      %v7468 = vadd.f32 0.0, %v7467
      %v7469 = vpop.f32.mrb[0].mxu0
      %v7470 = vpop.f32.mrb[0].mxu0
      %v7471 = vadd.f32 0.0, %v7470
      %v7472 = vpop.f32.mrb[0].mxu0
      %7473 = vmatprep.mubr.bf16.mxu0 0
      %7474 = vmatmul.mubr.bf16.gmra.mrb[0].mxu0 %v7100
      %v7475 = vpop.f32.mrb[0].mxu0
      %v7476 = vadd.f32 0.0, %v7475
      %v7477 = vpop.f32.mrb[0].mxu0
      %v7478 = vpop.f32.mrb[0].mxu0
      %v7479 = vadd.f32 0.0, %v7478
      %v7480 = vpop.f32.mrb[0].mxu0
      %7481 = vmatprep.mubr.bf16.mxu0 0
      %7482 = vmatmul.mubr.bf16.gmra.mrb[0].mxu0 %v7103
      %v7483 = vpop.f32.mrb[0].mxu0
      %v7484 = vadd.f32 0.0, %v7483
      %v7485 = vpop.f32.mrb[0].mxu0
      %v7486 = vpop.f32.mrb[0].mxu0
      %v7487 = vadd.f32 0.0, %v7486
      %v7488 = vpop.f32.mrb[0].mxu0
      %7489 = vmatprep.mubr.bf16.mxu0 0
      %7490 = vmatmul.mubr.bf16.gmra.mrb[0].mxu0 %v7106
      %v7491 = vpop.f32.mrb[0].mxu0
      %v7492 = vadd.f32 0.0, %v7491
      %v7493 = vpop.f32.mrb[0].mxu0
      %v7494 = vpop.f32.mrb[0].mxu0
      %v7495 = vadd.f32 0.0, %v7494
      %v7496 = vpop.f32.mrb[0].mxu0
      %7497 = vmatprep.mubr.bf16.mxu0 0
      %7498 = vmatmul.mubr.bf16.gmra.mrb[0].mxu0 %v7109
      %v7499 = vpop.f32.mrb[0].mxu0
      %v7500 = vadd.f32 0.0, %v7499
      %v7501 = vpop.f32.mrb[0].mxu0
      %v7502 = vpop.f32.mrb[0].mxu0
      %v7503 = vadd.f32 0.0, %v7502
      %v7504 = vpop.f32.mrb[0].mxu0
      %7505 = vmatprep.mubr.bf16.mxu0 0
      %7506 = vmatmul.mubr.bf16.gmra.mrb[0].mxu0 %v7112
      %v7507 = vpop.f32.mrb[0].mxu0
      %v7508 = vadd.f32 0.0, %v7507
      %v7509 = vpop.f32.mrb[0].mxu0
      %v7510 = vpop.f32.mrb[0].mxu0
      %v7511 = vadd.f32 0.0, %v7510
      %v7512 = vpop.f32.mrb[0].mxu0
      %7513 = vmatprep.mubr.bf16.mxu0 0
      %7514 = vmatmul.mubr.bf16.gmra.mrb[0].mxu0 %v7115
      %v7515 = vpop.f32.mrb[0].mxu0
      %v7516 = vadd.f32 0.0, %v7515
      %v7517 = vpop.f32.mrb[0].mxu0
      %v7518 = vpop.f32.mrb[0].mxu0
      %v7519 = vadd.f32 0.0, %v7518
      %v7520 = vpop.f32.mrb[0].mxu0
      %7521 = vmatprep.mubr.bf16.mxu0 0
      %7522 = vmatmul.mubr.bf16.gmra.mrb[0].mxu0 %v7118
      %v7523 = vpop.f32.mrb[0].mxu0
      %v7524 = vadd.f32 0.0, %v7523
      %v7525 = vpop.f32.mrb[0].mxu0
      %v7526 = vpop.f32.mrb[0].mxu0
      %v7527 = vadd.f32 0.0, %v7526
      %v7528 = vpop.f32.mrb[0].mxu0
      %7529 = vmatprep.mubr.bf16.mxu0 0
      %7530 = vmatmul.mubr.bf16.gmra.mrb[0].mxu0 %v7121
      %v7531 = vpop.f32.mrb[0].mxu0
      %v7532 = vadd.f32 0.0, %v7531
      %v7533 = vpop.f32.mrb[0].mxu0
      %v7534 = vpop.f32.mrb[0].mxu0
      %v7535 = vadd.f32 0.0, %v7534
      %v7536 = vpop.f32.mrb[0].mxu0
      %7537 = vmatprep.mubr.bf16.mxu0 0
      %7538 = vmatmul.mubr.bf16.gmra.mrb[0].mxu0 %v7124
      %v7539 = vpop.f32.mrb[0].mxu0
      %v7540 = vadd.f32 0.0, %v7539
      %v7541 = vpop.f32.mrb[0].mxu0
      %v7542 = vpop.f32.mrb[0].mxu0
      %v7543 = vadd.f32 0.0, %v7542
      %v7544 = vpop.f32.mrb[0].mxu0
      %7545 = vmatprep.mubr.bf16.mxu0 0
      %7546 = vmatmul.mubr.bf16.gmra.mrb[0].mxu0 %v7127
      %v7547 = vpop.f32.mrb[0].mxu0
      %v7548 = vadd.f32 0.0, %v7547
      %v7549 = vpop.f32.mrb[0].mxu0
      %v7550 = vpop.f32.mrb[0].mxu0
      %v7551 = vadd.f32 0.0, %v7550
      %v7552 = vpop.f32.mrb[0].mxu0
      %7553 = vmatprep.mubr.bf16.mxu0 0
      %7554 = vmatmul.mubr.bf16.gmra.mrb[0].mxu0 %v7130
      %v7555 = vpop.f32.mrb[0].mxu0
      %v7556 = vadd.f32 0.0, %v7555
      %v7557 = vpop.f32.mrb[0].mxu0
      %v7558 = vpop.f32.mrb[0].mxu0
      %v7559 = vadd.f32 0.0, %v7558
      %v7560 = vpop.f32.mrb[0].mxu0
      %7561 = vmatprep.mubr.bf16.mxu0 0
      %7562 = vmatmul.mubr.bf16.gmra.mrb[0].mxu0 %v7133
      %v7563 = vpop.f32.mrb[0].mxu0
      %v7564 = vadd.f32 0.0, %v7563
      %v7565 = vpop.f32.mrb[0].mxu0
      %v7566 = vpop.f32.mrb[0].mxu0
      %v7567 = vadd.f32 0.0, %v7566
      %v7568 = vpop.f32.mrb[0].mxu0
      %7569 = vmatprep.mubr.bf16.mxu0 0
      %7570 = vmatmul.mubr.bf16.gmra.mrb[0].mxu0 %v7136
      %v7571 = vpop.f32.mrb[0].mxu0
      %v7572 = vadd.f32 0.0, %v7571
      %v7573 = vpop.f32.mrb[0].mxu0
      %v7574 = vpop.f32.mrb[0].mxu0
      %v7575 = vadd.f32 0.0, %v7574
      %v7576 = vpop.f32.mrb[0].mxu0
      %7577 = vmatprep.mubr.bf16.mxu0 0
      %7578 = vmatmul.mubr.bf16.gmra.mrb[0].mxu0 %v7139
      %v7579 = vpop.f32.mrb[0].mxu0
      %v7580 = vadd.f32 0.0, %v7579
      %v7581 = vpop.f32.mrb[0].mxu0
      %v7582 = vpop.f32.mrb[0].mxu0
      %v7583 = vadd.f32 0.0, %v7582
      %v7584 = vpop.f32.mrb[0].mxu0
      %7585 = vmatprep.mubr.bf16.mxu0 0
      %7586 = vmatmul.mubr.bf16.gmra.mrb[0].mxu0 %v7142
      %v7587 = vpop.f32.mrb[0].mxu0
      %v7588 = vadd.f32 0.0, %v7587
      %v7589 = vpop.f32.mrb[0].mxu0
      %v7590 = vpop.f32.mrb[0].mxu0
      %v7591 = vadd.f32 0.0, %v7590
      %v7592 = vpop.f32.mrb[0].mxu0
      %7593 = vmatprep.mubr.bf16.mxu0 0
      %7594 = vmatmul.mubr.bf16.gmra.mrb[0].mxu0 %v7145
      %v7595 = vpop.f32.mrb[0].mxu0
      %v7596 = vadd.f32 0.0, %v7595
      %v7597 = vpop.f32.mrb[0].mxu0
      %v7598 = vpop.f32.mrb[0].mxu0
      %v7599 = vadd.f32 0.0, %v7598
      %v7600 = vpop.f32.mrb[0].mxu0
      %7601 = vmatprep.mubr.bf16.mxu0 0
      %7602 = vmatmul.mubr.bf16.gmra.mrb[0].mxu0 %v7148
      %v7603 = vpop.f32.mrb[0].mxu0
      %v7604 = vadd.f32 0.0, %v7603
      %v7605 = vpop.f32.mrb[0].mxu0
      %v7606 = vpop.f32.mrb[0].mxu0
      %v7607 = vadd.f32 0.0, %v7606
      %v7608 = vpop.f32.mrb[0].mxu0
      %7609 = vmatprep.mubr.bf16.mxu0 0
      %7610 = vmatmul.mubr.bf16.gmra.mrb[0].mxu0 %v7151
      %v7611 = vpop.f32.mrb[0].mxu0
      %v7612 = vadd.f32 0.0, %v7611
      %v7613 = vpop.f32.mrb[0].mxu0
      %v7614 = vpop.f32.mrb[0].mxu0
      %v7615 = vadd.f32 0.0, %v7614
      %v7616 = vpop.f32.mrb[0].mxu0
      %7617 = vmatprep.mubr.bf16.mxu0 0
      %7618 = vmatmul.mubr.bf16.gmra.mrb[0].mxu0 %v7154
      %v7619 = vpop.f32.mrb[0].mxu0
      %v7620 = vadd.f32 0.0, %v7619
      %v7621 = vpop.f32.mrb[0].mxu0
      %v7622 = vpop.f32.mrb[0].mxu0
      %v7623 = vadd.f32 0.0, %v7622
      %v7624 = vpop.f32.mrb[0].mxu0
      %7625 = vmatprep.mubr.bf16.mxu0 0
      %7626 = vmatmul.mubr.bf16.gmra.mrb[0].mxu0 %v7157
      %v7627 = vpop.f32.mrb[0].mxu0
      %v7628 = vadd.f32 0.0, %v7627
      %v7629 = vpop.f32.mrb[0].mxu0
      %v7630 = vpop.f32.mrb[0].mxu0
      %v7631 = vadd.f32 0.0, %v7630
      %v7632 = vpop.f32.mrb[0].mxu0
      %7633 = vmatprep.mubr.bf16.mxu0 0
      %7634 = vmatmul.mubr.bf16.gmra.mrb[0].mxu0 %v7160
      %v7635 = vpop.f32.mrb[0].mxu0
      %v7636 = vadd.f32 0.0, %v7635
      %v7637 = vpop.f32.mrb[0].mxu0
      %v7638 = vpop.f32.mrb[0].mxu0
      %v7639 = vadd.f32 0.0, %v7638
      %v7640 = vpop.f32.mrb[0].mxu0
      %7641 = vmatprep.mubr.bf16.mxu0 0
      %7642 = vmatmul.mubr.bf16.gmra.mrb[0].mxu0 %v7163
      %v7643 = vpop.f32.mrb[0].mxu0
      %v7644 = vadd.f32 0.0, %v7643
      %v7645 = vpop.f32.mrb[0].mxu0
      %v7646 = vpop.f32.mrb[0].mxu0
      %v7647 = vadd.f32 0.0, %v7646
      %v7648 = vpop.f32.mrb[0].mxu0
      %7649 = vmatprep.mubr.bf16.mxu0 0
      %7650 = vmatmul.mubr.bf16.gmra.mrb[0].mxu0 %v7166
      %v7651 = vpop.f32.mrb[0].mxu0
      %v7652 = vadd.f32 0.0, %v7651
      %v7653 = vpop.f32.mrb[0].mxu0
      %v7654 = vpop.f32.mrb[0].mxu0
      %v7655 = vadd.f32 0.0, %v7654
      %v7656 = vpop.f32.mrb[0].mxu0
      %7657 = vmatprep.mubr.bf16.mxu0 0
      %7658 = vmatmul.mubr.bf16.gmra.mrb[0].mxu0 %v7169
      %v7659 = vpop.f32.mrb[0].mxu0
      %v7660 = vadd.f32 0.0, %v7659
      %v7661 = vpop.f32.mrb[0].mxu0
      %v7662 = vpop.f32.mrb[0].mxu0
      %v7663 = vadd.f32 0.0, %v7662
      %v7664 = vpop.f32.mrb[0].mxu0
      %7665 = vmatprep.mubr.bf16.mxu0 0
      %7666 = vmatmul.mubr.bf16.gmra.mrb[0].mxu0 %v7172
      %v7667 = vpop.f32.mrb[0].mxu0
      %v7668 = vadd.f32 0.0, %v7667
      %v7669 = vpop.f32.mrb[0].mxu0
      %v7670 = vpop.f32.mrb[0].mxu0
      %v7671 = vadd.f32 0.0, %v7670
      %v7672 = vpop.f32.mrb[0].mxu0
      %7673 = vmatprep.mubr.bf16.mxu0 0
      %7674 = vmatmul.mubr.bf16.gmra.mrb[0].mxu0 %v7175
      %v7675 = vpop.f32.mrb[0].mxu0
      %v7676 = vadd.f32 0.0, %v7675
      %v7677 = vpop.f32.mrb[0].mxu0
      %v7678 = vpop.f32.mrb[0].mxu0
      %v7679 = vadd.f32 0.0, %v7678
      %v7680 = vpop.f32.mrb[0].mxu0
      %7681 = vmatprep.mubr.bf16.mxu0 0
      %7682 = vmatmul.mubr.bf16.gmra.mrb[0].mxu0 %v7178
      %v7683 = vpop.f32.mrb[0].mxu0
      %v7684 = vadd.f32 0.0, %v7683
      %v7685 = vpop.f32.mrb[0].mxu0
      %v7686 = vpop.f32.mrb[0].mxu0
      %v7687 = vadd.f32 0.0, %v7686
      %v7688 = vpop.f32.mrb[0].mxu0
      %7689 = vmatprep.mubr.bf16.mxu0 0
      %7690 = vmatmul.mubr.bf16.gmra.mrb[0].mxu0 %v7181
      %v7691 = vpop.f32.mrb[0].mxu0
      %v7692 = vadd.f32 0.0, %v7691
      %v7693 = vpop.f32.mrb[0].mxu0
      %v7694 = vpop.f32.mrb[0].mxu0
      %v7695 = vadd.f32 0.0, %v7694
      %v7696 = vpop.f32.mrb[0].mxu0
      %7697 = vmatprep.mubr.bf16.mxu0 0
      %7698 = vmatmul.mubr.bf16.gmra.mrb[0].mxu0 %v7184
      %v7699 = vpop.f32.mrb[0].mxu0
      %v7700 = vadd.f32 0.0, %v7699
      %v7701 = vpop.f32.mrb[0].mxu0
      %v7702 = vpop.f32.mrb[0].mxu0
      %v7703 = vadd.f32 0.0, %v7702
      %v7704 = vpop.f32.mrb[0].mxu0
      %7705 = vmatprep.mubr.bf16.mxu0 0
      %7706 = vmatmul.mubr.bf16.gmra.mrb[0].mxu0 %v7187
      %v7707 = vpop.f32.mrb[0].mxu0
      %v7708 = vadd.f32 0.0, %v7707
      %v7709 = vpop.f32.mrb[0].mxu0
      %v7710 = vpop.f32.mrb[0].mxu0
      %v7711 = vadd.f32 0.0, %v7710
      %v7712 = vpop.f32.mrb[0].mxu0
      %7713 = vmatprep.mubr.bf16.mxu0 0
      %7714 = vmatmul.mubr.bf16.gmra.mrb[0].mxu0 %v7190
      %v7715 = vpop.f32.mrb[0].mxu0
      %v7716 = vadd.f32 0.0, %v7715
      %v7717 = vpop.f32.mrb[0].mxu0
      %v7718 = vpop.f32.mrb[0].mxu0
      %v7719 = vadd.f32 0.0, %v7718
      %v7720 = vpop.f32.mrb[0].mxu0
      %7721 = vmatprep.mubr.bf16.mxu0 0
      %7722 = vmatmul.mubr.bf16.gmra.mrb[0].mxu0 %v7193
      %v7723 = vpop.f32.mrb[0].mxu0
      %v7724 = vadd.f32 0.0, %v7723
      %v7725 = vpop.f32.mrb[0].mxu0
      %v7726 = vpop.f32.mrb[0].mxu0
      %v7727 = vadd.f32 0.0, %v7726
      %v7728 = vpop.f32.mrb[0].mxu0
      %7729 = vmatprep.mubr.bf16.mxu0 0
      %7730 = vmatmul.mubr.bf16.gmra.mrb[0].mxu0 %v7196
      %v7731 = vpop.f32.mrb[0].mxu0
      %v7732 = vadd.f32 0.0, %v7731
      %v7733 = vpop.f32.mrb[0].mxu0
      %v7734 = vpop.f32.mrb[0].mxu0
      %v7735 = vadd.f32 0.0, %v7734
      %v7736 = vpop.f32.mrb[0].mxu0
      %7737 = vmatprep.mubr.bf16.mxu0 0
      %7738 = vmatmul.mubr.bf16.gmra.mrb[0].mxu0 %v7199
      %v7739 = vpop.f32.mrb[0].mxu0
      %v7740 = vadd.f32 0.0, %v7739
      %v7741 = vpop.f32.mrb[0].mxu0
      %v7742 = vpop.f32.mrb[0].mxu0
      %v7743 = vadd.f32 0.0, %v7742
      %v7744 = vpop.f32.mrb[0].mxu0
      %7745 = vdwg.mxu0
      %v7746 = vpack.c.bf16 %v7239, %v7236
      %v7747 = vpack.c.bf16 %v7247, %v7244
      %v7748 = vpack.c.bf16 %v7255, %v7252
      %v7749 = vpack.c.bf16 %v7263, %v7260
      %v7750 = vpack.c.bf16 %v7271, %v7268
      %v7751 = vpack.c.bf16 %v7279, %v7276
      %v7752 = vpack.c.bf16 %v7287, %v7284
      %v7753 = vpack.c.bf16 %v7295, %v7292
      %v7754 = vpack.c.bf16 %v7303, %v7300
      %v7755 = vpack.c.bf16 %v7311, %v7308
      %v7756 = vpack.c.bf16 %v7319, %v7316
      %v7757 = vpack.c.bf16 %v7327, %v7324
      %v7758 = vpack.c.bf16 %v7335, %v7332
      %v7759 = vpack.c.bf16 %v7343, %v7340
      %v7760 = vpack.c.bf16 %v7351, %v7348
      %v7761 = vpack.c.bf16 %v7359, %v7356
      %v7762 = vpack.c.bf16 %v7367, %v7364
      %v7763 = vpack.c.bf16 %v7375, %v7372
      %v7764 = vpack.c.bf16 %v7383, %v7380
      %v7765 = vpack.c.bf16 %v7391, %v7388
      %v7766 = vpack.c.bf16 %v7399, %v7396
      %v7767 = vpack.c.bf16 %v7407, %v7404
      %v7768 = vpack.c.bf16 %v7415, %v7412
      %v7769 = vpack.c.bf16 %v7423, %v7420
      %v7770 = vpack.c.bf16 %v7431, %v7428
      %v7771 = vpack.c.bf16 %v7439, %v7436
      %v7772 = vpack.c.bf16 %v7447, %v7444
      %v7773 = vpack.c.bf16 %v7455, %v7452
      %v7774 = vpack.c.bf16 %v7463, %v7460
      %v7775 = vpack.c.bf16 %v7471, %v7468
      %v7776 = vpack.c.bf16 %v7479, %v7476
      %v7777 = vpack.c.bf16 %v7487, %v7484
      %v7778 = vpack.c.bf16 %v7495, %v7492
      %v7779 = vpack.c.bf16 %v7503, %v7500
      %v7780 = vpack.c.bf16 %v7511, %v7508
      %v7781 = vpack.c.bf16 %v7519, %v7516
      %v7782 = vpack.c.bf16 %v7527, %v7524
      %v7783 = vpack.c.bf16 %v7535, %v7532
      %v7784 = vpack.c.bf16 %v7543, %v7540
      %v7785 = vpack.c.bf16 %v7551, %v7548
      %v7786 = vpack.c.bf16 %v7559, %v7556
      %v7787 = vpack.c.bf16 %v7567, %v7564
      %v7788 = vpack.c.bf16 %v7575, %v7572
      %v7789 = vpack.c.bf16 %v7583, %v7580
      %v7790 = vpack.c.bf16 %v7591, %v7588
      %v7791 = vpack.c.bf16 %v7599, %v7596
      %v7792 = vpack.c.bf16 %v7607, %v7604
      %v7793 = vpack.c.bf16 %v7615, %v7612
      %v7794 = vpack.c.bf16 %v7623, %v7620
      %v7795 = vpack.c.bf16 %v7631, %v7628
      %v7796 = vpack.c.bf16 %v7639, %v7636
      %v7797 = vpack.c.bf16 %v7647, %v7644
      %v7798 = vpack.c.bf16 %v7655, %v7652
      %v7799 = vpack.c.bf16 %v7663, %v7660
      %v7800 = vpack.c.bf16 %v7671, %v7668
      %v7801 = vpack.c.bf16 %v7679, %v7676
      %v7802 = vpack.c.bf16 %v7687, %v7684
      %v7803 = vpack.c.bf16 %v7695, %v7692
      %v7804 = vpack.c.bf16 %v7703, %v7700
      %v7805 = vpack.c.bf16 %v7711, %v7708
      %v7806 = vpack.c.bf16 %v7719, %v7716
      %v7807 = vpack.c.bf16 %v7727, %v7724
      %v7808 = vpack.c.bf16 %v7735, %v7732
      %v7809 = vpack.c.bf16 %v7743, %v7740
      %v7810 = vlaneseq
      %v7811 = vshrl.u32 %v7810, 7
      %v7812 = vsub.s32 0, %v7811
      %v7813 = vrot.slane %v290, %v7812
      %7814 = vmatprep.subr.bf16.mxu0 0
      %7815 = vmatpush1.bf16.msra.mxu0 %v7746
      %7816 = vmatprep.subr.bf16.mxu0 0
      %7817 = vmatpush1.bf16.msra.mxu0 %v7747
      %7818 = vmatprep.subr.bf16.mxu0 0
      %7819 = vmatpush1.bf16.msra.mxu0 %v7748
      %7820 = vmatprep.subr.bf16.mxu0 0
      %7821 = vmatpush1.bf16.msra.mxu0 %v7749
      %7822 = vmatprep.subr.bf16.mxu0 0
      %7823 = vmatpush1.bf16.msra.mxu0 %v7750
      %7824 = vmatprep.subr.bf16.mxu0 0
      %7825 = vmatpush1.bf16.msra.mxu0 %v7751
      %7826 = vmatprep.subr.bf16.mxu0 0
      %7827 = vmatpush1.bf16.msra.mxu0 %v7752
      %7828 = vmatprep.subr.bf16.mxu0 0
      %7829 = vmatpush1.bf16.msra.mxu0 %v7753
      %7830 = vmatprep.subr.bf16.mxu0 0
      %7831 = vmatpush1.bf16.msra.mxu0 %v7754
      %7832 = vmatprep.subr.bf16.mxu0 0
      %7833 = vmatpush1.bf16.msra.mxu0 %v7755
      %7834 = vmatprep.subr.bf16.mxu0 0
      %7835 = vmatpush1.bf16.msra.mxu0 %v7756
      %7836 = vmatprep.subr.bf16.mxu0 0
      %7837 = vmatpush1.bf16.msra.mxu0 %v7757
      %7838 = vmatprep.subr.bf16.mxu0 0
      %7839 = vmatpush1.bf16.msra.mxu0 %v7758
      %7840 = vmatprep.subr.bf16.mxu0 0
      %7841 = vmatpush1.bf16.msra.mxu0 %v7759
      %7842 = vmatprep.subr.bf16.mxu0 0
      %7843 = vmatpush1.bf16.msra.mxu0 %v7760
      %7844 = vmatprep.subr.bf16.mxu0 0
      %7845 = vmatpush1.bf16.msra.mxu0 %v7761
      %7846 = vmatprep.mubr.bf16.mxu0 %v3601
      %7847 = vmatmul.mubr.bf16.gmra.mrb[0].mxu0 %v3600
      %v7848 = vpop.f32.mrb[0].mxu0
      %v7849 = vadd.f32 %v7813, %v7848
      %v7850 = vpop.f32.mrb[0].mxu0
      %v7851 = vpop.f32.mrb[0].mxu0
      %v7852 = vadd.f32 %v7813, %v7851
      %v7853 = vpop.f32.mrb[0].mxu0
      %7854 = vmatprep.mubr.bf16.mxu0 %v3609
      %7855 = vmatmul.mubr.bf16.gmra.mrb[0].mxu0 %v3608
      %v7856 = vpop.f32.mrb[0].mxu0
      %v7857 = vadd.f32 %v7813, %v7856
      %v7858 = vpop.f32.mrb[0].mxu0
      %v7859 = vpop.f32.mrb[0].mxu0
      %v7860 = vadd.f32 %v7813, %v7859
      %v7861 = vpop.f32.mrb[0].mxu0
      %7862 = vmatprep.mubr.bf16.mxu0 %v3617
      %7863 = vmatmul.mubr.bf16.gmra.mrb[0].mxu0 %v3616
      %v7864 = vpop.f32.mrb[0].mxu0
      %v7865 = vadd.f32 %v7813, %v7864
      %v7866 = vpop.f32.mrb[0].mxu0
      %v7867 = vpop.f32.mrb[0].mxu0
      %v7868 = vadd.f32 %v7813, %v7867
      %v7869 = vpop.f32.mrb[0].mxu0
      %7870 = vmatprep.mubr.bf16.mxu0 %v3625
      %7871 = vmatmul.mubr.bf16.gmra.mrb[0].mxu0 %v3624
      %v7872 = vpop.f32.mrb[0].mxu0
      %v7873 = vadd.f32 %v7813, %v7872
      %v7874 = vpop.f32.mrb[0].mxu0
      %v7875 = vpop.f32.mrb[0].mxu0
      %v7876 = vadd.f32 %v7813, %v7875
      %v7877 = vpop.f32.mrb[0].mxu0
      %7878 = vmatprep.mubr.bf16.mxu0 %v3633
      %7879 = vmatmul.mubr.bf16.gmra.mrb[0].mxu0 %v3632
      %v7880 = vpop.f32.mrb[0].mxu0
      %v7881 = vadd.f32 %v7813, %v7880
      %v7882 = vpop.f32.mrb[0].mxu0
      %v7883 = vpop.f32.mrb[0].mxu0
      %v7884 = vadd.f32 %v7813, %v7883
      %v7885 = vpop.f32.mrb[0].mxu0
      %7886 = vmatprep.mubr.bf16.mxu0 %v3641
      %7887 = vmatmul.mubr.bf16.gmra.mrb[0].mxu0 %v3640
      %v7888 = vpop.f32.mrb[0].mxu0
      %v7889 = vadd.f32 %v7813, %v7888
      %v7890 = vpop.f32.mrb[0].mxu0
      %v7891 = vpop.f32.mrb[0].mxu0
      %v7892 = vadd.f32 %v7813, %v7891
      %v7893 = vpop.f32.mrb[0].mxu0
      %7894 = vmatprep.mubr.bf16.mxu0 %v3649
      %7895 = vmatmul.mubr.bf16.gmra.mrb[0].mxu0 %v3648
      %v7896 = vpop.f32.mrb[0].mxu0
      %v7897 = vadd.f32 %v7813, %v7896
      %v7898 = vpop.f32.mrb[0].mxu0
      %v7899 = vpop.f32.mrb[0].mxu0
      %v7900 = vadd.f32 %v7813, %v7899
      %v7901 = vpop.f32.mrb[0].mxu0
      %7902 = vmatprep.mubr.bf16.mxu0 %v3657
      %7903 = vmatmul.mubr.bf16.gmra.mrb[0].mxu0 %v3656
      %v7904 = vpop.f32.mrb[0].mxu0
      %v7905 = vadd.f32 %v7813, %v7904
      %v7906 = vpop.f32.mrb[0].mxu0
      %v7907 = vpop.f32.mrb[0].mxu0
      %v7908 = vadd.f32 %v7813, %v7907
      %v7909 = vpop.f32.mrb[0].mxu0
      %7910 = vmatprep.mubr.bf16.mxu0 %v3665
      %7911 = vmatmul.mubr.bf16.gmra.mrb[0].mxu0 %v3664
      %v7912 = vpop.f32.mrb[0].mxu0
      %v7913 = vadd.f32 %v7813, %v7912
      %v7914 = vpop.f32.mrb[0].mxu0
      %v7915 = vpop.f32.mrb[0].mxu0
      %v7916 = vadd.f32 %v7813, %v7915
      %v7917 = vpop.f32.mrb[0].mxu0
      %7918 = vmatprep.mubr.bf16.mxu0 %v3673
      %7919 = vmatmul.mubr.bf16.gmra.mrb[0].mxu0 %v3672
      %v7920 = vpop.f32.mrb[0].mxu0
      %v7921 = vadd.f32 %v7813, %v7920
      %v7922 = vpop.f32.mrb[0].mxu0
      %v7923 = vpop.f32.mrb[0].mxu0
      %v7924 = vadd.f32 %v7813, %v7923
      %v7925 = vpop.f32.mrb[0].mxu0
      %7926 = vmatprep.mubr.bf16.mxu0 %v3681
      %7927 = vmatmul.mubr.bf16.gmra.mrb[0].mxu0 %v3680
      %v7928 = vpop.f32.mrb[0].mxu0
      %v7929 = vadd.f32 %v7813, %v7928
      %v7930 = vpop.f32.mrb[0].mxu0
      %v7931 = vpop.f32.mrb[0].mxu0
      %v7932 = vadd.f32 %v7813, %v7931
      %v7933 = vpop.f32.mrb[0].mxu0
      %7934 = vmatprep.mubr.bf16.mxu0 %v3689
      %7935 = vmatmul.mubr.bf16.gmra.mrb[0].mxu0 %v3688
      %v7936 = vpop.f32.mrb[0].mxu0
      %v7937 = vadd.f32 %v7813, %v7936
      %v7938 = vpop.f32.mrb[0].mxu0
      %v7939 = vpop.f32.mrb[0].mxu0
      %v7940 = vadd.f32 %v7813, %v7939
      %v7941 = vpop.f32.mrb[0].mxu0
      %7942 = vmatprep.mubr.bf16.mxu0 %v3697
      %7943 = vmatmul.mubr.bf16.gmra.mrb[0].mxu0 %v3696
      %v7944 = vpop.f32.mrb[0].mxu0
      %v7945 = vadd.f32 %v7813, %v7944
      %v7946 = vpop.f32.mrb[0].mxu0
      %v7947 = vpop.f32.mrb[0].mxu0
      %v7948 = vadd.f32 %v7813, %v7947
      %v7949 = vpop.f32.mrb[0].mxu0
      %7950 = vmatprep.mubr.bf16.mxu0 %v3705
      %7951 = vmatmul.mubr.bf16.gmra.mrb[0].mxu0 %v3704
      %v7952 = vpop.f32.mrb[0].mxu0
      %v7953 = vadd.f32 %v7813, %v7952
      %v7954 = vpop.f32.mrb[0].mxu0
      %v7955 = vpop.f32.mrb[0].mxu0
      %v7956 = vadd.f32 %v7813, %v7955
      %v7957 = vpop.f32.mrb[0].mxu0
      %7958 = vmatprep.mubr.bf16.mxu0 %v3713
      %7959 = vmatmul.mubr.bf16.gmra.mrb[0].mxu0 %v3712
      %v7960 = vpop.f32.mrb[0].mxu0
      %v7961 = vadd.f32 %v7813, %v7960
      %v7962 = vpop.f32.mrb[0].mxu0
      %v7963 = vpop.f32.mrb[0].mxu0
      %v7964 = vadd.f32 %v7813, %v7963
      %v7965 = vpop.f32.mrb[0].mxu0
      %7966 = vmatprep.mubr.bf16.mxu0 %v3721
      %7967 = vmatmul.mubr.bf16.gmra.mrb[0].mxu0 %v3720
      %v7968 = vpop.f32.mrb[0].mxu0
      %v7969 = vadd.f32 %v7813, %v7968
      %v7970 = vpop.f32.mrb[0].mxu0
      %v7971 = vpop.f32.mrb[0].mxu0
      %v7972 = vadd.f32 %v7813, %v7971
      %v7973 = vpop.f32.mrb[0].mxu0
      %7974 = vmatprep.mubr.bf16.mxu0 %v3729
      %7975 = vmatmul.mubr.bf16.gmra.mrb[0].mxu0 %v3728
      %v7976 = vpop.f32.mrb[0].mxu0
      %v7977 = vadd.f32 %v7813, %v7976
      %v7978 = vpop.f32.mrb[0].mxu0
      %v7979 = vpop.f32.mrb[0].mxu0
      %v7980 = vadd.f32 %v7813, %v7979
      %v7981 = vpop.f32.mrb[0].mxu0
      %7982 = vmatprep.mubr.bf16.mxu0 %v3737
      %7983 = vmatmul.mubr.bf16.gmra.mrb[0].mxu0 %v3736
      %v7984 = vpop.f32.mrb[0].mxu0
      %v7985 = vadd.f32 %v7813, %v7984
      %v7986 = vpop.f32.mrb[0].mxu0
      %v7987 = vpop.f32.mrb[0].mxu0
      %v7988 = vadd.f32 %v7813, %v7987
      %v7989 = vpop.f32.mrb[0].mxu0
      %7990 = vmatprep.mubr.bf16.mxu0 %v3745
      %7991 = vmatmul.mubr.bf16.gmra.mrb[0].mxu0 %v3744
      %v7992 = vpop.f32.mrb[0].mxu0
      %v7993 = vadd.f32 %v7813, %v7992
      %v7994 = vpop.f32.mrb[0].mxu0
      %v7995 = vpop.f32.mrb[0].mxu0
      %v7996 = vadd.f32 %v7813, %v7995
      %v7997 = vpop.f32.mrb[0].mxu0
      %7998 = vmatprep.mubr.bf16.mxu0 %v3753
      %7999 = vmatmul.mubr.bf16.gmra.mrb[0].mxu0 %v3752
      %v8000 = vpop.f32.mrb[0].mxu0
      %v8001 = vadd.f32 %v7813, %v8000
      %v8002 = vpop.f32.mrb[0].mxu0
      %v8003 = vpop.f32.mrb[0].mxu0
      %v8004 = vadd.f32 %v7813, %v8003
      %v8005 = vpop.f32.mrb[0].mxu0
      %8006 = vmatprep.mubr.bf16.mxu0 %v3761
      %8007 = vmatmul.mubr.bf16.gmra.mrb[0].mxu0 %v3760
      %v8008 = vpop.f32.mrb[0].mxu0
      %v8009 = vadd.f32 %v7813, %v8008
      %v8010 = vpop.f32.mrb[0].mxu0
      %v8011 = vpop.f32.mrb[0].mxu0
      %v8012 = vadd.f32 %v7813, %v8011
      %v8013 = vpop.f32.mrb[0].mxu0
      %8014 = vmatprep.mubr.bf16.mxu0 %v3769
      %8015 = vmatmul.mubr.bf16.gmra.mrb[0].mxu0 %v3768
      %v8016 = vpop.f32.mrb[0].mxu0
      %v8017 = vadd.f32 %v7813, %v8016
      %v8018 = vpop.f32.mrb[0].mxu0
      %v8019 = vpop.f32.mrb[0].mxu0
      %v8020 = vadd.f32 %v7813, %v8019
      %v8021 = vpop.f32.mrb[0].mxu0
      %8022 = vmatprep.mubr.bf16.mxu0 %v3777
      %8023 = vmatmul.mubr.bf16.gmra.mrb[0].mxu0 %v3776
      %v8024 = vpop.f32.mrb[0].mxu0
      %v8025 = vadd.f32 %v7813, %v8024
      %v8026 = vpop.f32.mrb[0].mxu0
      %v8027 = vpop.f32.mrb[0].mxu0
      %v8028 = vadd.f32 %v7813, %v8027
      %v8029 = vpop.f32.mrb[0].mxu0
      %8030 = vmatprep.mubr.bf16.mxu0 %v3785
      %8031 = vmatmul.mubr.bf16.gmra.mrb[0].mxu0 %v3784
      %v8032 = vpop.f32.mrb[0].mxu0
      %v8033 = vadd.f32 %v7813, %v8032
      %v8034 = vpop.f32.mrb[0].mxu0
      %v8035 = vpop.f32.mrb[0].mxu0
      %v8036 = vadd.f32 %v7813, %v8035
      %v8037 = vpop.f32.mrb[0].mxu0
      %8038 = vmatprep.mubr.bf16.mxu0 %v3793
      %8039 = vmatmul.mubr.bf16.gmra.mrb[0].mxu0 %v3792
      %v8040 = vpop.f32.mrb[0].mxu0
      %v8041 = vadd.f32 %v7813, %v8040
      %v8042 = vpop.f32.mrb[0].mxu0
      %v8043 = vpop.f32.mrb[0].mxu0
      %v8044 = vadd.f32 %v7813, %v8043
      %v8045 = vpop.f32.mrb[0].mxu0
      %8046 = vmatprep.mubr.bf16.mxu0 %v3801
      %8047 = vmatmul.mubr.bf16.gmra.mrb[0].mxu0 %v3800
      %v8048 = vpop.f32.mrb[0].mxu0
      %v8049 = vadd.f32 %v7813, %v8048
      %v8050 = vpop.f32.mrb[0].mxu0
      %v8051 = vpop.f32.mrb[0].mxu0
      %v8052 = vadd.f32 %v7813, %v8051
      %v8053 = vpop.f32.mrb[0].mxu0
      %8054 = vmatprep.mubr.bf16.mxu0 %v3809
      %8055 = vmatmul.mubr.bf16.gmra.mrb[0].mxu0 %v3808
      %v8056 = vpop.f32.mrb[0].mxu0
      %v8057 = vadd.f32 %v7813, %v8056
      %v8058 = vpop.f32.mrb[0].mxu0
      %v8059 = vpop.f32.mrb[0].mxu0
      %v8060 = vadd.f32 %v7813, %v8059
      %v8061 = vpop.f32.mrb[0].mxu0
      %8062 = vmatprep.mubr.bf16.mxu0 %v3817
      %8063 = vmatmul.mubr.bf16.gmra.mrb[0].mxu0 %v3816
      %v8064 = vpop.f32.mrb[0].mxu0
      %v8065 = vadd.f32 %v7813, %v8064
      %v8066 = vpop.f32.mrb[0].mxu0
      %v8067 = vpop.f32.mrb[0].mxu0
      %v8068 = vadd.f32 %v7813, %v8067
      %v8069 = vpop.f32.mrb[0].mxu0
      %8070 = vmatprep.mubr.bf16.mxu0 %v3825
      %8071 = vmatmul.mubr.bf16.gmra.mrb[0].mxu0 %v3824
      %v8072 = vpop.f32.mrb[0].mxu0
      %v8073 = vadd.f32 %v7813, %v8072
      %v8074 = vpop.f32.mrb[0].mxu0
      %v8075 = vpop.f32.mrb[0].mxu0
      %v8076 = vadd.f32 %v7813, %v8075
      %v8077 = vpop.f32.mrb[0].mxu0
      %8078 = vmatprep.mubr.bf16.mxu0 %v3833
      %8079 = vmatmul.mubr.bf16.gmra.mrb[0].mxu0 %v3832
      %v8080 = vpop.f32.mrb[0].mxu0
      %v8081 = vadd.f32 %v7813, %v8080
      %v8082 = vpop.f32.mrb[0].mxu0
      %v8083 = vpop.f32.mrb[0].mxu0
      %v8084 = vadd.f32 %v7813, %v8083
      %v8085 = vpop.f32.mrb[0].mxu0
      %8086 = vmatprep.mubr.bf16.mxu0 %v3841
      %8087 = vmatmul.mubr.bf16.gmra.mrb[0].mxu0 %v3840
      %v8088 = vpop.f32.mrb[0].mxu0
      %v8089 = vadd.f32 %v7813, %v8088
      %v8090 = vpop.f32.mrb[0].mxu0
      %v8091 = vpop.f32.mrb[0].mxu0
      %v8092 = vadd.f32 %v7813, %v8091
      %v8093 = vpop.f32.mrb[0].mxu0
      %8094 = vmatprep.mubr.bf16.mxu0 %v3849
      %8095 = vmatmul.mubr.bf16.gmra.mrb[0].mxu0 %v3848
      %v8096 = vpop.f32.mrb[0].mxu0
      %v8097 = vadd.f32 %v7813, %v8096
      %v8098 = vpop.f32.mrb[0].mxu0
      %v8099 = vpop.f32.mrb[0].mxu0
      %v8100 = vadd.f32 %v7813, %v8099
      %v8101 = vpop.f32.mrb[0].mxu0
      %8102 = vmatprep.mubr.bf16.mxu0 %v3857
      %8103 = vmatmul.mubr.bf16.gmra.mrb[0].mxu0 %v3856
      %v8104 = vpop.f32.mrb[0].mxu0
      %v8105 = vadd.f32 %v7813, %v8104
      %v8106 = vpop.f32.mrb[0].mxu0
      %v8107 = vpop.f32.mrb[0].mxu0
      %v8108 = vadd.f32 %v7813, %v8107
      %v8109 = vpop.f32.mrb[0].mxu0
      %8110 = vmatprep.mubr.bf16.mxu0 %v3865
      %8111 = vmatmul.mubr.bf16.gmra.mrb[0].mxu0 %v3864
      %v8112 = vpop.f32.mrb[0].mxu0
      %v8113 = vadd.f32 %v7813, %v8112
      %v8114 = vpop.f32.mrb[0].mxu0
      %v8115 = vpop.f32.mrb[0].mxu0
      %v8116 = vadd.f32 %v7813, %v8115
      %v8117 = vpop.f32.mrb[0].mxu0
      %8118 = vmatprep.mubr.bf16.mxu0 %v3873
      %8119 = vmatmul.mubr.bf16.gmra.mrb[0].mxu0 %v3872
      %v8120 = vpop.f32.mrb[0].mxu0
      %v8121 = vadd.f32 %v7813, %v8120
      %v8122 = vpop.f32.mrb[0].mxu0
      %v8123 = vpop.f32.mrb[0].mxu0
      %v8124 = vadd.f32 %v7813, %v8123
      %v8125 = vpop.f32.mrb[0].mxu0
      %8126 = vmatprep.mubr.bf16.mxu0 %v3881
      %8127 = vmatmul.mubr.bf16.gmra.mrb[0].mxu0 %v3880
      %v8128 = vpop.f32.mrb[0].mxu0
      %v8129 = vadd.f32 %v7813, %v8128
      %v8130 = vpop.f32.mrb[0].mxu0
      %v8131 = vpop.f32.mrb[0].mxu0
      %v8132 = vadd.f32 %v7813, %v8131
      %v8133 = vpop.f32.mrb[0].mxu0
      %8134 = vmatprep.mubr.bf16.mxu0 %v3889
      %8135 = vmatmul.mubr.bf16.gmra.mrb[0].mxu0 %v3888
      %v8136 = vpop.f32.mrb[0].mxu0
      %v8137 = vadd.f32 %v7813, %v8136
      %v8138 = vpop.f32.mrb[0].mxu0
      %v8139 = vpop.f32.mrb[0].mxu0
      %v8140 = vadd.f32 %v7813, %v8139
      %v8141 = vpop.f32.mrb[0].mxu0
      %8142 = vmatprep.mubr.bf16.mxu0 %v3897
      %8143 = vmatmul.mubr.bf16.gmra.mrb[0].mxu0 %v3896
      %v8144 = vpop.f32.mrb[0].mxu0
      %v8145 = vadd.f32 %v7813, %v8144
      %v8146 = vpop.f32.mrb[0].mxu0
      %v8147 = vpop.f32.mrb[0].mxu0
      %v8148 = vadd.f32 %v7813, %v8147
      %v8149 = vpop.f32.mrb[0].mxu0
      %8150 = vmatprep.mubr.bf16.mxu0 %v3905
      %8151 = vmatmul.mubr.bf16.gmra.mrb[0].mxu0 %v3904
      %v8152 = vpop.f32.mrb[0].mxu0
      %v8153 = vadd.f32 %v7813, %v8152
      %v8154 = vpop.f32.mrb[0].mxu0
      %v8155 = vpop.f32.mrb[0].mxu0
      %v8156 = vadd.f32 %v7813, %v8155
      %v8157 = vpop.f32.mrb[0].mxu0
      %8158 = vmatprep.mubr.bf16.mxu0 %v3913
      %8159 = vmatmul.mubr.bf16.gmra.mrb[0].mxu0 %v3912
      %v8160 = vpop.f32.mrb[0].mxu0
      %v8161 = vadd.f32 %v7813, %v8160
      %v8162 = vpop.f32.mrb[0].mxu0
      %v8163 = vpop.f32.mrb[0].mxu0
      %v8164 = vadd.f32 %v7813, %v8163
      %v8165 = vpop.f32.mrb[0].mxu0
      %8166 = vmatprep.mubr.bf16.mxu0 %v3921
      %8167 = vmatmul.mubr.bf16.gmra.mrb[0].mxu0 %v3920
      %v8168 = vpop.f32.mrb[0].mxu0
      %v8169 = vadd.f32 %v7813, %v8168
      %v8170 = vpop.f32.mrb[0].mxu0
      %v8171 = vpop.f32.mrb[0].mxu0
      %v8172 = vadd.f32 %v7813, %v8171
      %v8173 = vpop.f32.mrb[0].mxu0
      %8174 = vmatprep.mubr.bf16.mxu0 %v3929
      %8175 = vmatmul.mubr.bf16.gmra.mrb[0].mxu0 %v3928
      %v8176 = vpop.f32.mrb[0].mxu0
      %v8177 = vadd.f32 %v7813, %v8176
      %v8178 = vpop.f32.mrb[0].mxu0
      %v8179 = vpop.f32.mrb[0].mxu0
      %v8180 = vadd.f32 %v7813, %v8179
      %v8181 = vpop.f32.mrb[0].mxu0
      %8182 = vmatprep.mubr.bf16.mxu0 %v3937
      %8183 = vmatmul.mubr.bf16.gmra.mrb[0].mxu0 %v3936
      %v8184 = vpop.f32.mrb[0].mxu0
      %v8185 = vadd.f32 %v7813, %v8184
      %v8186 = vpop.f32.mrb[0].mxu0
      %v8187 = vpop.f32.mrb[0].mxu0
      %v8188 = vadd.f32 %v7813, %v8187
      %v8189 = vpop.f32.mrb[0].mxu0
      %8190 = vmatprep.mubr.bf16.mxu0 %v3945
      %8191 = vmatmul.mubr.bf16.gmra.mrb[0].mxu0 %v3944
      %v8192 = vpop.f32.mrb[0].mxu0
      %v8193 = vadd.f32 %v7813, %v8192
      %v8194 = vpop.f32.mrb[0].mxu0
      %v8195 = vpop.f32.mrb[0].mxu0
      %v8196 = vadd.f32 %v7813, %v8195
      %v8197 = vpop.f32.mrb[0].mxu0
      %8198 = vmatprep.mubr.bf16.mxu0 %v3953
      %8199 = vmatmul.mubr.bf16.gmra.mrb[0].mxu0 %v3952
      %v8200 = vpop.f32.mrb[0].mxu0
      %v8201 = vadd.f32 %v7813, %v8200
      %v8202 = vpop.f32.mrb[0].mxu0
      %v8203 = vpop.f32.mrb[0].mxu0
      %v8204 = vadd.f32 %v7813, %v8203
      %v8205 = vpop.f32.mrb[0].mxu0
      %8206 = vmatprep.mubr.bf16.mxu0 %v3961
      %8207 = vmatmul.mubr.bf16.gmra.mrb[0].mxu0 %v3960
      %v8208 = vpop.f32.mrb[0].mxu0
      %v8209 = vadd.f32 %v7813, %v8208
      %v8210 = vpop.f32.mrb[0].mxu0
      %v8211 = vpop.f32.mrb[0].mxu0
      %v8212 = vadd.f32 %v7813, %v8211
      %v8213 = vpop.f32.mrb[0].mxu0
      %8214 = vmatprep.mubr.bf16.mxu0 %v3969
      %8215 = vmatmul.mubr.bf16.gmra.mrb[0].mxu0 %v3968
      %v8216 = vpop.f32.mrb[0].mxu0
      %v8217 = vadd.f32 %v7813, %v8216
      %v8218 = vpop.f32.mrb[0].mxu0
      %v8219 = vpop.f32.mrb[0].mxu0
      %v8220 = vadd.f32 %v7813, %v8219
      %v8221 = vpop.f32.mrb[0].mxu0
      %8222 = vmatprep.mubr.bf16.mxu0 %v3977
      %8223 = vmatmul.mubr.bf16.gmra.mrb[0].mxu0 %v3976
      %v8224 = vpop.f32.mrb[0].mxu0
      %v8225 = vadd.f32 %v7813, %v8224
      %v8226 = vpop.f32.mrb[0].mxu0
      %v8227 = vpop.f32.mrb[0].mxu0
      %v8228 = vadd.f32 %v7813, %v8227
      %v8229 = vpop.f32.mrb[0].mxu0
      %8230 = vmatprep.mubr.bf16.mxu0 %v3985
      %8231 = vmatmul.mubr.bf16.gmra.mrb[0].mxu0 %v3984
      %v8232 = vpop.f32.mrb[0].mxu0
      %v8233 = vadd.f32 %v7813, %v8232
      %v8234 = vpop.f32.mrb[0].mxu0
      %v8235 = vpop.f32.mrb[0].mxu0
      %v8236 = vadd.f32 %v7813, %v8235
      %v8237 = vpop.f32.mrb[0].mxu0
      %8238 = vmatprep.mubr.bf16.mxu0 %v3993
      %8239 = vmatmul.mubr.bf16.gmra.mrb[0].mxu0 %v3992
      %v8240 = vpop.f32.mrb[0].mxu0
      %v8241 = vadd.f32 %v7813, %v8240
      %v8242 = vpop.f32.mrb[0].mxu0
      %v8243 = vpop.f32.mrb[0].mxu0
      %v8244 = vadd.f32 %v7813, %v8243
      %v8245 = vpop.f32.mrb[0].mxu0
      %8246 = vmatprep.mubr.bf16.mxu0 %v4001
      %8247 = vmatmul.mubr.bf16.gmra.mrb[0].mxu0 %v4000
      %v8248 = vpop.f32.mrb[0].mxu0
      %v8249 = vadd.f32 %v7813, %v8248
      %v8250 = vpop.f32.mrb[0].mxu0
      %v8251 = vpop.f32.mrb[0].mxu0
      %v8252 = vadd.f32 %v7813, %v8251
      %v8253 = vpop.f32.mrb[0].mxu0
      %8254 = vmatprep.mubr.bf16.mxu0 %v4009
      %8255 = vmatmul.mubr.bf16.gmra.mrb[0].mxu0 %v4008
      %v8256 = vpop.f32.mrb[0].mxu0
      %v8257 = vadd.f32 %v7813, %v8256
      %v8258 = vpop.f32.mrb[0].mxu0
      %v8259 = vpop.f32.mrb[0].mxu0
      %v8260 = vadd.f32 %v7813, %v8259
      %v8261 = vpop.f32.mrb[0].mxu0
      %8262 = vmatprep.mubr.bf16.mxu0 %v4017
      %8263 = vmatmul.mubr.bf16.gmra.mrb[0].mxu0 %v4016
      %v8264 = vpop.f32.mrb[0].mxu0
      %v8265 = vadd.f32 %v7813, %v8264
      %v8266 = vpop.f32.mrb[0].mxu0
      %v8267 = vpop.f32.mrb[0].mxu0
      %v8268 = vadd.f32 %v7813, %v8267
      %v8269 = vpop.f32.mrb[0].mxu0
      %8270 = vmatprep.mubr.bf16.mxu0 %v4025
      %8271 = vmatmul.mubr.bf16.gmra.mrb[0].mxu0 %v4024
      %v8272 = vpop.f32.mrb[0].mxu0
      %v8273 = vadd.f32 %v7813, %v8272
      %v8274 = vpop.f32.mrb[0].mxu0
      %v8275 = vpop.f32.mrb[0].mxu0
      %v8276 = vadd.f32 %v7813, %v8275
      %v8277 = vpop.f32.mrb[0].mxu0
      %8278 = vmatprep.mubr.bf16.mxu0 %v4033
      %8279 = vmatmul.mubr.bf16.gmra.mrb[0].mxu0 %v4032
      %v8280 = vpop.f32.mrb[0].mxu0
      %v8281 = vadd.f32 %v7813, %v8280
      %v8282 = vpop.f32.mrb[0].mxu0
      %v8283 = vpop.f32.mrb[0].mxu0
      %v8284 = vadd.f32 %v7813, %v8283
      %v8285 = vpop.f32.mrb[0].mxu0
      %8286 = vmatprep.mubr.bf16.mxu0 %v4041
      %8287 = vmatmul.mubr.bf16.gmra.mrb[0].mxu0 %v4040
      %v8288 = vpop.f32.mrb[0].mxu0
      %v8289 = vadd.f32 %v7813, %v8288
      %v8290 = vpop.f32.mrb[0].mxu0
      %v8291 = vpop.f32.mrb[0].mxu0
      %v8292 = vadd.f32 %v7813, %v8291
      %v8293 = vpop.f32.mrb[0].mxu0
      %8294 = vmatprep.mubr.bf16.mxu0 %v4049
      %8295 = vmatmul.mubr.bf16.gmra.mrb[0].mxu0 %v4048
      %v8296 = vpop.f32.mrb[0].mxu0
      %v8297 = vadd.f32 %v7813, %v8296
      %v8298 = vpop.f32.mrb[0].mxu0
      %v8299 = vpop.f32.mrb[0].mxu0
      %v8300 = vadd.f32 %v7813, %v8299
      %v8301 = vpop.f32.mrb[0].mxu0
      %8302 = vmatprep.mubr.bf16.mxu0 %v4057
      %8303 = vmatmul.mubr.bf16.gmra.mrb[0].mxu0 %v4056
      %v8304 = vpop.f32.mrb[0].mxu0
      %v8305 = vadd.f32 %v7813, %v8304
      %v8306 = vpop.f32.mrb[0].mxu0
      %v8307 = vpop.f32.mrb[0].mxu0
      %v8308 = vadd.f32 %v7813, %v8307
      %v8309 = vpop.f32.mrb[0].mxu0
      %8310 = vmatprep.mubr.bf16.mxu0 %v4065
      %8311 = vmatmul.mubr.bf16.gmra.mrb[0].mxu0 %v4064
      %v8312 = vpop.f32.mrb[0].mxu0
      %v8313 = vadd.f32 %v7813, %v8312
      %v8314 = vpop.f32.mrb[0].mxu0
      %v8315 = vpop.f32.mrb[0].mxu0
      %v8316 = vadd.f32 %v7813, %v8315
      %v8317 = vpop.f32.mrb[0].mxu0
      %8318 = vmatprep.mubr.bf16.mxu0 %v4073
      %8319 = vmatmul.mubr.bf16.gmra.mrb[0].mxu0 %v4072
      %v8320 = vpop.f32.mrb[0].mxu0
      %v8321 = vadd.f32 %v7813, %v8320
      %v8322 = vpop.f32.mrb[0].mxu0
      %v8323 = vpop.f32.mrb[0].mxu0
      %v8324 = vadd.f32 %v7813, %v8323
      %v8325 = vpop.f32.mrb[0].mxu0
      %8326 = vmatprep.mubr.bf16.mxu0 %v4081
      %8327 = vmatmul.mubr.bf16.gmra.mrb[0].mxu0 %v4080
      %v8328 = vpop.f32.mrb[0].mxu0
      %v8329 = vadd.f32 %v7813, %v8328
      %v8330 = vpop.f32.mrb[0].mxu0
      %v8331 = vpop.f32.mrb[0].mxu0
      %v8332 = vadd.f32 %v7813, %v8331
      %v8333 = vpop.f32.mrb[0].mxu0
      %8334 = vmatprep.mubr.bf16.mxu0 %v4089
      %8335 = vmatmul.mubr.bf16.gmra.mrb[0].mxu0 %v4088
      %v8336 = vpop.f32.mrb[0].mxu0
      %v8337 = vadd.f32 %v7813, %v8336
      %v8338 = vpop.f32.mrb[0].mxu0
      %v8339 = vpop.f32.mrb[0].mxu0
      %v8340 = vadd.f32 %v7813, %v8339
      %v8341 = vpop.f32.mrb[0].mxu0
      %8342 = vmatprep.mubr.bf16.mxu0 %v4097
      %8343 = vmatmul.mubr.bf16.gmra.mrb[0].mxu0 %v4096
      %v8344 = vpop.f32.mrb[0].mxu0
      %v8345 = vadd.f32 %v7813, %v8344
      %v8346 = vpop.f32.mrb[0].mxu0
      %v8347 = vpop.f32.mrb[0].mxu0
      %v8348 = vadd.f32 %v7813, %v8347
      %v8349 = vpop.f32.mrb[0].mxu0
      %8350 = vmatprep.mubr.bf16.mxu0 %v4105
      %8351 = vmatmul.mubr.bf16.gmra.mrb[0].mxu0 %v4104
      %v8352 = vpop.f32.mrb[0].mxu0
      %v8353 = vadd.f32 %v7813, %v8352
      %v8354 = vpop.f32.mrb[0].mxu0
      %v8355 = vpop.f32.mrb[0].mxu0
      %v8356 = vadd.f32 %v7813, %v8355
      %v8357 = vpop.f32.mrb[0].mxu0
      %8358 = vdwg.mxu0
      %8359 = vmatprep.subr.bf16.mxu0 0
      %8360 = vmatpush1.bf16.msra.mxu0 %v7762
      %8361 = vmatprep.subr.bf16.mxu0 0
      %8362 = vmatpush1.bf16.msra.mxu0 %v7763
      %8363 = vmatprep.subr.bf16.mxu0 0
      %8364 = vmatpush1.bf16.msra.mxu0 %v7764
      %8365 = vmatprep.subr.bf16.mxu0 0
      %8366 = vmatpush1.bf16.msra.mxu0 %v7765
      %8367 = vmatprep.subr.bf16.mxu0 0
      %8368 = vmatpush1.bf16.msra.mxu0 %v7766
      %8369 = vmatprep.subr.bf16.mxu0 0
      %8370 = vmatpush1.bf16.msra.mxu0 %v7767
      %8371 = vmatprep.subr.bf16.mxu0 0
      %8372 = vmatpush1.bf16.msra.mxu0 %v7768
      %8373 = vmatprep.subr.bf16.mxu0 0
      %8374 = vmatpush1.bf16.msra.mxu0 %v7769
      %8375 = vmatprep.subr.bf16.mxu0 0
      %8376 = vmatpush1.bf16.msra.mxu0 %v7770
      %8377 = vmatprep.subr.bf16.mxu0 0
      %8378 = vmatpush1.bf16.msra.mxu0 %v7771
      %8379 = vmatprep.subr.bf16.mxu0 0
      %8380 = vmatpush1.bf16.msra.mxu0 %v7772
      %8381 = vmatprep.subr.bf16.mxu0 0
      %8382 = vmatpush1.bf16.msra.mxu0 %v7773
      %8383 = vmatprep.subr.bf16.mxu0 0
      %8384 = vmatpush1.bf16.msra.mxu0 %v7774
      %8385 = vmatprep.subr.bf16.mxu0 0
      %8386 = vmatpush1.bf16.msra.mxu0 %v7775
      %8387 = vmatprep.subr.bf16.mxu0 0
      %8388 = vmatpush1.bf16.msra.mxu0 %v7776
      %8389 = vmatprep.subr.bf16.mxu0 0
      %8390 = vmatpush1.bf16.msra.mxu0 %v7777
      %8391 = vmatprep.mubr.bf16.mxu0 %v3603
      %8392 = vmatmul.mubr.bf16.gmra.mrb[0].mxu0 %v3602
      %v8393 = vpop.f32.mrb[0].mxu0
      %v8394 = vadd.f32 %v7849, %v8393
      %v8395 = vpop.f32.mrb[0].mxu0
      %v8396 = vpop.f32.mrb[0].mxu0
      %v8397 = vadd.f32 %v7852, %v8396
      %v8398 = vpop.f32.mrb[0].mxu0
      %8399 = vmatprep.mubr.bf16.mxu0 %v3611
      %8400 = vmatmul.mubr.bf16.gmra.mrb[0].mxu0 %v3610
      %v8401 = vpop.f32.mrb[0].mxu0
      %v8402 = vadd.f32 %v7857, %v8401
      %v8403 = vpop.f32.mrb[0].mxu0
      %v8404 = vpop.f32.mrb[0].mxu0
      %v8405 = vadd.f32 %v7860, %v8404
      %v8406 = vpop.f32.mrb[0].mxu0
      %8407 = vmatprep.mubr.bf16.mxu0 %v3619
      %8408 = vmatmul.mubr.bf16.gmra.mrb[0].mxu0 %v3618
      %v8409 = vpop.f32.mrb[0].mxu0
      %v8410 = vadd.f32 %v7865, %v8409
      %v8411 = vpop.f32.mrb[0].mxu0
      %v8412 = vpop.f32.mrb[0].mxu0
      %v8413 = vadd.f32 %v7868, %v8412
      %v8414 = vpop.f32.mrb[0].mxu0
      %8415 = vmatprep.mubr.bf16.mxu0 %v3627
      %8416 = vmatmul.mubr.bf16.gmra.mrb[0].mxu0 %v3626
      %v8417 = vpop.f32.mrb[0].mxu0
      %v8418 = vadd.f32 %v7873, %v8417
      %v8419 = vpop.f32.mrb[0].mxu0
      %v8420 = vpop.f32.mrb[0].mxu0
      %v8421 = vadd.f32 %v7876, %v8420
      %v8422 = vpop.f32.mrb[0].mxu0
      %8423 = vmatprep.mubr.bf16.mxu0 %v3635
      %8424 = vmatmul.mubr.bf16.gmra.mrb[0].mxu0 %v3634
      %v8425 = vpop.f32.mrb[0].mxu0
      %v8426 = vadd.f32 %v7881, %v8425
      %v8427 = vpop.f32.mrb[0].mxu0
      %v8428 = vpop.f32.mrb[0].mxu0
      %v8429 = vadd.f32 %v7884, %v8428
      %v8430 = vpop.f32.mrb[0].mxu0
      %8431 = vmatprep.mubr.bf16.mxu0 %v3643
      %8432 = vmatmul.mubr.bf16.gmra.mrb[0].mxu0 %v3642
      %v8433 = vpop.f32.mrb[0].mxu0
      %v8434 = vadd.f32 %v7889, %v8433
      %v8435 = vpop.f32.mrb[0].mxu0
      %v8436 = vpop.f32.mrb[0].mxu0
      %v8437 = vadd.f32 %v7892, %v8436
      %v8438 = vpop.f32.mrb[0].mxu0
      %8439 = vmatprep.mubr.bf16.mxu0 %v3651
      %8440 = vmatmul.mubr.bf16.gmra.mrb[0].mxu0 %v3650
      %v8441 = vpop.f32.mrb[0].mxu0
      %v8442 = vadd.f32 %v7897, %v8441
      %v8443 = vpop.f32.mrb[0].mxu0
      %v8444 = vpop.f32.mrb[0].mxu0
      %v8445 = vadd.f32 %v7900, %v8444
      %v8446 = vpop.f32.mrb[0].mxu0
      %8447 = vmatprep.mubr.bf16.mxu0 %v3659
      %8448 = vmatmul.mubr.bf16.gmra.mrb[0].mxu0 %v3658
      %v8449 = vpop.f32.mrb[0].mxu0
      %v8450 = vadd.f32 %v7905, %v8449
      %v8451 = vpop.f32.mrb[0].mxu0
      %v8452 = vpop.f32.mrb[0].mxu0
      %v8453 = vadd.f32 %v7908, %v8452
      %v8454 = vpop.f32.mrb[0].mxu0
      %8455 = vmatprep.mubr.bf16.mxu0 %v3667
      %8456 = vmatmul.mubr.bf16.gmra.mrb[0].mxu0 %v3666
      %v8457 = vpop.f32.mrb[0].mxu0
      %v8458 = vadd.f32 %v7913, %v8457
      %v8459 = vpop.f32.mrb[0].mxu0
      %v8460 = vpop.f32.mrb[0].mxu0
      %v8461 = vadd.f32 %v7916, %v8460
      %v8462 = vpop.f32.mrb[0].mxu0
      %8463 = vmatprep.mubr.bf16.mxu0 %v3675
      %8464 = vmatmul.mubr.bf16.gmra.mrb[0].mxu0 %v3674
      %v8465 = vpop.f32.mrb[0].mxu0
      %v8466 = vadd.f32 %v7921, %v8465
      %v8467 = vpop.f32.mrb[0].mxu0
      %v8468 = vpop.f32.mrb[0].mxu0
      %v8469 = vadd.f32 %v7924, %v8468
      %v8470 = vpop.f32.mrb[0].mxu0
      %8471 = vmatprep.mubr.bf16.mxu0 %v3683
      %8472 = vmatmul.mubr.bf16.gmra.mrb[0].mxu0 %v3682
      %v8473 = vpop.f32.mrb[0].mxu0
      %v8474 = vadd.f32 %v7929, %v8473
      %v8475 = vpop.f32.mrb[0].mxu0
      %v8476 = vpop.f32.mrb[0].mxu0
      %v8477 = vadd.f32 %v7932, %v8476
      %v8478 = vpop.f32.mrb[0].mxu0
      %8479 = vmatprep.mubr.bf16.mxu0 %v3691
      %8480 = vmatmul.mubr.bf16.gmra.mrb[0].mxu0 %v3690
      %v8481 = vpop.f32.mrb[0].mxu0
      %v8482 = vadd.f32 %v7937, %v8481
      %v8483 = vpop.f32.mrb[0].mxu0
      %v8484 = vpop.f32.mrb[0].mxu0
      %v8485 = vadd.f32 %v7940, %v8484
      %v8486 = vpop.f32.mrb[0].mxu0
      %8487 = vmatprep.mubr.bf16.mxu0 %v3699
      %8488 = vmatmul.mubr.bf16.gmra.mrb[0].mxu0 %v3698
      %v8489 = vpop.f32.mrb[0].mxu0
      %v8490 = vadd.f32 %v7945, %v8489
      %v8491 = vpop.f32.mrb[0].mxu0
      %v8492 = vpop.f32.mrb[0].mxu0
      %v8493 = vadd.f32 %v7948, %v8492
      %v8494 = vpop.f32.mrb[0].mxu0
      %8495 = vmatprep.mubr.bf16.mxu0 %v3707
      %8496 = vmatmul.mubr.bf16.gmra.mrb[0].mxu0 %v3706
      %v8497 = vpop.f32.mrb[0].mxu0
      %v8498 = vadd.f32 %v7953, %v8497
      %v8499 = vpop.f32.mrb[0].mxu0
      %v8500 = vpop.f32.mrb[0].mxu0
      %v8501 = vadd.f32 %v7956, %v8500
      %v8502 = vpop.f32.mrb[0].mxu0
      %8503 = vmatprep.mubr.bf16.mxu0 %v3715
      %8504 = vmatmul.mubr.bf16.gmra.mrb[0].mxu0 %v3714
      %v8505 = vpop.f32.mrb[0].mxu0
      %v8506 = vadd.f32 %v7961, %v8505
      %v8507 = vpop.f32.mrb[0].mxu0
      %v8508 = vpop.f32.mrb[0].mxu0
      %v8509 = vadd.f32 %v7964, %v8508
      %v8510 = vpop.f32.mrb[0].mxu0
      %8511 = vmatprep.mubr.bf16.mxu0 %v3723
      %8512 = vmatmul.mubr.bf16.gmra.mrb[0].mxu0 %v3722
      %v8513 = vpop.f32.mrb[0].mxu0
      %v8514 = vadd.f32 %v7969, %v8513
      %v8515 = vpop.f32.mrb[0].mxu0
      %v8516 = vpop.f32.mrb[0].mxu0
      %v8517 = vadd.f32 %v7972, %v8516
      %v8518 = vpop.f32.mrb[0].mxu0
      %8519 = vmatprep.mubr.bf16.mxu0 %v3731
      %8520 = vmatmul.mubr.bf16.gmra.mrb[0].mxu0 %v3730
      %v8521 = vpop.f32.mrb[0].mxu0
      %v8522 = vadd.f32 %v7977, %v8521
      %v8523 = vpop.f32.mrb[0].mxu0
      %v8524 = vpop.f32.mrb[0].mxu0
      %v8525 = vadd.f32 %v7980, %v8524
      %v8526 = vpop.f32.mrb[0].mxu0
      %8527 = vmatprep.mubr.bf16.mxu0 %v3739
      %8528 = vmatmul.mubr.bf16.gmra.mrb[0].mxu0 %v3738
      %v8529 = vpop.f32.mrb[0].mxu0
      %v8530 = vadd.f32 %v7985, %v8529
      %v8531 = vpop.f32.mrb[0].mxu0
      %v8532 = vpop.f32.mrb[0].mxu0
      %v8533 = vadd.f32 %v7988, %v8532
      %v8534 = vpop.f32.mrb[0].mxu0
      %8535 = vmatprep.mubr.bf16.mxu0 %v3747
      %8536 = vmatmul.mubr.bf16.gmra.mrb[0].mxu0 %v3746
      %v8537 = vpop.f32.mrb[0].mxu0
      %v8538 = vadd.f32 %v7993, %v8537
      %v8539 = vpop.f32.mrb[0].mxu0
      %v8540 = vpop.f32.mrb[0].mxu0
      %v8541 = vadd.f32 %v7996, %v8540
      %v8542 = vpop.f32.mrb[0].mxu0
      %8543 = vmatprep.mubr.bf16.mxu0 %v3755
      %8544 = vmatmul.mubr.bf16.gmra.mrb[0].mxu0 %v3754
      %v8545 = vpop.f32.mrb[0].mxu0
      %v8546 = vadd.f32 %v8001, %v8545
      %v8547 = vpop.f32.mrb[0].mxu0
      %v8548 = vpop.f32.mrb[0].mxu0
      %v8549 = vadd.f32 %v8004, %v8548
      %v8550 = vpop.f32.mrb[0].mxu0
      %8551 = vmatprep.mubr.bf16.mxu0 %v3763
      %8552 = vmatmul.mubr.bf16.gmra.mrb[0].mxu0 %v3762
      %v8553 = vpop.f32.mrb[0].mxu0
      %v8554 = vadd.f32 %v8009, %v8553
      %v8555 = vpop.f32.mrb[0].mxu0
      %v8556 = vpop.f32.mrb[0].mxu0
      %v8557 = vadd.f32 %v8012, %v8556
      %v8558 = vpop.f32.mrb[0].mxu0
      %8559 = vmatprep.mubr.bf16.mxu0 %v3771
      %8560 = vmatmul.mubr.bf16.gmra.mrb[0].mxu0 %v3770
      %v8561 = vpop.f32.mrb[0].mxu0
      %v8562 = vadd.f32 %v8017, %v8561
      %v8563 = vpop.f32.mrb[0].mxu0
      %v8564 = vpop.f32.mrb[0].mxu0
      %v8565 = vadd.f32 %v8020, %v8564
      %v8566 = vpop.f32.mrb[0].mxu0
      %8567 = vmatprep.mubr.bf16.mxu0 %v3779
      %8568 = vmatmul.mubr.bf16.gmra.mrb[0].mxu0 %v3778
      %v8569 = vpop.f32.mrb[0].mxu0
      %v8570 = vadd.f32 %v8025, %v8569
      %v8571 = vpop.f32.mrb[0].mxu0
      %v8572 = vpop.f32.mrb[0].mxu0
      %v8573 = vadd.f32 %v8028, %v8572
      %v8574 = vpop.f32.mrb[0].mxu0
      %8575 = vmatprep.mubr.bf16.mxu0 %v3787
      %8576 = vmatmul.mubr.bf16.gmra.mrb[0].mxu0 %v3786
      %v8577 = vpop.f32.mrb[0].mxu0
      %v8578 = vadd.f32 %v8033, %v8577
      %v8579 = vpop.f32.mrb[0].mxu0
      %v8580 = vpop.f32.mrb[0].mxu0
      %v8581 = vadd.f32 %v8036, %v8580
      %v8582 = vpop.f32.mrb[0].mxu0
      %8583 = vmatprep.mubr.bf16.mxu0 %v3795
      %8584 = vmatmul.mubr.bf16.gmra.mrb[0].mxu0 %v3794
      %v8585 = vpop.f32.mrb[0].mxu0
      %v8586 = vadd.f32 %v8041, %v8585
      %v8587 = vpop.f32.mrb[0].mxu0
      %v8588 = vpop.f32.mrb[0].mxu0
      %v8589 = vadd.f32 %v8044, %v8588
      %v8590 = vpop.f32.mrb[0].mxu0
      %8591 = vmatprep.mubr.bf16.mxu0 %v3803
      %8592 = vmatmul.mubr.bf16.gmra.mrb[0].mxu0 %v3802
      %v8593 = vpop.f32.mrb[0].mxu0
      %v8594 = vadd.f32 %v8049, %v8593
      %v8595 = vpop.f32.mrb[0].mxu0
      %v8596 = vpop.f32.mrb[0].mxu0
      %v8597 = vadd.f32 %v8052, %v8596
      %v8598 = vpop.f32.mrb[0].mxu0
      %8599 = vmatprep.mubr.bf16.mxu0 %v3811
      %8600 = vmatmul.mubr.bf16.gmra.mrb[0].mxu0 %v3810
      %v8601 = vpop.f32.mrb[0].mxu0
      %v8602 = vadd.f32 %v8057, %v8601
      %v8603 = vpop.f32.mrb[0].mxu0
      %v8604 = vpop.f32.mrb[0].mxu0
      %v8605 = vadd.f32 %v8060, %v8604
      %v8606 = vpop.f32.mrb[0].mxu0
      %8607 = vmatprep.mubr.bf16.mxu0 %v3819
      %8608 = vmatmul.mubr.bf16.gmra.mrb[0].mxu0 %v3818
      %v8609 = vpop.f32.mrb[0].mxu0
      %v8610 = vadd.f32 %v8065, %v8609
      %v8611 = vpop.f32.mrb[0].mxu0
      %v8612 = vpop.f32.mrb[0].mxu0
      %v8613 = vadd.f32 %v8068, %v8612
      %v8614 = vpop.f32.mrb[0].mxu0
      %8615 = vmatprep.mubr.bf16.mxu0 %v3827
      %8616 = vmatmul.mubr.bf16.gmra.mrb[0].mxu0 %v3826
      %v8617 = vpop.f32.mrb[0].mxu0
      %v8618 = vadd.f32 %v8073, %v8617
      %v8619 = vpop.f32.mrb[0].mxu0
      %v8620 = vpop.f32.mrb[0].mxu0
      %v8621 = vadd.f32 %v8076, %v8620
      %v8622 = vpop.f32.mrb[0].mxu0
      %8623 = vmatprep.mubr.bf16.mxu0 %v3835
      %8624 = vmatmul.mubr.bf16.gmra.mrb[0].mxu0 %v3834
      %v8625 = vpop.f32.mrb[0].mxu0
      %v8626 = vadd.f32 %v8081, %v8625
      %v8627 = vpop.f32.mrb[0].mxu0
      %v8628 = vpop.f32.mrb[0].mxu0
      %v8629 = vadd.f32 %v8084, %v8628
      %v8630 = vpop.f32.mrb[0].mxu0
      %8631 = vmatprep.mubr.bf16.mxu0 %v3843
      %8632 = vmatmul.mubr.bf16.gmra.mrb[0].mxu0 %v3842
      %v8633 = vpop.f32.mrb[0].mxu0
      %v8634 = vadd.f32 %v8089, %v8633
      %v8635 = vpop.f32.mrb[0].mxu0
      %v8636 = vpop.f32.mrb[0].mxu0
      %v8637 = vadd.f32 %v8092, %v8636
      %v8638 = vpop.f32.mrb[0].mxu0
      %8639 = vmatprep.mubr.bf16.mxu0 %v3851
      %8640 = vmatmul.mubr.bf16.gmra.mrb[0].mxu0 %v3850
      %v8641 = vpop.f32.mrb[0].mxu0
      %v8642 = vadd.f32 %v8097, %v8641
      %v8643 = vpop.f32.mrb[0].mxu0
      %v8644 = vpop.f32.mrb[0].mxu0
      %v8645 = vadd.f32 %v8100, %v8644
      %v8646 = vpop.f32.mrb[0].mxu0
      %8647 = vmatprep.mubr.bf16.mxu0 %v3859
      %8648 = vmatmul.mubr.bf16.gmra.mrb[0].mxu0 %v3858
      %v8649 = vpop.f32.mrb[0].mxu0
      %v8650 = vadd.f32 %v8105, %v8649
      %v8651 = vpop.f32.mrb[0].mxu0
      %v8652 = vpop.f32.mrb[0].mxu0
      %v8653 = vadd.f32 %v8108, %v8652
      %v8654 = vpop.f32.mrb[0].mxu0
      %8655 = vmatprep.mubr.bf16.mxu0 %v3867
      %8656 = vmatmul.mubr.bf16.gmra.mrb[0].mxu0 %v3866
      %v8657 = vpop.f32.mrb[0].mxu0
      %v8658 = vadd.f32 %v8113, %v8657
      %v8659 = vpop.f32.mrb[0].mxu0
      %v8660 = vpop.f32.mrb[0].mxu0
      %v8661 = vadd.f32 %v8116, %v8660
      %v8662 = vpop.f32.mrb[0].mxu0
      %8663 = vmatprep.mubr.bf16.mxu0 %v3875
      %8664 = vmatmul.mubr.bf16.gmra.mrb[0].mxu0 %v3874
      %v8665 = vpop.f32.mrb[0].mxu0
      %v8666 = vadd.f32 %v8121, %v8665
      %v8667 = vpop.f32.mrb[0].mxu0
      %v8668 = vpop.f32.mrb[0].mxu0
      %v8669 = vadd.f32 %v8124, %v8668
      %v8670 = vpop.f32.mrb[0].mxu0
      %8671 = vmatprep.mubr.bf16.mxu0 %v3883
      %8672 = vmatmul.mubr.bf16.gmra.mrb[0].mxu0 %v3882
      %v8673 = vpop.f32.mrb[0].mxu0
      %v8674 = vadd.f32 %v8129, %v8673
      %v8675 = vpop.f32.mrb[0].mxu0
      %v8676 = vpop.f32.mrb[0].mxu0
      %v8677 = vadd.f32 %v8132, %v8676
      %v8678 = vpop.f32.mrb[0].mxu0
      %8679 = vmatprep.mubr.bf16.mxu0 %v3891
      %8680 = vmatmul.mubr.bf16.gmra.mrb[0].mxu0 %v3890
      %v8681 = vpop.f32.mrb[0].mxu0
      %v8682 = vadd.f32 %v8137, %v8681
      %v8683 = vpop.f32.mrb[0].mxu0
      %v8684 = vpop.f32.mrb[0].mxu0
      %v8685 = vadd.f32 %v8140, %v8684
      %v8686 = vpop.f32.mrb[0].mxu0
      %8687 = vmatprep.mubr.bf16.mxu0 %v3899
      %8688 = vmatmul.mubr.bf16.gmra.mrb[0].mxu0 %v3898
      %v8689 = vpop.f32.mrb[0].mxu0
      %v8690 = vadd.f32 %v8145, %v8689
      %v8691 = vpop.f32.mrb[0].mxu0
      %v8692 = vpop.f32.mrb[0].mxu0
      %v8693 = vadd.f32 %v8148, %v8692
      %v8694 = vpop.f32.mrb[0].mxu0
      %8695 = vmatprep.mubr.bf16.mxu0 %v3907
      %8696 = vmatmul.mubr.bf16.gmra.mrb[0].mxu0 %v3906
      %v8697 = vpop.f32.mrb[0].mxu0
      %v8698 = vadd.f32 %v8153, %v8697
      %v8699 = vpop.f32.mrb[0].mxu0
      %v8700 = vpop.f32.mrb[0].mxu0
      %v8701 = vadd.f32 %v8156, %v8700
      %v8702 = vpop.f32.mrb[0].mxu0
      %8703 = vmatprep.mubr.bf16.mxu0 %v3915
      %8704 = vmatmul.mubr.bf16.gmra.mrb[0].mxu0 %v3914
      %v8705 = vpop.f32.mrb[0].mxu0
      %v8706 = vadd.f32 %v8161, %v8705
      %v8707 = vpop.f32.mrb[0].mxu0
      %v8708 = vpop.f32.mrb[0].mxu0
      %v8709 = vadd.f32 %v8164, %v8708
      %v8710 = vpop.f32.mrb[0].mxu0
      %8711 = vmatprep.mubr.bf16.mxu0 %v3923
      %8712 = vmatmul.mubr.bf16.gmra.mrb[0].mxu0 %v3922
      %v8713 = vpop.f32.mrb[0].mxu0
      %v8714 = vadd.f32 %v8169, %v8713
      %v8715 = vpop.f32.mrb[0].mxu0
      %v8716 = vpop.f32.mrb[0].mxu0
      %v8717 = vadd.f32 %v8172, %v8716
      %v8718 = vpop.f32.mrb[0].mxu0
      %8719 = vmatprep.mubr.bf16.mxu0 %v3931
      %8720 = vmatmul.mubr.bf16.gmra.mrb[0].mxu0 %v3930
      %v8721 = vpop.f32.mrb[0].mxu0
      %v8722 = vadd.f32 %v8177, %v8721
      %v8723 = vpop.f32.mrb[0].mxu0
      %v8724 = vpop.f32.mrb[0].mxu0
      %v8725 = vadd.f32 %v8180, %v8724
      %v8726 = vpop.f32.mrb[0].mxu0
      %8727 = vmatprep.mubr.bf16.mxu0 %v3939
      %8728 = vmatmul.mubr.bf16.gmra.mrb[0].mxu0 %v3938
      %v8729 = vpop.f32.mrb[0].mxu0
      %v8730 = vadd.f32 %v8185, %v8729
      %v8731 = vpop.f32.mrb[0].mxu0
      %v8732 = vpop.f32.mrb[0].mxu0
      %v8733 = vadd.f32 %v8188, %v8732
      %v8734 = vpop.f32.mrb[0].mxu0
      %8735 = vmatprep.mubr.bf16.mxu0 %v3947
      %8736 = vmatmul.mubr.bf16.gmra.mrb[0].mxu0 %v3946
      %v8737 = vpop.f32.mrb[0].mxu0
      %v8738 = vadd.f32 %v8193, %v8737
      %v8739 = vpop.f32.mrb[0].mxu0
      %v8740 = vpop.f32.mrb[0].mxu0
      %v8741 = vadd.f32 %v8196, %v8740
      %v8742 = vpop.f32.mrb[0].mxu0
      %8743 = vmatprep.mubr.bf16.mxu0 %v3955
      %8744 = vmatmul.mubr.bf16.gmra.mrb[0].mxu0 %v3954
      %v8745 = vpop.f32.mrb[0].mxu0
      %v8746 = vadd.f32 %v8201, %v8745
      %v8747 = vpop.f32.mrb[0].mxu0
      %v8748 = vpop.f32.mrb[0].mxu0
      %v8749 = vadd.f32 %v8204, %v8748
      %v8750 = vpop.f32.mrb[0].mxu0
      %8751 = vmatprep.mubr.bf16.mxu0 %v3963
      %8752 = vmatmul.mubr.bf16.gmra.mrb[0].mxu0 %v3962
      %v8753 = vpop.f32.mrb[0].mxu0
      %v8754 = vadd.f32 %v8209, %v8753
      %v8755 = vpop.f32.mrb[0].mxu0
      %v8756 = vpop.f32.mrb[0].mxu0
      %v8757 = vadd.f32 %v8212, %v8756
      %v8758 = vpop.f32.mrb[0].mxu0
      %8759 = vmatprep.mubr.bf16.mxu0 %v3971
      %8760 = vmatmul.mubr.bf16.gmra.mrb[0].mxu0 %v3970
      %v8761 = vpop.f32.mrb[0].mxu0
      %v8762 = vadd.f32 %v8217, %v8761
      %v8763 = vpop.f32.mrb[0].mxu0
      %v8764 = vpop.f32.mrb[0].mxu0
      %v8765 = vadd.f32 %v8220, %v8764
      %v8766 = vpop.f32.mrb[0].mxu0
      %8767 = vmatprep.mubr.bf16.mxu0 %v3979
      %8768 = vmatmul.mubr.bf16.gmra.mrb[0].mxu0 %v3978
      %v8769 = vpop.f32.mrb[0].mxu0
      %v8770 = vadd.f32 %v8225, %v8769
      %v8771 = vpop.f32.mrb[0].mxu0
      %v8772 = vpop.f32.mrb[0].mxu0
      %v8773 = vadd.f32 %v8228, %v8772
      %v8774 = vpop.f32.mrb[0].mxu0
      %8775 = vmatprep.mubr.bf16.mxu0 %v3987
      %8776 = vmatmul.mubr.bf16.gmra.mrb[0].mxu0 %v3986
      %v8777 = vpop.f32.mrb[0].mxu0
      %v8778 = vadd.f32 %v8233, %v8777
      %v8779 = vpop.f32.mrb[0].mxu0
      %v8780 = vpop.f32.mrb[0].mxu0
      %v8781 = vadd.f32 %v8236, %v8780
      %v8782 = vpop.f32.mrb[0].mxu0
      %8783 = vmatprep.mubr.bf16.mxu0 %v3995
      %8784 = vmatmul.mubr.bf16.gmra.mrb[0].mxu0 %v3994
      %v8785 = vpop.f32.mrb[0].mxu0
      %v8786 = vadd.f32 %v8241, %v8785
      %v8787 = vpop.f32.mrb[0].mxu0
      %v8788 = vpop.f32.mrb[0].mxu0
      %v8789 = vadd.f32 %v8244, %v8788
      %v8790 = vpop.f32.mrb[0].mxu0
      %8791 = vmatprep.mubr.bf16.mxu0 %v4003
      %8792 = vmatmul.mubr.bf16.gmra.mrb[0].mxu0 %v4002
      %v8793 = vpop.f32.mrb[0].mxu0
      %v8794 = vadd.f32 %v8249, %v8793
      %v8795 = vpop.f32.mrb[0].mxu0
      %v8796 = vpop.f32.mrb[0].mxu0
      %v8797 = vadd.f32 %v8252, %v8796
      %v8798 = vpop.f32.mrb[0].mxu0
      %8799 = vmatprep.mubr.bf16.mxu0 %v4011
      %8800 = vmatmul.mubr.bf16.gmra.mrb[0].mxu0 %v4010
      %v8801 = vpop.f32.mrb[0].mxu0
      %v8802 = vadd.f32 %v8257, %v8801
      %v8803 = vpop.f32.mrb[0].mxu0
      %v8804 = vpop.f32.mrb[0].mxu0
      %v8805 = vadd.f32 %v8260, %v8804
      %v8806 = vpop.f32.mrb[0].mxu0
      %8807 = vmatprep.mubr.bf16.mxu0 %v4019
      %8808 = vmatmul.mubr.bf16.gmra.mrb[0].mxu0 %v4018
      %v8809 = vpop.f32.mrb[0].mxu0
      %v8810 = vadd.f32 %v8265, %v8809
      %v8811 = vpop.f32.mrb[0].mxu0
      %v8812 = vpop.f32.mrb[0].mxu0
      %v8813 = vadd.f32 %v8268, %v8812
      %v8814 = vpop.f32.mrb[0].mxu0
      %8815 = vmatprep.mubr.bf16.mxu0 %v4027
      %8816 = vmatmul.mubr.bf16.gmra.mrb[0].mxu0 %v4026
      %v8817 = vpop.f32.mrb[0].mxu0
      %v8818 = vadd.f32 %v8273, %v8817
      %v8819 = vpop.f32.mrb[0].mxu0
      %v8820 = vpop.f32.mrb[0].mxu0
      %v8821 = vadd.f32 %v8276, %v8820
      %v8822 = vpop.f32.mrb[0].mxu0
      %8823 = vmatprep.mubr.bf16.mxu0 %v4035
      %8824 = vmatmul.mubr.bf16.gmra.mrb[0].mxu0 %v4034
      %v8825 = vpop.f32.mrb[0].mxu0
      %v8826 = vadd.f32 %v8281, %v8825
      %v8827 = vpop.f32.mrb[0].mxu0
      %v8828 = vpop.f32.mrb[0].mxu0
      %v8829 = vadd.f32 %v8284, %v8828
      %v8830 = vpop.f32.mrb[0].mxu0
      %8831 = vmatprep.mubr.bf16.mxu0 %v4043
      %8832 = vmatmul.mubr.bf16.gmra.mrb[0].mxu0 %v4042
      %v8833 = vpop.f32.mrb[0].mxu0
      %v8834 = vadd.f32 %v8289, %v8833
      %v8835 = vpop.f32.mrb[0].mxu0
      %v8836 = vpop.f32.mrb[0].mxu0
      %v8837 = vadd.f32 %v8292, %v8836
      %v8838 = vpop.f32.mrb[0].mxu0
      %8839 = vmatprep.mubr.bf16.mxu0 %v4051
      %8840 = vmatmul.mubr.bf16.gmra.mrb[0].mxu0 %v4050
      %v8841 = vpop.f32.mrb[0].mxu0
      %v8842 = vadd.f32 %v8297, %v8841
      %v8843 = vpop.f32.mrb[0].mxu0
      %v8844 = vpop.f32.mrb[0].mxu0
      %v8845 = vadd.f32 %v8300, %v8844
      %v8846 = vpop.f32.mrb[0].mxu0
      %8847 = vmatprep.mubr.bf16.mxu0 %v4059
      %8848 = vmatmul.mubr.bf16.gmra.mrb[0].mxu0 %v4058
      %v8849 = vpop.f32.mrb[0].mxu0
      %v8850 = vadd.f32 %v8305, %v8849
      %v8851 = vpop.f32.mrb[0].mxu0
      %v8852 = vpop.f32.mrb[0].mxu0
      %v8853 = vadd.f32 %v8308, %v8852
      %v8854 = vpop.f32.mrb[0].mxu0
      %8855 = vmatprep.mubr.bf16.mxu0 %v4067
      %8856 = vmatmul.mubr.bf16.gmra.mrb[0].mxu0 %v4066
      %v8857 = vpop.f32.mrb[0].mxu0
      %v8858 = vadd.f32 %v8313, %v8857
      %v8859 = vpop.f32.mrb[0].mxu0
      %v8860 = vpop.f32.mrb[0].mxu0
      %v8861 = vadd.f32 %v8316, %v8860
      %v8862 = vpop.f32.mrb[0].mxu0
      %8863 = vmatprep.mubr.bf16.mxu0 %v4075
      %8864 = vmatmul.mubr.bf16.gmra.mrb[0].mxu0 %v4074
      %v8865 = vpop.f32.mrb[0].mxu0
      %v8866 = vadd.f32 %v8321, %v8865
      %v8867 = vpop.f32.mrb[0].mxu0
      %v8868 = vpop.f32.mrb[0].mxu0
      %v8869 = vadd.f32 %v8324, %v8868
      %v8870 = vpop.f32.mrb[0].mxu0
      %8871 = vmatprep.mubr.bf16.mxu0 %v4083
      %8872 = vmatmul.mubr.bf16.gmra.mrb[0].mxu0 %v4082
      %v8873 = vpop.f32.mrb[0].mxu0
      %v8874 = vadd.f32 %v8329, %v8873
      %v8875 = vpop.f32.mrb[0].mxu0
      %v8876 = vpop.f32.mrb[0].mxu0
      %v8877 = vadd.f32 %v8332, %v8876
      %v8878 = vpop.f32.mrb[0].mxu0
      %8879 = vmatprep.mubr.bf16.mxu0 %v4091
      %8880 = vmatmul.mubr.bf16.gmra.mrb[0].mxu0 %v4090
      %v8881 = vpop.f32.mrb[0].mxu0
      %v8882 = vadd.f32 %v8337, %v8881
      %v8883 = vpop.f32.mrb[0].mxu0
      %v8884 = vpop.f32.mrb[0].mxu0
      %v8885 = vadd.f32 %v8340, %v8884
      %v8886 = vpop.f32.mrb[0].mxu0
      %8887 = vmatprep.mubr.bf16.mxu0 %v4099
      %8888 = vmatmul.mubr.bf16.gmra.mrb[0].mxu0 %v4098
      %v8889 = vpop.f32.mrb[0].mxu0
      %v8890 = vadd.f32 %v8345, %v8889
      %v8891 = vpop.f32.mrb[0].mxu0
      %v8892 = vpop.f32.mrb[0].mxu0
      %v8893 = vadd.f32 %v8348, %v8892
      %v8894 = vpop.f32.mrb[0].mxu0
      %8895 = vmatprep.mubr.bf16.mxu0 %v4107
      %8896 = vmatmul.mubr.bf16.gmra.mrb[0].mxu0 %v4106
      %v8897 = vpop.f32.mrb[0].mxu0
      %v8898 = vadd.f32 %v8353, %v8897
      %v8899 = vpop.f32.mrb[0].mxu0
      %v8900 = vpop.f32.mrb[0].mxu0
      %v8901 = vadd.f32 %v8356, %v8900
      %v8902 = vpop.f32.mrb[0].mxu0
      %8903 = vdwg.mxu0
      %8904 = vmatprep.subr.bf16.mxu0 0
      %8905 = vmatpush1.bf16.msra.mxu0 %v7778
      %8906 = vmatprep.subr.bf16.mxu0 0
      %8907 = vmatpush1.bf16.msra.mxu0 %v7779
      %8908 = vmatprep.subr.bf16.mxu0 0
      %8909 = vmatpush1.bf16.msra.mxu0 %v7780
      %8910 = vmatprep.subr.bf16.mxu0 0
      %8911 = vmatpush1.bf16.msra.mxu0 %v7781
      %8912 = vmatprep.subr.bf16.mxu0 0
      %8913 = vmatpush1.bf16.msra.mxu0 %v7782
      %8914 = vmatprep.subr.bf16.mxu0 0
      %8915 = vmatpush1.bf16.msra.mxu0 %v7783
      %8916 = vmatprep.subr.bf16.mxu0 0
      %8917 = vmatpush1.bf16.msra.mxu0 %v7784
      %8918 = vmatprep.subr.bf16.mxu0 0
      %8919 = vmatpush1.bf16.msra.mxu0 %v7785
      %8920 = vmatprep.subr.bf16.mxu0 0
      %8921 = vmatpush1.bf16.msra.mxu0 %v7786
      %8922 = vmatprep.subr.bf16.mxu0 0
      %8923 = vmatpush1.bf16.msra.mxu0 %v7787
      %8924 = vmatprep.subr.bf16.mxu0 0
      %8925 = vmatpush1.bf16.msra.mxu0 %v7788
      %8926 = vmatprep.subr.bf16.mxu0 0
      %8927 = vmatpush1.bf16.msra.mxu0 %v7789
      %8928 = vmatprep.subr.bf16.mxu0 0
      %8929 = vmatpush1.bf16.msra.mxu0 %v7790
      %8930 = vmatprep.subr.bf16.mxu0 0
      %8931 = vmatpush1.bf16.msra.mxu0 %v7791
      %8932 = vmatprep.subr.bf16.mxu0 0
      %8933 = vmatpush1.bf16.msra.mxu0 %v7792
      %8934 = vmatprep.subr.bf16.mxu0 0
      %8935 = vmatpush1.bf16.msra.mxu0 %v7793
      %8936 = vmatprep.mubr.bf16.mxu0 %v3605
      %8937 = vmatmul.mubr.bf16.gmra.mrb[0].mxu0 %v3604
      %v8938 = vpop.f32.mrb[0].mxu0
      %v8939 = vadd.f32 %v8394, %v8938
      %v8940 = vpop.f32.mrb[0].mxu0
      %v8941 = vpop.f32.mrb[0].mxu0
      %v8942 = vadd.f32 %v8397, %v8941
      %v8943 = vpop.f32.mrb[0].mxu0
      %8944 = vmatprep.mubr.bf16.mxu0 %v3613
      %8945 = vmatmul.mubr.bf16.gmra.mrb[0].mxu0 %v3612
      %v8946 = vpop.f32.mrb[0].mxu0
      %v8947 = vadd.f32 %v8402, %v8946
      %v8948 = vpop.f32.mrb[0].mxu0
      %v8949 = vpop.f32.mrb[0].mxu0
      %v8950 = vadd.f32 %v8405, %v8949
      %v8951 = vpop.f32.mrb[0].mxu0
      %8952 = vmatprep.mubr.bf16.mxu0 %v3621
      %8953 = vmatmul.mubr.bf16.gmra.mrb[0].mxu0 %v3620
      %v8954 = vpop.f32.mrb[0].mxu0
      %v8955 = vadd.f32 %v8410, %v8954
      %v8956 = vpop.f32.mrb[0].mxu0
      %v8957 = vpop.f32.mrb[0].mxu0
      %v8958 = vadd.f32 %v8413, %v8957
      %v8959 = vpop.f32.mrb[0].mxu0
      %8960 = vmatprep.mubr.bf16.mxu0 %v3629
      %8961 = vmatmul.mubr.bf16.gmra.mrb[0].mxu0 %v3628
      %v8962 = vpop.f32.mrb[0].mxu0
      %v8963 = vadd.f32 %v8418, %v8962
      %v8964 = vpop.f32.mrb[0].mxu0
      %v8965 = vpop.f32.mrb[0].mxu0
      %v8966 = vadd.f32 %v8421, %v8965
      %v8967 = vpop.f32.mrb[0].mxu0
      %8968 = vmatprep.mubr.bf16.mxu0 %v3637
      %8969 = vmatmul.mubr.bf16.gmra.mrb[0].mxu0 %v3636
      %v8970 = vpop.f32.mrb[0].mxu0
      %v8971 = vadd.f32 %v8426, %v8970
      %v8972 = vpop.f32.mrb[0].mxu0
      %v8973 = vpop.f32.mrb[0].mxu0
      %v8974 = vadd.f32 %v8429, %v8973
      %v8975 = vpop.f32.mrb[0].mxu0
      %8976 = vmatprep.mubr.bf16.mxu0 %v3645
      %8977 = vmatmul.mubr.bf16.gmra.mrb[0].mxu0 %v3644
      %v8978 = vpop.f32.mrb[0].mxu0
      %v8979 = vadd.f32 %v8434, %v8978
      %v8980 = vpop.f32.mrb[0].mxu0
      %v8981 = vpop.f32.mrb[0].mxu0
      %v8982 = vadd.f32 %v8437, %v8981
      %v8983 = vpop.f32.mrb[0].mxu0
      %8984 = vmatprep.mubr.bf16.mxu0 %v3653
      %8985 = vmatmul.mubr.bf16.gmra.mrb[0].mxu0 %v3652
      %v8986 = vpop.f32.mrb[0].mxu0
      %v8987 = vadd.f32 %v8442, %v8986
      %v8988 = vpop.f32.mrb[0].mxu0
      %v8989 = vpop.f32.mrb[0].mxu0
      %v8990 = vadd.f32 %v8445, %v8989
      %v8991 = vpop.f32.mrb[0].mxu0
      %8992 = vmatprep.mubr.bf16.mxu0 %v3661
      %8993 = vmatmul.mubr.bf16.gmra.mrb[0].mxu0 %v3660
      %v8994 = vpop.f32.mrb[0].mxu0
      %v8995 = vadd.f32 %v8450, %v8994
      %v8996 = vpop.f32.mrb[0].mxu0
      %v8997 = vpop.f32.mrb[0].mxu0
      %v8998 = vadd.f32 %v8453, %v8997
      %v8999 = vpop.f32.mrb[0].mxu0
      %9000 = vmatprep.mubr.bf16.mxu0 %v3669
      %9001 = vmatmul.mubr.bf16.gmra.mrb[0].mxu0 %v3668
      %v9002 = vpop.f32.mrb[0].mxu0
      %v9003 = vadd.f32 %v8458, %v9002
      %v9004 = vpop.f32.mrb[0].mxu0
      %v9005 = vpop.f32.mrb[0].mxu0
      %v9006 = vadd.f32 %v8461, %v9005
      %v9007 = vpop.f32.mrb[0].mxu0
      %9008 = vmatprep.mubr.bf16.mxu0 %v3677
      %9009 = vmatmul.mubr.bf16.gmra.mrb[0].mxu0 %v3676
      %v9010 = vpop.f32.mrb[0].mxu0
      %v9011 = vadd.f32 %v8466, %v9010
      %v9012 = vpop.f32.mrb[0].mxu0
      %v9013 = vpop.f32.mrb[0].mxu0
      %v9014 = vadd.f32 %v8469, %v9013
      %v9015 = vpop.f32.mrb[0].mxu0
      %9016 = vmatprep.mubr.bf16.mxu0 %v3685
      %9017 = vmatmul.mubr.bf16.gmra.mrb[0].mxu0 %v3684
      %v9018 = vpop.f32.mrb[0].mxu0
      %v9019 = vadd.f32 %v8474, %v9018
      %v9020 = vpop.f32.mrb[0].mxu0
      %v9021 = vpop.f32.mrb[0].mxu0
      %v9022 = vadd.f32 %v8477, %v9021
      %v9023 = vpop.f32.mrb[0].mxu0
      %9024 = vmatprep.mubr.bf16.mxu0 %v3693
      %9025 = vmatmul.mubr.bf16.gmra.mrb[0].mxu0 %v3692
      %v9026 = vpop.f32.mrb[0].mxu0
      %v9027 = vadd.f32 %v8482, %v9026
      %v9028 = vpop.f32.mrb[0].mxu0
      %v9029 = vpop.f32.mrb[0].mxu0
      %v9030 = vadd.f32 %v8485, %v9029
      %v9031 = vpop.f32.mrb[0].mxu0
      %9032 = vmatprep.mubr.bf16.mxu0 %v3701
      %9033 = vmatmul.mubr.bf16.gmra.mrb[0].mxu0 %v3700
      %v9034 = vpop.f32.mrb[0].mxu0
      %v9035 = vadd.f32 %v8490, %v9034
      %v9036 = vpop.f32.mrb[0].mxu0
      %v9037 = vpop.f32.mrb[0].mxu0
      %v9038 = vadd.f32 %v8493, %v9037
      %v9039 = vpop.f32.mrb[0].mxu0
      %9040 = vmatprep.mubr.bf16.mxu0 %v3709
      %9041 = vmatmul.mubr.bf16.gmra.mrb[0].mxu0 %v3708
      %v9042 = vpop.f32.mrb[0].mxu0
      %v9043 = vadd.f32 %v8498, %v9042
      %v9044 = vpop.f32.mrb[0].mxu0
      %v9045 = vpop.f32.mrb[0].mxu0
      %v9046 = vadd.f32 %v8501, %v9045
      %v9047 = vpop.f32.mrb[0].mxu0
      %9048 = vmatprep.mubr.bf16.mxu0 %v3717
      %9049 = vmatmul.mubr.bf16.gmra.mrb[0].mxu0 %v3716
      %v9050 = vpop.f32.mrb[0].mxu0
      %v9051 = vadd.f32 %v8506, %v9050
      %v9052 = vpop.f32.mrb[0].mxu0
      %v9053 = vpop.f32.mrb[0].mxu0
      %v9054 = vadd.f32 %v8509, %v9053
      %v9055 = vpop.f32.mrb[0].mxu0
      %9056 = vmatprep.mubr.bf16.mxu0 %v3725
      %9057 = vmatmul.mubr.bf16.gmra.mrb[0].mxu0 %v3724
      %v9058 = vpop.f32.mrb[0].mxu0
      %v9059 = vadd.f32 %v8514, %v9058
      %v9060 = vpop.f32.mrb[0].mxu0
      %v9061 = vpop.f32.mrb[0].mxu0
      %v9062 = vadd.f32 %v8517, %v9061
      %v9063 = vpop.f32.mrb[0].mxu0
      %9064 = vmatprep.mubr.bf16.mxu0 %v3733
      %9065 = vmatmul.mubr.bf16.gmra.mrb[0].mxu0 %v3732
      %v9066 = vpop.f32.mrb[0].mxu0
      %v9067 = vadd.f32 %v8522, %v9066
      %v9068 = vpop.f32.mrb[0].mxu0
      %v9069 = vpop.f32.mrb[0].mxu0
      %v9070 = vadd.f32 %v8525, %v9069
      %v9071 = vpop.f32.mrb[0].mxu0
      %9072 = vmatprep.mubr.bf16.mxu0 %v3741
      %9073 = vmatmul.mubr.bf16.gmra.mrb[0].mxu0 %v3740
      %v9074 = vpop.f32.mrb[0].mxu0
      %v9075 = vadd.f32 %v8530, %v9074
      %v9076 = vpop.f32.mrb[0].mxu0
      %v9077 = vpop.f32.mrb[0].mxu0
      %v9078 = vadd.f32 %v8533, %v9077
      %v9079 = vpop.f32.mrb[0].mxu0
      %9080 = vmatprep.mubr.bf16.mxu0 %v3749
      %9081 = vmatmul.mubr.bf16.gmra.mrb[0].mxu0 %v3748
      %v9082 = vpop.f32.mrb[0].mxu0
      %v9083 = vadd.f32 %v8538, %v9082
      %v9084 = vpop.f32.mrb[0].mxu0
      %v9085 = vpop.f32.mrb[0].mxu0
      %v9086 = vadd.f32 %v8541, %v9085
      %v9087 = vpop.f32.mrb[0].mxu0
      %9088 = vmatprep.mubr.bf16.mxu0 %v3757
      %9089 = vmatmul.mubr.bf16.gmra.mrb[0].mxu0 %v3756
      %v9090 = vpop.f32.mrb[0].mxu0
      %v9091 = vadd.f32 %v8546, %v9090
      %v9092 = vpop.f32.mrb[0].mxu0
      %v9093 = vpop.f32.mrb[0].mxu0
      %v9094 = vadd.f32 %v8549, %v9093
      %v9095 = vpop.f32.mrb[0].mxu0
      %9096 = vmatprep.mubr.bf16.mxu0 %v3765
      %9097 = vmatmul.mubr.bf16.gmra.mrb[0].mxu0 %v3764
      %v9098 = vpop.f32.mrb[0].mxu0
      %v9099 = vadd.f32 %v8554, %v9098
      %v9100 = vpop.f32.mrb[0].mxu0
      %v9101 = vpop.f32.mrb[0].mxu0
      %v9102 = vadd.f32 %v8557, %v9101
      %v9103 = vpop.f32.mrb[0].mxu0
      %9104 = vmatprep.mubr.bf16.mxu0 %v3773
      %9105 = vmatmul.mubr.bf16.gmra.mrb[0].mxu0 %v3772
      %v9106 = vpop.f32.mrb[0].mxu0
      %v9107 = vadd.f32 %v8562, %v9106
      %v9108 = vpop.f32.mrb[0].mxu0
      %v9109 = vpop.f32.mrb[0].mxu0
      %v9110 = vadd.f32 %v8565, %v9109
      %v9111 = vpop.f32.mrb[0].mxu0
      %9112 = vmatprep.mubr.bf16.mxu0 %v3781
      %9113 = vmatmul.mubr.bf16.gmra.mrb[0].mxu0 %v3780
      %v9114 = vpop.f32.mrb[0].mxu0
      %v9115 = vadd.f32 %v8570, %v9114
      %v9116 = vpop.f32.mrb[0].mxu0
      %v9117 = vpop.f32.mrb[0].mxu0
      %v9118 = vadd.f32 %v8573, %v9117
      %v9119 = vpop.f32.mrb[0].mxu0
      %9120 = vmatprep.mubr.bf16.mxu0 %v3789
      %9121 = vmatmul.mubr.bf16.gmra.mrb[0].mxu0 %v3788
      %v9122 = vpop.f32.mrb[0].mxu0
      %v9123 = vadd.f32 %v8578, %v9122
      %v9124 = vpop.f32.mrb[0].mxu0
      %v9125 = vpop.f32.mrb[0].mxu0
      %v9126 = vadd.f32 %v8581, %v9125
      %v9127 = vpop.f32.mrb[0].mxu0
      %9128 = vmatprep.mubr.bf16.mxu0 %v3797
      %9129 = vmatmul.mubr.bf16.gmra.mrb[0].mxu0 %v3796
      %v9130 = vpop.f32.mrb[0].mxu0
      %v9131 = vadd.f32 %v8586, %v9130
      %v9132 = vpop.f32.mrb[0].mxu0
      %v9133 = vpop.f32.mrb[0].mxu0
      %v9134 = vadd.f32 %v8589, %v9133
      %v9135 = vpop.f32.mrb[0].mxu0
      %9136 = vmatprep.mubr.bf16.mxu0 %v3805
      %9137 = vmatmul.mubr.bf16.gmra.mrb[0].mxu0 %v3804
      %v9138 = vpop.f32.mrb[0].mxu0
      %v9139 = vadd.f32 %v8594, %v9138
      %v9140 = vpop.f32.mrb[0].mxu0
      %v9141 = vpop.f32.mrb[0].mxu0
      %v9142 = vadd.f32 %v8597, %v9141
      %v9143 = vpop.f32.mrb[0].mxu0
      %9144 = vmatprep.mubr.bf16.mxu0 %v3813
      %9145 = vmatmul.mubr.bf16.gmra.mrb[0].mxu0 %v3812
      %v9146 = vpop.f32.mrb[0].mxu0
      %v9147 = vadd.f32 %v8602, %v9146
      %v9148 = vpop.f32.mrb[0].mxu0
      %v9149 = vpop.f32.mrb[0].mxu0
      %v9150 = vadd.f32 %v8605, %v9149
      %v9151 = vpop.f32.mrb[0].mxu0
      %9152 = vmatprep.mubr.bf16.mxu0 %v3821
      %9153 = vmatmul.mubr.bf16.gmra.mrb[0].mxu0 %v3820
      %v9154 = vpop.f32.mrb[0].mxu0
      %v9155 = vadd.f32 %v8610, %v9154
      %v9156 = vpop.f32.mrb[0].mxu0
      %v9157 = vpop.f32.mrb[0].mxu0
      %v9158 = vadd.f32 %v8613, %v9157
      %v9159 = vpop.f32.mrb[0].mxu0
      %9160 = vmatprep.mubr.bf16.mxu0 %v3829
      %9161 = vmatmul.mubr.bf16.gmra.mrb[0].mxu0 %v3828
      %v9162 = vpop.f32.mrb[0].mxu0
      %v9163 = vadd.f32 %v8618, %v9162
      %v9164 = vpop.f32.mrb[0].mxu0
      %v9165 = vpop.f32.mrb[0].mxu0
      %v9166 = vadd.f32 %v8621, %v9165
      %v9167 = vpop.f32.mrb[0].mxu0
      %9168 = vmatprep.mubr.bf16.mxu0 %v3837
      %9169 = vmatmul.mubr.bf16.gmra.mrb[0].mxu0 %v3836
      %v9170 = vpop.f32.mrb[0].mxu0
      %v9171 = vadd.f32 %v8626, %v9170
      %v9172 = vpop.f32.mrb[0].mxu0
      %v9173 = vpop.f32.mrb[0].mxu0
      %v9174 = vadd.f32 %v8629, %v9173
      %v9175 = vpop.f32.mrb[0].mxu0
      %9176 = vmatprep.mubr.bf16.mxu0 %v3845
      %9177 = vmatmul.mubr.bf16.gmra.mrb[0].mxu0 %v3844
      %v9178 = vpop.f32.mrb[0].mxu0
      %v9179 = vadd.f32 %v8634, %v9178
      %v9180 = vpop.f32.mrb[0].mxu0
      %v9181 = vpop.f32.mrb[0].mxu0
      %v9182 = vadd.f32 %v8637, %v9181
      %v9183 = vpop.f32.mrb[0].mxu0
      %9184 = vmatprep.mubr.bf16.mxu0 %v3853
      %9185 = vmatmul.mubr.bf16.gmra.mrb[0].mxu0 %v3852
      %v9186 = vpop.f32.mrb[0].mxu0
      %v9187 = vadd.f32 %v8642, %v9186
      %v9188 = vpop.f32.mrb[0].mxu0
      %v9189 = vpop.f32.mrb[0].mxu0
      %v9190 = vadd.f32 %v8645, %v9189
      %v9191 = vpop.f32.mrb[0].mxu0
      %9192 = vmatprep.mubr.bf16.mxu0 %v3861
      %9193 = vmatmul.mubr.bf16.gmra.mrb[0].mxu0 %v3860
      %v9194 = vpop.f32.mrb[0].mxu0
      %v9195 = vadd.f32 %v8650, %v9194
      %v9196 = vpop.f32.mrb[0].mxu0
      %v9197 = vpop.f32.mrb[0].mxu0
      %v9198 = vadd.f32 %v8653, %v9197
      %v9199 = vpop.f32.mrb[0].mxu0
      %9200 = vmatprep.mubr.bf16.mxu0 %v3869
      %9201 = vmatmul.mubr.bf16.gmra.mrb[0].mxu0 %v3868
      %v9202 = vpop.f32.mrb[0].mxu0
      %v9203 = vadd.f32 %v8658, %v9202
      %v9204 = vpop.f32.mrb[0].mxu0
      %v9205 = vpop.f32.mrb[0].mxu0
      %v9206 = vadd.f32 %v8661, %v9205
      %v9207 = vpop.f32.mrb[0].mxu0
      %9208 = vmatprep.mubr.bf16.mxu0 %v3877
      %9209 = vmatmul.mubr.bf16.gmra.mrb[0].mxu0 %v3876
      %v9210 = vpop.f32.mrb[0].mxu0
      %v9211 = vadd.f32 %v8666, %v9210
      %v9212 = vpop.f32.mrb[0].mxu0
      %v9213 = vpop.f32.mrb[0].mxu0
      %v9214 = vadd.f32 %v8669, %v9213
      %v9215 = vpop.f32.mrb[0].mxu0
      %9216 = vmatprep.mubr.bf16.mxu0 %v3885
      %9217 = vmatmul.mubr.bf16.gmra.mrb[0].mxu0 %v3884
      %v9218 = vpop.f32.mrb[0].mxu0
      %v9219 = vadd.f32 %v8674, %v9218
      %v9220 = vpop.f32.mrb[0].mxu0
      %v9221 = vpop.f32.mrb[0].mxu0
      %v9222 = vadd.f32 %v8677, %v9221
      %v9223 = vpop.f32.mrb[0].mxu0
      %9224 = vmatprep.mubr.bf16.mxu0 %v3893
      %9225 = vmatmul.mubr.bf16.gmra.mrb[0].mxu0 %v3892
      %v9226 = vpop.f32.mrb[0].mxu0
      %v9227 = vadd.f32 %v8682, %v9226
      %v9228 = vpop.f32.mrb[0].mxu0
      %v9229 = vpop.f32.mrb[0].mxu0
      %v9230 = vadd.f32 %v8685, %v9229
      %v9231 = vpop.f32.mrb[0].mxu0
      %9232 = vmatprep.mubr.bf16.mxu0 %v3901
      %9233 = vmatmul.mubr.bf16.gmra.mrb[0].mxu0 %v3900
      %v9234 = vpop.f32.mrb[0].mxu0
      %v9235 = vadd.f32 %v8690, %v9234
      %v9236 = vpop.f32.mrb[0].mxu0
      %v9237 = vpop.f32.mrb[0].mxu0
      %v9238 = vadd.f32 %v8693, %v9237
      %v9239 = vpop.f32.mrb[0].mxu0
      %9240 = vmatprep.mubr.bf16.mxu0 %v3909
      %9241 = vmatmul.mubr.bf16.gmra.mrb[0].mxu0 %v3908
      %v9242 = vpop.f32.mrb[0].mxu0
      %v9243 = vadd.f32 %v8698, %v9242
      %v9244 = vpop.f32.mrb[0].mxu0
      %v9245 = vpop.f32.mrb[0].mxu0
      %v9246 = vadd.f32 %v8701, %v9245
      %v9247 = vpop.f32.mrb[0].mxu0
      %9248 = vmatprep.mubr.bf16.mxu0 %v3917
      %9249 = vmatmul.mubr.bf16.gmra.mrb[0].mxu0 %v3916
      %v9250 = vpop.f32.mrb[0].mxu0
      %v9251 = vadd.f32 %v8706, %v9250
      %v9252 = vpop.f32.mrb[0].mxu0
      %v9253 = vpop.f32.mrb[0].mxu0
      %v9254 = vadd.f32 %v8709, %v9253
      %v9255 = vpop.f32.mrb[0].mxu0
      %9256 = vmatprep.mubr.bf16.mxu0 %v3925
      %9257 = vmatmul.mubr.bf16.gmra.mrb[0].mxu0 %v3924
      %v9258 = vpop.f32.mrb[0].mxu0
      %v9259 = vadd.f32 %v8714, %v9258
      %v9260 = vpop.f32.mrb[0].mxu0
      %v9261 = vpop.f32.mrb[0].mxu0
      %v9262 = vadd.f32 %v8717, %v9261
      %v9263 = vpop.f32.mrb[0].mxu0
      %9264 = vmatprep.mubr.bf16.mxu0 %v3933
      %9265 = vmatmul.mubr.bf16.gmra.mrb[0].mxu0 %v3932
      %v9266 = vpop.f32.mrb[0].mxu0
      %v9267 = vadd.f32 %v8722, %v9266
      %v9268 = vpop.f32.mrb[0].mxu0
      %v9269 = vpop.f32.mrb[0].mxu0
      %v9270 = vadd.f32 %v8725, %v9269
      %v9271 = vpop.f32.mrb[0].mxu0
      %9272 = vmatprep.mubr.bf16.mxu0 %v3941
      %9273 = vmatmul.mubr.bf16.gmra.mrb[0].mxu0 %v3940
      %v9274 = vpop.f32.mrb[0].mxu0
      %v9275 = vadd.f32 %v8730, %v9274
      %v9276 = vpop.f32.mrb[0].mxu0
      %v9277 = vpop.f32.mrb[0].mxu0
      %v9278 = vadd.f32 %v8733, %v9277
      %v9279 = vpop.f32.mrb[0].mxu0
      %9280 = vmatprep.mubr.bf16.mxu0 %v3949
      %9281 = vmatmul.mubr.bf16.gmra.mrb[0].mxu0 %v3948
      %v9282 = vpop.f32.mrb[0].mxu0
      %v9283 = vadd.f32 %v8738, %v9282
      %v9284 = vpop.f32.mrb[0].mxu0
      %v9285 = vpop.f32.mrb[0].mxu0
      %v9286 = vadd.f32 %v8741, %v9285
      %v9287 = vpop.f32.mrb[0].mxu0
      %9288 = vmatprep.mubr.bf16.mxu0 %v3957
      %9289 = vmatmul.mubr.bf16.gmra.mrb[0].mxu0 %v3956
      %v9290 = vpop.f32.mrb[0].mxu0
      %v9291 = vadd.f32 %v8746, %v9290
      %v9292 = vpop.f32.mrb[0].mxu0
      %v9293 = vpop.f32.mrb[0].mxu0
      %v9294 = vadd.f32 %v8749, %v9293
      %v9295 = vpop.f32.mrb[0].mxu0
      %9296 = vmatprep.mubr.bf16.mxu0 %v3965
      %9297 = vmatmul.mubr.bf16.gmra.mrb[0].mxu0 %v3964
      %v9298 = vpop.f32.mrb[0].mxu0
      %v9299 = vadd.f32 %v8754, %v9298
      %v9300 = vpop.f32.mrb[0].mxu0
      %v9301 = vpop.f32.mrb[0].mxu0
      %v9302 = vadd.f32 %v8757, %v9301
      %v9303 = vpop.f32.mrb[0].mxu0
      %9304 = vmatprep.mubr.bf16.mxu0 %v3973
      %9305 = vmatmul.mubr.bf16.gmra.mrb[0].mxu0 %v3972
      %v9306 = vpop.f32.mrb[0].mxu0
      %v9307 = vadd.f32 %v8762, %v9306
      %v9308 = vpop.f32.mrb[0].mxu0
      %v9309 = vpop.f32.mrb[0].mxu0
      %v9310 = vadd.f32 %v8765, %v9309
      %v9311 = vpop.f32.mrb[0].mxu0
      %9312 = vmatprep.mubr.bf16.mxu0 %v3981
      %9313 = vmatmul.mubr.bf16.gmra.mrb[0].mxu0 %v3980
      %v9314 = vpop.f32.mrb[0].mxu0
      %v9315 = vadd.f32 %v8770, %v9314
      %v9316 = vpop.f32.mrb[0].mxu0
      %v9317 = vpop.f32.mrb[0].mxu0
      %v9318 = vadd.f32 %v8773, %v9317
      %v9319 = vpop.f32.mrb[0].mxu0
      %9320 = vmatprep.mubr.bf16.mxu0 %v3989
      %9321 = vmatmul.mubr.bf16.gmra.mrb[0].mxu0 %v3988
      %v9322 = vpop.f32.mrb[0].mxu0
      %v9323 = vadd.f32 %v8778, %v9322
      %v9324 = vpop.f32.mrb[0].mxu0
      %v9325 = vpop.f32.mrb[0].mxu0
      %v9326 = vadd.f32 %v8781, %v9325
      %v9327 = vpop.f32.mrb[0].mxu0
      %9328 = vmatprep.mubr.bf16.mxu0 %v3997
      %9329 = vmatmul.mubr.bf16.gmra.mrb[0].mxu0 %v3996
      %v9330 = vpop.f32.mrb[0].mxu0
      %v9331 = vadd.f32 %v8786, %v9330
      %v9332 = vpop.f32.mrb[0].mxu0
      %v9333 = vpop.f32.mrb[0].mxu0
      %v9334 = vadd.f32 %v8789, %v9333
      %v9335 = vpop.f32.mrb[0].mxu0
      %9336 = vmatprep.mubr.bf16.mxu0 %v4005
      %9337 = vmatmul.mubr.bf16.gmra.mrb[0].mxu0 %v4004
      %v9338 = vpop.f32.mrb[0].mxu0
      %v9339 = vadd.f32 %v8794, %v9338
      %v9340 = vpop.f32.mrb[0].mxu0
      %v9341 = vpop.f32.mrb[0].mxu0
      %v9342 = vadd.f32 %v8797, %v9341
      %v9343 = vpop.f32.mrb[0].mxu0
      %9344 = vmatprep.mubr.bf16.mxu0 %v4013
      %9345 = vmatmul.mubr.bf16.gmra.mrb[0].mxu0 %v4012
      %v9346 = vpop.f32.mrb[0].mxu0
      %v9347 = vadd.f32 %v8802, %v9346
      %v9348 = vpop.f32.mrb[0].mxu0
      %v9349 = vpop.f32.mrb[0].mxu0
      %v9350 = vadd.f32 %v8805, %v9349
      %v9351 = vpop.f32.mrb[0].mxu0
      %9352 = vmatprep.mubr.bf16.mxu0 %v4021
      %9353 = vmatmul.mubr.bf16.gmra.mrb[0].mxu0 %v4020
      %v9354 = vpop.f32.mrb[0].mxu0
      %v9355 = vadd.f32 %v8810, %v9354
      %v9356 = vpop.f32.mrb[0].mxu0
      %v9357 = vpop.f32.mrb[0].mxu0
      %v9358 = vadd.f32 %v8813, %v9357
      %v9359 = vpop.f32.mrb[0].mxu0
      %9360 = vmatprep.mubr.bf16.mxu0 %v4029
      %9361 = vmatmul.mubr.bf16.gmra.mrb[0].mxu0 %v4028
      %v9362 = vpop.f32.mrb[0].mxu0
      %v9363 = vadd.f32 %v8818, %v9362
      %v9364 = vpop.f32.mrb[0].mxu0
      %v9365 = vpop.f32.mrb[0].mxu0
      %v9366 = vadd.f32 %v8821, %v9365
      %v9367 = vpop.f32.mrb[0].mxu0
      %9368 = vmatprep.mubr.bf16.mxu0 %v4037
      %9369 = vmatmul.mubr.bf16.gmra.mrb[0].mxu0 %v4036
      %v9370 = vpop.f32.mrb[0].mxu0
      %v9371 = vadd.f32 %v8826, %v9370
      %v9372 = vpop.f32.mrb[0].mxu0
      %v9373 = vpop.f32.mrb[0].mxu0
      %v9374 = vadd.f32 %v8829, %v9373
      %v9375 = vpop.f32.mrb[0].mxu0
      %9376 = vmatprep.mubr.bf16.mxu0 %v4045
      %9377 = vmatmul.mubr.bf16.gmra.mrb[0].mxu0 %v4044
      %v9378 = vpop.f32.mrb[0].mxu0
      %v9379 = vadd.f32 %v8834, %v9378
      %v9380 = vpop.f32.mrb[0].mxu0
      %v9381 = vpop.f32.mrb[0].mxu0
      %v9382 = vadd.f32 %v8837, %v9381
      %v9383 = vpop.f32.mrb[0].mxu0
      %9384 = vmatprep.mubr.bf16.mxu0 %v4053
      %9385 = vmatmul.mubr.bf16.gmra.mrb[0].mxu0 %v4052
      %v9386 = vpop.f32.mrb[0].mxu0
      %v9387 = vadd.f32 %v8842, %v9386
      %v9388 = vpop.f32.mrb[0].mxu0
      %v9389 = vpop.f32.mrb[0].mxu0
      %v9390 = vadd.f32 %v8845, %v9389
      %v9391 = vpop.f32.mrb[0].mxu0
      %9392 = vmatprep.mubr.bf16.mxu0 %v4061
      %9393 = vmatmul.mubr.bf16.gmra.mrb[0].mxu0 %v4060
      %v9394 = vpop.f32.mrb[0].mxu0
      %v9395 = vadd.f32 %v8850, %v9394
      %v9396 = vpop.f32.mrb[0].mxu0
      %v9397 = vpop.f32.mrb[0].mxu0
      %v9398 = vadd.f32 %v8853, %v9397
      %v9399 = vpop.f32.mrb[0].mxu0
      %9400 = vmatprep.mubr.bf16.mxu0 %v4069
      %9401 = vmatmul.mubr.bf16.gmra.mrb[0].mxu0 %v4068
      %v9402 = vpop.f32.mrb[0].mxu0
      %v9403 = vadd.f32 %v8858, %v9402
      %v9404 = vpop.f32.mrb[0].mxu0
      %v9405 = vpop.f32.mrb[0].mxu0
      %v9406 = vadd.f32 %v8861, %v9405
      %v9407 = vpop.f32.mrb[0].mxu0
      %9408 = vmatprep.mubr.bf16.mxu0 %v4077
      %9409 = vmatmul.mubr.bf16.gmra.mrb[0].mxu0 %v4076
      %v9410 = vpop.f32.mrb[0].mxu0
      %v9411 = vadd.f32 %v8866, %v9410
      %v9412 = vpop.f32.mrb[0].mxu0
      %v9413 = vpop.f32.mrb[0].mxu0
      %v9414 = vadd.f32 %v8869, %v9413
      %v9415 = vpop.f32.mrb[0].mxu0
      %9416 = vmatprep.mubr.bf16.mxu0 %v4085
      %9417 = vmatmul.mubr.bf16.gmra.mrb[0].mxu0 %v4084
      %v9418 = vpop.f32.mrb[0].mxu0
      %v9419 = vadd.f32 %v8874, %v9418
      %v9420 = vpop.f32.mrb[0].mxu0
      %v9421 = vpop.f32.mrb[0].mxu0
      %v9422 = vadd.f32 %v8877, %v9421
      %v9423 = vpop.f32.mrb[0].mxu0
      %9424 = vmatprep.mubr.bf16.mxu0 %v4093
      %9425 = vmatmul.mubr.bf16.gmra.mrb[0].mxu0 %v4092
      %v9426 = vpop.f32.mrb[0].mxu0
      %v9427 = vadd.f32 %v8882, %v9426
      %v9428 = vpop.f32.mrb[0].mxu0
      %v9429 = vpop.f32.mrb[0].mxu0
      %v9430 = vadd.f32 %v8885, %v9429
      %v9431 = vpop.f32.mrb[0].mxu0
      %9432 = vmatprep.mubr.bf16.mxu0 %v4101
      %9433 = vmatmul.mubr.bf16.gmra.mrb[0].mxu0 %v4100
      %v9434 = vpop.f32.mrb[0].mxu0
      %v9435 = vadd.f32 %v8890, %v9434
      %v9436 = vpop.f32.mrb[0].mxu0
      %v9437 = vpop.f32.mrb[0].mxu0
      %v9438 = vadd.f32 %v8893, %v9437
      %v9439 = vpop.f32.mrb[0].mxu0
      %9440 = vmatprep.mubr.bf16.mxu0 %v4109
      %9441 = vmatmul.mubr.bf16.gmra.mrb[0].mxu0 %v4108
      %v9442 = vpop.f32.mrb[0].mxu0
      %v9443 = vadd.f32 %v8898, %v9442
      %v9444 = vpop.f32.mrb[0].mxu0
      %v9445 = vpop.f32.mrb[0].mxu0
      %v9446 = vadd.f32 %v8901, %v9445
      %v9447 = vpop.f32.mrb[0].mxu0
      %9448 = vdwg.mxu0
      %9449 = vmatprep.subr.bf16.mxu0 0
      %9450 = vmatpush1.bf16.msra.mxu0 %v7794
      %9451 = vmatprep.subr.bf16.mxu0 0
      %9452 = vmatpush1.bf16.msra.mxu0 %v7795
      %9453 = vmatprep.subr.bf16.mxu0 0
      %9454 = vmatpush1.bf16.msra.mxu0 %v7796
      %9455 = vmatprep.subr.bf16.mxu0 0
      %9456 = vmatpush1.bf16.msra.mxu0 %v7797
      %9457 = vmatprep.subr.bf16.mxu0 0
      %9458 = vmatpush1.bf16.msra.mxu0 %v7798
      %9459 = vmatprep.subr.bf16.mxu0 0
      %9460 = vmatpush1.bf16.msra.mxu0 %v7799
      %9461 = vmatprep.subr.bf16.mxu0 0
      %9462 = vmatpush1.bf16.msra.mxu0 %v7800
      %9463 = vmatprep.subr.bf16.mxu0 0
      %9464 = vmatpush1.bf16.msra.mxu0 %v7801
      %9465 = vmatprep.subr.bf16.mxu0 0
      %9466 = vmatpush1.bf16.msra.mxu0 %v7802
      %9467 = vmatprep.subr.bf16.mxu0 0
      %9468 = vmatpush1.bf16.msra.mxu0 %v7803
      %9469 = vmatprep.subr.bf16.mxu0 0
      %9470 = vmatpush1.bf16.msra.mxu0 %v7804
      %9471 = vmatprep.subr.bf16.mxu0 0
      %9472 = vmatpush1.bf16.msra.mxu0 %v7805
      %9473 = vmatprep.subr.bf16.mxu0 0
      %9474 = vmatpush1.bf16.msra.mxu0 %v7806
      %9475 = vmatprep.subr.bf16.mxu0 0
      %9476 = vmatpush1.bf16.msra.mxu0 %v7807
      %9477 = vmatprep.subr.bf16.mxu0 0
      %9478 = vmatpush1.bf16.msra.mxu0 %v7808
      %9479 = vmatprep.subr.bf16.mxu0 0
      %9480 = vmatpush1.bf16.msra.mxu0 %v7809
      %9481 = vmatprep.mubr.bf16.mxu0 %v3607
      %9482 = vmatmul.mubr.bf16.gmra.mrb[0].mxu0 %v3606
      %v9483 = vpop.f32.mrb[0].mxu0
      %v9484 = vadd.f32 %v8939, %v9483
      %v9485 = vpop.f32.mrb[0].mxu0
      %v9486 = vpop.f32.mrb[0].mxu0
      %v9487 = vadd.f32 %v8942, %v9486
      %v9488 = vpop.f32.mrb[0].mxu0
      %9489 = vmatprep.mubr.bf16.mxu0 %v3615
      %9490 = vmatmul.mubr.bf16.gmra.mrb[0].mxu0 %v3614
      %v9491 = vpop.f32.mrb[0].mxu0
      %v9492 = vadd.f32 %v8947, %v9491
      %v9493 = vpop.f32.mrb[0].mxu0
      %v9494 = vpop.f32.mrb[0].mxu0
      %v9495 = vadd.f32 %v8950, %v9494
      %v9496 = vpop.f32.mrb[0].mxu0
      %9497 = vmatprep.mubr.bf16.mxu0 %v3623
      %9498 = vmatmul.mubr.bf16.gmra.mrb[0].mxu0 %v3622
      %v9499 = vpop.f32.mrb[0].mxu0
      %v9500 = vadd.f32 %v8955, %v9499
      %v9501 = vpop.f32.mrb[0].mxu0
      %v9502 = vpop.f32.mrb[0].mxu0
      %v9503 = vadd.f32 %v8958, %v9502
      %v9504 = vpop.f32.mrb[0].mxu0
      %9505 = vmatprep.mubr.bf16.mxu0 %v3631
      %9506 = vmatmul.mubr.bf16.gmra.mrb[0].mxu0 %v3630
      %v9507 = vpop.f32.mrb[0].mxu0
      %v9508 = vadd.f32 %v8963, %v9507
      %v9509 = vpop.f32.mrb[0].mxu0
      %v9510 = vpop.f32.mrb[0].mxu0
      %v9511 = vadd.f32 %v8966, %v9510
      %v9512 = vpop.f32.mrb[0].mxu0
      %9513 = vmatprep.mubr.bf16.mxu0 %v3639
      %9514 = vmatmul.mubr.bf16.gmra.mrb[0].mxu0 %v3638
      %v9515 = vpop.f32.mrb[0].mxu0
      %v9516 = vadd.f32 %v8971, %v9515
      %v9517 = vpop.f32.mrb[0].mxu0
      %v9518 = vpop.f32.mrb[0].mxu0
      %v9519 = vadd.f32 %v8974, %v9518
      %v9520 = vpop.f32.mrb[0].mxu0
      %9521 = vmatprep.mubr.bf16.mxu0 %v3647
      %9522 = vmatmul.mubr.bf16.gmra.mrb[0].mxu0 %v3646
      %v9523 = vpop.f32.mrb[0].mxu0
      %v9524 = vadd.f32 %v8979, %v9523
      %v9525 = vpop.f32.mrb[0].mxu0
      %v9526 = vpop.f32.mrb[0].mxu0
      %v9527 = vadd.f32 %v8982, %v9526
      %v9528 = vpop.f32.mrb[0].mxu0
      %9529 = vmatprep.mubr.bf16.mxu0 %v3655
      %9530 = vmatmul.mubr.bf16.gmra.mrb[0].mxu0 %v3654
      %v9531 = vpop.f32.mrb[0].mxu0
      %v9532 = vadd.f32 %v8987, %v9531
      %v9533 = vpop.f32.mrb[0].mxu0
      %v9534 = vpop.f32.mrb[0].mxu0
      %v9535 = vadd.f32 %v8990, %v9534
      %v9536 = vpop.f32.mrb[0].mxu0
      %9537 = vmatprep.mubr.bf16.mxu0 %v3663
      %9538 = vmatmul.mubr.bf16.gmra.mrb[0].mxu0 %v3662
      %v9539 = vpop.f32.mrb[0].mxu0
      %v9540 = vadd.f32 %v8995, %v9539
      %v9541 = vpop.f32.mrb[0].mxu0
      %v9542 = vpop.f32.mrb[0].mxu0
      %v9543 = vadd.f32 %v8998, %v9542
      %v9544 = vpop.f32.mrb[0].mxu0
      %9545 = vmatprep.mubr.bf16.mxu0 %v3671
      %9546 = vmatmul.mubr.bf16.gmra.mrb[0].mxu0 %v3670
      %v9547 = vpop.f32.mrb[0].mxu0
      %v9548 = vadd.f32 %v9003, %v9547
      %v9549 = vpop.f32.mrb[0].mxu0
      %v9550 = vpop.f32.mrb[0].mxu0
      %v9551 = vadd.f32 %v9006, %v9550
      %v9552 = vpop.f32.mrb[0].mxu0
      %9553 = vmatprep.mubr.bf16.mxu0 %v3679
      %9554 = vmatmul.mubr.bf16.gmra.mrb[0].mxu0 %v3678
      %v9555 = vpop.f32.mrb[0].mxu0
      %v9556 = vadd.f32 %v9011, %v9555
      %v9557 = vpop.f32.mrb[0].mxu0
      %v9558 = vpop.f32.mrb[0].mxu0
      %v9559 = vadd.f32 %v9014, %v9558
      %v9560 = vpop.f32.mrb[0].mxu0
      %9561 = vmatprep.mubr.bf16.mxu0 %v3687
      %9562 = vmatmul.mubr.bf16.gmra.mrb[0].mxu0 %v3686
      %v9563 = vpop.f32.mrb[0].mxu0
      %v9564 = vadd.f32 %v9019, %v9563
      %v9565 = vpop.f32.mrb[0].mxu0
      %v9566 = vpop.f32.mrb[0].mxu0
      %v9567 = vadd.f32 %v9022, %v9566
      %v9568 = vpop.f32.mrb[0].mxu0
      %9569 = vmatprep.mubr.bf16.mxu0 %v3695
      %9570 = vmatmul.mubr.bf16.gmra.mrb[0].mxu0 %v3694
      %v9571 = vpop.f32.mrb[0].mxu0
      %v9572 = vadd.f32 %v9027, %v9571
      %v9573 = vpop.f32.mrb[0].mxu0
      %v9574 = vpop.f32.mrb[0].mxu0
      %v9575 = vadd.f32 %v9030, %v9574
      %v9576 = vpop.f32.mrb[0].mxu0
      %9577 = vmatprep.mubr.bf16.mxu0 %v3703
      %9578 = vmatmul.mubr.bf16.gmra.mrb[0].mxu0 %v3702
      %v9579 = vpop.f32.mrb[0].mxu0
      %v9580 = vadd.f32 %v9035, %v9579
      %v9581 = vpop.f32.mrb[0].mxu0
      %v9582 = vpop.f32.mrb[0].mxu0
      %v9583 = vadd.f32 %v9038, %v9582
      %v9584 = vpop.f32.mrb[0].mxu0
      %9585 = vmatprep.mubr.bf16.mxu0 %v3711
      %9586 = vmatmul.mubr.bf16.gmra.mrb[0].mxu0 %v3710
      %v9587 = vpop.f32.mrb[0].mxu0
      %v9588 = vadd.f32 %v9043, %v9587
      %v9589 = vpop.f32.mrb[0].mxu0
      %v9590 = vpop.f32.mrb[0].mxu0
      %v9591 = vadd.f32 %v9046, %v9590
      %v9592 = vpop.f32.mrb[0].mxu0
      %9593 = vmatprep.mubr.bf16.mxu0 %v3719
      %9594 = vmatmul.mubr.bf16.gmra.mrb[0].mxu0 %v3718
      %v9595 = vpop.f32.mrb[0].mxu0
      %v9596 = vadd.f32 %v9051, %v9595
      %v9597 = vpop.f32.mrb[0].mxu0
      %v9598 = vpop.f32.mrb[0].mxu0
      %v9599 = vadd.f32 %v9054, %v9598
      %v9600 = vpop.f32.mrb[0].mxu0
      %9601 = vmatprep.mubr.bf16.mxu0 %v3727
      %9602 = vmatmul.mubr.bf16.gmra.mrb[0].mxu0 %v3726
      %v9603 = vpop.f32.mrb[0].mxu0
      %v9604 = vadd.f32 %v9059, %v9603
      %v9605 = vpop.f32.mrb[0].mxu0
      %v9606 = vpop.f32.mrb[0].mxu0
      %v9607 = vadd.f32 %v9062, %v9606
      %v9608 = vpop.f32.mrb[0].mxu0
      %9609 = vmatprep.mubr.bf16.mxu0 %v3735
      %9610 = vmatmul.mubr.bf16.gmra.mrb[0].mxu0 %v3734
      %v9611 = vpop.f32.mrb[0].mxu0
      %v9612 = vadd.f32 %v9067, %v9611
      %v9613 = vpop.f32.mrb[0].mxu0
      %v9614 = vpop.f32.mrb[0].mxu0
      %v9615 = vadd.f32 %v9070, %v9614
      %v9616 = vpop.f32.mrb[0].mxu0
      %9617 = vmatprep.mubr.bf16.mxu0 %v3743
      %9618 = vmatmul.mubr.bf16.gmra.mrb[0].mxu0 %v3742
      %v9619 = vpop.f32.mrb[0].mxu0
      %v9620 = vadd.f32 %v9075, %v9619
      %v9621 = vpop.f32.mrb[0].mxu0
      %v9622 = vpop.f32.mrb[0].mxu0
      %v9623 = vadd.f32 %v9078, %v9622
      %v9624 = vpop.f32.mrb[0].mxu0
      %9625 = vmatprep.mubr.bf16.mxu0 %v3751
      %9626 = vmatmul.mubr.bf16.gmra.mrb[0].mxu0 %v3750
      %v9627 = vpop.f32.mrb[0].mxu0
      %v9628 = vadd.f32 %v9083, %v9627
      %v9629 = vpop.f32.mrb[0].mxu0
      %v9630 = vpop.f32.mrb[0].mxu0
      %v9631 = vadd.f32 %v9086, %v9630
      %v9632 = vpop.f32.mrb[0].mxu0
      %9633 = vmatprep.mubr.bf16.mxu0 %v3759
      %9634 = vmatmul.mubr.bf16.gmra.mrb[0].mxu0 %v3758
      %v9635 = vpop.f32.mrb[0].mxu0
      %v9636 = vadd.f32 %v9091, %v9635
      %v9637 = vpop.f32.mrb[0].mxu0
      %v9638 = vpop.f32.mrb[0].mxu0
      %v9639 = vadd.f32 %v9094, %v9638
      %v9640 = vpop.f32.mrb[0].mxu0
      %9641 = vmatprep.mubr.bf16.mxu0 %v3767
      %9642 = vmatmul.mubr.bf16.gmra.mrb[0].mxu0 %v3766
      %v9643 = vpop.f32.mrb[0].mxu0
      %v9644 = vadd.f32 %v9099, %v9643
      %v9645 = vpop.f32.mrb[0].mxu0
      %v9646 = vpop.f32.mrb[0].mxu0
      %v9647 = vadd.f32 %v9102, %v9646
      %v9648 = vpop.f32.mrb[0].mxu0
      %9649 = vmatprep.mubr.bf16.mxu0 %v3775
      %9650 = vmatmul.mubr.bf16.gmra.mrb[0].mxu0 %v3774
      %v9651 = vpop.f32.mrb[0].mxu0
      %v9652 = vadd.f32 %v9107, %v9651
      %v9653 = vpop.f32.mrb[0].mxu0
      %v9654 = vpop.f32.mrb[0].mxu0
      %v9655 = vadd.f32 %v9110, %v9654
      %v9656 = vpop.f32.mrb[0].mxu0
      %9657 = vmatprep.mubr.bf16.mxu0 %v3783
      %9658 = vmatmul.mubr.bf16.gmra.mrb[0].mxu0 %v3782
      %v9659 = vpop.f32.mrb[0].mxu0
      %v9660 = vadd.f32 %v9115, %v9659
      %v9661 = vpop.f32.mrb[0].mxu0
      %v9662 = vpop.f32.mrb[0].mxu0
      %v9663 = vadd.f32 %v9118, %v9662
      %v9664 = vpop.f32.mrb[0].mxu0
      %9665 = vmatprep.mubr.bf16.mxu0 %v3791
      %9666 = vmatmul.mubr.bf16.gmra.mrb[0].mxu0 %v3790
      %v9667 = vpop.f32.mrb[0].mxu0
      %v9668 = vadd.f32 %v9123, %v9667
      %v9669 = vpop.f32.mrb[0].mxu0
      %v9670 = vpop.f32.mrb[0].mxu0
      %v9671 = vadd.f32 %v9126, %v9670
      %v9672 = vpop.f32.mrb[0].mxu0
      %9673 = vmatprep.mubr.bf16.mxu0 %v3799
      %9674 = vmatmul.mubr.bf16.gmra.mrb[0].mxu0 %v3798
      %v9675 = vpop.f32.mrb[0].mxu0
      %v9676 = vadd.f32 %v9131, %v9675
      %v9677 = vpop.f32.mrb[0].mxu0
      %v9678 = vpop.f32.mrb[0].mxu0
      %v9679 = vadd.f32 %v9134, %v9678
      %v9680 = vpop.f32.mrb[0].mxu0
      %9681 = vmatprep.mubr.bf16.mxu0 %v3807
      %9682 = vmatmul.mubr.bf16.gmra.mrb[0].mxu0 %v3806
      %v9683 = vpop.f32.mrb[0].mxu0
      %v9684 = vadd.f32 %v9139, %v9683
      %v9685 = vpop.f32.mrb[0].mxu0
      %v9686 = vpop.f32.mrb[0].mxu0
      %v9687 = vadd.f32 %v9142, %v9686
      %v9688 = vpop.f32.mrb[0].mxu0
      %9689 = vmatprep.mubr.bf16.mxu0 %v3815
      %9690 = vmatmul.mubr.bf16.gmra.mrb[0].mxu0 %v3814
      %v9691 = vpop.f32.mrb[0].mxu0
      %v9692 = vadd.f32 %v9147, %v9691
      %v9693 = vpop.f32.mrb[0].mxu0
      %v9694 = vpop.f32.mrb[0].mxu0
      %v9695 = vadd.f32 %v9150, %v9694
      %v9696 = vpop.f32.mrb[0].mxu0
      %9697 = vmatprep.mubr.bf16.mxu0 %v3823
      %9698 = vmatmul.mubr.bf16.gmra.mrb[0].mxu0 %v3822
      %v9699 = vpop.f32.mrb[0].mxu0
      %v9700 = vadd.f32 %v9155, %v9699
      %v9701 = vpop.f32.mrb[0].mxu0
      %v9702 = vpop.f32.mrb[0].mxu0
      %v9703 = vadd.f32 %v9158, %v9702
      %v9704 = vpop.f32.mrb[0].mxu0
      %9705 = vmatprep.mubr.bf16.mxu0 %v3831
      %9706 = vmatmul.mubr.bf16.gmra.mrb[0].mxu0 %v3830
      %v9707 = vpop.f32.mrb[0].mxu0
      %v9708 = vadd.f32 %v9163, %v9707
      %v9709 = vpop.f32.mrb[0].mxu0
      %v9710 = vpop.f32.mrb[0].mxu0
      %v9711 = vadd.f32 %v9166, %v9710
      %v9712 = vpop.f32.mrb[0].mxu0
      %9713 = vmatprep.mubr.bf16.mxu0 %v3839
      %9714 = vmatmul.mubr.bf16.gmra.mrb[0].mxu0 %v3838
      %v9715 = vpop.f32.mrb[0].mxu0
      %v9716 = vadd.f32 %v9171, %v9715
      %v9717 = vpop.f32.mrb[0].mxu0
      %v9718 = vpop.f32.mrb[0].mxu0
      %v9719 = vadd.f32 %v9174, %v9718
      %v9720 = vpop.f32.mrb[0].mxu0
      %9721 = vmatprep.mubr.bf16.mxu0 %v3847
      %9722 = vmatmul.mubr.bf16.gmra.mrb[0].mxu0 %v3846
      %v9723 = vpop.f32.mrb[0].mxu0
      %v9724 = vadd.f32 %v9179, %v9723
      %v9725 = vpop.f32.mrb[0].mxu0
      %v9726 = vpop.f32.mrb[0].mxu0
      %v9727 = vadd.f32 %v9182, %v9726
      %v9728 = vpop.f32.mrb[0].mxu0
      %9729 = vmatprep.mubr.bf16.mxu0 %v3855
      %9730 = vmatmul.mubr.bf16.gmra.mrb[0].mxu0 %v3854
      %v9731 = vpop.f32.mrb[0].mxu0
      %v9732 = vadd.f32 %v9187, %v9731
      %v9733 = vpop.f32.mrb[0].mxu0
      %v9734 = vpop.f32.mrb[0].mxu0
      %v9735 = vadd.f32 %v9190, %v9734
      %v9736 = vpop.f32.mrb[0].mxu0
      %9737 = vmatprep.mubr.bf16.mxu0 %v3863
      %9738 = vmatmul.mubr.bf16.gmra.mrb[0].mxu0 %v3862
      %v9739 = vpop.f32.mrb[0].mxu0
      %v9740 = vadd.f32 %v9195, %v9739
      %v9741 = vpop.f32.mrb[0].mxu0
      %v9742 = vpop.f32.mrb[0].mxu0
      %v9743 = vadd.f32 %v9198, %v9742
      %v9744 = vpop.f32.mrb[0].mxu0
      %9745 = vmatprep.mubr.bf16.mxu0 %v3871
      %9746 = vmatmul.mubr.bf16.gmra.mrb[0].mxu0 %v3870
      %v9747 = vpop.f32.mrb[0].mxu0
      %v9748 = vadd.f32 %v9203, %v9747
      %v9749 = vpop.f32.mrb[0].mxu0
      %v9750 = vpop.f32.mrb[0].mxu0
      %v9751 = vadd.f32 %v9206, %v9750
      %v9752 = vpop.f32.mrb[0].mxu0
      %9753 = vmatprep.mubr.bf16.mxu0 %v3879
      %9754 = vmatmul.mubr.bf16.gmra.mrb[0].mxu0 %v3878
      %v9755 = vpop.f32.mrb[0].mxu0
      %v9756 = vadd.f32 %v9211, %v9755
      %v9757 = vpop.f32.mrb[0].mxu0
      %v9758 = vpop.f32.mrb[0].mxu0
      %v9759 = vadd.f32 %v9214, %v9758
      %v9760 = vpop.f32.mrb[0].mxu0
      %9761 = vmatprep.mubr.bf16.mxu0 %v3887
      %9762 = vmatmul.mubr.bf16.gmra.mrb[0].mxu0 %v3886
      %v9763 = vpop.f32.mrb[0].mxu0
      %v9764 = vadd.f32 %v9219, %v9763
      %v9765 = vpop.f32.mrb[0].mxu0
      %v9766 = vpop.f32.mrb[0].mxu0
      %v9767 = vadd.f32 %v9222, %v9766
      %v9768 = vpop.f32.mrb[0].mxu0
      %9769 = vmatprep.mubr.bf16.mxu0 %v3895
      %9770 = vmatmul.mubr.bf16.gmra.mrb[0].mxu0 %v3894
      %v9771 = vpop.f32.mrb[0].mxu0
      %v9772 = vadd.f32 %v9227, %v9771
      %v9773 = vpop.f32.mrb[0].mxu0
      %v9774 = vpop.f32.mrb[0].mxu0
      %v9775 = vadd.f32 %v9230, %v9774
      %v9776 = vpop.f32.mrb[0].mxu0
      %9777 = vmatprep.mubr.bf16.mxu0 %v3903
      %9778 = vmatmul.mubr.bf16.gmra.mrb[0].mxu0 %v3902
      %v9779 = vpop.f32.mrb[0].mxu0
      %v9780 = vadd.f32 %v9235, %v9779
      %v9781 = vpop.f32.mrb[0].mxu0
      %v9782 = vpop.f32.mrb[0].mxu0
      %v9783 = vadd.f32 %v9238, %v9782
      %v9784 = vpop.f32.mrb[0].mxu0
      %9785 = vmatprep.mubr.bf16.mxu0 %v3911
      %9786 = vmatmul.mubr.bf16.gmra.mrb[0].mxu0 %v3910
      %v9787 = vpop.f32.mrb[0].mxu0
      %v9788 = vadd.f32 %v9243, %v9787
      %v9789 = vpop.f32.mrb[0].mxu0
      %v9790 = vpop.f32.mrb[0].mxu0
      %v9791 = vadd.f32 %v9246, %v9790
      %v9792 = vpop.f32.mrb[0].mxu0
      %9793 = vmatprep.mubr.bf16.mxu0 %v3919
      %9794 = vmatmul.mubr.bf16.gmra.mrb[0].mxu0 %v3918
      %v9795 = vpop.f32.mrb[0].mxu0
      %v9796 = vadd.f32 %v9251, %v9795
      %v9797 = vpop.f32.mrb[0].mxu0
      %v9798 = vpop.f32.mrb[0].mxu0
      %v9799 = vadd.f32 %v9254, %v9798
      %v9800 = vpop.f32.mrb[0].mxu0
      %9801 = vmatprep.mubr.bf16.mxu0 %v3927
      %9802 = vmatmul.mubr.bf16.gmra.mrb[0].mxu0 %v3926
      %v9803 = vpop.f32.mrb[0].mxu0
      %v9804 = vadd.f32 %v9259, %v9803
      %v9805 = vpop.f32.mrb[0].mxu0
      %v9806 = vpop.f32.mrb[0].mxu0
      %v9807 = vadd.f32 %v9262, %v9806
      %v9808 = vpop.f32.mrb[0].mxu0
      %9809 = vmatprep.mubr.bf16.mxu0 %v3935
      %9810 = vmatmul.mubr.bf16.gmra.mrb[0].mxu0 %v3934
      %v9811 = vpop.f32.mrb[0].mxu0
      %v9812 = vadd.f32 %v9267, %v9811
      %v9813 = vpop.f32.mrb[0].mxu0
      %v9814 = vpop.f32.mrb[0].mxu0
      %v9815 = vadd.f32 %v9270, %v9814
      %v9816 = vpop.f32.mrb[0].mxu0
      %9817 = vmatprep.mubr.bf16.mxu0 %v3943
      %9818 = vmatmul.mubr.bf16.gmra.mrb[0].mxu0 %v3942
      %v9819 = vpop.f32.mrb[0].mxu0
      %v9820 = vadd.f32 %v9275, %v9819
      %v9821 = vpop.f32.mrb[0].mxu0
      %v9822 = vpop.f32.mrb[0].mxu0
      %v9823 = vadd.f32 %v9278, %v9822
      %v9824 = vpop.f32.mrb[0].mxu0
      %9825 = vmatprep.mubr.bf16.mxu0 %v3951
      %9826 = vmatmul.mubr.bf16.gmra.mrb[0].mxu0 %v3950
      %v9827 = vpop.f32.mrb[0].mxu0
      %v9828 = vadd.f32 %v9283, %v9827
      %v9829 = vpop.f32.mrb[0].mxu0
      %v9830 = vpop.f32.mrb[0].mxu0
      %v9831 = vadd.f32 %v9286, %v9830
      %v9832 = vpop.f32.mrb[0].mxu0
      %9833 = vmatprep.mubr.bf16.mxu0 %v3959
      %9834 = vmatmul.mubr.bf16.gmra.mrb[0].mxu0 %v3958
      %v9835 = vpop.f32.mrb[0].mxu0
      %v9836 = vadd.f32 %v9291, %v9835
      %v9837 = vpop.f32.mrb[0].mxu0
      %v9838 = vpop.f32.mrb[0].mxu0
      %v9839 = vadd.f32 %v9294, %v9838
      %v9840 = vpop.f32.mrb[0].mxu0
      %9841 = vmatprep.mubr.bf16.mxu0 %v3967
      %9842 = vmatmul.mubr.bf16.gmra.mrb[0].mxu0 %v3966
      %v9843 = vpop.f32.mrb[0].mxu0
      %v9844 = vadd.f32 %v9299, %v9843
      %v9845 = vpop.f32.mrb[0].mxu0
      %v9846 = vpop.f32.mrb[0].mxu0
      %v9847 = vadd.f32 %v9302, %v9846
      %v9848 = vpop.f32.mrb[0].mxu0
      %9849 = vmatprep.mubr.bf16.mxu0 %v3975
      %9850 = vmatmul.mubr.bf16.gmra.mrb[0].mxu0 %v3974
      %v9851 = vpop.f32.mrb[0].mxu0
      %v9852 = vadd.f32 %v9307, %v9851
      %v9853 = vpop.f32.mrb[0].mxu0
      %v9854 = vpop.f32.mrb[0].mxu0
      %v9855 = vadd.f32 %v9310, %v9854
      %v9856 = vpop.f32.mrb[0].mxu0
      %9857 = vmatprep.mubr.bf16.mxu0 %v3983
      %9858 = vmatmul.mubr.bf16.gmra.mrb[0].mxu0 %v3982
      %v9859 = vpop.f32.mrb[0].mxu0
      %v9860 = vadd.f32 %v9315, %v9859
      %v9861 = vpop.f32.mrb[0].mxu0
      %v9862 = vpop.f32.mrb[0].mxu0
      %v9863 = vadd.f32 %v9318, %v9862
      %v9864 = vpop.f32.mrb[0].mxu0
      %9865 = vmatprep.mubr.bf16.mxu0 %v3991
      %9866 = vmatmul.mubr.bf16.gmra.mrb[0].mxu0 %v3990
      %v9867 = vpop.f32.mrb[0].mxu0
      %v9868 = vadd.f32 %v9323, %v9867
      %v9869 = vpop.f32.mrb[0].mxu0
      %v9870 = vpop.f32.mrb[0].mxu0
      %v9871 = vadd.f32 %v9326, %v9870
      %v9872 = vpop.f32.mrb[0].mxu0
      %9873 = vmatprep.mubr.bf16.mxu0 %v3999
      %9874 = vmatmul.mubr.bf16.gmra.mrb[0].mxu0 %v3998
      %v9875 = vpop.f32.mrb[0].mxu0
      %v9876 = vadd.f32 %v9331, %v9875
      %v9877 = vpop.f32.mrb[0].mxu0
      %v9878 = vpop.f32.mrb[0].mxu0
      %v9879 = vadd.f32 %v9334, %v9878
      %v9880 = vpop.f32.mrb[0].mxu0
      %9881 = vmatprep.mubr.bf16.mxu0 %v4007
      %9882 = vmatmul.mubr.bf16.gmra.mrb[0].mxu0 %v4006
      %v9883 = vpop.f32.mrb[0].mxu0
      %v9884 = vadd.f32 %v9339, %v9883
      %v9885 = vpop.f32.mrb[0].mxu0
      %v9886 = vpop.f32.mrb[0].mxu0
      %v9887 = vadd.f32 %v9342, %v9886
      %v9888 = vpop.f32.mrb[0].mxu0
      %9889 = vmatprep.mubr.bf16.mxu0 %v4015
      %9890 = vmatmul.mubr.bf16.gmra.mrb[0].mxu0 %v4014
      %v9891 = vpop.f32.mrb[0].mxu0
      %v9892 = vadd.f32 %v9347, %v9891
      %v9893 = vpop.f32.mrb[0].mxu0
      %v9894 = vpop.f32.mrb[0].mxu0
      %v9895 = vadd.f32 %v9350, %v9894
      %v9896 = vpop.f32.mrb[0].mxu0
      %9897 = vmatprep.mubr.bf16.mxu0 %v4023
      %9898 = vmatmul.mubr.bf16.gmra.mrb[0].mxu0 %v4022
      %v9899 = vpop.f32.mrb[0].mxu0
      %v9900 = vadd.f32 %v9355, %v9899
      %v9901 = vpop.f32.mrb[0].mxu0
      %v9902 = vpop.f32.mrb[0].mxu0
      %v9903 = vadd.f32 %v9358, %v9902
      %v9904 = vpop.f32.mrb[0].mxu0
      %9905 = vmatprep.mubr.bf16.mxu0 %v4031
      %9906 = vmatmul.mubr.bf16.gmra.mrb[0].mxu0 %v4030
      %v9907 = vpop.f32.mrb[0].mxu0
      %v9908 = vadd.f32 %v9363, %v9907
      %v9909 = vpop.f32.mrb[0].mxu0
      %v9910 = vpop.f32.mrb[0].mxu0
      %v9911 = vadd.f32 %v9366, %v9910
      %v9912 = vpop.f32.mrb[0].mxu0
      %9913 = vmatprep.mubr.bf16.mxu0 %v4039
      %9914 = vmatmul.mubr.bf16.gmra.mrb[0].mxu0 %v4038
      %v9915 = vpop.f32.mrb[0].mxu0
      %v9916 = vadd.f32 %v9371, %v9915
      %v9917 = vpop.f32.mrb[0].mxu0
      %v9918 = vpop.f32.mrb[0].mxu0
      %v9919 = vadd.f32 %v9374, %v9918
      %v9920 = vpop.f32.mrb[0].mxu0
      %9921 = vmatprep.mubr.bf16.mxu0 %v4047
      %9922 = vmatmul.mubr.bf16.gmra.mrb[0].mxu0 %v4046
      %v9923 = vpop.f32.mrb[0].mxu0
      %v9924 = vadd.f32 %v9379, %v9923
      %v9925 = vpop.f32.mrb[0].mxu0
      %v9926 = vpop.f32.mrb[0].mxu0
      %v9927 = vadd.f32 %v9382, %v9926
      %v9928 = vpop.f32.mrb[0].mxu0
      %9929 = vmatprep.mubr.bf16.mxu0 %v4055
      %9930 = vmatmul.mubr.bf16.gmra.mrb[0].mxu0 %v4054
      %v9931 = vpop.f32.mrb[0].mxu0
      %v9932 = vadd.f32 %v9387, %v9931
      %v9933 = vpop.f32.mrb[0].mxu0
      %v9934 = vpop.f32.mrb[0].mxu0
      %v9935 = vadd.f32 %v9390, %v9934
      %v9936 = vpop.f32.mrb[0].mxu0
      %9937 = vmatprep.mubr.bf16.mxu0 %v4063
      %9938 = vmatmul.mubr.bf16.gmra.mrb[0].mxu0 %v4062
      %v9939 = vpop.f32.mrb[0].mxu0
      %v9940 = vadd.f32 %v9395, %v9939
      %v9941 = vpop.f32.mrb[0].mxu0
      %v9942 = vpop.f32.mrb[0].mxu0
      %v9943 = vadd.f32 %v9398, %v9942
      %v9944 = vpop.f32.mrb[0].mxu0
      %9945 = vmatprep.mubr.bf16.mxu0 %v4071
      %9946 = vmatmul.mubr.bf16.gmra.mrb[0].mxu0 %v4070
      %v9947 = vpop.f32.mrb[0].mxu0
      %v9948 = vadd.f32 %v9403, %v9947
      %v9949 = vpop.f32.mrb[0].mxu0
      %v9950 = vpop.f32.mrb[0].mxu0
      %v9951 = vadd.f32 %v9406, %v9950
      %v9952 = vpop.f32.mrb[0].mxu0
      %9953 = vmatprep.mubr.bf16.mxu0 %v4079
      %9954 = vmatmul.mubr.bf16.gmra.mrb[0].mxu0 %v4078
      %v9955 = vpop.f32.mrb[0].mxu0
      %v9956 = vadd.f32 %v9411, %v9955
      %v9957 = vpop.f32.mrb[0].mxu0
      %v9958 = vpop.f32.mrb[0].mxu0
      %v9959 = vadd.f32 %v9414, %v9958
      %v9960 = vpop.f32.mrb[0].mxu0
      %9961 = vmatprep.mubr.bf16.mxu0 %v4087
      %9962 = vmatmul.mubr.bf16.gmra.mrb[0].mxu0 %v4086
      %v9963 = vpop.f32.mrb[0].mxu0
      %v9964 = vadd.f32 %v9419, %v9963
      %v9965 = vpop.f32.mrb[0].mxu0
      %v9966 = vpop.f32.mrb[0].mxu0
      %v9967 = vadd.f32 %v9422, %v9966
      %v9968 = vpop.f32.mrb[0].mxu0
      %9969 = vmatprep.mubr.bf16.mxu0 %v4095
      %9970 = vmatmul.mubr.bf16.gmra.mrb[0].mxu0 %v4094
      %v9971 = vpop.f32.mrb[0].mxu0
      %v9972 = vadd.f32 %v9427, %v9971
      %v9973 = vpop.f32.mrb[0].mxu0
      %v9974 = vpop.f32.mrb[0].mxu0
      %v9975 = vadd.f32 %v9430, %v9974
      %v9976 = vpop.f32.mrb[0].mxu0
      %9977 = vmatprep.mubr.bf16.mxu0 %v4103
      %9978 = vmatmul.mubr.bf16.gmra.mrb[0].mxu0 %v4102
      %v9979 = vpop.f32.mrb[0].mxu0
      %v9980 = vadd.f32 %v9435, %v9979
      %v9981 = vpop.f32.mrb[0].mxu0
      %v9982 = vpop.f32.mrb[0].mxu0
      %v9983 = vadd.f32 %v9438, %v9982
      %v9984 = vpop.f32.mrb[0].mxu0
      %9985 = vmatprep.mubr.bf16.mxu0 %v4111
      %9986 = vmatmul.mubr.bf16.gmra.mrb[0].mxu0 %v4110
      %v9987 = vpop.f32.mrb[0].mxu0
      %v9988 = vadd.f32 %v9443, %v9987
      %v9989 = vpop.f32.mrb[0].mxu0
      %v9990 = vpop.f32.mrb[0].mxu0
      %v9991 = vadd.f32 %v9446, %v9990
      %v9992 = vpop.f32.mrb[0].mxu0
      %9993 = vdwg.mxu0
      %v9994 = vmax.f32 %v9484, 0.0
      %v9995 = vmax.f32 %v9487, 0.0
      %v9996 = vmax.f32 %v9492, 0.0
      %v9997 = vmax.f32 %v9495, 0.0
      %v9998 = vmax.f32 %v9500, 0.0
      %v9999 = vmax.f32 %v9503, 0.0
      %v10000 = vmax.f32 %v9508, 0.0
      %v10001 = vmax.f32 %v9511, 0.0
      %v10002 = vmax.f32 %v9516, 0.0
      %v10003 = vmax.f32 %v9519, 0.0
      %v10004 = vmax.f32 %v9524, 0.0
      %v10005 = vmax.f32 %v9527, 0.0
      %v10006 = vmax.f32 %v9532, 0.0
      %v10007 = vmax.f32 %v9535, 0.0
      %v10008 = vmax.f32 %v9540, 0.0
      %v10009 = vmax.f32 %v9543, 0.0
      %v10010 = vmax.f32 %v9548, 0.0
      %v10011 = vmax.f32 %v9551, 0.0
      %v10012 = vmax.f32 %v9556, 0.0
      %v10013 = vmax.f32 %v9559, 0.0
      %v10014 = vmax.f32 %v9564, 0.0
      %v10015 = vmax.f32 %v9567, 0.0
      %v10016 = vmax.f32 %v9572, 0.0
      %v10017 = vmax.f32 %v9575, 0.0
      %v10018 = vmax.f32 %v9580, 0.0
      %v10019 = vmax.f32 %v9583, 0.0
      %v10020 = vmax.f32 %v9588, 0.0
      %v10021 = vmax.f32 %v9591, 0.0
      %v10022 = vmax.f32 %v9596, 0.0
      %v10023 = vmax.f32 %v9599, 0.0
      %v10024 = vmax.f32 %v9604, 0.0
      %v10025 = vmax.f32 %v9607, 0.0
      %v10026 = vmax.f32 %v9612, 0.0
      %v10027 = vmax.f32 %v9615, 0.0
      %v10028 = vmax.f32 %v9620, 0.0
      %v10029 = vmax.f32 %v9623, 0.0
      %v10030 = vmax.f32 %v9628, 0.0
      %v10031 = vmax.f32 %v9631, 0.0
      %v10032 = vmax.f32 %v9636, 0.0
      %v10033 = vmax.f32 %v9639, 0.0
      %v10034 = vmax.f32 %v9644, 0.0
      %v10035 = vmax.f32 %v9647, 0.0
      %v10036 = vmax.f32 %v9652, 0.0
      %v10037 = vmax.f32 %v9655, 0.0
      %v10038 = vmax.f32 %v9660, 0.0
      %v10039 = vmax.f32 %v9663, 0.0
      %v10040 = vmax.f32 %v9668, 0.0
      %v10041 = vmax.f32 %v9671, 0.0
      %v10042 = vmax.f32 %v9676, 0.0
      %v10043 = vmax.f32 %v9679, 0.0
      %v10044 = vmax.f32 %v9684, 0.0
      %v10045 = vmax.f32 %v9687, 0.0
      %v10046 = vmax.f32 %v9692, 0.0
      %v10047 = vmax.f32 %v9695, 0.0
      %v10048 = vmax.f32 %v9700, 0.0
      %v10049 = vmax.f32 %v9703, 0.0
      %v10050 = vmax.f32 %v9708, 0.0
      %v10051 = vmax.f32 %v9711, 0.0
      %v10052 = vmax.f32 %v9716, 0.0
      %v10053 = vmax.f32 %v9719, 0.0
      %v10054 = vmax.f32 %v9724, 0.0
      %v10055 = vmax.f32 %v9727, 0.0
      %v10056 = vmax.f32 %v9732, 0.0
      %v10057 = vmax.f32 %v9735, 0.0
      %v10058 = vmax.f32 %v9740, 0.0
      %v10059 = vmax.f32 %v9743, 0.0
      %v10060 = vmax.f32 %v9748, 0.0
      %v10061 = vmax.f32 %v9751, 0.0
      %v10062 = vmax.f32 %v9756, 0.0
      %v10063 = vmax.f32 %v9759, 0.0
      %v10064 = vmax.f32 %v9764, 0.0
      %v10065 = vmax.f32 %v9767, 0.0
      %v10066 = vmax.f32 %v9772, 0.0
      %v10067 = vmax.f32 %v9775, 0.0
      %v10068 = vmax.f32 %v9780, 0.0
      %v10069 = vmax.f32 %v9783, 0.0
      %v10070 = vmax.f32 %v9788, 0.0
      %v10071 = vmax.f32 %v9791, 0.0
      %v10072 = vmax.f32 %v9796, 0.0
      %v10073 = vmax.f32 %v9799, 0.0
      %v10074 = vmax.f32 %v9804, 0.0
      %v10075 = vmax.f32 %v9807, 0.0
      %v10076 = vmax.f32 %v9812, 0.0
      %v10077 = vmax.f32 %v9815, 0.0
      %v10078 = vmax.f32 %v9820, 0.0
      %v10079 = vmax.f32 %v9823, 0.0
      %v10080 = vmax.f32 %v9828, 0.0
      %v10081 = vmax.f32 %v9831, 0.0
      %v10082 = vmax.f32 %v9836, 0.0
      %v10083 = vmax.f32 %v9839, 0.0
      %v10084 = vmax.f32 %v9844, 0.0
      %v10085 = vmax.f32 %v9847, 0.0
      %v10086 = vmax.f32 %v9852, 0.0
      %v10087 = vmax.f32 %v9855, 0.0
      %v10088 = vmax.f32 %v9860, 0.0
      %v10089 = vmax.f32 %v9863, 0.0
      %v10090 = vmax.f32 %v9868, 0.0
      %v10091 = vmax.f32 %v9871, 0.0
      %v10092 = vmax.f32 %v9876, 0.0
      %v10093 = vmax.f32 %v9879, 0.0
      %v10094 = vmax.f32 %v9884, 0.0
      %v10095 = vmax.f32 %v9887, 0.0
      %v10096 = vmax.f32 %v9892, 0.0
      %v10097 = vmax.f32 %v9895, 0.0
      %v10098 = vmax.f32 %v9900, 0.0
      %v10099 = vmax.f32 %v9903, 0.0
      %v10100 = vmax.f32 %v9908, 0.0
      %v10101 = vmax.f32 %v9911, 0.0
      %v10102 = vmax.f32 %v9916, 0.0
      %v10103 = vmax.f32 %v9919, 0.0
      %v10104 = vmax.f32 %v9924, 0.0
      %v10105 = vmax.f32 %v9927, 0.0
      %v10106 = vmax.f32 %v9932, 0.0
      %v10107 = vmax.f32 %v9935, 0.0
      %v10108 = vmax.f32 %v9940, 0.0
      %v10109 = vmax.f32 %v9943, 0.0
      %v10110 = vmax.f32 %v9948, 0.0
      %v10111 = vmax.f32 %v9951, 0.0
      %v10112 = vmax.f32 %v9956, 0.0
      %v10113 = vmax.f32 %v9959, 0.0
      %v10114 = vmax.f32 %v9964, 0.0
      %v10115 = vmax.f32 %v9967, 0.0
      %v10116 = vmax.f32 %v9972, 0.0
      %v10117 = vmax.f32 %v9975, 0.0
      %v10118 = vmax.f32 %v9980, 0.0
      %v10119 = vmax.f32 %v9983, 0.0
      %v10120 = vmax.f32 %v9988, 0.0
      %v10121 = vmax.f32 %v9991, 0.0
      %v10122 = vpack.c.bf16 %v9995, %v9994
      %v10123 = vpack.c.bf16 %v9997, %v9996
      %v10124 = vpack.c.bf16 %v9999, %v9998
      %v10125 = vpack.c.bf16 %v10001, %v10000
      %v10126 = vpack.c.bf16 %v10003, %v10002
      %v10127 = vpack.c.bf16 %v10005, %v10004
      %v10128 = vpack.c.bf16 %v10007, %v10006
      %v10129 = vpack.c.bf16 %v10009, %v10008
      %v10130 = vpack.c.bf16 %v10011, %v10010
      %v10131 = vpack.c.bf16 %v10013, %v10012
      %v10132 = vpack.c.bf16 %v10015, %v10014
      %v10133 = vpack.c.bf16 %v10017, %v10016
      %v10134 = vpack.c.bf16 %v10019, %v10018
      %v10135 = vpack.c.bf16 %v10021, %v10020
      %v10136 = vpack.c.bf16 %v10023, %v10022
      %v10137 = vpack.c.bf16 %v10025, %v10024
      %v10138 = vpack.c.bf16 %v10027, %v10026
      %v10139 = vpack.c.bf16 %v10029, %v10028
      %v10140 = vpack.c.bf16 %v10031, %v10030
      %v10141 = vpack.c.bf16 %v10033, %v10032
      %v10142 = vpack.c.bf16 %v10035, %v10034
      %v10143 = vpack.c.bf16 %v10037, %v10036
      %v10144 = vpack.c.bf16 %v10039, %v10038
      %v10145 = vpack.c.bf16 %v10041, %v10040
      %v10146 = vpack.c.bf16 %v10043, %v10042
      %v10147 = vpack.c.bf16 %v10045, %v10044
      %v10148 = vpack.c.bf16 %v10047, %v10046
      %v10149 = vpack.c.bf16 %v10049, %v10048
      %v10150 = vpack.c.bf16 %v10051, %v10050
      %v10151 = vpack.c.bf16 %v10053, %v10052
      %v10152 = vpack.c.bf16 %v10055, %v10054
      %v10153 = vpack.c.bf16 %v10057, %v10056
      %v10154 = vpack.c.bf16 %v10059, %v10058
      %v10155 = vpack.c.bf16 %v10061, %v10060
      %v10156 = vpack.c.bf16 %v10063, %v10062
      %v10157 = vpack.c.bf16 %v10065, %v10064
      %v10158 = vpack.c.bf16 %v10067, %v10066
      %v10159 = vpack.c.bf16 %v10069, %v10068
      %v10160 = vpack.c.bf16 %v10071, %v10070
      %v10161 = vpack.c.bf16 %v10073, %v10072
      %v10162 = vpack.c.bf16 %v10075, %v10074
      %v10163 = vpack.c.bf16 %v10077, %v10076
      %v10164 = vpack.c.bf16 %v10079, %v10078
      %v10165 = vpack.c.bf16 %v10081, %v10080
      %v10166 = vpack.c.bf16 %v10083, %v10082
      %v10167 = vpack.c.bf16 %v10085, %v10084
      %v10168 = vpack.c.bf16 %v10087, %v10086
      %v10169 = vpack.c.bf16 %v10089, %v10088
      %v10170 = vpack.c.bf16 %v10091, %v10090
      %v10171 = vpack.c.bf16 %v10093, %v10092
      %v10172 = vpack.c.bf16 %v10095, %v10094
      %v10173 = vpack.c.bf16 %v10097, %v10096
      %v10174 = vpack.c.bf16 %v10099, %v10098
      %v10175 = vpack.c.bf16 %v10101, %v10100
      %v10176 = vpack.c.bf16 %v10103, %v10102
      %v10177 = vpack.c.bf16 %v10105, %v10104
      %v10178 = vpack.c.bf16 %v10107, %v10106
      %v10179 = vpack.c.bf16 %v10109, %v10108
      %v10180 = vpack.c.bf16 %v10111, %v10110
      %v10181 = vpack.c.bf16 %v10113, %v10112
      %v10182 = vpack.c.bf16 %v10115, %v10114
      %v10183 = vpack.c.bf16 %v10117, %v10116
      %v10184 = vpack.c.bf16 %v10119, %v10118
      %v10185 = vpack.c.bf16 %v10121, %v10120
      %v10186 = vld [vmem:[%s270] sm:$0xff]
      %v10187 = vld [vmem:[%s270 + $0x8] sm:$0xff]
      %v10188 = vld [vmem:[%s270 + $0x10] sm:$0xff]
      %v10189 = vld [vmem:[%s270 + $0x18] sm:$0xff]
      %v10190 = vld [vmem:[%s270 + $0x20] sm:$0xff]
      %v10191 = vld [vmem:[%s270 + $0x28] sm:$0xff]
      %v10192 = vld [vmem:[%s270 + $0x30] sm:$0xff]
      %v10193 = vld [vmem:[%s270 + $0x38] sm:$0xff]
      %v10194 = vld [vmem:[%s270 + $0x40] sm:$0xff]
      %v10195 = vld [vmem:[%s270 + $0x48] sm:$0xff]
      %v10196 = vld [vmem:[%s270 + $0x50] sm:$0xff]
      %v10197 = vld [vmem:[%s270 + $0x58] sm:$0xff]
      %v10198 = vld [vmem:[%s270 + $0x60] sm:$0xff]
      %v10199 = vld [vmem:[%s270 + $0x68] sm:$0xff]
      %v10200 = vld [vmem:[%s270 + $0x70] sm:$0xff]
      %v10201 = vld [vmem:[%s270 + $0x78] sm:$0xff]
      %v10202 = vld [vmem:[%s270 + $0x80] sm:$0xff]
      %v10203 = vld [vmem:[%s270 + $0x88] sm:$0xff]
      %v10204 = vld [vmem:[%s270 + $0x90] sm:$0xff]
      %v10205 = vld [vmem:[%s270 + $0x98] sm:$0xff]
      %v10206 = vld [vmem:[%s270 + $0xa0] sm:$0xff]
      %v10207 = vld [vmem:[%s270 + $0xa8] sm:$0xff]
      %v10208 = vld [vmem:[%s270 + $0xb0] sm:$0xff]
      %v10209 = vld [vmem:[%s270 + $0xb8] sm:$0xff]
      %v10210 = vld [vmem:[%s270 + $0xc0] sm:$0xff]
      %v10211 = vld [vmem:[%s270 + $0xc8] sm:$0xff]
      %v10212 = vld [vmem:[%s270 + $0xd0] sm:$0xff]
      %v10213 = vld [vmem:[%s270 + $0xd8] sm:$0xff]
      %v10214 = vld [vmem:[%s270 + $0xe0] sm:$0xff]
      %v10215 = vld [vmem:[%s270 + $0xe8] sm:$0xff]
      %v10216 = vld [vmem:[%s270 + $0xf0] sm:$0xff]
      %v10217 = vld [vmem:[%s270 + $0xf8] sm:$0xff]
      %v10250 = vunpack.c.l.b16 %v10186
      %v10251 = vunpack.c.h.b16 %v10186
      %v10252 = vunpack.c.l.b16 %v10187
      %v10253 = vunpack.c.h.b16 %v10187
      %v10254 = vunpack.c.l.b16 %v10188
      %v10255 = vunpack.c.h.b16 %v10188
      %v10256 = vunpack.c.l.b16 %v10189
      %v10257 = vunpack.c.h.b16 %v10189
      %v10258 = vunpack.c.l.b16 %v10190
      %v10259 = vunpack.c.h.b16 %v10190
      %v10260 = vunpack.c.l.b16 %v10191
      %v10261 = vunpack.c.h.b16 %v10191
      %v10262 = vunpack.c.l.b16 %v10192
      %v10263 = vunpack.c.h.b16 %v10192
      %v10264 = vunpack.c.l.b16 %v10193
      %v10265 = vunpack.c.h.b16 %v10193
      %v10266 = vunpack.c.l.b16 %v10194
      %v10267 = vunpack.c.h.b16 %v10194
      %v10268 = vunpack.c.l.b16 %v10195
      %v10269 = vunpack.c.h.b16 %v10195
      %v10270 = vunpack.c.l.b16 %v10196
      %v10271 = vunpack.c.h.b16 %v10196
      %v10272 = vunpack.c.l.b16 %v10197
      %v10273 = vunpack.c.h.b16 %v10197
      %v10274 = vunpack.c.l.b16 %v10198
      %v10275 = vunpack.c.h.b16 %v10198
      %v10276 = vunpack.c.l.b16 %v10199
      %v10277 = vunpack.c.h.b16 %v10199
      %v10278 = vunpack.c.l.b16 %v10200
      %v10279 = vunpack.c.h.b16 %v10200
      %v10280 = vunpack.c.l.b16 %v10201
      %v10281 = vunpack.c.h.b16 %v10201
      %v10282 = vunpack.c.l.b16 %v10202
      %v10283 = vunpack.c.h.b16 %v10202
      %v10284 = vunpack.c.l.b16 %v10203
      %v10285 = vunpack.c.h.b16 %v10203
      %v10286 = vunpack.c.l.b16 %v10204
      %v10287 = vunpack.c.h.b16 %v10204
      %v10288 = vunpack.c.l.b16 %v10205
      %v10289 = vunpack.c.h.b16 %v10205
      %v10290 = vunpack.c.l.b16 %v10206
      %v10291 = vunpack.c.h.b16 %v10206
      %v10292 = vunpack.c.l.b16 %v10207
      %v10293 = vunpack.c.h.b16 %v10207
      %v10294 = vunpack.c.l.b16 %v10208
      %v10295 = vunpack.c.h.b16 %v10208
      %v10296 = vunpack.c.l.b16 %v10209
      %v10297 = vunpack.c.h.b16 %v10209
      %v10298 = vunpack.c.l.b16 %v10210
      %v10299 = vunpack.c.h.b16 %v10210
      %v10300 = vunpack.c.l.b16 %v10211
      %v10301 = vunpack.c.h.b16 %v10211
      %v10302 = vunpack.c.l.b16 %v10212
      %v10303 = vunpack.c.h.b16 %v10212
      %v10304 = vunpack.c.l.b16 %v10213
      %v10305 = vunpack.c.h.b16 %v10213
      %v10306 = vunpack.c.l.b16 %v10214
      %v10307 = vunpack.c.h.b16 %v10214
      %v10308 = vunpack.c.l.b16 %v10215
      %v10309 = vunpack.c.h.b16 %v10215
      %v10310 = vunpack.c.l.b16 %v10216
      %v10311 = vunpack.c.h.b16 %v10216
      %v10312 = vunpack.c.l.b16 %v10217
      %v10313 = vunpack.c.h.b16 %v10217
      %v10314 = vpack.c.b16 %v10258, %v10250
      %v10315 = vpack.c.b16 %v10259, %v10251
      %v10316 = vpack.c.b16 %v10260, %v10252
      %v10317 = vpack.c.b16 %v10261, %v10253
      %v10318 = vpack.c.b16 %v10262, %v10254
      %v10319 = vpack.c.b16 %v10263, %v10255
      %v10320 = vpack.c.b16 %v10264, %v10256
      %v10321 = vpack.c.b16 %v10265, %v10257
      %v10322 = vpack.c.b16 %v10274, %v10266
      %v10323 = vpack.c.b16 %v10275, %v10267
      %v10324 = vpack.c.b16 %v10276, %v10268
      %v10325 = vpack.c.b16 %v10277, %v10269
      %v10326 = vpack.c.b16 %v10278, %v10270
      %v10327 = vpack.c.b16 %v10279, %v10271
      %v10328 = vpack.c.b16 %v10280, %v10272
      %v10329 = vpack.c.b16 %v10281, %v10273
      %v10330 = vpack.c.b16 %v10290, %v10282
      %v10331 = vpack.c.b16 %v10291, %v10283
      %v10332 = vpack.c.b16 %v10292, %v10284
      %v10333 = vpack.c.b16 %v10293, %v10285
      %v10334 = vpack.c.b16 %v10294, %v10286
      %v10335 = vpack.c.b16 %v10295, %v10287
      %v10336 = vpack.c.b16 %v10296, %v10288
      %v10337 = vpack.c.b16 %v10297, %v10289
      %v10338 = vpack.c.b16 %v10306, %v10298
      %v10339 = vpack.c.b16 %v10307, %v10299
      %v10340 = vpack.c.b16 %v10308, %v10300
      %v10341 = vpack.c.b16 %v10309, %v10301
      %v10342 = vpack.c.b16 %v10310, %v10302
      %v10343 = vpack.c.b16 %v10311, %v10303
      %v10344 = vpack.c.b16 %v10312, %v10304
      %v10345 = vpack.c.b16 %v10313, %v10305
      %10378 = vmatprep.subr.bf16.mxu0 0
      %10379 = vmatpush1.bf16.msra.mxu0 %v10122
      %10380 = vmatprep.subr.bf16.mxu0 0
      %10381 = vmatpush1.bf16.msra.mxu0 %v10123
      %10382 = vmatprep.subr.bf16.mxu0 0
      %10383 = vmatpush1.bf16.msra.mxu0 %v10124
      %10384 = vmatprep.subr.bf16.mxu0 0
      %10385 = vmatpush1.bf16.msra.mxu0 %v10125
      %10386 = vmatprep.subr.bf16.mxu0 0
      %10387 = vmatpush1.bf16.msra.mxu0 %v10126
      %10388 = vmatprep.subr.bf16.mxu0 0
      %10389 = vmatpush1.bf16.msra.mxu0 %v10127
      %10390 = vmatprep.subr.bf16.mxu0 0
      %10391 = vmatpush1.bf16.msra.mxu0 %v10128
      %10392 = vmatprep.subr.bf16.mxu0 0
      %10393 = vmatpush1.bf16.msra.mxu0 %v10129
      %10394 = vmatprep.subr.bf16.mxu0 0
      %10395 = vmatpush1.bf16.msra.mxu0 %v10130
      %10396 = vmatprep.subr.bf16.mxu0 0
      %10397 = vmatpush1.bf16.msra.mxu0 %v10131
      %10398 = vmatprep.subr.bf16.mxu0 0
      %10399 = vmatpush1.bf16.msra.mxu0 %v10132
      %10400 = vmatprep.subr.bf16.mxu0 0
      %10401 = vmatpush1.bf16.msra.mxu0 %v10133
      %10402 = vmatprep.subr.bf16.mxu0 0
      %10403 = vmatpush1.bf16.msra.mxu0 %v10134
      %10404 = vmatprep.subr.bf16.mxu0 0
      %10405 = vmatpush1.bf16.msra.mxu0 %v10135
      %10406 = vmatprep.subr.bf16.mxu0 0
      %10407 = vmatpush1.bf16.msra.mxu0 %v10136
      %10408 = vmatprep.subr.bf16.mxu0 0
      %10409 = vmatpush1.bf16.msra.mxu0 %v10137
      %10410 = vmatprep.mubr.bf16.mxu0 %v10315
      %10411 = vmatmul.mubr.bf16.gmra.mrb[0].mxu0 %v10314
      %v10412 = vpop.f32.mrb[0].mxu0
      %v10413 = vadd.f32 0.0, %v10412
      %v10414 = vpop.f32.mrb[0].mxu0
      %v10415 = vpop.f32.mrb[0].mxu0
      %v10416 = vadd.f32 0.0, %v10415
      %v10417 = vpop.f32.mrb[0].mxu0
      %10418 = vmatprep.mubr.bf16.mxu0 %v10323
      %10419 = vmatmul.mubr.bf16.gmra.mrb[0].mxu0 %v10322
      %v10420 = vpop.f32.mrb[0].mxu0
      %v10421 = vadd.f32 0.0, %v10420
      %v10422 = vpop.f32.mrb[0].mxu0
      %v10423 = vpop.f32.mrb[0].mxu0
      %v10424 = vadd.f32 0.0, %v10423
      %v10425 = vpop.f32.mrb[0].mxu0
      %10426 = vmatprep.mubr.bf16.mxu0 %v10331
      %10427 = vmatmul.mubr.bf16.gmra.mrb[0].mxu0 %v10330
      %v10428 = vpop.f32.mrb[0].mxu0
      %v10429 = vadd.f32 0.0, %v10428
      %v10430 = vpop.f32.mrb[0].mxu0
      %v10431 = vpop.f32.mrb[0].mxu0
      %v10432 = vadd.f32 0.0, %v10431
      %v10433 = vpop.f32.mrb[0].mxu0
      %10434 = vmatprep.mubr.bf16.mxu0 %v10339
      %10435 = vmatmul.mubr.bf16.gmra.mrb[0].mxu0 %v10338
      %v10436 = vpop.f32.mrb[0].mxu0
      %v10437 = vadd.f32 0.0, %v10436
      %v10438 = vpop.f32.mrb[0].mxu0
      %v10439 = vpop.f32.mrb[0].mxu0
      %v10440 = vadd.f32 0.0, %v10439
      %v10441 = vpop.f32.mrb[0].mxu0
      %10442 = vdwg.mxu0
      %10443 = vmatprep.subr.bf16.mxu0 0
      %10444 = vmatpush1.bf16.msra.mxu0 %v10138
      %10445 = vmatprep.subr.bf16.mxu0 0
      %10446 = vmatpush1.bf16.msra.mxu0 %v10139
      %10447 = vmatprep.subr.bf16.mxu0 0
      %10448 = vmatpush1.bf16.msra.mxu0 %v10140
      %10449 = vmatprep.subr.bf16.mxu0 0
      %10450 = vmatpush1.bf16.msra.mxu0 %v10141
      %10451 = vmatprep.subr.bf16.mxu0 0
      %10452 = vmatpush1.bf16.msra.mxu0 %v10142
      %10453 = vmatprep.subr.bf16.mxu0 0
      %10454 = vmatpush1.bf16.msra.mxu0 %v10143
      %10455 = vmatprep.subr.bf16.mxu0 0
      %10456 = vmatpush1.bf16.msra.mxu0 %v10144
      %10457 = vmatprep.subr.bf16.mxu0 0
      %10458 = vmatpush1.bf16.msra.mxu0 %v10145
      %10459 = vmatprep.subr.bf16.mxu0 0
      %10460 = vmatpush1.bf16.msra.mxu0 %v10146
      %10461 = vmatprep.subr.bf16.mxu0 0
      %10462 = vmatpush1.bf16.msra.mxu0 %v10147
      %10463 = vmatprep.subr.bf16.mxu0 0
      %10464 = vmatpush1.bf16.msra.mxu0 %v10148
      %10465 = vmatprep.subr.bf16.mxu0 0
      %10466 = vmatpush1.bf16.msra.mxu0 %v10149
      %10467 = vmatprep.subr.bf16.mxu0 0
      %10468 = vmatpush1.bf16.msra.mxu0 %v10150
      %10469 = vmatprep.subr.bf16.mxu0 0
      %10470 = vmatpush1.bf16.msra.mxu0 %v10151
      %10471 = vmatprep.subr.bf16.mxu0 0
      %10472 = vmatpush1.bf16.msra.mxu0 %v10152
      %10473 = vmatprep.subr.bf16.mxu0 0
      %10474 = vmatpush1.bf16.msra.mxu0 %v10153
      %10475 = vmatprep.mubr.bf16.mxu0 %v10317
      %10476 = vmatmul.mubr.bf16.gmra.mrb[0].mxu0 %v10316
      %v10477 = vpop.f32.mrb[0].mxu0
      %v10478 = vadd.f32 %v10413, %v10477
      %v10479 = vpop.f32.mrb[0].mxu0
      %v10480 = vpop.f32.mrb[0].mxu0
      %v10481 = vadd.f32 %v10416, %v10480
      %v10482 = vpop.f32.mrb[0].mxu0
      %10483 = vmatprep.mubr.bf16.mxu0 %v10325
      %10484 = vmatmul.mubr.bf16.gmra.mrb[0].mxu0 %v10324
      %v10485 = vpop.f32.mrb[0].mxu0
      %v10486 = vadd.f32 %v10421, %v10485
      %v10487 = vpop.f32.mrb[0].mxu0
      %v10488 = vpop.f32.mrb[0].mxu0
      %v10489 = vadd.f32 %v10424, %v10488
      %v10490 = vpop.f32.mrb[0].mxu0
      %10491 = vmatprep.mubr.bf16.mxu0 %v10333
      %10492 = vmatmul.mubr.bf16.gmra.mrb[0].mxu0 %v10332
      %v10493 = vpop.f32.mrb[0].mxu0
      %v10494 = vadd.f32 %v10429, %v10493
      %v10495 = vpop.f32.mrb[0].mxu0
      %v10496 = vpop.f32.mrb[0].mxu0
      %v10497 = vadd.f32 %v10432, %v10496
      %v10498 = vpop.f32.mrb[0].mxu0
      %10499 = vmatprep.mubr.bf16.mxu0 %v10341
      %10500 = vmatmul.mubr.bf16.gmra.mrb[0].mxu0 %v10340
      %v10501 = vpop.f32.mrb[0].mxu0
      %v10502 = vadd.f32 %v10437, %v10501
      %v10503 = vpop.f32.mrb[0].mxu0
      %v10504 = vpop.f32.mrb[0].mxu0
      %v10505 = vadd.f32 %v10440, %v10504
      %v10506 = vpop.f32.mrb[0].mxu0
      %10507 = vdwg.mxu0
      %10508 = vmatprep.subr.bf16.mxu0 0
      %10509 = vmatpush1.bf16.msra.mxu0 %v10154
      %10510 = vmatprep.subr.bf16.mxu0 0
      %10511 = vmatpush1.bf16.msra.mxu0 %v10155
      %10512 = vmatprep.subr.bf16.mxu0 0
      %10513 = vmatpush1.bf16.msra.mxu0 %v10156
      %10514 = vmatprep.subr.bf16.mxu0 0
      %10515 = vmatpush1.bf16.msra.mxu0 %v10157
      %10516 = vmatprep.subr.bf16.mxu0 0
      %10517 = vmatpush1.bf16.msra.mxu0 %v10158
      %10518 = vmatprep.subr.bf16.mxu0 0
      %10519 = vmatpush1.bf16.msra.mxu0 %v10159
      %10520 = vmatprep.subr.bf16.mxu0 0
      %10521 = vmatpush1.bf16.msra.mxu0 %v10160
      %10522 = vmatprep.subr.bf16.mxu0 0
      %10523 = vmatpush1.bf16.msra.mxu0 %v10161
      %10524 = vmatprep.subr.bf16.mxu0 0
      %10525 = vmatpush1.bf16.msra.mxu0 %v10162
      %10526 = vmatprep.subr.bf16.mxu0 0
      %10527 = vmatpush1.bf16.msra.mxu0 %v10163
      %10528 = vmatprep.subr.bf16.mxu0 0
      %10529 = vmatpush1.bf16.msra.mxu0 %v10164
      %10530 = vmatprep.subr.bf16.mxu0 0
      %10531 = vmatpush1.bf16.msra.mxu0 %v10165
      %10532 = vmatprep.subr.bf16.mxu0 0
      %10533 = vmatpush1.bf16.msra.mxu0 %v10166
      %10534 = vmatprep.subr.bf16.mxu0 0
      %10535 = vmatpush1.bf16.msra.mxu0 %v10167
      %10536 = vmatprep.subr.bf16.mxu0 0
      %10537 = vmatpush1.bf16.msra.mxu0 %v10168
      %10538 = vmatprep.subr.bf16.mxu0 0
      %10539 = vmatpush1.bf16.msra.mxu0 %v10169
      %10540 = vmatprep.mubr.bf16.mxu0 %v10319
      %10541 = vmatmul.mubr.bf16.gmra.mrb[0].mxu0 %v10318
      %v10542 = vpop.f32.mrb[0].mxu0
      %v10543 = vadd.f32 %v10478, %v10542
      %v10544 = vpop.f32.mrb[0].mxu0
      %v10545 = vpop.f32.mrb[0].mxu0
      %v10546 = vadd.f32 %v10481, %v10545
      %v10547 = vpop.f32.mrb[0].mxu0
      %10548 = vmatprep.mubr.bf16.mxu0 %v10327
      %10549 = vmatmul.mubr.bf16.gmra.mrb[0].mxu0 %v10326
      %v10550 = vpop.f32.mrb[0].mxu0
      %v10551 = vadd.f32 %v10486, %v10550
      %v10552 = vpop.f32.mrb[0].mxu0
      %v10553 = vpop.f32.mrb[0].mxu0
      %v10554 = vadd.f32 %v10489, %v10553
      %v10555 = vpop.f32.mrb[0].mxu0
      %10556 = vmatprep.mubr.bf16.mxu0 %v10335
      %10557 = vmatmul.mubr.bf16.gmra.mrb[0].mxu0 %v10334
      %v10558 = vpop.f32.mrb[0].mxu0
      %v10559 = vadd.f32 %v10494, %v10558
      %v10560 = vpop.f32.mrb[0].mxu0
      %v10561 = vpop.f32.mrb[0].mxu0
      %v10562 = vadd.f32 %v10497, %v10561
      %v10563 = vpop.f32.mrb[0].mxu0
      %10564 = vmatprep.mubr.bf16.mxu0 %v10343
      %10565 = vmatmul.mubr.bf16.gmra.mrb[0].mxu0 %v10342
      %v10566 = vpop.f32.mrb[0].mxu0
      %v10567 = vadd.f32 %v10502, %v10566
      %v10568 = vpop.f32.mrb[0].mxu0
      %v10569 = vpop.f32.mrb[0].mxu0
      %v10570 = vadd.f32 %v10505, %v10569
      %v10571 = vpop.f32.mrb[0].mxu0
      %10572 = vdwg.mxu0
      %10573 = vmatprep.subr.bf16.mxu0 0
      %10574 = vmatpush1.bf16.msra.mxu0 %v10170
      %10575 = vmatprep.subr.bf16.mxu0 0
      %10576 = vmatpush1.bf16.msra.mxu0 %v10171
      %10577 = vmatprep.subr.bf16.mxu0 0
      %10578 = vmatpush1.bf16.msra.mxu0 %v10172
      %10579 = vmatprep.subr.bf16.mxu0 0
      %10580 = vmatpush1.bf16.msra.mxu0 %v10173
      %10581 = vmatprep.subr.bf16.mxu0 0
      %10582 = vmatpush1.bf16.msra.mxu0 %v10174
      %10583 = vmatprep.subr.bf16.mxu0 0
      %10584 = vmatpush1.bf16.msra.mxu0 %v10175
      %10585 = vmatprep.subr.bf16.mxu0 0
      %10586 = vmatpush1.bf16.msra.mxu0 %v10176
      %10587 = vmatprep.subr.bf16.mxu0 0
      %10588 = vmatpush1.bf16.msra.mxu0 %v10177
      %10589 = vmatprep.subr.bf16.mxu0 0
      %10590 = vmatpush1.bf16.msra.mxu0 %v10178
      %10591 = vmatprep.subr.bf16.mxu0 0
      %10592 = vmatpush1.bf16.msra.mxu0 %v10179
      %10593 = vmatprep.subr.bf16.mxu0 0
      %10594 = vmatpush1.bf16.msra.mxu0 %v10180
      %10595 = vmatprep.subr.bf16.mxu0 0
      %10596 = vmatpush1.bf16.msra.mxu0 %v10181
      %10597 = vmatprep.subr.bf16.mxu0 0
      %10598 = vmatpush1.bf16.msra.mxu0 %v10182
      %10599 = vmatprep.subr.bf16.mxu0 0
      %10600 = vmatpush1.bf16.msra.mxu0 %v10183
      %10601 = vmatprep.subr.bf16.mxu0 0
      %10602 = vmatpush1.bf16.msra.mxu0 %v10184
      %10603 = vmatprep.subr.bf16.mxu0 0
      %10604 = vmatpush1.bf16.msra.mxu0 %v10185
      %10605 = vmatprep.mubr.bf16.mxu0 %v10321
      %10606 = vmatmul.mubr.bf16.gmra.mrb[0].mxu0 %v10320
      %v10607 = vpop.f32.mrb[0].mxu0
      %v10608 = vadd.f32 %v10543, %v10607
      %v10609 = vpop.f32.mrb[0].mxu0
      %v10610 = vpop.f32.mrb[0].mxu0
      %v10611 = vadd.f32 %v10546, %v10610
      %v10612 = vpop.f32.mrb[0].mxu0
      %10613 = vmatprep.mubr.bf16.mxu0 %v10329
      %10614 = vmatmul.mubr.bf16.gmra.mrb[0].mxu0 %v10328
      %v10615 = vpop.f32.mrb[0].mxu0
      %v10616 = vadd.f32 %v10551, %v10615
      %v10617 = vpop.f32.mrb[0].mxu0
      %v10618 = vpop.f32.mrb[0].mxu0
      %v10619 = vadd.f32 %v10554, %v10618
      %v10620 = vpop.f32.mrb[0].mxu0
      %10621 = vmatprep.mubr.bf16.mxu0 %v10337
      %10622 = vmatmul.mubr.bf16.gmra.mrb[0].mxu0 %v10336
      %v10623 = vpop.f32.mrb[0].mxu0
      %v10624 = vadd.f32 %v10559, %v10623
      %v10625 = vpop.f32.mrb[0].mxu0
      %v10626 = vpop.f32.mrb[0].mxu0
      %v10627 = vadd.f32 %v10562, %v10626
      %v10628 = vpop.f32.mrb[0].mxu0
      %10629 = vmatprep.mubr.bf16.mxu0 %v10345
      %10630 = vmatmul.mubr.bf16.gmra.mrb[0].mxu0 %v10344
      %v10631 = vpop.f32.mrb[0].mxu0
      %v10632 = vadd.f32 %v10567, %v10631
      %v10633 = vpop.f32.mrb[0].mxu0
      %v10634 = vpop.f32.mrb[0].mxu0
      %v10635 = vadd.f32 %v10570, %v10634
      %v10636 = vpop.f32.mrb[0].mxu0
      %10637 = vdwg.mxu0
      %v10638 = vpack.c.bf16 %v10611, %v10608
      %v10639 = vpack.c.bf16 %v10619, %v10616
      %v10640 = vpack.c.bf16 %v10627, %v10624
      %v10641 = vpack.c.bf16 %v10635, %v10632
      %v10642 = vlaneseq
      %v10643 = vshrl.u32 %v10642, 7
      %v10644 = vsub.s32 0, %v10643
      %v10645 = vrot.slane %v291, %v10644
      %v10650 = vunpack.c.l.b16 %v285
      %v10651 = vunpack.c.l.b16 %v286
      %v10652 = vunpack.c.l.b16 %v287
      %v10653 = vunpack.c.l.b16 %v288
      %v10654 = vpack.c.b16 %v10651, %v10650
      %v10655 = vpack.c.b16 %v10653, %v10652
      %v10659 = vsel %vm7008, %v10638, 0
      %v10662 = vsel %vm7008, %v10639, 0
      %v10665 = vsel %vm7008, %v10640, 0
      %v10668 = vsel %vm7008, %v10641, 0
      %10670 = vmatprep.subr.bf16.mxu0 0
      %10671 = vmatpush1.bf16.msra.mxu0 %v10654
      %10672 = vmatprep.subr.bf16.mxu0 0
      %10673 = vmatpush1.bf16.msra.mxu0 %v10655
      %10674 = vmatprep.subr.bf16.mxu0 0
      %10675 = vmatpush1.bf16.msra.mxu0 0
      %10676 = vmatprep.subr.bf16.mxu0 0
      %10677 = vmatpush1.bf16.msra.mxu0 0
      %10678 = vmatprep.subr.bf16.mxu0 0
      %10679 = vmatpush1.bf16.msra.mxu0 0
      %10680 = vmatprep.subr.bf16.mxu0 0
      %10681 = vmatpush1.bf16.msra.mxu0 0
      %10682 = vmatprep.subr.bf16.mxu0 0
      %10683 = vmatpush1.bf16.msra.mxu0 0
      %10684 = vmatprep.subr.bf16.mxu0 0
      %10685 = vmatpush1.bf16.msra.mxu0 0
      %10686 = vmatprep.subr.bf16.mxu0 0
      %10687 = vmatpush1.bf16.msra.mxu0 0
      %10688 = vmatprep.subr.bf16.mxu0 0
      %10689 = vmatpush1.bf16.msra.mxu0 0
      %10690 = vmatprep.subr.bf16.mxu0 0
      %10691 = vmatpush1.bf16.msra.mxu0 0
      %10692 = vmatprep.subr.bf16.mxu0 0
      %10693 = vmatpush1.bf16.msra.mxu0 0
      %10694 = vmatprep.subr.bf16.mxu0 0
      %10695 = vmatpush1.bf16.msra.mxu0 0
      %10696 = vmatprep.subr.bf16.mxu0 0
      %10697 = vmatpush1.bf16.msra.mxu0 0
      %10698 = vmatprep.subr.bf16.mxu0 0
      %10699 = vmatpush1.bf16.msra.mxu0 0
      %10700 = vmatprep.subr.bf16.mxu0 0
      %10701 = vmatpush1.bf16.msra.mxu0 0
      %10702 = vmatprep.mubr.bf16.mxu0 0
      %10703 = vmatmul.mubr.bf16.gmra.mrb[0].mxu0 %v10659
      %v10704 = vpop.f32.mrb[0].mxu0
      %v10705 = vadd.f32 %v10645, %v10704
      %v10706 = vpop.f32.mrb[0].mxu0
      %v10707 = vpop.f32.mrb[0].mxu0
      %v10708 = vadd.f32 %v10645, %v10707
      %v10709 = vpop.f32.mrb[0].mxu0
      %10710 = vmatprep.mubr.bf16.mxu0 0
      %10711 = vmatmul.mubr.bf16.gmra.mrb[0].mxu0 %v10662
      %v10712 = vpop.f32.mrb[0].mxu0
      %v10713 = vadd.f32 %v10645, %v10712
      %v10714 = vpop.f32.mrb[0].mxu0
      %v10715 = vpop.f32.mrb[0].mxu0
      %v10716 = vadd.f32 %v10645, %v10715
      %v10717 = vpop.f32.mrb[0].mxu0
      %10718 = vmatprep.mubr.bf16.mxu0 0
      %10719 = vmatmul.mubr.bf16.gmra.mrb[0].mxu0 %v10665
      %v10720 = vpop.f32.mrb[0].mxu0
      %v10721 = vadd.f32 %v10645, %v10720
      %v10722 = vpop.f32.mrb[0].mxu0
      %v10723 = vpop.f32.mrb[0].mxu0
      %v10724 = vadd.f32 %v10645, %v10723
      %v10725 = vpop.f32.mrb[0].mxu0
      %10726 = vmatprep.mubr.bf16.mxu0 0
      %10727 = vmatmul.mubr.bf16.gmra.mrb[0].mxu0 %v10668
      %v10728 = vpop.f32.mrb[0].mxu0
      %v10729 = vadd.f32 %v10645, %v10728
      %v10730 = vpop.f32.mrb[0].mxu0
      %v10731 = vpop.f32.mrb[0].mxu0
      %v10732 = vadd.f32 %v10645, %v10731
      %v10733 = vpop.f32.mrb[0].mxu0
      %10734 = vdwg.mxu0
      %v10735 = vsel %vm7008, %v10705, -inf
      %10736 = vmax.xlane.f32.xlu0 %v10735
      %v10737 = vpop.xlane.xlu0 %10736
      %v10738 = vsel %vm7008, %v10708, -inf
      %10739 = vmax.xlane.f32.xlu0 %v10738
      %v10740 = vpop.xlane.xlu0 %10739
      %v10741 = vsel %vm7008, %v10713, -inf
      %10742 = vmax.xlane.f32.xlu0 %v10741
      %v10743 = vpop.xlane.xlu0 %10742
      %v10744 = vsel %vm7008, %v10716, -inf
      %10745 = vmax.xlane.f32.xlu0 %v10744
      %v10746 = vpop.xlane.xlu0 %10745
      %v10747 = vsel %vm7008, %v10721, -inf
      %10748 = vmax.xlane.f32.xlu0 %v10747
      %v10749 = vpop.xlane.xlu0 %10748
      %v10750 = vsel %vm7008, %v10724, -inf
      %10751 = vmax.xlane.f32.xlu0 %v10750
      %v10752 = vpop.xlane.xlu0 %10751
      %v10753 = vsel %vm7008, %v10729, -inf
      %10754 = vmax.xlane.f32.xlu0 %v10753
      %v10755 = vpop.xlane.xlu0 %10754
      %v10756 = vsel %vm7008, %v10732, -inf
      %10757 = vmax.xlane.f32.xlu0 %v10756
      %v10758 = vpop.xlane.xlu0 %10757
      %v10759 = vsub.f32 %v10705, %v10737
      %v10760 = vsub.f32 %v10708, %v10740
      %v10761 = vsub.f32 %v10713, %v10743
      %v10762 = vsub.f32 %v10716, %v10746
      %v10763 = vsub.f32 %v10721, %v10749
      %v10764 = vsub.f32 %v10724, %v10752
      %v10765 = vsub.f32 %v10729, %v10755
      %v10766 = vsub.f32 %v10732, %v10758
      %v10767 = vmul.f32 %v10759, 1.442695
      %v10768 = vpow.pop %v10767
      %v10769 = vmul.f32 %v10760, 1.442695
      %v10770 = vpow.pop %v10769
      %v10771 = vmul.f32 %v10761, 1.442695
      %v10772 = vpow.pop %v10771
      %v10773 = vmul.f32 %v10762, 1.442695
      %v10774 = vpow.pop %v10773
      %v10775 = vmul.f32 %v10763, 1.442695
      %v10776 = vpow.pop %v10775
      %v10777 = vmul.f32 %v10764, 1.442695
      %v10778 = vpow.pop %v10777
      %v10779 = vmul.f32 %v10765, 1.442695
      %v10780 = vpow.pop %v10779
      %v10781 = vmul.f32 %v10766, 1.442695
      %v10782 = vpow.pop %v10781
      %v10783 = vsel %vm7008, %v10768, 0.0
      %10784 = vadd.xlane.f32.xlu0 %v10783
      %v10785 = vpop.xlane.xlu0 %10784
      %v10786 = vsel %vm7008, %v10770, 0.0
      %10787 = vadd.xlane.f32.xlu0 %v10786
      %v10788 = vpop.xlane.xlu0 %10787
      %v10789 = vsel %vm7008, %v10772, 0.0
      %10790 = vadd.xlane.f32.xlu0 %v10789
      %v10791 = vpop.xlane.xlu0 %10790
      %v10792 = vsel %vm7008, %v10774, 0.0
      %10793 = vadd.xlane.f32.xlu0 %v10792
      %v10794 = vpop.xlane.xlu0 %10793
      %v10795 = vsel %vm7008, %v10776, 0.0
      %10796 = vadd.xlane.f32.xlu0 %v10795
      %v10797 = vpop.xlane.xlu0 %10796
      %v10798 = vsel %vm7008, %v10778, 0.0
      %10799 = vadd.xlane.f32.xlu0 %v10798
      %v10800 = vpop.xlane.xlu0 %10799
      %v10801 = vsel %vm7008, %v10780, 0.0
      %10802 = vadd.xlane.f32.xlu0 %v10801
      %v10803 = vpop.xlane.xlu0 %10802
      %v10804 = vsel %vm7008, %v10782, 0.0
      %10805 = vadd.xlane.f32.xlu0 %v10804
      %v10806 = vpop.xlane.xlu0 %10805
      %v10807 = vrcp.pop %v10785
      %v10808 = vrcp.pop %v10788
      %v10809 = vrcp.pop %v10791
      %v10810 = vrcp.pop %v10794
      %v10811 = vrcp.pop %v10797
      %v10812 = vrcp.pop %v10800
      %v10813 = vrcp.pop %v10803
      %v10814 = vrcp.pop %v10806
      %v10815 = vmul.f32 %v10768, %v10807
      %v10816 = vmul.f32 %v10770, %v10808
      %v10817 = vmul.f32 %v10772, %v10809
      %v10818 = vmul.f32 %v10774, %v10810
      %v10819 = vmul.f32 %v10776, %v10811
      %v10820 = vmul.f32 %v10778, %v10812
      %v10821 = vmul.f32 %v10780, %v10813
      %v10822 = vmul.f32 %v10782, %v10814
      %10823 = vst.msk [vmem:[%s276] sm:$0xff] %vm7008, %v10815
      %10824 = vst.msk [vmem:[%s276 + $0x8] sm:$0xff] %vm7008, %v10816
      %10825 = vst.msk [vmem:[%s276 + $0x10] sm:$0xff] %vm7008, %v10817
      %10826 = vst.msk [vmem:[%s276 + $0x18] sm:$0xff] %vm7008, %v10818
      %10827 = vst.msk [vmem:[%s276 + $0x20] sm:$0xff] %vm7008, %v10819
      %10828 = vst.msk [vmem:[%s276 + $0x28] sm:$0xff] %vm7008, %v10820
      %10829 = vst.msk [vmem:[%s276 + $0x30] sm:$0xff] %vm7008, %v10821
      %10830 = vst.msk [vmem:[%s276 + $0x38] sm:$0xff] %vm7008, %v10822
      %s10831 = smul.u32 8, %s16
      %p10832 = scmp.lt.s32.totalorder %s10831, 15
      %s10833 = scalar_select %p10832, %s10831, 15
      %s10834 = smul.addr %s10833, 8
      %s10835 = scalar_lea.vmem %s5, %s10834
      // Predicated region
      $region41: #{gcnflat_forward.1} parent=39 // pred_check
        %p10836 = pneg %p154
      $region42: #{gcnflat_forward.1} parent=39 // pred_check_branch
        %10838 = sbr.rel (%p10836) target = $region44
      $region43: #{gcnflat_forward.1} parent=39 // pred_region
        %s10839 = smul.u32 8, %s16
      $region44: #{gcnflat_forward.1} parent=39 // pred_fallthru
        _
    $region40: #{gcnflat_forward.1} parent=5 // pred_fallthru
      _
    %p10840 = scmp.le.s32.totalorder 2, %s11
    // Predicated region
    $region45: #{gcnflat_forward.1} parent=5 // pred_check
      %p10841 = pneg %p10840
    $region46: #{gcnflat_forward.1} parent=5 // pred_check_branch
      %10843 = sbr.rel (%p10841) target = $region48
    $region47: #{gcnflat_forward.1} parent=5 // pred_region
      %s10844 = ssub.s32 %s11, 2
      // Predicated region
      $region49: #{gcnflat_forward.1} parent=47 // pred_check
        %p10845 = pneg %p160
      $region50: #{gcnflat_forward.1} parent=47 // pred_check_branch
        %10847 = sbr.rel (%p10845) target = $region52
      $region51: #{gcnflat_forward.1} parent=47 // pred_region
        %s10848 = smul.u32 8, %s17
        %p10849 = scmp.lt.s32.totalorder %s10848, 15
        %s10850 = scalar_select %p10849, %s10848, 15
        %s10851 = smul.addr %s10850, 8
        %s10852 = scalar_lea.vmem %s5, %s10851
      $region52: #{gcnflat_forward.1} parent=47 // pred_fallthru
        _
    $region48: #{gcnflat_forward.1} parent=5 // pred_fallthru
      _
  $region6: #{gcnflat_forward.1} parent=0 // loop_footer
    %s15 = sadd.s32 1, %s11
  $region7: #{gcnflat_forward.1} parent=0 // loop_footer_branch
    %10 = sbr.rel target = $region3
  $region8: #{gcnflat_forward.1} parent=0 // loop_exit
    _

</llo_original>
